<compile_context>
chip_gen: v7x
topology: tpu7x:2x2x1
jax: 0.10.0
libtpu: 0.0.40
codegen_flags: <defaults>
</compile_context>

<pallas_src>
import functools

import jax
import jax.numpy as jnp
from jax.experimental import pallas as pl
from jax.experimental.pallas import tpu as pltpu


def _round_up(x, m):
    return (x + m - 1) // m * m


# ---------------------------------------------------------------------------
# Fused Pallas kernel: whole network for one batch tile of Nb samples.
# ---------------------------------------------------------------------------

def _fused_net_kernel(p1_ref, w1_ref, b1_ref, w2_ref, b2_ref,
                      w3_ref, b3_ref, w4_ref, b4_ref, w5_ref, b5_ref,
                      fw1_ref, fb1_ref, fw2_ref, fb2_ref, fw3_ref, fb3_ref,
                      o_ref, *, block_batch):
    f32 = jnp.float32
    bf16 = jnp.bfloat16
    nb = block_batch

    # ---- conv1 (11x11, s4, p2) as one im2col matmul ------------------------
    # (nb*49, 384) @ (384, 64) -> (nb*49, 64), K zero-padded 363 -> 384.
    h1 = jnp.dot(p1_ref[...], w1_ref[...], preferred_element_type=f32)
    h1 = h1.reshape(nb, 7, 7, 64)

    # ---- maxpool1 3x3 s2 (7x7 -> 3x3): pure VPU jnp.maximum chains ---------
    # then +bias, ReLU (exact reorder).
    slab = [[h1[:, i, j, :] for j in range(7)] for i in range(7)]   # (nb,64)
    b1 = b1_ref[...]                                                # (1, 64)
    pieces = []
    for po in range(3):
        for pw in range(3):
            m = slab[2 * po][2 * pw]
            for dh in range(3):
                for dw in range(3):
                    if dh == 0 and dw == 0:
                        continue
                    m = jnp.maximum(m, slab[2 * po + dh][2 * pw + dw])
            pieces.append(jnp.maximum(m + b1, 0.0))
    # Flatten pooled map in (ih, iw, cin) order -> matches unfolded W2 rows.
    x2 = jnp.concatenate(pieces, axis=-1).astype(bf16)              # (nb, 576)

    # ---- conv2 (5x5, p2 on 3x3 map) folded into one dense matmul -----------
    # (nb, 576) @ (576, 9*256) -> (nb, 2304); each spatial group of 256
    # columns is 128-lane aligned (channels 192..255 are zero padding).
    h2 = jnp.dot(x2, w2_ref[...], preferred_element_type=f32)

    # ---- maxpool2 3x3 s2 on the 3x3 map == max over all 9 positions --------
    m2 = h2[:, 0:256]
    for i in range(1, 9):
        m2 = jnp.maximum(m2, h2[:, i * 256:(i + 1) * 256])
    a2 = jnp.maximum(m2 + b2_ref[...], 0.0)                         # (nb, 256)

    # ---- conv3/4/5: 3x3 pad-1 on 1x1 maps == centre-tap matmuls ------------
    a3 = jnp.maximum(jnp.dot(a2.astype(bf16), w3_ref[...],
                             preferred_element_type=f32) + b3_ref[...], 0.0)
    a4 = jnp.maximum(jnp.dot(a3.astype(bf16), w4_ref[...],
                             preferred_element_type=f32) + b4_ref[...], 0.0)
    a5 = jnp.maximum(jnp.dot(a4.astype(bf16), w5_ref[...],
                             preferred_element_type=f32) + b5_ref[...], 0.0)

    # ---- classifier ---------------------------------------------------------
    # TODO(synk): nn.Dropout(p=0.5) omitted (inference / eval mode).
    z = jnp.maximum(jnp.dot(a5.astype(bf16), fw1_ref[...],
                            preferred_element_type=f32) + fb1_ref[...], 0.0)
    z = jnp.maximum(jnp.dot(z.astype(bf16), fw2_ref[...],
                            preferred_element_type=f32) + fb2_ref[...], 0.0)
    z = jnp.dot(z.astype(bf16), fw3_ref[...], preferred_element_type=f32)
    o_ref[...] = z + fb3_ref[...]                                   # (nb, 128)


# ---------------------------------------------------------------------------
# Wrapper: one-time weight preprocessing + conv1 im2col + gridded pallas_call.
# ---------------------------------------------------------------------------

def prepare_params(p):
    """One-time parameter transformation (pure layout work, done once)."""
    bf16 = jnp.bfloat16
    f32 = jnp.float32

    # Geometry-specific rewrites: assert the exact AlexNet-for-32x32 shapes.
    assert p["conv1_w"].shape[:2] == (11, 11) and p["conv1_w"].shape[3] == 64
    assert p["conv2_w"].shape == (5, 5, 64, 192)
    assert p["conv3_w"].shape == (3, 3, 192, 384)
    assert p["conv4_w"].shape == (3, 3, 384, 256)
    assert p["conv5_w"].shape == (3, 3, 256, 256)
    assert p["fc1_w"].shape == (256, 256) and p["fc2_w"].shape == (256, 256)
    assert p["fc3_w"].shape[0] == 256

    cin = p["conv1_w"].shape[2]
    k1 = 11 * 11 * cin
    k1_pad = _round_up(k1, 128)
    # conv1: (11,11,cin,64) -> (k1_pad, 64), rows flatten (kh, kw, cin).
    w1 = p["conv1_w"].reshape(k1, 64)
    w1 = jnp.pad(w1, ((0, k1_pad - k1), (0, 0)))

    # conv2: unfold (5,5,64,192) into a dense Toeplitz matrix so the whole
    # padded conv becomes one matmul:  W2[(ih,iw,ci),(oh,ow,co)] =
    # w2[ih-oh+2, iw-ow+2, ci, co]  (always in range for a 3x3 map, pad 2).
    # Output channels are zero-padded 192 -> 256 per spatial group so that
    # the maxpool2 slices in the kernel are 128-lane aligned.
    w2 = p["conv2_w"]
    idx = jnp.arange(3)
    k = idx[:, None] - idx[None, :] + 2                  # k[i, o] = i - o + 2
    W2 = w2[k[:, None, :, None], k[None, :, None, :]]    # (ih,iw,oh,ow,ci,co)
    W2 = jnp.transpose(W2, (0, 1, 4, 2, 3, 5))           # (ih,iw,ci,oh,ow,co)
    W2 = jnp.pad(W2, ((0, 0),) * 5 + ((0, 64),))         # co: 192 -> 256
    W2 = W2.reshape(9 * 64, 9 * 256)                     # (576, 2304)
    b2 = jnp.pad(p["conv2_b"], (0, 64))                  # (256,), pads = 0

    # conv3/4/5: 1x1 spatial input + zero pad => only the centre tap matters.
    w3 = jnp.pad(p["conv3_w"][1, 1], ((0, 64), (0, 0)))  # (256, 384), pad rows 0
    w4 = p["conv4_w"][1, 1]                              # (384, 256)
    w5 = p["conv5_w"][1, 1]                              # (256, 256)

    # classifier: pad final layer to 128 lane-dense output columns.
    nc = p["fc3_w"].shape[1]
    nc_pad = _round_up(max(nc, 128), 128)
    fw3 = jnp.pad(p["fc3_w"], ((0, 0), (0, nc_pad - nc)))
    fb3 = jnp.pad(p["fc3_b"], (0, nc_pad - nc))

    def b(v):
        return v.reshape(1, -1).astype(f32)

    return {
        "w1": w1.astype(bf16), "b1": b(p["conv1_b"]),
        "w2": W2.astype(bf16), "b2": b(b2),
        "w3": w3.astype(bf16), "b3": b(p["conv3_b"]),
        "w4": w4.astype(bf16), "b4": b(p["conv4_b"]),
        "w5": w5.astype(bf16), "b5": b(p["conv5_b"]),
        "fw1": p["fc1_w"].astype(bf16), "fb1": b(p["fc1_b"]),
        "fw2": p["fc2_w"].astype(bf16), "fb2": b(p["fc2_b"]),
        "fw3": fw3.astype(bf16), "fb3": b(fb3),
    }


def net_forward(x_nchw, prep, *, num_classes=10, block_batch=128):
    """Forward pass matching Net.forward (eval mode). x_nchw: (N, C, 32, 32).

    block_batch: batch tile per grid step.  Suggested: ~128 on v5e,
    256-512 on v6e, ~256 on v7x (64 MiB VMEM).
    """
    assert x_nchw.shape[2] == 32 and x_nchw.shape[3] == 32, \
        "kernel's algebraic rewrites are specific to 32x32 inputs"

    x = jnp.transpose(x_nchw, (0, 2, 3, 1)).astype(jnp.float32)     # NHWC
    n = x.shape[0]
    cin = x.shape[-1]

    # Batch tiling: Nb multiple of 8 (sublanes); pad N up to a multiple of Nb.
    nb = _round_up(min(block_batch, _round_up(n, 8)), 8)
    n_pad = _round_up(n, nb)
    if n_pad != n:
        x = jnp.pad(x, ((0, n_pad - n), (0, 0), (0, 0), (0, 0)))

    # conv1 im2col in the wrapper (layout plumbing): (n_pad, 36, 36, cin) ->
    # (n_pad*49, k1_pad) patch matrix, columns ordered (kh, kw, cin), K padded
    # to a multiple of 128.
    xp = jnp.pad(x, ((0, 0), (2, 2), (2, 2), (0, 0)))               # 36x36
    cols = []
    for kh in range(11):
        for kw in range(11):
            cols.append(xp[:, kh:kh + 25:4, kw:kw + 25:4, :])       # (n,7,7,cin)
    k1 = 11 * 11 * cin
    k1_pad = _round_up(k1, 128)
    patches = jnp.concatenate(cols, axis=-1).reshape(n_pad * 49, k1)
    patches = jnp.pad(patches, ((0, 0), (0, k1_pad - k1))).astype(jnp.bfloat16)

    weight_args = (prep["w1"], prep["b1"], prep["w2"], prep["b2"],
                   prep["w3"], prep["b3"], prep["w4"], prep["b4"],
                   prep["w5"], prep["b5"],
                   prep["fw1"], prep["fb1"], prep["fw2"], prep["fb2"],
                   prep["fw3"], prep["fb3"])
    nc_pad = prep["fw3"].shape[1]

    # Grid over batch tiles; weights use constant index_maps (resident).
    def const_spec(arr):
        return pl.BlockSpec(arr.shape, lambda i: (0, 0))

    in_specs = [pl.BlockSpec((nb * 49, k1_pad), lambda i: (i, 0))]
    in_specs += [const_spec(w) for w in weight_args]
    out_specs = pl.BlockSpec((nb, nc_pad), lambda i: (i, 0))

    # Advisory cost estimate (helps XLA overlap the wrapper-side im2col).
    flops = 2 * n_pad * (
        49 * k1_pad * 64            # conv1
        + 576 * 2304                # conv2 (Toeplitz, padded cout)
        + 256 * 384 + 384 * 256 + 256 * 256   # conv3/4/5
        + 256 * 256 + 256 * 256 + 256 * nc_pad)  # fc1/2/3
    bytes_accessed = (n_pad * 49 * k1_pad * 2
                      + sum(int(w.size) * w.dtype.itemsize for w in weight_args)
                      + n_pad * nc_pad * 4)

    kern = functools.partial(_fused_net_kernel, block_batch=nb)
    out = pl.pallas_call(
        kern,
        grid=(n_pad // nb,),
        in_specs=in_specs,
        out_specs=out_specs,
        out_shape=jax.ShapeDtypeStruct((n_pad, nc_pad), jnp.float32),
        compiler_params=pltpu.CompilerParams(
            dimension_semantics=("parallel",),      # megacore on v7x
            vmem_limit_bytes=48 * 1024 * 1024,      # > v5e 16MiB / v6e-v7x 32MiB defaults
        ),
        cost_estimate=pl.CostEstimate(flops=flops, transcendentals=0,
                                      bytes_accessed=bytes_accessed),
    )(patches, *weight_args)

    return out[:n, :num_classes]


# ---------------------------------------------------------------------------
# Pure-JAX reference (f32) for a sanity check.
# ---------------------------------------------------------------------------

def net_forward_ref(x_nchw, p):
    x = jnp.transpose(x_nchw, (0, 2, 3, 1)).astype(jnp.float32)

    def conv(x, w, b, stride, pad):
        y = jax.lax.conv_general_dilated(
            x, w, (stride, stride), [(pad, pad), (pad, pad)],
            dimension_numbers=("NHWC", "HWIO", "NHWC"))
        return jnp.maximum(y + b, 0.0)

    def pool(x):
        return jax.lax.reduce_window(x, -jnp.inf, jax.lax.max,
                                     (1, 3, 3, 1), (1, 2, 2, 1), "VALID")

    x = pool(conv(x, p["conv1_w"], p["conv1_b"], 4, 2))
    x = pool(conv(x, p["conv2_w"], p["conv2_b"], 1, 2))
    x = conv(x, p["conv3_w"], p["conv3_b"], 1, 1)
    x = conv(x, p["conv4_w"], p["conv4_b"], 1, 1)
    x = conv(x, p["conv5_w"], p["conv5_b"], 1, 1)
    x = x.reshape(x.shape[0], -1)
    x = jnp.maximum(x @ p["fc1_w"] + p["fc1_b"], 0.0)
    x = jnp.maximum(x @ p["fc2_w"] + p["fc2_b"], 0.0)
    return x @ p["fc3_w"] + p["fc3_b"]


# ---------------------------------------------------------------------------
# Parameter init (deterministic, synthetic)
# ---------------------------------------------------------------------------

def init_params(key, channels_in=3, num_classes=10):
    ks = jax.random.split(key, 16)

    def rnd(k, shape, scale=0.05):
        return jax.random.normal(k, shape, jnp.float32) * scale

    return {
        "conv1_w": rnd(ks[0], (11, 11, channels_in, 64)),
        "conv1_b": rnd(ks[1], (64,)),
        "conv2_w": rnd(ks[2], (5, 5, 64, 192)),
        "conv2_b": rnd(ks[3], (192,)),
        "conv3_w": rnd(ks[4], (3, 3, 192, 384)),
        "conv3_b": rnd(ks[5], (384,)),
        "conv4_w": rnd(ks[6], (3, 3, 384, 256)),
        "conv4_b": rnd(ks[7], (256,)),
        "conv5_w": rnd(ks[8], (3, 3, 256, 256)),
        "conv5_b": rnd(ks[9], (256,)),
        "fc1_w": rnd(ks[10], (256, 256)),
        "fc1_b": rnd(ks[11], (256,)),
        "fc2_w": rnd(ks[12], (256, 256)),
        "fc2_b": rnd(ks[13], (256,)),
        "fc3_w": rnd(ks[14], (256, num_classes)),
        "fc3_b": rnd(ks[15], (num_classes,)),
    }


if __name__ == "__main__":
    key = jax.random.PRNGKey(0)
    k_x, k_p = jax.random.split(key)
    # 32x32 input -> features end at 1x1x256, matching features_out = 256*1*1.
    x = jax.random.normal(k_x, (2, 3, 32, 32), jnp.float32)
    params = init_params(k_p, channels_in=3, num_classes=10)

    prep = prepare_params(params)                    # one-time weight prep
    fwd = jax.jit(functools.partial(net_forward, num_classes=10,
                                    block_batch=128))
    out = jax.block_until_ready(fwd(x, prep))

    assert out.shape == (2, 10), out.shape
    assert out.dtype == jnp.float32

    # Sanity-check against the f32 XLA reference (bf16 MXU operands -> loose tol).
    ref = jax.block_until_ready(jax.jit(net_forward_ref)(x, params))
    err = float(jnp.max(jnp.abs(out - ref)))
    tol = 5e-2 * (1.0 + float(jnp.max(jnp.abs(ref))))
    assert err < tol, (err, tol)

    print("KERNEL_OK")
</pallas_src>

<mosaic_0001>
module attributes {stable_mosaic.version = 11 : i64} {
  func.func @_fused_net_kernel(%arg0: i32, %arg1: memref<392x384xbf16, #tpu.memory_space<vmem>>, %arg2: memref<384x64xbf16, #tpu.memory_space<vmem>>, %arg3: memref<1x64xf32, #tpu.memory_space<vmem>>, %arg4: memref<576x2304xbf16, #tpu.memory_space<vmem>>, %arg5: memref<1x256xf32, #tpu.memory_space<vmem>>, %arg6: memref<256x384xbf16, #tpu.memory_space<vmem>>, %arg7: memref<1x384xf32, #tpu.memory_space<vmem>>, %arg8: memref<384x256xbf16, #tpu.memory_space<vmem>>, %arg9: memref<1x256xf32, #tpu.memory_space<vmem>>, %arg10: memref<256x256xbf16, #tpu.memory_space<vmem>>, %arg11: memref<1x256xf32, #tpu.memory_space<vmem>>, %arg12: memref<256x256xbf16, #tpu.memory_space<vmem>>, %arg13: memref<1x256xf32, #tpu.memory_space<vmem>>, %arg14: memref<256x256xbf16, #tpu.memory_space<vmem>>, %arg15: memref<1x256xf32, #tpu.memory_space<vmem>>, %arg16: memref<256x128xbf16, #tpu.memory_space<vmem>>, %arg17: memref<1x128xf32, #tpu.memory_space<vmem>>, %arg18: memref<8x128xf32, #tpu.memory_space<vmem>>) attributes {dimension_semantics = [#tpu.dimension_semantics<parallel>], iteration_bounds = array<i64: 1>, scalar_prefetch = 0 : i64, scratch_operands = 0 : i64, tpu.core_type = #tpu.core_type<tc>, window_params = [{transform_indices = @transform_0, window_bounds = array<i64: 392, 384>}, {pipeline_mode = #tpu.pipeline_mode<synchronous>, transform_indices = @transform_1, window_bounds = array<i64: 384, 64>}, {pipeline_mode = #tpu.pipeline_mode<synchronous>, transform_indices = @transform_2, window_bounds = array<i64: 1, 64>}, {pipeline_mode = #tpu.pipeline_mode<synchronous>, transform_indices = @transform_3, window_bounds = array<i64: 576, 2304>}, {pipeline_mode = #tpu.pipeline_mode<synchronous>, transform_indices = @transform_4, window_bounds = array<i64: 1, 256>}, {pipeline_mode = #tpu.pipeline_mode<synchronous>, transform_indices = @transform_5, window_bounds = array<i64: 256, 384>}, {pipeline_mode = #tpu.pipeline_mode<synchronous>, transform_indices = @transform_6, window_bounds = array<i64: 1, 384>}, {pipeline_mode = #tpu.pipeline_mode<synchronous>, transform_indices = @transform_7, window_bounds = array<i64: 384, 256>}, {pipeline_mode = #tpu.pipeline_mode<synchronous>, transform_indices = @transform_8, window_bounds = array<i64: 1, 256>}, {pipeline_mode = #tpu.pipeline_mode<synchronous>, transform_indices = @transform_9, window_bounds = array<i64: 256, 256>}, {pipeline_mode = #tpu.pipeline_mode<synchronous>, transform_indices = @transform_10, window_bounds = array<i64: 1, 256>}, {pipeline_mode = #tpu.pipeline_mode<synchronous>, transform_indices = @transform_11, window_bounds = array<i64: 256, 256>}, {pipeline_mode = #tpu.pipeline_mode<synchronous>, transform_indices = @transform_12, window_bounds = array<i64: 1, 256>}, {pipeline_mode = #tpu.pipeline_mode<synchronous>, transform_indices = @transform_13, window_bounds = array<i64: 256, 256>}, {pipeline_mode = #tpu.pipeline_mode<synchronous>, transform_indices = @transform_14, window_bounds = array<i64: 1, 256>}, {pipeline_mode = #tpu.pipeline_mode<synchronous>, transform_indices = @transform_15, window_bounds = array<i64: 256, 128>}, {pipeline_mode = #tpu.pipeline_mode<synchronous>, transform_indices = @transform_16, window_bounds = array<i64: 1, 128>}, {transform_indices = @transform_17, window_bounds = array<i64: 8, 128>}]} {
    %c0 = arith.constant 0 : index
    %c0_0 = arith.constant 0 : index
    %0 = vector.load %arg1[%c0, %c0_0] : memref<392x384xbf16, #tpu.memory_space<vmem>>, vector<392x384xbf16>
    %c0_1 = arith.constant 0 : index
    %c0_2 = arith.constant 0 : index
    %1 = vector.load %arg2[%c0_1, %c0_2] : memref<384x64xbf16, #tpu.memory_space<vmem>>, vector<384x64xbf16>
    %cst = arith.constant dense<0.000000e+00> : vector<392x64xf32>
    %2 = tpu.matmul %0, %1, %cst {dimension_numbers = #tpu.dot_dimension_numbers<[1], [0], [0], [1], [0, 0, 1, 1], [], []>} : vector<392x384xbf16>, vector<384x64xbf16>, vector<392x64xf32> -> vector<392x64xf32>
    %3 = vector.shape_cast %2 : vector<392x64xf32> to vector<8x7x7x64xf32>
    %4 = vector.extract_strided_slice %3 {offsets = [0, 0, 0, 0], sizes = [8, 1, 1, 64], strides = [1, 1, 1, 1]} : vector<8x7x7x64xf32> to vector<8x1x1x64xf32>
    %5 = vector.shape_cast %4 : vector<8x1x1x64xf32> to vector<8x64xf32>
    %6 = vector.extract_strided_slice %3 {offsets = [0, 0, 1, 0], sizes = [8, 1, 1, 64], strides = [1, 1, 1, 1]} : vector<8x7x7x64xf32> to vector<8x1x1x64xf32>
    %7 = vector.shape_cast %6 : vector<8x1x1x64xf32> to vector<8x64xf32>
    %8 = vector.extract_strided_slice %3 {offsets = [0, 0, 2, 0], sizes = [8, 1, 1, 64], strides = [1, 1, 1, 1]} : vector<8x7x7x64xf32> to vector<8x1x1x64xf32>
    %9 = vector.shape_cast %8 : vector<8x1x1x64xf32> to vector<8x64xf32>
    %10 = vector.extract_strided_slice %3 {offsets = [0, 0, 3, 0], sizes = [8, 1, 1, 64], strides = [1, 1, 1, 1]} : vector<8x7x7x64xf32> to vector<8x1x1x64xf32>
    %11 = vector.shape_cast %10 : vector<8x1x1x64xf32> to vector<8x64xf32>
    %12 = vector.extract_strided_slice %3 {offsets = [0, 0, 4, 0], sizes = [8, 1, 1, 64], strides = [1, 1, 1, 1]} : vector<8x7x7x64xf32> to vector<8x1x1x64xf32>
    %13 = vector.shape_cast %12 : vector<8x1x1x64xf32> to vector<8x64xf32>
    %14 = vector.extract_strided_slice %3 {offsets = [0, 0, 5, 0], sizes = [8, 1, 1, 64], strides = [1, 1, 1, 1]} : vector<8x7x7x64xf32> to vector<8x1x1x64xf32>
    %15 = vector.shape_cast %14 : vector<8x1x1x64xf32> to vector<8x64xf32>
    %16 = vector.extract_strided_slice %3 {offsets = [0, 0, 6, 0], sizes = [8, 1, 1, 64], strides = [1, 1, 1, 1]} : vector<8x7x7x64xf32> to vector<8x1x1x64xf32>
    %17 = vector.shape_cast %16 : vector<8x1x1x64xf32> to vector<8x64xf32>
    %18 = vector.extract_strided_slice %3 {offsets = [0, 1, 0, 0], sizes = [8, 1, 1, 64], strides = [1, 1, 1, 1]} : vector<8x7x7x64xf32> to vector<8x1x1x64xf32>
    %19 = vector.shape_cast %18 : vector<8x1x1x64xf32> to vector<8x64xf32>
    %20 = vector.extract_strided_slice %3 {offsets = [0, 1, 1, 0], sizes = [8, 1, 1, 64], strides = [1, 1, 1, 1]} : vector<8x7x7x64xf32> to vector<8x1x1x64xf32>
    %21 = vector.shape_cast %20 : vector<8x1x1x64xf32> to vector<8x64xf32>
    %22 = vector.extract_strided_slice %3 {offsets = [0, 1, 2, 0], sizes = [8, 1, 1, 64], strides = [1, 1, 1, 1]} : vector<8x7x7x64xf32> to vector<8x1x1x64xf32>
    %23 = vector.shape_cast %22 : vector<8x1x1x64xf32> to vector<8x64xf32>
    %24 = vector.extract_strided_slice %3 {offsets = [0, 1, 3, 0], sizes = [8, 1, 1, 64], strides = [1, 1, 1, 1]} : vector<8x7x7x64xf32> to vector<8x1x1x64xf32>
    %25 = vector.shape_cast %24 : vector<8x1x1x64xf32> to vector<8x64xf32>
    %26 = vector.extract_strided_slice %3 {offsets = [0, 1, 4, 0], sizes = [8, 1, 1, 64], strides = [1, 1, 1, 1]} : vector<8x7x7x64xf32> to vector<8x1x1x64xf32>
    %27 = vector.shape_cast %26 : vector<8x1x1x64xf32> to vector<8x64xf32>
    %28 = vector.extract_strided_slice %3 {offsets = [0, 1, 5, 0], sizes = [8, 1, 1, 64], strides = [1, 1, 1, 1]} : vector<8x7x7x64xf32> to vector<8x1x1x64xf32>
    %29 = vector.shape_cast %28 : vector<8x1x1x64xf32> to vector<8x64xf32>
    %30 = vector.extract_strided_slice %3 {offsets = [0, 1, 6, 0], sizes = [8, 1, 1, 64], strides = [1, 1, 1, 1]} : vector<8x7x7x64xf32> to vector<8x1x1x64xf32>
    %31 = vector.shape_cast %30 : vector<8x1x1x64xf32> to vector<8x64xf32>
    %32 = vector.extract_strided_slice %3 {offsets = [0, 2, 0, 0], sizes = [8, 1, 1, 64], strides = [1, 1, 1, 1]} : vector<8x7x7x64xf32> to vector<8x1x1x64xf32>
    %33 = vector.shape_cast %32 : vector<8x1x1x64xf32> to vector<8x64xf32>
    %34 = vector.extract_strided_slice %3 {offsets = [0, 2, 1, 0], sizes = [8, 1, 1, 64], strides = [1, 1, 1, 1]} : vector<8x7x7x64xf32> to vector<8x1x1x64xf32>
    %35 = vector.shape_cast %34 : vector<8x1x1x64xf32> to vector<8x64xf32>
    %36 = vector.extract_strided_slice %3 {offsets = [0, 2, 2, 0], sizes = [8, 1, 1, 64], strides = [1, 1, 1, 1]} : vector<8x7x7x64xf32> to vector<8x1x1x64xf32>
    %37 = vector.shape_cast %36 : vector<8x1x1x64xf32> to vector<8x64xf32>
    %38 = vector.extract_strided_slice %3 {offsets = [0, 2, 3, 0], sizes = [8, 1, 1, 64], strides = [1, 1, 1, 1]} : vector<8x7x7x64xf32> to vector<8x1x1x64xf32>
    %39 = vector.shape_cast %38 : vector<8x1x1x64xf32> to vector<8x64xf32>
    %40 = vector.extract_strided_slice %3 {offsets = [0, 2, 4, 0], sizes = [8, 1, 1, 64], strides = [1, 1, 1, 1]} : vector<8x7x7x64xf32> to vector<8x1x1x64xf32>
    %41 = vector.shape_cast %40 : vector<8x1x1x64xf32> to vector<8x64xf32>
    %42 = vector.extract_strided_slice %3 {offsets = [0, 2, 5, 0], sizes = [8, 1, 1, 64], strides = [1, 1, 1, 1]} : vector<8x7x7x64xf32> to vector<8x1x1x64xf32>
    %43 = vector.shape_cast %42 : vector<8x1x1x64xf32> to vector<8x64xf32>
    %44 = vector.extract_strided_slice %3 {offsets = [0, 2, 6, 0], sizes = [8, 1, 1, 64], strides = [1, 1, 1, 1]} : vector<8x7x7x64xf32> to vector<8x1x1x64xf32>
    %45 = vector.shape_cast %44 : vector<8x1x1x64xf32> to vector<8x64xf32>
    %46 = vector.extract_strided_slice %3 {offsets = [0, 3, 0, 0], sizes = [8, 1, 1, 64], strides = [1, 1, 1, 1]} : vector<8x7x7x64xf32> to vector<8x1x1x64xf32>
    %47 = vector.shape_cast %46 : vector<8x1x1x64xf32> to vector<8x64xf32>
    %48 = vector.extract_strided_slice %3 {offsets = [0, 3, 1, 0], sizes = [8, 1, 1, 64], strides = [1, 1, 1, 1]} : vector<8x7x7x64xf32> to vector<8x1x1x64xf32>
    %49 = vector.shape_cast %48 : vector<8x1x1x64xf32> to vector<8x64xf32>
    %50 = vector.extract_strided_slice %3 {offsets = [0, 3, 2, 0], sizes = [8, 1, 1, 64], strides = [1, 1, 1, 1]} : vector<8x7x7x64xf32> to vector<8x1x1x64xf32>
    %51 = vector.shape_cast %50 : vector<8x1x1x64xf32> to vector<8x64xf32>
    %52 = vector.extract_strided_slice %3 {offsets = [0, 3, 3, 0], sizes = [8, 1, 1, 64], strides = [1, 1, 1, 1]} : vector<8x7x7x64xf32> to vector<8x1x1x64xf32>
    %53 = vector.shape_cast %52 : vector<8x1x1x64xf32> to vector<8x64xf32>
    %54 = vector.extract_strided_slice %3 {offsets = [0, 3, 4, 0], sizes = [8, 1, 1, 64], strides = [1, 1, 1, 1]} : vector<8x7x7x64xf32> to vector<8x1x1x64xf32>
    %55 = vector.shape_cast %54 : vector<8x1x1x64xf32> to vector<8x64xf32>
    %56 = vector.extract_strided_slice %3 {offsets = [0, 3, 5, 0], sizes = [8, 1, 1, 64], strides = [1, 1, 1, 1]} : vector<8x7x7x64xf32> to vector<8x1x1x64xf32>
    %57 = vector.shape_cast %56 : vector<8x1x1x64xf32> to vector<8x64xf32>
    %58 = vector.extract_strided_slice %3 {offsets = [0, 3, 6, 0], sizes = [8, 1, 1, 64], strides = [1, 1, 1, 1]} : vector<8x7x7x64xf32> to vector<8x1x1x64xf32>
    %59 = vector.shape_cast %58 : vector<8x1x1x64xf32> to vector<8x64xf32>
    %60 = vector.extract_strided_slice %3 {offsets = [0, 4, 0, 0], sizes = [8, 1, 1, 64], strides = [1, 1, 1, 1]} : vector<8x7x7x64xf32> to vector<8x1x1x64xf32>
    %61 = vector.shape_cast %60 : vector<8x1x1x64xf32> to vector<8x64xf32>
    %62 = vector.extract_strided_slice %3 {offsets = [0, 4, 1, 0], sizes = [8, 1, 1, 64], strides = [1, 1, 1, 1]} : vector<8x7x7x64xf32> to vector<8x1x1x64xf32>
    %63 = vector.shape_cast %62 : vector<8x1x1x64xf32> to vector<8x64xf32>
    %64 = vector.extract_strided_slice %3 {offsets = [0, 4, 2, 0], sizes = [8, 1, 1, 64], strides = [1, 1, 1, 1]} : vector<8x7x7x64xf32> to vector<8x1x1x64xf32>
    %65 = vector.shape_cast %64 : vector<8x1x1x64xf32> to vector<8x64xf32>
    %66 = vector.extract_strided_slice %3 {offsets = [0, 4, 3, 0], sizes = [8, 1, 1, 64], strides = [1, 1, 1, 1]} : vector<8x7x7x64xf32> to vector<8x1x1x64xf32>
    %67 = vector.shape_cast %66 : vector<8x1x1x64xf32> to vector<8x64xf32>
    %68 = vector.extract_strided_slice %3 {offsets = [0, 4, 4, 0], sizes = [8, 1, 1, 64], strides = [1, 1, 1, 1]} : vector<8x7x7x64xf32> to vector<8x1x1x64xf32>
    %69 = vector.shape_cast %68 : vector<8x1x1x64xf32> to vector<8x64xf32>
    %70 = vector.extract_strided_slice %3 {offsets = [0, 4, 5, 0], sizes = [8, 1, 1, 64], strides = [1, 1, 1, 1]} : vector<8x7x7x64xf32> to vector<8x1x1x64xf32>
    %71 = vector.shape_cast %70 : vector<8x1x1x64xf32> to vector<8x64xf32>
    %72 = vector.extract_strided_slice %3 {offsets = [0, 4, 6, 0], sizes = [8, 1, 1, 64], strides = [1, 1, 1, 1]} : vector<8x7x7x64xf32> to vector<8x1x1x64xf32>
    %73 = vector.shape_cast %72 : vector<8x1x1x64xf32> to vector<8x64xf32>
    %74 = vector.extract_strided_slice %3 {offsets = [0, 5, 0, 0], sizes = [8, 1, 1, 64], strides = [1, 1, 1, 1]} : vector<8x7x7x64xf32> to vector<8x1x1x64xf32>
    %75 = vector.shape_cast %74 : vector<8x1x1x64xf32> to vector<8x64xf32>
    %76 = vector.extract_strided_slice %3 {offsets = [0, 5, 1, 0], sizes = [8, 1, 1, 64], strides = [1, 1, 1, 1]} : vector<8x7x7x64xf32> to vector<8x1x1x64xf32>
    %77 = vector.shape_cast %76 : vector<8x1x1x64xf32> to vector<8x64xf32>
    %78 = vector.extract_strided_slice %3 {offsets = [0, 5, 2, 0], sizes = [8, 1, 1, 64], strides = [1, 1, 1, 1]} : vector<8x7x7x64xf32> to vector<8x1x1x64xf32>
    %79 = vector.shape_cast %78 : vector<8x1x1x64xf32> to vector<8x64xf32>
    %80 = vector.extract_strided_slice %3 {offsets = [0, 5, 3, 0], sizes = [8, 1, 1, 64], strides = [1, 1, 1, 1]} : vector<8x7x7x64xf32> to vector<8x1x1x64xf32>
    %81 = vector.shape_cast %80 : vector<8x1x1x64xf32> to vector<8x64xf32>
    %82 = vector.extract_strided_slice %3 {offsets = [0, 5, 4, 0], sizes = [8, 1, 1, 64], strides = [1, 1, 1, 1]} : vector<8x7x7x64xf32> to vector<8x1x1x64xf32>
    %83 = vector.shape_cast %82 : vector<8x1x1x64xf32> to vector<8x64xf32>
    %84 = vector.extract_strided_slice %3 {offsets = [0, 5, 5, 0], sizes = [8, 1, 1, 64], strides = [1, 1, 1, 1]} : vector<8x7x7x64xf32> to vector<8x1x1x64xf32>
    %85 = vector.shape_cast %84 : vector<8x1x1x64xf32> to vector<8x64xf32>
    %86 = vector.extract_strided_slice %3 {offsets = [0, 5, 6, 0], sizes = [8, 1, 1, 64], strides = [1, 1, 1, 1]} : vector<8x7x7x64xf32> to vector<8x1x1x64xf32>
    %87 = vector.shape_cast %86 : vector<8x1x1x64xf32> to vector<8x64xf32>
    %88 = vector.extract_strided_slice %3 {offsets = [0, 6, 0, 0], sizes = [8, 1, 1, 64], strides = [1, 1, 1, 1]} : vector<8x7x7x64xf32> to vector<8x1x1x64xf32>
    %89 = vector.shape_cast %88 : vector<8x1x1x64xf32> to vector<8x64xf32>
    %90 = vector.extract_strided_slice %3 {offsets = [0, 6, 1, 0], sizes = [8, 1, 1, 64], strides = [1, 1, 1, 1]} : vector<8x7x7x64xf32> to vector<8x1x1x64xf32>
    %91 = vector.shape_cast %90 : vector<8x1x1x64xf32> to vector<8x64xf32>
    %92 = vector.extract_strided_slice %3 {offsets = [0, 6, 2, 0], sizes = [8, 1, 1, 64], strides = [1, 1, 1, 1]} : vector<8x7x7x64xf32> to vector<8x1x1x64xf32>
    %93 = vector.shape_cast %92 : vector<8x1x1x64xf32> to vector<8x64xf32>
    %94 = vector.extract_strided_slice %3 {offsets = [0, 6, 3, 0], sizes = [8, 1, 1, 64], strides = [1, 1, 1, 1]} : vector<8x7x7x64xf32> to vector<8x1x1x64xf32>
    %95 = vector.shape_cast %94 : vector<8x1x1x64xf32> to vector<8x64xf32>
    %96 = vector.extract_strided_slice %3 {offsets = [0, 6, 4, 0], sizes = [8, 1, 1, 64], strides = [1, 1, 1, 1]} : vector<8x7x7x64xf32> to vector<8x1x1x64xf32>
    %97 = vector.shape_cast %96 : vector<8x1x1x64xf32> to vector<8x64xf32>
    %98 = vector.extract_strided_slice %3 {offsets = [0, 6, 5, 0], sizes = [8, 1, 1, 64], strides = [1, 1, 1, 1]} : vector<8x7x7x64xf32> to vector<8x1x1x64xf32>
    %99 = vector.shape_cast %98 : vector<8x1x1x64xf32> to vector<8x64xf32>
    %100 = vector.extract_strided_slice %3 {offsets = [0, 6, 6, 0], sizes = [8, 1, 1, 64], strides = [1, 1, 1, 1]} : vector<8x7x7x64xf32> to vector<8x1x1x64xf32>
    %101 = vector.shape_cast %100 : vector<8x1x1x64xf32> to vector<8x64xf32>
    %c0_3 = arith.constant 0 : index
    %c0_4 = arith.constant 0 : index
    %102 = vector.load %arg3[%c0_3, %c0_4] : memref<1x64xf32, #tpu.memory_space<vmem>>, vector<1x64xf32>
    %103 = arith.maximumf %5, %7 : vector<8x64xf32>
    %104 = arith.maximumf %103, %9 : vector<8x64xf32>
    %105 = arith.maximumf %104, %19 : vector<8x64xf32>
    %106 = arith.maximumf %105, %21 : vector<8x64xf32>
    %107 = arith.maximumf %106, %23 : vector<8x64xf32>
    %108 = arith.maximumf %107, %33 : vector<8x64xf32>
    %109 = arith.maximumf %108, %35 : vector<8x64xf32>
    %110 = arith.maximumf %109, %37 : vector<8x64xf32>
    %111 = vector.broadcast %102 : vector<1x64xf32> to vector<8x64xf32>
    %112 = arith.addf %110, %111 : vector<8x64xf32>
    %cst_5 = arith.constant 0.000000e+00 : f32
    %113 = vector.broadcast %cst_5 : f32 to vector<8x64xf32>
    %114 = arith.maximumf %112, %113 : vector<8x64xf32>
    %115 = arith.maximumf %9, %11 : vector<8x64xf32>
    %116 = arith.maximumf %115, %13 : vector<8x64xf32>
    %117 = arith.maximumf %116, %23 : vector<8x64xf32>
    %118 = arith.maximumf %117, %25 : vector<8x64xf32>
    %119 = arith.maximumf %118, %27 : vector<8x64xf32>
    %120 = arith.maximumf %119, %37 : vector<8x64xf32>
    %121 = arith.maximumf %120, %39 : vector<8x64xf32>
    %122 = arith.maximumf %121, %41 : vector<8x64xf32>
    %123 = vector.broadcast %102 : vector<1x64xf32> to vector<8x64xf32>
    %124 = arith.addf %122, %123 : vector<8x64xf32>
    %cst_6 = arith.constant 0.000000e+00 : f32
    %125 = vector.broadcast %cst_6 : f32 to vector<8x64xf32>
    %126 = arith.maximumf %124, %125 : vector<8x64xf32>
    %127 = arith.maximumf %13, %15 : vector<8x64xf32>
    %128 = arith.maximumf %127, %17 : vector<8x64xf32>
    %129 = arith.maximumf %128, %27 : vector<8x64xf32>
    %130 = arith.maximumf %129, %29 : vector<8x64xf32>
    %131 = arith.maximumf %130, %31 : vector<8x64xf32>
    %132 = arith.maximumf %131, %41 : vector<8x64xf32>
    %133 = arith.maximumf %132, %43 : vector<8x64xf32>
    %134 = arith.maximumf %133, %45 : vector<8x64xf32>
    %135 = vector.broadcast %102 : vector<1x64xf32> to vector<8x64xf32>
    %136 = arith.addf %134, %135 : vector<8x64xf32>
    %cst_7 = arith.constant 0.000000e+00 : f32
    %137 = vector.broadcast %cst_7 : f32 to vector<8x64xf32>
    %138 = arith.maximumf %136, %137 : vector<8x64xf32>
    %139 = arith.maximumf %33, %35 : vector<8x64xf32>
    %140 = arith.maximumf %139, %37 : vector<8x64xf32>
    %141 = arith.maximumf %140, %47 : vector<8x64xf32>
    %142 = arith.maximumf %141, %49 : vector<8x64xf32>
    %143 = arith.maximumf %142, %51 : vector<8x64xf32>
    %144 = arith.maximumf %143, %61 : vector<8x64xf32>
    %145 = arith.maximumf %144, %63 : vector<8x64xf32>
    %146 = arith.maximumf %145, %65 : vector<8x64xf32>
    %147 = vector.broadcast %102 : vector<1x64xf32> to vector<8x64xf32>
    %148 = arith.addf %146, %147 : vector<8x64xf32>
    %cst_8 = arith.constant 0.000000e+00 : f32
    %149 = vector.broadcast %cst_8 : f32 to vector<8x64xf32>
    %150 = arith.maximumf %148, %149 : vector<8x64xf32>
    %151 = arith.maximumf %37, %39 : vector<8x64xf32>
    %152 = arith.maximumf %151, %41 : vector<8x64xf32>
    %153 = arith.maximumf %152, %51 : vector<8x64xf32>
    %154 = arith.maximumf %153, %53 : vector<8x64xf32>
    %155 = arith.maximumf %154, %55 : vector<8x64xf32>
    %156 = arith.maximumf %155, %65 : vector<8x64xf32>
    %157 = arith.maximumf %156, %67 : vector<8x64xf32>
    %158 = arith.maximumf %157, %69 : vector<8x64xf32>
    %159 = vector.broadcast %102 : vector<1x64xf32> to vector<8x64xf32>
    %160 = arith.addf %158, %159 : vector<8x64xf32>
    %cst_9 = arith.constant 0.000000e+00 : f32
    %161 = vector.broadcast %cst_9 : f32 to vector<8x64xf32>
    %162 = arith.maximumf %160, %161 : vector<8x64xf32>
    %163 = arith.maximumf %41, %43 : vector<8x64xf32>
    %164 = arith.maximumf %163, %45 : vector<8x64xf32>
    %165 = arith.maximumf %164, %55 : vector<8x64xf32>
    %166 = arith.maximumf %165, %57 : vector<8x64xf32>
    %167 = arith.maximumf %166, %59 : vector<8x64xf32>
    %168 = arith.maximumf %167, %69 : vector<8x64xf32>
    %169 = arith.maximumf %168, %71 : vector<8x64xf32>
    %170 = arith.maximumf %169, %73 : vector<8x64xf32>
    %171 = vector.broadcast %102 : vector<1x64xf32> to vector<8x64xf32>
    %172 = arith.addf %170, %171 : vector<8x64xf32>
    %cst_10 = arith.constant 0.000000e+00 : f32
    %173 = vector.broadcast %cst_10 : f32 to vector<8x64xf32>
    %174 = arith.maximumf %172, %173 : vector<8x64xf32>
    %175 = arith.maximumf %61, %63 : vector<8x64xf32>
    %176 = arith.maximumf %175, %65 : vector<8x64xf32>
    %177 = arith.maximumf %176, %75 : vector<8x64xf32>
    %178 = arith.maximumf %177, %77 : vector<8x64xf32>
    %179 = arith.maximumf %178, %79 : vector<8x64xf32>
    %180 = arith.maximumf %179, %89 : vector<8x64xf32>
    %181 = arith.maximumf %180, %91 : vector<8x64xf32>
    %182 = arith.maximumf %181, %93 : vector<8x64xf32>
    %183 = vector.broadcast %102 : vector<1x64xf32> to vector<8x64xf32>
    %184 = arith.addf %182, %183 : vector<8x64xf32>
    %cst_11 = arith.constant 0.000000e+00 : f32
    %185 = vector.broadcast %cst_11 : f32 to vector<8x64xf32>
    %186 = arith.maximumf %184, %185 : vector<8x64xf32>
    %187 = arith.maximumf %65, %67 : vector<8x64xf32>
    %188 = arith.maximumf %187, %69 : vector<8x64xf32>
    %189 = arith.maximumf %188, %79 : vector<8x64xf32>
    %190 = arith.maximumf %189, %81 : vector<8x64xf32>
    %191 = arith.maximumf %190, %83 : vector<8x64xf32>
    %192 = arith.maximumf %191, %93 : vector<8x64xf32>
    %193 = arith.maximumf %192, %95 : vector<8x64xf32>
    %194 = arith.maximumf %193, %97 : vector<8x64xf32>
    %195 = vector.broadcast %102 : vector<1x64xf32> to vector<8x64xf32>
    %196 = arith.addf %194, %195 : vector<8x64xf32>
    %cst_12 = arith.constant 0.000000e+00 : f32
    %197 = vector.broadcast %cst_12 : f32 to vector<8x64xf32>
    %198 = arith.maximumf %196, %197 : vector<8x64xf32>
    %199 = arith.maximumf %69, %71 : vector<8x64xf32>
    %200 = arith.maximumf %199, %73 : vector<8x64xf32>
    %201 = arith.maximumf %200, %83 : vector<8x64xf32>
    %202 = arith.maximumf %201, %85 : vector<8x64xf32>
    %203 = arith.maximumf %202, %87 : vector<8x64xf32>
    %204 = arith.maximumf %203, %97 : vector<8x64xf32>
    %205 = arith.maximumf %204, %99 : vector<8x64xf32>
    %206 = arith.maximumf %205, %101 : vector<8x64xf32>
    %207 = vector.broadcast %102 : vector<1x64xf32> to vector<8x64xf32>
    %208 = arith.addf %206, %207 : vector<8x64xf32>
    %cst_13 = arith.constant 0.000000e+00 : f32
    %209 = vector.broadcast %cst_13 : f32 to vector<8x64xf32>
    %210 = arith.maximumf %208, %209 : vector<8x64xf32>
    %211 = tpu.concatenate %114, %126, %138, %150, %162, %174, %186, %198, %210 in 1 : vector<8x64xf32>, vector<8x64xf32>, vector<8x64xf32>, vector<8x64xf32>, vector<8x64xf32>, vector<8x64xf32>, vector<8x64xf32>, vector<8x64xf32>, vector<8x64xf32> -> vector<8x576xf32>
    %212 = arith.truncf %211 : vector<8x576xf32> to vector<8x576xbf16>
    %c0_14 = arith.constant 0 : index
    %c0_15 = arith.constant 0 : index
    %213 = vector.load %arg4[%c0_14, %c0_15] : memref<576x2304xbf16, #tpu.memory_space<vmem>>, vector<576x2304xbf16>
    %cst_16 = arith.constant dense<0.000000e+00> : vector<8x2304xf32>
    %214 = tpu.matmul %212, %213, %cst_16 {dimension_numbers = #tpu.dot_dimension_numbers<[1], [0], [0], [1], [0, 0, 1, 1], [], []>} : vector<8x576xbf16>, vector<576x2304xbf16>, vector<8x2304xf32> -> vector<8x2304xf32>
    %215 = vector.extract_strided_slice %214 {offsets = [0, 0], sizes = [8, 256], strides = [1, 1]} : vector<8x2304xf32> to vector<8x256xf32>
    %216 = vector.extract_strided_slice %214 {offsets = [0, 256], sizes = [8, 256], strides = [1, 1]} : vector<8x2304xf32> to vector<8x256xf32>
    %217 = arith.maximumf %215, %216 : vector<8x256xf32>
    %218 = vector.extract_strided_slice %214 {offsets = [0, 512], sizes = [8, 256], strides = [1, 1]} : vector<8x2304xf32> to vector<8x256xf32>
    %219 = arith.maximumf %217, %218 : vector<8x256xf32>
    %220 = vector.extract_strided_slice %214 {offsets = [0, 768], sizes = [8, 256], strides = [1, 1]} : vector<8x2304xf32> to vector<8x256xf32>
    %221 = arith.maximumf %219, %220 : vector<8x256xf32>
    %222 = vector.extract_strided_slice %214 {offsets = [0, 1024], sizes = [8, 256], strides = [1, 1]} : vector<8x2304xf32> to vector<8x256xf32>
    %223 = arith.maximumf %221, %222 : vector<8x256xf32>
    %224 = vector.extract_strided_slice %214 {offsets = [0, 1280], sizes = [8, 256], strides = [1, 1]} : vector<8x2304xf32> to vector<8x256xf32>
    %225 = arith.maximumf %223, %224 : vector<8x256xf32>
    %226 = vector.extract_strided_slice %214 {offsets = [0, 1536], sizes = [8, 256], strides = [1, 1]} : vector<8x2304xf32> to vector<8x256xf32>
    %227 = arith.maximumf %225, %226 : vector<8x256xf32>
    %228 = vector.extract_strided_slice %214 {offsets = [0, 1792], sizes = [8, 256], strides = [1, 1]} : vector<8x2304xf32> to vector<8x256xf32>
    %229 = arith.maximumf %227, %228 : vector<8x256xf32>
    %230 = vector.extract_strided_slice %214 {offsets = [0, 2048], sizes = [8, 256], strides = [1, 1]} : vector<8x2304xf32> to vector<8x256xf32>
    %231 = arith.maximumf %229, %230 : vector<8x256xf32>
    %c0_17 = arith.constant 0 : index
    %c0_18 = arith.constant 0 : index
    %232 = vector.load %arg5[%c0_17, %c0_18] : memref<1x256xf32, #tpu.memory_space<vmem>>, vector<1x256xf32>
    %233 = vector.broadcast %232 : vector<1x256xf32> to vector<8x256xf32>
    %234 = arith.addf %231, %233 : vector<8x256xf32>
    %cst_19 = arith.constant 0.000000e+00 : f32
    %235 = vector.broadcast %cst_19 : f32 to vector<8x256xf32>
    %236 = arith.maximumf %234, %235 : vector<8x256xf32>
    %237 = arith.truncf %236 : vector<8x256xf32> to vector<8x256xbf16>
    %c0_20 = arith.constant 0 : index
    %c0_21 = arith.constant 0 : index
    %238 = vector.load %arg6[%c0_20, %c0_21] : memref<256x384xbf16, #tpu.memory_space<vmem>>, vector<256x384xbf16>
    %cst_22 = arith.constant dense<0.000000e+00> : vector<8x384xf32>
    %239 = tpu.matmul %237, %238, %cst_22 {dimension_numbers = #tpu.dot_dimension_numbers<[1], [0], [0], [1], [0, 0, 1, 1], [], []>} : vector<8x256xbf16>, vector<256x384xbf16>, vector<8x384xf32> -> vector<8x384xf32>
    %c0_23 = arith.constant 0 : index
    %c0_24 = arith.constant 0 : index
    %240 = vector.load %arg7[%c0_23, %c0_24] : memref<1x384xf32, #tpu.memory_space<vmem>>, vector<1x384xf32>
    %241 = vector.broadcast %240 : vector<1x384xf32> to vector<8x384xf32>
    %242 = arith.addf %239, %241 : vector<8x384xf32>
    %cst_25 = arith.constant 0.000000e+00 : f32
    %243 = vector.broadcast %cst_25 : f32 to vector<8x384xf32>
    %244 = arith.maximumf %242, %243 : vector<8x384xf32>
    %245 = arith.truncf %244 : vector<8x384xf32> to vector<8x384xbf16>
    %c0_26 = arith.constant 0 : index
    %c0_27 = arith.constant 0 : index
    %246 = vector.load %arg8[%c0_26, %c0_27] : memref<384x256xbf16, #tpu.memory_space<vmem>>, vector<384x256xbf16>
    %cst_28 = arith.constant dense<0.000000e+00> : vector<8x256xf32>
    %247 = tpu.matmul %245, %246, %cst_28 {dimension_numbers = #tpu.dot_dimension_numbers<[1], [0], [0], [1], [0, 0, 1, 1], [], []>} : vector<8x384xbf16>, vector<384x256xbf16>, vector<8x256xf32> -> vector<8x256xf32>
    %c0_29 = arith.constant 0 : index
    %c0_30 = arith.constant 0 : index
    %248 = vector.load %arg9[%c0_29, %c0_30] : memref<1x256xf32, #tpu.memory_space<vmem>>, vector<1x256xf32>
    %249 = vector.broadcast %248 : vector<1x256xf32> to vector<8x256xf32>
    %250 = arith.addf %247, %249 : vector<8x256xf32>
    %cst_31 = arith.constant 0.000000e+00 : f32
    %251 = vector.broadcast %cst_31 : f32 to vector<8x256xf32>
    %252 = arith.maximumf %250, %251 : vector<8x256xf32>
    %253 = arith.truncf %252 : vector<8x256xf32> to vector<8x256xbf16>
    %c0_32 = arith.constant 0 : index
    %c0_33 = arith.constant 0 : index
    %254 = vector.load %arg10[%c0_32, %c0_33] : memref<256x256xbf16, #tpu.memory_space<vmem>>, vector<256x256xbf16>
    %cst_34 = arith.constant dense<0.000000e+00> : vector<8x256xf32>
    %255 = tpu.matmul %253, %254, %cst_34 {dimension_numbers = #tpu.dot_dimension_numbers<[1], [0], [0], [1], [0, 0, 1, 1], [], []>} : vector<8x256xbf16>, vector<256x256xbf16>, vector<8x256xf32> -> vector<8x256xf32>
    %c0_35 = arith.constant 0 : index
    %c0_36 = arith.constant 0 : index
    %256 = vector.load %arg11[%c0_35, %c0_36] : memref<1x256xf32, #tpu.memory_space<vmem>>, vector<1x256xf32>
    %257 = vector.broadcast %256 : vector<1x256xf32> to vector<8x256xf32>
    %258 = arith.addf %255, %257 : vector<8x256xf32>
    %cst_37 = arith.constant 0.000000e+00 : f32
    %259 = vector.broadcast %cst_37 : f32 to vector<8x256xf32>
    %260 = arith.maximumf %258, %259 : vector<8x256xf32>
    %261 = arith.truncf %260 : vector<8x256xf32> to vector<8x256xbf16>
    %c0_38 = arith.constant 0 : index
    %c0_39 = arith.constant 0 : index
    %262 = vector.load %arg12[%c0_38, %c0_39] : memref<256x256xbf16, #tpu.memory_space<vmem>>, vector<256x256xbf16>
    %cst_40 = arith.constant dense<0.000000e+00> : vector<8x256xf32>
    %263 = tpu.matmul %261, %262, %cst_40 {dimension_numbers = #tpu.dot_dimension_numbers<[1], [0], [0], [1], [0, 0, 1, 1], [], []>} : vector<8x256xbf16>, vector<256x256xbf16>, vector<8x256xf32> -> vector<8x256xf32>
    %c0_41 = arith.constant 0 : index
    %c0_42 = arith.constant 0 : index
    %264 = vector.load %arg13[%c0_41, %c0_42] : memref<1x256xf32, #tpu.memory_space<vmem>>, vector<1x256xf32>
    %265 = vector.broadcast %264 : vector<1x256xf32> to vector<8x256xf32>
    %266 = arith.addf %263, %265 : vector<8x256xf32>
    %cst_43 = arith.constant 0.000000e+00 : f32
    %267 = vector.broadcast %cst_43 : f32 to vector<8x256xf32>
    %268 = arith.maximumf %266, %267 : vector<8x256xf32>
    %269 = arith.truncf %268 : vector<8x256xf32> to vector<8x256xbf16>
    %c0_44 = arith.constant 0 : index
    %c0_45 = arith.constant 0 : index
    %270 = vector.load %arg14[%c0_44, %c0_45] : memref<256x256xbf16, #tpu.memory_space<vmem>>, vector<256x256xbf16>
    %cst_46 = arith.constant dense<0.000000e+00> : vector<8x256xf32>
    %271 = tpu.matmul %269, %270, %cst_46 {dimension_numbers = #tpu.dot_dimension_numbers<[1], [0], [0], [1], [0, 0, 1, 1], [], []>} : vector<8x256xbf16>, vector<256x256xbf16>, vector<8x256xf32> -> vector<8x256xf32>
    %c0_47 = arith.constant 0 : index
    %c0_48 = arith.constant 0 : index
    %272 = vector.load %arg15[%c0_47, %c0_48] : memref<1x256xf32, #tpu.memory_space<vmem>>, vector<1x256xf32>
    %273 = vector.broadcast %272 : vector<1x256xf32> to vector<8x256xf32>
    %274 = arith.addf %271, %273 : vector<8x256xf32>
    %cst_49 = arith.constant 0.000000e+00 : f32
    %275 = vector.broadcast %cst_49 : f32 to vector<8x256xf32>
    %276 = arith.maximumf %274, %275 : vector<8x256xf32>
    %277 = arith.truncf %276 : vector<8x256xf32> to vector<8x256xbf16>
    %c0_50 = arith.constant 0 : index
    %c0_51 = arith.constant 0 : index
    %278 = vector.load %arg16[%c0_50, %c0_51] : memref<256x128xbf16, #tpu.memory_space<vmem>>, vector<256x128xbf16>
    %cst_52 = arith.constant dense<0.000000e+00> : vector<8x128xf32>
    %279 = tpu.matmul %277, %278, %cst_52 {dimension_numbers = #tpu.dot_dimension_numbers<[1], [0], [0], [1], [0, 0, 1, 1], [], []>} : vector<8x256xbf16>, vector<256x128xbf16>, vector<8x128xf32> -> vector<8x128xf32>
    %c0_53 = arith.constant 0 : index
    %c0_54 = arith.constant 0 : index
    %280 = vector.load %arg17[%c0_53, %c0_54] : memref<1x128xf32, #tpu.memory_space<vmem>>, vector<1x128xf32>
    %281 = vector.broadcast %280 : vector<1x128xf32> to vector<8x128xf32>
    %282 = arith.addf %279, %281 : vector<8x128xf32>
    %c0_55 = arith.constant 0 : index
    %c0_56 = arith.constant 0 : index
    %283 = vector.load %arg18[%c0_55, %c0_56] : memref<8x128xf32, #tpu.memory_space<vmem>>, vector<8x128xf32>
    tpu.vector_store %arg18[%c0_55, %c0_56], %282 {strides = array<i32>} : memref<8x128xf32, #tpu.memory_space<vmem>>, vector<8x128xf32>,
    return
  }
  func.func @transform_0(%arg0: i32) -> (i32, i32) {
    %c0_i32 = arith.constant 0 : i32
    %c0_i32_0 = arith.constant 0 : i32
    return %arg0, %c0_i32 : i32, i32
  }
  func.func @transform_1(%arg0: i32) -> (i32, i32) {
    %c0_i32 = arith.constant 0 : i32
    %c0_i32_0 = arith.constant 0 : i32
    %c0_i32_1 = arith.constant 0 : i32
    return %c0_i32, %c0_i32_0 : i32, i32
  }
  func.func @transform_2(%arg0: i32) -> (i32, i32) {
    %c0_i32 = arith.constant 0 : i32
    %c0_i32_0 = arith.constant 0 : i32
    %c0_i32_1 = arith.constant 0 : i32
    return %c0_i32, %c0_i32_0 : i32, i32
  }
  func.func @transform_3(%arg0: i32) -> (i32, i32) {
    %c0_i32 = arith.constant 0 : i32
    %c0_i32_0 = arith.constant 0 : i32
    %c0_i32_1 = arith.constant 0 : i32
    return %c0_i32, %c0_i32_0 : i32, i32
  }
  func.func @transform_4(%arg0: i32) -> (i32, i32) {
    %c0_i32 = arith.constant 0 : i32
    %c0_i32_0 = arith.constant 0 : i32
    %c0_i32_1 = arith.constant 0 : i32
    return %c0_i32, %c0_i32_0 : i32, i32
  }
  func.func @transform_5(%arg0: i32) -> (i32, i32) {
    %c0_i32 = arith.constant 0 : i32
    %c0_i32_0 = arith.constant 0 : i32
    %c0_i32_1 = arith.constant 0 : i32
    return %c0_i32, %c0_i32_0 : i32, i32
  }
  func.func @transform_6(%arg0: i32) -> (i32, i32) {
    %c0_i32 = arith.constant 0 : i32
    %c0_i32_0 = arith.constant 0 : i32
    %c0_i32_1 = arith.constant 0 : i32
    return %c0_i32, %c0_i32_0 : i32, i32
  }
  func.func @transform_7(%arg0: i32) -> (i32, i32) {
    %c0_i32 = arith.constant 0 : i32
    %c0_i32_0 = arith.constant 0 : i32
    %c0_i32_1 = arith.constant 0 : i32
    return %c0_i32, %c0_i32_0 : i32, i32
  }
  func.func @transform_8(%arg0: i32) -> (i32, i32) {
    %c0_i32 = arith.constant 0 : i32
    %c0_i32_0 = arith.constant 0 : i32
    %c0_i32_1 = arith.constant 0 : i32
    return %c0_i32, %c0_i32_0 : i32, i32
  }
  func.func @transform_9(%arg0: i32) -> (i32, i32) {
    %c0_i32 = arith.constant 0 : i32
    %c0_i32_0 = arith.constant 0 : i32
    %c0_i32_1 = arith.constant 0 : i32
    return %c0_i32, %c0_i32_0 : i32, i32
  }
  func.func @transform_10(%arg0: i32) -> (i32, i32) {
    %c0_i32 = arith.constant 0 : i32
    %c0_i32_0 = arith.constant 0 : i32
    %c0_i32_1 = arith.constant 0 : i32
    return %c0_i32, %c0_i32_0 : i32, i32
  }
  func.func @transform_11(%arg0: i32) -> (i32, i32) {
    %c0_i32 = arith.constant 0 : i32
    %c0_i32_0 = arith.constant 0 : i32
    %c0_i32_1 = arith.constant 0 : i32
    return %c0_i32, %c0_i32_0 : i32, i32
  }
  func.func @transform_12(%arg0: i32) -> (i32, i32) {
    %c0_i32 = arith.constant 0 : i32
    %c0_i32_0 = arith.constant 0 : i32
    %c0_i32_1 = arith.constant 0 : i32
    return %c0_i32, %c0_i32_0 : i32, i32
  }
  func.func @transform_13(%arg0: i32) -> (i32, i32) {
    %c0_i32 = arith.constant 0 : i32
    %c0_i32_0 = arith.constant 0 : i32
    %c0_i32_1 = arith.constant 0 : i32
    return %c0_i32, %c0_i32_0 : i32, i32
  }
  func.func @transform_14(%arg0: i32) -> (i32, i32) {
    %c0_i32 = arith.constant 0 : i32
    %c0_i32_0 = arith.constant 0 : i32
    %c0_i32_1 = arith.constant 0 : i32
    return %c0_i32, %c0_i32_0 : i32, i32
  }
  func.func @transform_15(%arg0: i32) -> (i32, i32) {
    %c0_i32 = arith.constant 0 : i32
    %c0_i32_0 = arith.constant 0 : i32
    %c0_i32_1 = arith.constant 0 : i32
    return %c0_i32, %c0_i32_0 : i32, i32
  }
  func.func @transform_16(%arg0: i32) -> (i32, i32) {
    %c0_i32 = arith.constant 0 : i32
    %c0_i32_0 = arith.constant 0 : i32
    %c0_i32_1 = arith.constant 0 : i32
    return %c0_i32, %c0_i32_0 : i32, i32
  }
  func.func @transform_17(%arg0: i32) -> (i32, i32) {
    %c0_i32 = arith.constant 0 : i32
    %c0_i32_0 = arith.constant 0 : i32
    return %arg0, %c0_i32 : i32, i32
  }
}

</mosaic_0001>

<llo_original>
// kernel: net_forward.1
$region0: #{net_forward.1}
  #allocation0 [shape = 'u32[]', space=smem, size = 0x4, offset = 0x4, fixed_abs, tag = 'smem constant byte address 0x4 - core index']
  #allocation1 [shape = 'u32[144,128]{1,0:T(1,128)}', space=vmem, size = 0x12000, scoped, tag = 'internal scratch']
  %s0 = inlined_call_operand.vmem [shape: bf16[392,384], index: 0, kind: input, shape index: {}]
  %s1 = inlined_call_operand.vmem [shape: bf16[384,64], index: 1, kind: input, shape index: {}]
  %s2 = inlined_call_operand.vmem [shape: f32[1,64], index: 2, kind: input, shape index: {}]
  %s3 = inlined_call_operand.vmem [shape: bf16[576,2304], index: 3, kind: input, shape index: {}]
  %s4 = inlined_call_operand.vmem [shape: f32[1,256], index: 4, kind: input, shape index: {}]
  %s5 = inlined_call_operand.vmem [shape: bf16[256,384], index: 5, kind: input, shape index: {}]
  %s6 = inlined_call_operand.vmem [shape: f32[1,384], index: 6, kind: input, shape index: {}]
  %s7 = inlined_call_operand.vmem [shape: bf16[384,256], index: 7, kind: input, shape index: {}]
  %s8 = inlined_call_operand.vmem [shape: f32[1,256], index: 8, kind: input, shape index: {}]
  %s9 = inlined_call_operand.vmem [shape: bf16[256,256], index: 9, kind: input, shape index: {}]
  %s10 = inlined_call_operand.vmem [shape: f32[1,256], index: 10, kind: input, shape index: {}]
  %s11 = inlined_call_operand.vmem [shape: bf16[256,256], index: 11, kind: input, shape index: {}]
  %s12 = inlined_call_operand.vmem [shape: f32[1,256], index: 12, kind: input, shape index: {}]
  %s13 = inlined_call_operand.vmem [shape: bf16[256,256], index: 13, kind: input, shape index: {}]
  %s14 = inlined_call_operand.vmem [shape: f32[1,256], index: 14, kind: input, shape index: {}]
  %s15 = inlined_call_operand.vmem [shape: bf16[256,128], index: 15, kind: input, shape index: {}]
  %s16 = inlined_call_operand.vmem [shape: f32[1,128], index: 16, kind: input, shape index: {}]
  %s17 = inlined_call_operand.vmem [shape: f32[8,128], index: 17, kind: output, shape index: {}]
  %s18 = sld [smem:[#allocation0]]
  $region78: #{net_forward.1} parent=0
    _
  %s20 = ssub.s32 1, %s18
  %s21 = scalar_select 0, %s20, %s18
  // Predicated region
  $region2: #{net_forward.1} parent=0 // pred_check
    _
  $region3: #{net_forward.1} parent=0 // pred_check_branch
    %23 = sbr.rel (0) target = $region5
  $region4: #{net_forward.1} parent=0 // pred_region
    _
  $region5: #{net_forward.1} parent=0 // pred_fallthru
    _
  // Predicated region
  $region6: #{net_forward.1} parent=0 // pred_check
    _
  $region7: #{net_forward.1} parent=0 // pred_check_branch
    %25 = sbr.rel (0) target = $region9
  $region8: #{net_forward.1} parent=0 // pred_region
    _
  $region9: #{net_forward.1} parent=0 // pred_fallthru
    _
  // Predicated region
  $region10: #{net_forward.1} parent=0 // pred_check
    _
  $region11: #{net_forward.1} parent=0 // pred_check_branch
    %27 = sbr.rel (0) target = $region13
  $region12: #{net_forward.1} parent=0 // pred_region
    _
  $region13: #{net_forward.1} parent=0 // pred_fallthru
    _
  // Predicated region
  $region14: #{net_forward.1} parent=0 // pred_check
    _
  $region15: #{net_forward.1} parent=0 // pred_check_branch
    %29 = sbr.rel (0) target = $region17
  $region16: #{net_forward.1} parent=0 // pred_region
    _
  $region17: #{net_forward.1} parent=0 // pred_fallthru
    _
  // Predicated region
  $region18: #{net_forward.1} parent=0 // pred_check
    _
  $region19: #{net_forward.1} parent=0 // pred_check_branch
    %31 = sbr.rel (0) target = $region21
  $region20: #{net_forward.1} parent=0 // pred_region
    _
  $region21: #{net_forward.1} parent=0 // pred_fallthru
    _
  // Predicated region
  $region22: #{net_forward.1} parent=0 // pred_check
    _
  $region23: #{net_forward.1} parent=0 // pred_check_branch
    %33 = sbr.rel (0) target = $region25
  $region24: #{net_forward.1} parent=0 // pred_region
    _
  $region25: #{net_forward.1} parent=0 // pred_fallthru
    _
  // Predicated region
  $region26: #{net_forward.1} parent=0 // pred_check
    _
  $region27: #{net_forward.1} parent=0 // pred_check_branch
    %35 = sbr.rel (0) target = $region29
  $region28: #{net_forward.1} parent=0 // pred_region
    _
  $region29: #{net_forward.1} parent=0 // pred_fallthru
    _
  // Predicated region
  $region30: #{net_forward.1} parent=0 // pred_check
    _
  $region31: #{net_forward.1} parent=0 // pred_check_branch
    %37 = sbr.rel (0) target = $region33
  $region32: #{net_forward.1} parent=0 // pred_region
    _
  $region33: #{net_forward.1} parent=0 // pred_fallthru
    _
  // Predicated region
  $region34: #{net_forward.1} parent=0 // pred_check
    _
  $region35: #{net_forward.1} parent=0 // pred_check_branch
    %39 = sbr.rel (0) target = $region37
  $region36: #{net_forward.1} parent=0 // pred_region
    _
  $region37: #{net_forward.1} parent=0 // pred_fallthru
    _
  // Predicated region
  $region38: #{net_forward.1} parent=0 // pred_check
    _
  $region39: #{net_forward.1} parent=0 // pred_check_branch
    %41 = sbr.rel (0) target = $region41
  $region40: #{net_forward.1} parent=0 // pred_region
    _
  $region41: #{net_forward.1} parent=0 // pred_fallthru
    _
  // Predicated region
  $region42: #{net_forward.1} parent=0 // pred_check
    _
  $region43: #{net_forward.1} parent=0 // pred_check_branch
    %43 = sbr.rel (0) target = $region45
  $region44: #{net_forward.1} parent=0 // pred_region
    _
  $region45: #{net_forward.1} parent=0 // pred_fallthru
    _
  // Predicated region
  $region46: #{net_forward.1} parent=0 // pred_check
    _
  $region47: #{net_forward.1} parent=0 // pred_check_branch
    %45 = sbr.rel (0) target = $region49
  $region48: #{net_forward.1} parent=0 // pred_region
    _
  $region49: #{net_forward.1} parent=0 // pred_fallthru
    _
  // Predicated region
  $region50: #{net_forward.1} parent=0 // pred_check
    _
  $region51: #{net_forward.1} parent=0 // pred_check_branch
    %47 = sbr.rel (0) target = $region53
  $region52: #{net_forward.1} parent=0 // pred_region
    _
  $region53: #{net_forward.1} parent=0 // pred_fallthru
    _
  // Predicated region
  $region54: #{net_forward.1} parent=0 // pred_check
    _
  $region55: #{net_forward.1} parent=0 // pred_check_branch
    %49 = sbr.rel (0) target = $region57
  $region56: #{net_forward.1} parent=0 // pred_region
    _
  $region57: #{net_forward.1} parent=0 // pred_fallthru
    _
  // Predicated region
  $region58: #{net_forward.1} parent=0 // pred_check
    _
  $region59: #{net_forward.1} parent=0 // pred_check_branch
    %51 = sbr.rel (0) target = $region61
  $region60: #{net_forward.1} parent=0 // pred_region
    _
  $region61: #{net_forward.1} parent=0 // pred_fallthru
    _
  // Predicated region
  $region62: #{net_forward.1} parent=0 // pred_check
    _
  $region63: #{net_forward.1} parent=0 // pred_check_branch
    %53 = sbr.rel (0) target = $region65
  $region64: #{net_forward.1} parent=0 // pred_region
    _
  $region65: #{net_forward.1} parent=0 // pred_fallthru
    _
  // Predicated region
  $region66: #{net_forward.1} parent=0 // pred_check
    _
  $region67: #{net_forward.1} parent=0 // pred_check_branch
    %55 = sbr.rel (0) target = $region69
  $region68: #{net_forward.1} parent=0 // pred_region
    _
  $region69: #{net_forward.1} parent=0 // pred_fallthru
    _
  %v57 = vld [vmem:[%s0] sm:$0xff]
  %v58 = vld [vmem:[%s0 + $0x8] sm:$0xf]
  %v59 = vld [vmem:[%s0 + $0xc] sm:$0xff]
  %v60 = vld [vmem:[%s0 + $0x14] sm:$0xf]
  %v61 = vld [vmem:[%s0 + $0x18] sm:$0xff]
  %v62 = vld [vmem:[%s0 + $0x20] sm:$0xf]
  %v63 = vld [vmem:[%s0 + $0x24] sm:$0xff]
  %v64 = vld [vmem:[%s0 + $0x2c] sm:$0xf]
  %v65 = vld [vmem:[%s0 + $0x30] sm:$0xff]
  %v66 = vld [vmem:[%s0 + $0x38] sm:$0xf]
  %v67 = vld [vmem:[%s0 + $0x3c] sm:$0xff]
  %v68 = vld [vmem:[%s0 + $0x44] sm:$0xf]
  %v69 = vld [vmem:[%s0 + $0x48] sm:$0xff]
  %v70 = vld [vmem:[%s0 + $0x50] sm:$0xf]
  %v71 = vld [vmem:[%s0 + $0x54] sm:$0xff]
  %v72 = vld [vmem:[%s0 + $0x5c] sm:$0xf]
  %v73 = vld [vmem:[%s0 + $0x60] sm:$0xff]
  %v74 = vld [vmem:[%s0 + $0x68] sm:$0xf]
  %v75 = vld [vmem:[%s0 + $0x6c] sm:$0xff]
  %v76 = vld [vmem:[%s0 + $0x74] sm:$0xf]
  %v77 = vld [vmem:[%s0 + $0x78] sm:$0xff]
  %v78 = vld [vmem:[%s0 + $0x80] sm:$0xf]
  %v79 = vld [vmem:[%s0 + $0x84] sm:$0xff]
  %v80 = vld [vmem:[%s0 + $0x8c] sm:$0xf]
  %v81 = vld [vmem:[%s0 + $0x90] sm:$0xff]
  %v82 = vld [vmem:[%s0 + $0x98] sm:$0xf]
  %v83 = vld [vmem:[%s0 + $0x9c] sm:$0xff]
  %v84 = vld [vmem:[%s0 + $0xa4] sm:$0xf]
  %v85 = vld [vmem:[%s0 + $0xa8] sm:$0xff]
  %v86 = vld [vmem:[%s0 + $0xb0] sm:$0xf]
  %v87 = vld [vmem:[%s0 + $0xb4] sm:$0xff]
  %v88 = vld [vmem:[%s0 + $0xbc] sm:$0xf]
  %v89 = vld [vmem:[%s0 + $0xc0] sm:$0xff]
  %v90 = vld [vmem:[%s0 + $0xc8] sm:$0xf]
  %v91 = vld [vmem:[%s0 + $0xcc] sm:$0xff]
  %v92 = vld [vmem:[%s0 + $0xd4] sm:$0xf]
  %v93 = vld [vmem:[%s0 + $0xd8] sm:$0xff]
  %v94 = vld [vmem:[%s0 + $0xe0] sm:$0xf]
  %v95 = vld [vmem:[%s0 + $0xe4] sm:$0xff]
  %v96 = vld [vmem:[%s0 + $0xec] sm:$0xf]
  %v97 = vld [vmem:[%s0 + $0xf0] sm:$0xff]
  %v98 = vld [vmem:[%s0 + $0xf8] sm:$0xf]
  %v99 = vld [vmem:[%s0 + $0xfc] sm:$0xff]
  %v100 = vld [vmem:[%s0 + $0x104] sm:$0xf]
  %v101 = vld [vmem:[%s0 + $0x108] sm:$0xff]
  %v102 = vld [vmem:[%s0 + $0x110] sm:$0xf]
  %v103 = vld [vmem:[%s0 + $0x114] sm:$0xff]
  %v104 = vld [vmem:[%s0 + $0x11c] sm:$0xf]
  %v105 = vld [vmem:[%s0 + $0x120] sm:$0xff]
  %v106 = vld [vmem:[%s0 + $0x128] sm:$0xf]
  %v107 = vld [vmem:[%s0 + $0x12c] sm:$0xff]
  %v108 = vld [vmem:[%s0 + $0x134] sm:$0xf]
  %v109 = vld [vmem:[%s0 + $0x138] sm:$0xff]
  %v110 = vld [vmem:[%s0 + $0x140] sm:$0xf]
  %v111 = vld [vmem:[%s0 + $0x144] sm:$0xff]
  %v112 = vld [vmem:[%s0 + $0x14c] sm:$0xf]
  %v113 = vld [vmem:[%s0 + $0x150] sm:$0xff]
  %v114 = vld [vmem:[%s0 + $0x158] sm:$0xf]
  %v115 = vld [vmem:[%s0 + $0x15c] sm:$0xff]
  %v116 = vld [vmem:[%s0 + $0x164] sm:$0xf]
  %v117 = vld [vmem:[%s0 + $0x168] sm:$0xff]
  %v118 = vld [vmem:[%s0 + $0x170] sm:$0xf]
  %v119 = vld [vmem:[%s0 + $0x174] sm:$0xff]
  %v120 = vld [vmem:[%s0 + $0x17c] sm:$0xf]
  %v121 = vld [vmem:[%s0 + $0x180] sm:$0xff]
  %v122 = vld [vmem:[%s0 + $0x188] sm:$0xf]
  %v123 = vld [vmem:[%s0 + $0x18c] sm:$0xff]
  %v124 = vld [vmem:[%s0 + $0x194] sm:$0xf]
  %v125 = vld [vmem:[%s0 + $0x198] sm:$0xff]
  %v126 = vld [vmem:[%s0 + $0x1a0] sm:$0xf]
  %v127 = vld [vmem:[%s0 + $0x1a4] sm:$0xff]
  %v128 = vld [vmem:[%s0 + $0x1ac] sm:$0xf]
  %v129 = vld [vmem:[%s0 + $0x1b0] sm:$0xff]
  %v130 = vld [vmem:[%s0 + $0x1b8] sm:$0xf]
  %v131 = vld [vmem:[%s0 + $0x1bc] sm:$0xff]
  %v132 = vld [vmem:[%s0 + $0x1c4] sm:$0xf]
  %v133 = vld [vmem:[%s0 + $0x1c8] sm:$0xff]
  %v134 = vld [vmem:[%s0 + $0x1d0] sm:$0xf]
  %v135 = vld [vmem:[%s0 + $0x1d4] sm:$0xff]
  %v136 = vld [vmem:[%s0 + $0x1dc] sm:$0xf]
  %v137 = vld [vmem:[%s0 + $0x1e0] sm:$0xff]
  %v138 = vld [vmem:[%s0 + $0x1e8] sm:$0xf]
  %v139 = vld [vmem:[%s0 + $0x1ec] sm:$0xff]
  %v140 = vld [vmem:[%s0 + $0x1f4] sm:$0xf]
  %v141 = vld [vmem:[%s0 + $0x1f8] sm:$0xff]
  %v142 = vld [vmem:[%s0 + $0x200] sm:$0xf]
  %v143 = vld [vmem:[%s0 + $0x204] sm:$0xff]
  %v144 = vld [vmem:[%s0 + $0x20c] sm:$0xf]
  %v145 = vld [vmem:[%s0 + $0x210] sm:$0xff]
  %v146 = vld [vmem:[%s0 + $0x218] sm:$0xf]
  %v147 = vld [vmem:[%s0 + $0x21c] sm:$0xff]
  %v148 = vld [vmem:[%s0 + $0x224] sm:$0xf]
  %v149 = vld [vmem:[%s0 + $0x228] sm:$0xff]
  %v150 = vld [vmem:[%s0 + $0x230] sm:$0xf]
  %v151 = vld [vmem:[%s0 + $0x234] sm:$0xff]
  %v152 = vld [vmem:[%s0 + $0x23c] sm:$0xf]
  %v153 = vld [vmem:[%s0 + $0x240] sm:$0xff]
  %v154 = vld [vmem:[%s0 + $0x248] sm:$0xf]
  %v155 = vld [vmem:[%s1] sm:$0xf]
  %v156 = vld [vmem:[%s1 + $0x4] sm:$0xf]
  %v157 = vld [vmem:[%s1 + $0x8] sm:$0xf]
  %v158 = vld [vmem:[%s1 + $0xc] sm:$0xf]
  %v159 = vld [vmem:[%s1 + $0x10] sm:$0xf]
  %v160 = vld [vmem:[%s1 + $0x14] sm:$0xf]
  %v161 = vld [vmem:[%s1 + $0x18] sm:$0xf]
  %v162 = vld [vmem:[%s1 + $0x1c] sm:$0xf]
  %v163 = vld [vmem:[%s1 + $0x20] sm:$0xf]
  %v164 = vld [vmem:[%s1 + $0x24] sm:$0xf]
  %v165 = vld [vmem:[%s1 + $0x28] sm:$0xf]
  %v166 = vld [vmem:[%s1 + $0x2c] sm:$0xf]
  %v167 = vld [vmem:[%s1 + $0x30] sm:$0xf]
  %v168 = vld [vmem:[%s1 + $0x34] sm:$0xf]
  %v169 = vld [vmem:[%s1 + $0x38] sm:$0xf]
  %v170 = vld [vmem:[%s1 + $0x3c] sm:$0xf]
  %v171 = vld [vmem:[%s1 + $0x40] sm:$0xf]
  %v172 = vld [vmem:[%s1 + $0x44] sm:$0xf]
  %v173 = vld [vmem:[%s1 + $0x48] sm:$0xf]
  %v174 = vld [vmem:[%s1 + $0x4c] sm:$0xf]
  %v175 = vld [vmem:[%s1 + $0x50] sm:$0xf]
  %v176 = vld [vmem:[%s1 + $0x54] sm:$0xf]
  %v177 = vld [vmem:[%s1 + $0x58] sm:$0xf]
  %v178 = vld [vmem:[%s1 + $0x5c] sm:$0xf]
  %v179 = vld [vmem:[%s1 + $0x60] sm:$0xf]
  %v180 = vld [vmem:[%s1 + $0x64] sm:$0xf]
  %v181 = vld [vmem:[%s1 + $0x68] sm:$0xf]
  %v182 = vld [vmem:[%s1 + $0x6c] sm:$0xf]
  %v183 = vld [vmem:[%s1 + $0x70] sm:$0xf]
  %v184 = vld [vmem:[%s1 + $0x74] sm:$0xf]
  %v185 = vld [vmem:[%s1 + $0x78] sm:$0xf]
  %v186 = vld [vmem:[%s1 + $0x7c] sm:$0xf]
  %v187 = vld [vmem:[%s1 + $0x80] sm:$0xf]
  %v188 = vld [vmem:[%s1 + $0x84] sm:$0xf]
  %v189 = vld [vmem:[%s1 + $0x88] sm:$0xf]
  %v190 = vld [vmem:[%s1 + $0x8c] sm:$0xf]
  %v191 = vld [vmem:[%s1 + $0x90] sm:$0xf]
  %v192 = vld [vmem:[%s1 + $0x94] sm:$0xf]
  %v193 = vld [vmem:[%s1 + $0x98] sm:$0xf]
  %v194 = vld [vmem:[%s1 + $0x9c] sm:$0xf]
  %v195 = vld [vmem:[%s1 + $0xa0] sm:$0xf]
  %v196 = vld [vmem:[%s1 + $0xa4] sm:$0xf]
  %v197 = vld [vmem:[%s1 + $0xa8] sm:$0xf]
  %v198 = vld [vmem:[%s1 + $0xac] sm:$0xf]
  %v199 = vld [vmem:[%s1 + $0xb0] sm:$0xf]
  %v200 = vld [vmem:[%s1 + $0xb4] sm:$0xf]
  %v201 = vld [vmem:[%s1 + $0xb8] sm:$0xf]
  %v202 = vld [vmem:[%s1 + $0xbc] sm:$0xf]
  %v301 = vunpack.c.l.b16 %v57
  %v302 = vunpack.c.h.b16 %v57
  %v303 = vunpack.c.l.b16 %v58
  %v304 = vunpack.c.l.b16 %v59
  %v305 = vunpack.c.h.b16 %v59
  %v306 = vunpack.c.l.b16 %v60
  %v307 = vunpack.c.l.b16 %v61
  %v308 = vunpack.c.h.b16 %v61
  %v309 = vunpack.c.l.b16 %v62
  %v310 = vunpack.c.l.b16 %v63
  %v311 = vunpack.c.h.b16 %v63
  %v312 = vunpack.c.l.b16 %v64
  %v313 = vunpack.c.l.b16 %v65
  %v314 = vunpack.c.h.b16 %v65
  %v315 = vunpack.c.l.b16 %v66
  %v316 = vunpack.c.l.b16 %v67
  %v317 = vunpack.c.h.b16 %v67
  %v318 = vunpack.c.l.b16 %v68
  %v319 = vunpack.c.l.b16 %v69
  %v320 = vunpack.c.h.b16 %v69
  %v321 = vunpack.c.l.b16 %v70
  %v322 = vunpack.c.l.b16 %v71
  %v323 = vunpack.c.h.b16 %v71
  %v324 = vunpack.c.l.b16 %v72
  %v325 = vunpack.c.l.b16 %v73
  %v326 = vunpack.c.h.b16 %v73
  %v327 = vunpack.c.l.b16 %v74
  %v328 = vunpack.c.l.b16 %v75
  %v329 = vunpack.c.h.b16 %v75
  %v330 = vunpack.c.l.b16 %v76
  %v331 = vunpack.c.l.b16 %v77
  %v332 = vunpack.c.h.b16 %v77
  %v333 = vunpack.c.l.b16 %v78
  %v334 = vunpack.c.l.b16 %v79
  %v335 = vunpack.c.h.b16 %v79
  %v336 = vunpack.c.l.b16 %v80
  %v337 = vunpack.c.l.b16 %v81
  %v338 = vunpack.c.h.b16 %v81
  %v339 = vunpack.c.l.b16 %v82
  %v340 = vunpack.c.l.b16 %v83
  %v341 = vunpack.c.h.b16 %v83
  %v342 = vunpack.c.l.b16 %v84
  %v343 = vunpack.c.l.b16 %v85
  %v344 = vunpack.c.h.b16 %v85
  %v345 = vunpack.c.l.b16 %v86
  %v346 = vunpack.c.l.b16 %v87
  %v347 = vunpack.c.h.b16 %v87
  %v348 = vunpack.c.l.b16 %v88
  %v349 = vunpack.c.l.b16 %v89
  %v350 = vunpack.c.h.b16 %v89
  %v351 = vunpack.c.l.b16 %v90
  %v352 = vunpack.c.l.b16 %v91
  %v353 = vunpack.c.h.b16 %v91
  %v354 = vunpack.c.l.b16 %v92
  %v355 = vunpack.c.l.b16 %v93
  %v356 = vunpack.c.h.b16 %v93
  %v357 = vunpack.c.l.b16 %v94
  %v358 = vunpack.c.l.b16 %v95
  %v359 = vunpack.c.h.b16 %v95
  %v360 = vunpack.c.l.b16 %v96
  %v361 = vunpack.c.l.b16 %v97
  %v362 = vunpack.c.h.b16 %v97
  %v363 = vunpack.c.l.b16 %v98
  %v364 = vunpack.c.l.b16 %v99
  %v365 = vunpack.c.h.b16 %v99
  %v366 = vunpack.c.l.b16 %v100
  %v367 = vunpack.c.l.b16 %v101
  %v368 = vunpack.c.h.b16 %v101
  %v369 = vunpack.c.l.b16 %v102
  %v370 = vunpack.c.l.b16 %v103
  %v371 = vunpack.c.h.b16 %v103
  %v372 = vunpack.c.l.b16 %v104
  %v373 = vunpack.c.l.b16 %v105
  %v374 = vunpack.c.h.b16 %v105
  %v375 = vunpack.c.l.b16 %v106
  %v376 = vunpack.c.l.b16 %v107
  %v377 = vunpack.c.h.b16 %v107
  %v378 = vunpack.c.l.b16 %v108
  %v379 = vunpack.c.l.b16 %v109
  %v380 = vunpack.c.h.b16 %v109
  %v381 = vunpack.c.l.b16 %v110
  %v382 = vunpack.c.l.b16 %v111
  %v383 = vunpack.c.h.b16 %v111
  %v384 = vunpack.c.l.b16 %v112
  %v385 = vunpack.c.l.b16 %v113
  %v386 = vunpack.c.h.b16 %v113
  %v387 = vunpack.c.l.b16 %v114
  %v388 = vunpack.c.l.b16 %v115
  %v389 = vunpack.c.h.b16 %v115
  %v390 = vunpack.c.l.b16 %v116
  %v391 = vunpack.c.l.b16 %v117
  %v392 = vunpack.c.h.b16 %v117
  %v393 = vunpack.c.l.b16 %v118
  %v394 = vunpack.c.l.b16 %v119
  %v395 = vunpack.c.h.b16 %v119
  %v396 = vunpack.c.l.b16 %v120
  %v397 = vunpack.c.l.b16 %v121
  %v398 = vunpack.c.h.b16 %v121
  %v399 = vunpack.c.l.b16 %v122
  %v400 = vunpack.c.l.b16 %v123
  %v401 = vunpack.c.h.b16 %v123
  %v402 = vunpack.c.l.b16 %v124
  %v403 = vunpack.c.l.b16 %v125
  %v404 = vunpack.c.h.b16 %v125
  %v405 = vunpack.c.l.b16 %v126
  %v406 = vunpack.c.l.b16 %v127
  %v407 = vunpack.c.h.b16 %v127
  %v408 = vunpack.c.l.b16 %v128
  %v409 = vunpack.c.l.b16 %v129
  %v410 = vunpack.c.h.b16 %v129
  %v411 = vunpack.c.l.b16 %v130
  %v412 = vunpack.c.l.b16 %v131
  %v413 = vunpack.c.h.b16 %v131
  %v414 = vunpack.c.l.b16 %v132
  %v415 = vunpack.c.l.b16 %v133
  %v416 = vunpack.c.h.b16 %v133
  %v417 = vunpack.c.l.b16 %v134
  %v418 = vunpack.c.l.b16 %v135
  %v419 = vunpack.c.h.b16 %v135
  %v420 = vunpack.c.l.b16 %v136
  %v421 = vunpack.c.l.b16 %v137
  %v422 = vunpack.c.h.b16 %v137
  %v423 = vunpack.c.l.b16 %v138
  %v424 = vunpack.c.l.b16 %v139
  %v425 = vunpack.c.h.b16 %v139
  %v426 = vunpack.c.l.b16 %v140
  %v427 = vunpack.c.l.b16 %v141
  %v428 = vunpack.c.h.b16 %v141
  %v429 = vunpack.c.l.b16 %v142
  %v430 = vunpack.c.l.b16 %v143
  %v431 = vunpack.c.h.b16 %v143
  %v432 = vunpack.c.l.b16 %v144
  %v433 = vunpack.c.l.b16 %v145
  %v434 = vunpack.c.h.b16 %v145
  %v435 = vunpack.c.l.b16 %v146
  %v436 = vunpack.c.l.b16 %v147
  %v437 = vunpack.c.h.b16 %v147
  %v438 = vunpack.c.l.b16 %v148
  %v439 = vunpack.c.l.b16 %v149
  %v440 = vunpack.c.h.b16 %v149
  %v441 = vunpack.c.l.b16 %v150
  %v442 = vunpack.c.l.b16 %v151
  %v443 = vunpack.c.h.b16 %v151
  %v444 = vunpack.c.l.b16 %v152
  %v445 = vunpack.c.l.b16 %v153
  %v446 = vunpack.c.h.b16 %v153
  %v447 = vunpack.c.l.b16 %v154
  %v448 = vpack.c.b16 %v304, %v301
  %v449 = vpack.c.b16 %v305, %v302
  %v450 = vpack.c.b16 %v306, %v303
  %v451 = vpack.c.b16 %v310, %v307
  %v452 = vpack.c.b16 %v311, %v308
  %v453 = vpack.c.b16 %v312, %v309
  %v454 = vpack.c.b16 %v316, %v313
  %v455 = vpack.c.b16 %v317, %v314
  %v456 = vpack.c.b16 %v318, %v315
  %v457 = vpack.c.b16 %v322, %v319
  %v458 = vpack.c.b16 %v323, %v320
  %v459 = vpack.c.b16 %v324, %v321
  %v460 = vpack.c.b16 %v328, %v325
  %v461 = vpack.c.b16 %v329, %v326
  %v462 = vpack.c.b16 %v330, %v327
  %v463 = vpack.c.b16 %v334, %v331
  %v464 = vpack.c.b16 %v335, %v332
  %v465 = vpack.c.b16 %v336, %v333
  %v466 = vpack.c.b16 %v340, %v337
  %v467 = vpack.c.b16 %v341, %v338
  %v468 = vpack.c.b16 %v342, %v339
  %v469 = vpack.c.b16 %v346, %v343
  %v470 = vpack.c.b16 %v347, %v344
  %v471 = vpack.c.b16 %v348, %v345
  %v472 = vpack.c.b16 %v352, %v349
  %v473 = vpack.c.b16 %v353, %v350
  %v474 = vpack.c.b16 %v354, %v351
  %v475 = vpack.c.b16 %v358, %v355
  %v476 = vpack.c.b16 %v359, %v356
  %v477 = vpack.c.b16 %v360, %v357
  %v478 = vpack.c.b16 %v364, %v361
  %v479 = vpack.c.b16 %v365, %v362
  %v480 = vpack.c.b16 %v366, %v363
  %v481 = vpack.c.b16 %v370, %v367
  %v482 = vpack.c.b16 %v371, %v368
  %v483 = vpack.c.b16 %v372, %v369
  %v484 = vpack.c.b16 %v376, %v373
  %v485 = vpack.c.b16 %v377, %v374
  %v486 = vpack.c.b16 %v378, %v375
  %v487 = vpack.c.b16 %v382, %v379
  %v488 = vpack.c.b16 %v383, %v380
  %v489 = vpack.c.b16 %v384, %v381
  %v490 = vpack.c.b16 %v388, %v385
  %v491 = vpack.c.b16 %v389, %v386
  %v492 = vpack.c.b16 %v390, %v387
  %v493 = vpack.c.b16 %v394, %v391
  %v494 = vpack.c.b16 %v395, %v392
  %v495 = vpack.c.b16 %v396, %v393
  %v496 = vpack.c.b16 %v400, %v397
  %v497 = vpack.c.b16 %v401, %v398
  %v498 = vpack.c.b16 %v402, %v399
  %v499 = vpack.c.b16 %v406, %v403
  %v500 = vpack.c.b16 %v407, %v404
  %v501 = vpack.c.b16 %v408, %v405
  %v502 = vpack.c.b16 %v412, %v409
  %v503 = vpack.c.b16 %v413, %v410
  %v504 = vpack.c.b16 %v414, %v411
  %v505 = vpack.c.b16 %v418, %v415
  %v506 = vpack.c.b16 %v419, %v416
  %v507 = vpack.c.b16 %v420, %v417
  %v508 = vpack.c.b16 %v424, %v421
  %v509 = vpack.c.b16 %v425, %v422
  %v510 = vpack.c.b16 %v426, %v423
  %v511 = vpack.c.b16 %v430, %v427
  %v512 = vpack.c.b16 %v431, %v428
  %v513 = vpack.c.b16 %v432, %v429
  %v514 = vpack.c.b16 %v436, %v433
  %v515 = vpack.c.b16 %v437, %v434
  %v516 = vpack.c.b16 %v438, %v435
  %v517 = vpack.c.b16 %v442, %v439
  %v518 = vpack.c.b16 %v443, %v440
  %v519 = vpack.c.b16 %v444, %v441
  %v520 = vpack.c.b16 %v445, %v445
  %v521 = vpack.c.b16 %v446, %v446
  %v522 = vpack.c.b16 %v447, %v447
  %v646 = vunpack.c.l.b16 %v155
  %v647 = vunpack.c.l.b16 %v156
  %v648 = vunpack.c.l.b16 %v157
  %v649 = vunpack.c.l.b16 %v158
  %v650 = vunpack.c.l.b16 %v159
  %v651 = vunpack.c.l.b16 %v160
  %v652 = vunpack.c.l.b16 %v161
  %v653 = vunpack.c.l.b16 %v162
  %v654 = vunpack.c.l.b16 %v163
  %v655 = vunpack.c.l.b16 %v164
  %v656 = vunpack.c.l.b16 %v165
  %v657 = vunpack.c.l.b16 %v166
  %v658 = vunpack.c.l.b16 %v167
  %v659 = vunpack.c.l.b16 %v168
  %v660 = vunpack.c.l.b16 %v169
  %v661 = vunpack.c.l.b16 %v170
  %v662 = vunpack.c.l.b16 %v171
  %v663 = vunpack.c.l.b16 %v172
  %v664 = vunpack.c.l.b16 %v173
  %v665 = vunpack.c.l.b16 %v174
  %v666 = vunpack.c.l.b16 %v175
  %v667 = vunpack.c.l.b16 %v176
  %v668 = vunpack.c.l.b16 %v177
  %v669 = vunpack.c.l.b16 %v178
  %v670 = vunpack.c.l.b16 %v179
  %v671 = vunpack.c.l.b16 %v180
  %v672 = vunpack.c.l.b16 %v181
  %v673 = vunpack.c.l.b16 %v182
  %v674 = vunpack.c.l.b16 %v183
  %v675 = vunpack.c.l.b16 %v184
  %v676 = vunpack.c.l.b16 %v185
  %v677 = vunpack.c.l.b16 %v186
  %v678 = vunpack.c.l.b16 %v187
  %v679 = vunpack.c.l.b16 %v188
  %v680 = vunpack.c.l.b16 %v189
  %v681 = vunpack.c.l.b16 %v190
  %v682 = vunpack.c.l.b16 %v191
  %v683 = vunpack.c.l.b16 %v192
  %v684 = vunpack.c.l.b16 %v193
  %v685 = vunpack.c.l.b16 %v194
  %v686 = vunpack.c.l.b16 %v195
  %v687 = vunpack.c.l.b16 %v196
  %v688 = vunpack.c.l.b16 %v197
  %v689 = vunpack.c.l.b16 %v198
  %v690 = vunpack.c.l.b16 %v199
  %v691 = vunpack.c.l.b16 %v200
  %v692 = vunpack.c.l.b16 %v201
  %v693 = vunpack.c.l.b16 %v202
  %v694 = vpack.c.b16 %v647, %v646
  %v695 = vpack.c.b16 %v649, %v648
  %v696 = vpack.c.b16 %v651, %v650
  %v697 = vpack.c.b16 %v653, %v652
  %v698 = vpack.c.b16 %v655, %v654
  %v699 = vpack.c.b16 %v657, %v656
  %v700 = vpack.c.b16 %v659, %v658
  %v701 = vpack.c.b16 %v661, %v660
  %v702 = vpack.c.b16 %v663, %v662
  %v703 = vpack.c.b16 %v665, %v664
  %v704 = vpack.c.b16 %v667, %v666
  %v705 = vpack.c.b16 %v669, %v668
  %v706 = vpack.c.b16 %v671, %v670
  %v707 = vpack.c.b16 %v673, %v672
  %v708 = vpack.c.b16 %v675, %v674
  %v709 = vpack.c.b16 %v677, %v676
  %v710 = vpack.c.b16 %v679, %v678
  %v711 = vpack.c.b16 %v681, %v680
  %v712 = vpack.c.b16 %v683, %v682
  %v713 = vpack.c.b16 %v685, %v684
  %v714 = vpack.c.b16 %v687, %v686
  %v715 = vpack.c.b16 %v689, %v688
  %v716 = vpack.c.b16 %v691, %v690
  %v717 = vpack.c.b16 %v693, %v692
  %742 = vmatprep.subr.bf16.mxu0 0
  %743 = vmatpush1.bf16.msra.mxu0 %v694
  %744 = vmatprep.subr.bf16.mxu0 0
  %745 = vmatpush1.bf16.msra.mxu0 %v695
  %746 = vmatprep.subr.bf16.mxu0 0
  %747 = vmatpush1.bf16.msra.mxu0 %v696
  %748 = vmatprep.subr.bf16.mxu0 0
  %749 = vmatpush1.bf16.msra.mxu0 %v697
  %750 = vmatprep.subr.bf16.mxu0 0
  %751 = vmatpush1.bf16.msra.mxu0 %v698
  %752 = vmatprep.subr.bf16.mxu0 0
  %753 = vmatpush1.bf16.msra.mxu0 %v699
  %754 = vmatprep.subr.bf16.mxu0 0
  %755 = vmatpush1.bf16.msra.mxu0 %v700
  %756 = vmatprep.subr.bf16.mxu0 0
  %757 = vmatpush1.bf16.msra.mxu0 %v701
  %758 = vmatprep.subr.bf16.mxu0 0
  %759 = vmatpush1.bf16.msra.mxu0 %v702
  %760 = vmatprep.subr.bf16.mxu0 0
  %761 = vmatpush1.bf16.msra.mxu0 %v703
  %762 = vmatprep.subr.bf16.mxu0 0
  %763 = vmatpush1.bf16.msra.mxu0 %v704
  %764 = vmatprep.subr.bf16.mxu0 0
  %765 = vmatpush1.bf16.msra.mxu0 %v705
  %766 = vmatprep.subr.bf16.mxu0 0
  %767 = vmatpush1.bf16.msra.mxu0 %v706
  %768 = vmatprep.subr.bf16.mxu0 0
  %769 = vmatpush1.bf16.msra.mxu0 %v707
  %770 = vmatprep.subr.bf16.mxu0 0
  %771 = vmatpush1.bf16.msra.mxu0 %v708
  %772 = vmatprep.subr.bf16.mxu0 0
  %773 = vmatpush1.bf16.msra.mxu0 %v709
  %774 = vmatprep.mubr.bf16.mxu0 %v449
  %775 = vmatmul.mubr.bf16.gmra.mrb[0].mxu0 %v448
  %v776 = vpop.f32.mrb[0].mxu0
  %v777 = vadd.f32 0.0, %v776
  %v778 = vpop.f32.mrb[0].mxu0
  %v779 = vpop.f32.mrb[0].mxu0
  %v780 = vadd.f32 0.0, %v779
  %v781 = vpop.f32.mrb[0].mxu0
  %782 = vmatprep.mubr.bf16.mxu0 %v452
  %783 = vmatmul.mubr.bf16.gmra.mrb[0].mxu0 %v451
  %v784 = vpop.f32.mrb[0].mxu0
  %v785 = vadd.f32 0.0, %v784
  %v786 = vpop.f32.mrb[0].mxu0
  %v787 = vpop.f32.mrb[0].mxu0
  %v788 = vadd.f32 0.0, %v787
  %v789 = vpop.f32.mrb[0].mxu0
  %790 = vmatprep.mubr.bf16.mxu0 %v455
  %791 = vmatmul.mubr.bf16.gmra.mrb[0].mxu0 %v454
  %v792 = vpop.f32.mrb[0].mxu0
  %v793 = vadd.f32 0.0, %v792
  %v794 = vpop.f32.mrb[0].mxu0
  %v795 = vpop.f32.mrb[0].mxu0
  %v796 = vadd.f32 0.0, %v795
  %v797 = vpop.f32.mrb[0].mxu0
  %798 = vmatprep.mubr.bf16.mxu0 %v458
  %799 = vmatmul.mubr.bf16.gmra.mrb[0].mxu0 %v457
  %v800 = vpop.f32.mrb[0].mxu0
  %v801 = vadd.f32 0.0, %v800
  %v802 = vpop.f32.mrb[0].mxu0
  %v803 = vpop.f32.mrb[0].mxu0
  %v804 = vadd.f32 0.0, %v803
  %v805 = vpop.f32.mrb[0].mxu0
  %806 = vmatprep.mubr.bf16.mxu0 %v461
  %807 = vmatmul.mubr.bf16.gmra.mrb[0].mxu0 %v460
  %v808 = vpop.f32.mrb[0].mxu0
  %v809 = vadd.f32 0.0, %v808
  %v810 = vpop.f32.mrb[0].mxu0
  %v811 = vpop.f32.mrb[0].mxu0
  %v812 = vadd.f32 0.0, %v811
  %v813 = vpop.f32.mrb[0].mxu0
  %814 = vmatprep.mubr.bf16.mxu0 %v464
  %815 = vmatmul.mubr.bf16.gmra.mrb[0].mxu0 %v463
  %v816 = vpop.f32.mrb[0].mxu0
  %v817 = vadd.f32 0.0, %v816
  %v818 = vpop.f32.mrb[0].mxu0
  %v819 = vpop.f32.mrb[0].mxu0
  %v820 = vadd.f32 0.0, %v819
  %v821 = vpop.f32.mrb[0].mxu0
  %822 = vmatprep.mubr.bf16.mxu0 %v467
  %823 = vmatmul.mubr.bf16.gmra.mrb[0].mxu0 %v466
  %v824 = vpop.f32.mrb[0].mxu0
  %v825 = vadd.f32 0.0, %v824
  %v826 = vpop.f32.mrb[0].mxu0
  %v827 = vpop.f32.mrb[0].mxu0
  %v828 = vadd.f32 0.0, %v827
  %v829 = vpop.f32.mrb[0].mxu0
  %830 = vmatprep.mubr.bf16.mxu0 %v470
  %831 = vmatmul.mubr.bf16.gmra.mrb[0].mxu0 %v469
  %v832 = vpop.f32.mrb[0].mxu0
  %v833 = vadd.f32 0.0, %v832
  %v834 = vpop.f32.mrb[0].mxu0
  %v835 = vpop.f32.mrb[0].mxu0
  %v836 = vadd.f32 0.0, %v835
  %v837 = vpop.f32.mrb[0].mxu0
  %838 = vmatprep.mubr.bf16.mxu0 %v473
  %839 = vmatmul.mubr.bf16.gmra.mrb[0].mxu0 %v472
  %v840 = vpop.f32.mrb[0].mxu0
  %v841 = vadd.f32 0.0, %v840
  %v842 = vpop.f32.mrb[0].mxu0
  %v843 = vpop.f32.mrb[0].mxu0
  %v844 = vadd.f32 0.0, %v843
  %v845 = vpop.f32.mrb[0].mxu0
  %846 = vmatprep.mubr.bf16.mxu0 %v476
  %847 = vmatmul.mubr.bf16.gmra.mrb[0].mxu0 %v475
  %v848 = vpop.f32.mrb[0].mxu0
  %v849 = vadd.f32 0.0, %v848
  %v850 = vpop.f32.mrb[0].mxu0
  %v851 = vpop.f32.mrb[0].mxu0
  %v852 = vadd.f32 0.0, %v851
  %v853 = vpop.f32.mrb[0].mxu0
  %854 = vmatprep.mubr.bf16.mxu0 %v479
  %855 = vmatmul.mubr.bf16.gmra.mrb[0].mxu0 %v478
  %v856 = vpop.f32.mrb[0].mxu0
  %v857 = vadd.f32 0.0, %v856
  %v858 = vpop.f32.mrb[0].mxu0
  %v859 = vpop.f32.mrb[0].mxu0
  %v860 = vadd.f32 0.0, %v859
  %v861 = vpop.f32.mrb[0].mxu0
  %862 = vmatprep.mubr.bf16.mxu0 %v482
  %863 = vmatmul.mubr.bf16.gmra.mrb[0].mxu0 %v481
  %v864 = vpop.f32.mrb[0].mxu0
  %v865 = vadd.f32 0.0, %v864
  %v866 = vpop.f32.mrb[0].mxu0
  %v867 = vpop.f32.mrb[0].mxu0
  %v868 = vadd.f32 0.0, %v867
  %v869 = vpop.f32.mrb[0].mxu0
  %870 = vmatprep.mubr.bf16.mxu0 %v485
  %871 = vmatmul.mubr.bf16.gmra.mrb[0].mxu0 %v484
  %v872 = vpop.f32.mrb[0].mxu0
  %v873 = vadd.f32 0.0, %v872
  %v874 = vpop.f32.mrb[0].mxu0
  %v875 = vpop.f32.mrb[0].mxu0
  %v876 = vadd.f32 0.0, %v875
  %v877 = vpop.f32.mrb[0].mxu0
  %878 = vmatprep.mubr.bf16.mxu0 %v488
  %879 = vmatmul.mubr.bf16.gmra.mrb[0].mxu0 %v487
  %v880 = vpop.f32.mrb[0].mxu0
  %v881 = vadd.f32 0.0, %v880
  %v882 = vpop.f32.mrb[0].mxu0
  %v883 = vpop.f32.mrb[0].mxu0
  %v884 = vadd.f32 0.0, %v883
  %v885 = vpop.f32.mrb[0].mxu0
  %886 = vmatprep.mubr.bf16.mxu0 %v491
  %887 = vmatmul.mubr.bf16.gmra.mrb[0].mxu0 %v490
  %v888 = vpop.f32.mrb[0].mxu0
  %v889 = vadd.f32 0.0, %v888
  %v890 = vpop.f32.mrb[0].mxu0
  %v891 = vpop.f32.mrb[0].mxu0
  %v892 = vadd.f32 0.0, %v891
  %v893 = vpop.f32.mrb[0].mxu0
  %894 = vmatprep.mubr.bf16.mxu0 %v494
  %895 = vmatmul.mubr.bf16.gmra.mrb[0].mxu0 %v493
  %v896 = vpop.f32.mrb[0].mxu0
  %v897 = vadd.f32 0.0, %v896
  %v898 = vpop.f32.mrb[0].mxu0
  %v899 = vpop.f32.mrb[0].mxu0
  %v900 = vadd.f32 0.0, %v899
  %v901 = vpop.f32.mrb[0].mxu0
  %902 = vmatprep.mubr.bf16.mxu0 %v497
  %903 = vmatmul.mubr.bf16.gmra.mrb[0].mxu0 %v496
  %v904 = vpop.f32.mrb[0].mxu0
  %v905 = vadd.f32 0.0, %v904
  %v906 = vpop.f32.mrb[0].mxu0
  %v907 = vpop.f32.mrb[0].mxu0
  %v908 = vadd.f32 0.0, %v907
  %v909 = vpop.f32.mrb[0].mxu0
  %910 = vmatprep.mubr.bf16.mxu0 %v500
  %911 = vmatmul.mubr.bf16.gmra.mrb[0].mxu0 %v499
  %v912 = vpop.f32.mrb[0].mxu0
  %v913 = vadd.f32 0.0, %v912
  %v914 = vpop.f32.mrb[0].mxu0
  %v915 = vpop.f32.mrb[0].mxu0
  %v916 = vadd.f32 0.0, %v915
  %v917 = vpop.f32.mrb[0].mxu0
  %918 = vmatprep.mubr.bf16.mxu0 %v503
  %919 = vmatmul.mubr.bf16.gmra.mrb[0].mxu0 %v502
  %v920 = vpop.f32.mrb[0].mxu0
  %v921 = vadd.f32 0.0, %v920
  %v922 = vpop.f32.mrb[0].mxu0
  %v923 = vpop.f32.mrb[0].mxu0
  %v924 = vadd.f32 0.0, %v923
  %v925 = vpop.f32.mrb[0].mxu0
  %926 = vmatprep.mubr.bf16.mxu0 %v506
  %927 = vmatmul.mubr.bf16.gmra.mrb[0].mxu0 %v505
  %v928 = vpop.f32.mrb[0].mxu0
  %v929 = vadd.f32 0.0, %v928
  %v930 = vpop.f32.mrb[0].mxu0
  %v931 = vpop.f32.mrb[0].mxu0
  %v932 = vadd.f32 0.0, %v931
  %v933 = vpop.f32.mrb[0].mxu0
  %934 = vmatprep.mubr.bf16.mxu0 %v509
  %935 = vmatmul.mubr.bf16.gmra.mrb[0].mxu0 %v508
  %v936 = vpop.f32.mrb[0].mxu0
  %v937 = vadd.f32 0.0, %v936
  %v938 = vpop.f32.mrb[0].mxu0
  %v939 = vpop.f32.mrb[0].mxu0
  %v940 = vadd.f32 0.0, %v939
  %v941 = vpop.f32.mrb[0].mxu0
  %942 = vmatprep.mubr.bf16.mxu0 %v512
  %943 = vmatmul.mubr.bf16.gmra.mrb[0].mxu0 %v511
  %v944 = vpop.f32.mrb[0].mxu0
  %v945 = vadd.f32 0.0, %v944
  %v946 = vpop.f32.mrb[0].mxu0
  %v947 = vpop.f32.mrb[0].mxu0
  %v948 = vadd.f32 0.0, %v947
  %v949 = vpop.f32.mrb[0].mxu0
  %950 = vmatprep.mubr.bf16.mxu0 %v515
  %951 = vmatmul.mubr.bf16.gmra.mrb[0].mxu0 %v514
  %v952 = vpop.f32.mrb[0].mxu0
  %v953 = vadd.f32 0.0, %v952
  %v954 = vpop.f32.mrb[0].mxu0
  %v955 = vpop.f32.mrb[0].mxu0
  %v956 = vadd.f32 0.0, %v955
  %v957 = vpop.f32.mrb[0].mxu0
  %958 = vmatprep.mubr.bf16.mxu0 %v518
  %959 = vmatmul.mubr.bf16.gmra.mrb[0].mxu0 %v517
  %v960 = vpop.f32.mrb[0].mxu0
  %v961 = vadd.f32 0.0, %v960
  %v962 = vpop.f32.mrb[0].mxu0
  %v963 = vpop.f32.mrb[0].mxu0
  %v964 = vadd.f32 0.0, %v963
  %v965 = vpop.f32.mrb[0].mxu0
  %966 = vmatprep.mubr.bf16.mxu0 %v521
  %967 = vmatmul.mubr.bf16.gmra.mrb[0].mxu0 %v520
  %v968 = vpop.f32.mrb[0].mxu0
  %v969 = vadd.f32 0.0, %v968
  %v970 = vpop.f32.mrb[0].mxu0
  %v971 = vpop.f32.mrb[0].mxu0
  %v972 = vpop.f32.mrb[0].mxu0
  %973 = vdwg.mxu0
  %974 = vmatprep.subr.bf16.mxu0 0
  %975 = vmatpush1.bf16.msra.mxu0 %v710
  %976 = vmatprep.subr.bf16.mxu0 0
  %977 = vmatpush1.bf16.msra.mxu0 %v711
  %978 = vmatprep.subr.bf16.mxu0 0
  %979 = vmatpush1.bf16.msra.mxu0 %v712
  %980 = vmatprep.subr.bf16.mxu0 0
  %981 = vmatpush1.bf16.msra.mxu0 %v713
  %982 = vmatprep.subr.bf16.mxu0 0
  %983 = vmatpush1.bf16.msra.mxu0 %v714
  %984 = vmatprep.subr.bf16.mxu0 0
  %985 = vmatpush1.bf16.msra.mxu0 %v715
  %986 = vmatprep.subr.bf16.mxu0 0
  %987 = vmatpush1.bf16.msra.mxu0 %v716
  %988 = vmatprep.subr.bf16.mxu0 0
  %989 = vmatpush1.bf16.msra.mxu0 %v717
  %990 = vmatprep.subr.bf16.mxu0 0
  %991 = vmatpush1.bf16.msra.mxu0 0
  %992 = vmatprep.subr.bf16.mxu0 0
  %993 = vmatpush1.bf16.msra.mxu0 0
  %994 = vmatprep.subr.bf16.mxu0 0
  %995 = vmatpush1.bf16.msra.mxu0 0
  %996 = vmatprep.subr.bf16.mxu0 0
  %997 = vmatpush1.bf16.msra.mxu0 0
  %998 = vmatprep.subr.bf16.mxu0 0
  %999 = vmatpush1.bf16.msra.mxu0 0
  %1000 = vmatprep.subr.bf16.mxu0 0
  %1001 = vmatpush1.bf16.msra.mxu0 0
  %1002 = vmatprep.subr.bf16.mxu0 0
  %1003 = vmatpush1.bf16.msra.mxu0 0
  %1004 = vmatprep.subr.bf16.mxu0 0
  %1005 = vmatpush1.bf16.msra.mxu0 0
  %1006 = vmatprep.mubr.bf16.mxu0 0
  %1007 = vmatmul.mubr.bf16.gmra.mrb[0].mxu0 %v450
  %v1008 = vpop.f32.mrb[0].mxu0
  %v1009 = vadd.f32 %v777, %v1008
  %v1010 = vpop.f32.mrb[0].mxu0
  %v1011 = vpop.f32.mrb[0].mxu0
  %v1012 = vadd.f32 %v780, %v1011
  %v1013 = vpop.f32.mrb[0].mxu0
  %1014 = vmatprep.mubr.bf16.mxu0 0
  %1015 = vmatmul.mubr.bf16.gmra.mrb[0].mxu0 %v453
  %v1016 = vpop.f32.mrb[0].mxu0
  %v1017 = vadd.f32 %v785, %v1016
  %v1018 = vpop.f32.mrb[0].mxu0
  %v1019 = vpop.f32.mrb[0].mxu0
  %v1020 = vadd.f32 %v788, %v1019
  %v1021 = vpop.f32.mrb[0].mxu0
  %1022 = vmatprep.mubr.bf16.mxu0 0
  %1023 = vmatmul.mubr.bf16.gmra.mrb[0].mxu0 %v456
  %v1024 = vpop.f32.mrb[0].mxu0
  %v1025 = vadd.f32 %v793, %v1024
  %v1026 = vpop.f32.mrb[0].mxu0
  %v1027 = vpop.f32.mrb[0].mxu0
  %v1028 = vadd.f32 %v796, %v1027
  %v1029 = vpop.f32.mrb[0].mxu0
  %1030 = vmatprep.mubr.bf16.mxu0 0
  %1031 = vmatmul.mubr.bf16.gmra.mrb[0].mxu0 %v459
  %v1032 = vpop.f32.mrb[0].mxu0
  %v1033 = vadd.f32 %v801, %v1032
  %v1034 = vpop.f32.mrb[0].mxu0
  %v1035 = vpop.f32.mrb[0].mxu0
  %v1036 = vadd.f32 %v804, %v1035
  %v1037 = vpop.f32.mrb[0].mxu0
  %1038 = vmatprep.mubr.bf16.mxu0 0
  %1039 = vmatmul.mubr.bf16.gmra.mrb[0].mxu0 %v462
  %v1040 = vpop.f32.mrb[0].mxu0
  %v1041 = vadd.f32 %v809, %v1040
  %v1042 = vpop.f32.mrb[0].mxu0
  %v1043 = vpop.f32.mrb[0].mxu0
  %v1044 = vadd.f32 %v812, %v1043
  %v1045 = vpop.f32.mrb[0].mxu0
  %1046 = vmatprep.mubr.bf16.mxu0 0
  %1047 = vmatmul.mubr.bf16.gmra.mrb[0].mxu0 %v465
  %v1048 = vpop.f32.mrb[0].mxu0
  %v1049 = vadd.f32 %v817, %v1048
  %v1050 = vpop.f32.mrb[0].mxu0
  %v1051 = vpop.f32.mrb[0].mxu0
  %v1052 = vadd.f32 %v820, %v1051
  %v1053 = vpop.f32.mrb[0].mxu0
  %1054 = vmatprep.mubr.bf16.mxu0 0
  %1055 = vmatmul.mubr.bf16.gmra.mrb[0].mxu0 %v468
  %v1056 = vpop.f32.mrb[0].mxu0
  %v1057 = vadd.f32 %v825, %v1056
  %v1058 = vpop.f32.mrb[0].mxu0
  %v1059 = vpop.f32.mrb[0].mxu0
  %v1060 = vadd.f32 %v828, %v1059
  %v1061 = vpop.f32.mrb[0].mxu0
  %1062 = vmatprep.mubr.bf16.mxu0 0
  %1063 = vmatmul.mubr.bf16.gmra.mrb[0].mxu0 %v471
  %v1064 = vpop.f32.mrb[0].mxu0
  %v1065 = vadd.f32 %v833, %v1064
  %v1066 = vpop.f32.mrb[0].mxu0
  %v1067 = vpop.f32.mrb[0].mxu0
  %v1068 = vadd.f32 %v836, %v1067
  %v1069 = vpop.f32.mrb[0].mxu0
  %1070 = vmatprep.mubr.bf16.mxu0 0
  %1071 = vmatmul.mubr.bf16.gmra.mrb[0].mxu0 %v474
  %v1072 = vpop.f32.mrb[0].mxu0
  %v1073 = vadd.f32 %v841, %v1072
  %v1074 = vpop.f32.mrb[0].mxu0
  %v1075 = vpop.f32.mrb[0].mxu0
  %v1076 = vadd.f32 %v844, %v1075
  %v1077 = vpop.f32.mrb[0].mxu0
  %1078 = vmatprep.mubr.bf16.mxu0 0
  %1079 = vmatmul.mubr.bf16.gmra.mrb[0].mxu0 %v477
  %v1080 = vpop.f32.mrb[0].mxu0
  %v1081 = vadd.f32 %v849, %v1080
  %v1082 = vpop.f32.mrb[0].mxu0
  %v1083 = vpop.f32.mrb[0].mxu0
  %v1084 = vadd.f32 %v852, %v1083
  %v1085 = vpop.f32.mrb[0].mxu0
  %1086 = vmatprep.mubr.bf16.mxu0 0
  %1087 = vmatmul.mubr.bf16.gmra.mrb[0].mxu0 %v480
  %v1088 = vpop.f32.mrb[0].mxu0
  %v1089 = vadd.f32 %v857, %v1088
  %v1090 = vpop.f32.mrb[0].mxu0
  %v1091 = vpop.f32.mrb[0].mxu0
  %v1092 = vadd.f32 %v860, %v1091
  %v1093 = vpop.f32.mrb[0].mxu0
  %1094 = vmatprep.mubr.bf16.mxu0 0
  %1095 = vmatmul.mubr.bf16.gmra.mrb[0].mxu0 %v483
  %v1096 = vpop.f32.mrb[0].mxu0
  %v1097 = vadd.f32 %v865, %v1096
  %v1098 = vpop.f32.mrb[0].mxu0
  %v1099 = vpop.f32.mrb[0].mxu0
  %v1100 = vadd.f32 %v868, %v1099
  %v1101 = vpop.f32.mrb[0].mxu0
  %1102 = vmatprep.mubr.bf16.mxu0 0
  %1103 = vmatmul.mubr.bf16.gmra.mrb[0].mxu0 %v486
  %v1104 = vpop.f32.mrb[0].mxu0
  %v1105 = vadd.f32 %v873, %v1104
  %v1106 = vpop.f32.mrb[0].mxu0
  %v1107 = vpop.f32.mrb[0].mxu0
  %v1108 = vadd.f32 %v876, %v1107
  %v1109 = vpop.f32.mrb[0].mxu0
  %1110 = vmatprep.mubr.bf16.mxu0 0
  %1111 = vmatmul.mubr.bf16.gmra.mrb[0].mxu0 %v489
  %v1112 = vpop.f32.mrb[0].mxu0
  %v1113 = vadd.f32 %v881, %v1112
  %v1114 = vpop.f32.mrb[0].mxu0
  %v1115 = vpop.f32.mrb[0].mxu0
  %v1116 = vadd.f32 %v884, %v1115
  %v1117 = vpop.f32.mrb[0].mxu0
  %1118 = vmatprep.mubr.bf16.mxu0 0
  %1119 = vmatmul.mubr.bf16.gmra.mrb[0].mxu0 %v492
  %v1120 = vpop.f32.mrb[0].mxu0
  %v1121 = vadd.f32 %v889, %v1120
  %v1122 = vpop.f32.mrb[0].mxu0
  %v1123 = vpop.f32.mrb[0].mxu0
  %v1124 = vadd.f32 %v892, %v1123
  %v1125 = vpop.f32.mrb[0].mxu0
  %1126 = vmatprep.mubr.bf16.mxu0 0
  %1127 = vmatmul.mubr.bf16.gmra.mrb[0].mxu0 %v495
  %v1128 = vpop.f32.mrb[0].mxu0
  %v1129 = vadd.f32 %v897, %v1128
  %v1130 = vpop.f32.mrb[0].mxu0
  %v1131 = vpop.f32.mrb[0].mxu0
  %v1132 = vadd.f32 %v900, %v1131
  %v1133 = vpop.f32.mrb[0].mxu0
  %1134 = vmatprep.mubr.bf16.mxu0 0
  %1135 = vmatmul.mubr.bf16.gmra.mrb[0].mxu0 %v498
  %v1136 = vpop.f32.mrb[0].mxu0
  %v1137 = vadd.f32 %v905, %v1136
  %v1138 = vpop.f32.mrb[0].mxu0
  %v1139 = vpop.f32.mrb[0].mxu0
  %v1140 = vadd.f32 %v908, %v1139
  %v1141 = vpop.f32.mrb[0].mxu0
  %1142 = vmatprep.mubr.bf16.mxu0 0
  %1143 = vmatmul.mubr.bf16.gmra.mrb[0].mxu0 %v501
  %v1144 = vpop.f32.mrb[0].mxu0
  %v1145 = vadd.f32 %v913, %v1144
  %v1146 = vpop.f32.mrb[0].mxu0
  %v1147 = vpop.f32.mrb[0].mxu0
  %v1148 = vadd.f32 %v916, %v1147
  %v1149 = vpop.f32.mrb[0].mxu0
  %1150 = vmatprep.mubr.bf16.mxu0 0
  %1151 = vmatmul.mubr.bf16.gmra.mrb[0].mxu0 %v504
  %v1152 = vpop.f32.mrb[0].mxu0
  %v1153 = vadd.f32 %v921, %v1152
  %v1154 = vpop.f32.mrb[0].mxu0
  %v1155 = vpop.f32.mrb[0].mxu0
  %v1156 = vadd.f32 %v924, %v1155
  %v1157 = vpop.f32.mrb[0].mxu0
  %1158 = vmatprep.mubr.bf16.mxu0 0
  %1159 = vmatmul.mubr.bf16.gmra.mrb[0].mxu0 %v507
  %v1160 = vpop.f32.mrb[0].mxu0
  %v1161 = vadd.f32 %v929, %v1160
  %v1162 = vpop.f32.mrb[0].mxu0
  %v1163 = vpop.f32.mrb[0].mxu0
  %v1164 = vadd.f32 %v932, %v1163
  %v1165 = vpop.f32.mrb[0].mxu0
  %1166 = vmatprep.mubr.bf16.mxu0 0
  %1167 = vmatmul.mubr.bf16.gmra.mrb[0].mxu0 %v510
  %v1168 = vpop.f32.mrb[0].mxu0
  %v1169 = vadd.f32 %v937, %v1168
  %v1170 = vpop.f32.mrb[0].mxu0
  %v1171 = vpop.f32.mrb[0].mxu0
  %v1172 = vadd.f32 %v940, %v1171
  %v1173 = vpop.f32.mrb[0].mxu0
  %1174 = vmatprep.mubr.bf16.mxu0 0
  %1175 = vmatmul.mubr.bf16.gmra.mrb[0].mxu0 %v513
  %v1176 = vpop.f32.mrb[0].mxu0
  %v1177 = vadd.f32 %v945, %v1176
  %v1178 = vpop.f32.mrb[0].mxu0
  %v1179 = vpop.f32.mrb[0].mxu0
  %v1180 = vadd.f32 %v948, %v1179
  %v1181 = vpop.f32.mrb[0].mxu0
  %1182 = vmatprep.mubr.bf16.mxu0 0
  %1183 = vmatmul.mubr.bf16.gmra.mrb[0].mxu0 %v516
  %v1184 = vpop.f32.mrb[0].mxu0
  %v1185 = vadd.f32 %v953, %v1184
  %v1186 = vpop.f32.mrb[0].mxu0
  %v1187 = vpop.f32.mrb[0].mxu0
  %v1188 = vadd.f32 %v956, %v1187
  %v1189 = vpop.f32.mrb[0].mxu0
  %1190 = vmatprep.mubr.bf16.mxu0 0
  %1191 = vmatmul.mubr.bf16.gmra.mrb[0].mxu0 %v519
  %v1192 = vpop.f32.mrb[0].mxu0
  %v1193 = vadd.f32 %v961, %v1192
  %v1194 = vpop.f32.mrb[0].mxu0
  %v1195 = vpop.f32.mrb[0].mxu0
  %v1196 = vadd.f32 %v964, %v1195
  %v1197 = vpop.f32.mrb[0].mxu0
  %1198 = vmatprep.mubr.bf16.mxu0 0
  %1199 = vmatmul.mubr.bf16.gmra.mrb[0].mxu0 %v522
  %v1200 = vpop.f32.mrb[0].mxu0
  %v1201 = vadd.f32 %v969, %v1200
  %v1202 = vpop.f32.mrb[0].mxu0
  %v1203 = vpop.f32.mrb[0].mxu0
  %v1204 = vpop.f32.mrb[0].mxu0
  %1205 = vdwg.mxu0
  %v1255 = vcombine.high %v1009, %v1009
  %v1257 = vunpack.c.l.s4 1966171168
  %v1258 = vunpack.c.0.s8 %v1257
  %v1259 = vlaneseq
  %v1260 = vshrl.u32 %v1259, 7
  %v1261 = vsub.s32 %v1258, %v1260
  %v1262 = vrot.slane %v1009, %v1261
  %v1264 = vunpack.c.l.s4 1966171168
  %v1265 = vunpack.c.0.s8 %v1264
  %v1266 = vlaneseq
  %v1267 = vshrl.u32 %v1266, 7
  %v1268 = vsub.s32 %v1265, %v1267
  %v1269 = vrot.slane %v1255, %v1268
  %v1270 = vcombine.high %v1262, %v1262
  %v1271 = vcombine.high %v1269, %v1269
  %v1273 = vunpack.c.l.s4 1966171168
  %v1274 = vunpack.c.0.s8 %v1273
  %v1275 = vlaneseq
  %v1276 = vshrl.u32 %v1275, 7
  %v1277 = vsub.s32 %v1274, %v1276
  %v1278 = vrot.slane %v1262, %v1277
  %v1280 = vunpack.c.l.s4 1966171168
  %v1281 = vunpack.c.0.s8 %v1280
  %v1282 = vlaneseq
  %v1283 = vshrl.u32 %v1282, 7
  %v1284 = vsub.s32 %v1281, %v1283
  %v1285 = vrot.slane %v1269, %v1284
  %v1287 = vunpack.c.l.s4 1966171168
  %v1288 = vunpack.c.0.s8 %v1287
  %v1289 = vlaneseq
  %v1290 = vshrl.u32 %v1289, 7
  %v1291 = vsub.s32 %v1288, %v1290
  %v1292 = vrot.slane %v1270, %v1291
  %v1294 = vunpack.c.l.s4 1966171168
  %v1295 = vunpack.c.0.s8 %v1294
  %v1296 = vlaneseq
  %v1297 = vshrl.u32 %v1296, 7
  %v1298 = vsub.s32 %v1295, %v1297
  %v1299 = vrot.slane %v1271, %v1298
  %v1300 = vcombine.high %v1278, %v1278
  %v1301 = vcombine.high %v1285, %v1285
  %v1302 = vcombine.high %v1292, %v1292
  %v1303 = vcombine.high %v1299, %v1299
  %v1304 = vcombine.high %v1012, %v1012
  %v1306 = vunpack.c.l.s4 1966171168
  %v1307 = vunpack.c.0.s8 %v1306
  %v1308 = vlaneseq
  %v1309 = vshrl.u32 %v1308, 7
  %v1310 = vsub.s32 %v1307, %v1309
  %v1311 = vrot.slane %v1012, %v1310
  %v1313 = vunpack.c.l.s4 1966171168
  %v1314 = vunpack.c.0.s8 %v1313
  %v1315 = vlaneseq
  %v1316 = vshrl.u32 %v1315, 7
  %v1317 = vsub.s32 %v1314, %v1316
  %v1318 = vrot.slane %v1304, %v1317
  %v1319 = vcombine.high %v1311, %v1311
  %v1320 = vcombine.high %v1318, %v1318
  %v1322 = vunpack.c.l.s4 1966171168
  %v1323 = vunpack.c.0.s8 %v1322
  %v1324 = vlaneseq
  %v1325 = vshrl.u32 %v1324, 7
  %v1326 = vsub.s32 %v1323, %v1325
  %v1327 = vrot.slane %v1311, %v1326
  %v1329 = vunpack.c.l.s4 1966171168
  %v1330 = vunpack.c.0.s8 %v1329
  %v1331 = vlaneseq
  %v1332 = vshrl.u32 %v1331, 7
  %v1333 = vsub.s32 %v1330, %v1332
  %v1334 = vrot.slane %v1318, %v1333
  %v1336 = vunpack.c.l.s4 1966171168
  %v1337 = vunpack.c.0.s8 %v1336
  %v1338 = vlaneseq
  %v1339 = vshrl.u32 %v1338, 7
  %v1340 = vsub.s32 %v1337, %v1339
  %v1341 = vrot.slane %v1319, %v1340
  %v1343 = vunpack.c.l.s4 1966171168
  %v1344 = vunpack.c.0.s8 %v1343
  %v1345 = vlaneseq
  %v1346 = vshrl.u32 %v1345, 7
  %v1347 = vsub.s32 %v1344, %v1346
  %v1348 = vrot.slane %v1320, %v1347
  %v1349 = vcombine.high %v1327, %v1327
  %v1350 = vcombine.high %v1334, %v1334
  %v1351 = vcombine.high %v1341, %v1341
  %v1352 = vcombine.high %v1348, %v1348
  %v1353 = vcombine.high %v1017, %v1017
  %v1355 = vunpack.c.l.s4 1966171168
  %v1356 = vunpack.c.0.s8 %v1355
  %v1357 = vlaneseq
  %v1358 = vshrl.u32 %v1357, 7
  %v1359 = vsub.s32 %v1356, %v1358
  %v1360 = vrot.slane %v1017, %v1359
  %v1362 = vunpack.c.l.s4 1966171168
  %v1363 = vunpack.c.0.s8 %v1362
  %v1364 = vlaneseq
  %v1365 = vshrl.u32 %v1364, 7
  %v1366 = vsub.s32 %v1363, %v1365
  %v1367 = vrot.slane %v1353, %v1366
  %v1368 = vcombine.high %v1360, %v1360
  %v1369 = vcombine.high %v1367, %v1367
  %v1371 = vunpack.c.l.s4 1966171168
  %v1372 = vunpack.c.0.s8 %v1371
  %v1373 = vlaneseq
  %v1374 = vshrl.u32 %v1373, 7
  %v1375 = vsub.s32 %v1372, %v1374
  %v1376 = vrot.slane %v1360, %v1375
  %v1378 = vunpack.c.l.s4 1966171168
  %v1379 = vunpack.c.0.s8 %v1378
  %v1380 = vlaneseq
  %v1381 = vshrl.u32 %v1380, 7
  %v1382 = vsub.s32 %v1379, %v1381
  %v1383 = vrot.slane %v1367, %v1382
  %v1385 = vunpack.c.l.s4 1966171168
  %v1386 = vunpack.c.0.s8 %v1385
  %v1387 = vlaneseq
  %v1388 = vshrl.u32 %v1387, 7
  %v1389 = vsub.s32 %v1386, %v1388
  %v1390 = vrot.slane %v1368, %v1389
  %v1392 = vunpack.c.l.s4 1966171168
  %v1393 = vunpack.c.0.s8 %v1392
  %v1394 = vlaneseq
  %v1395 = vshrl.u32 %v1394, 7
  %v1396 = vsub.s32 %v1393, %v1395
  %v1397 = vrot.slane %v1369, %v1396
  %v1398 = vcombine.high %v1376, %v1376
  %v1399 = vcombine.high %v1383, %v1383
  %v1400 = vcombine.high %v1390, %v1390
  %v1401 = vcombine.high %v1397, %v1397
  %v1402 = vcombine.high %v1020, %v1020
  %v1404 = vunpack.c.l.s4 1966171168
  %v1405 = vunpack.c.0.s8 %v1404
  %v1406 = vlaneseq
  %v1407 = vshrl.u32 %v1406, 7
  %v1408 = vsub.s32 %v1405, %v1407
  %v1409 = vrot.slane %v1020, %v1408
  %v1411 = vunpack.c.l.s4 1966171168
  %v1412 = vunpack.c.0.s8 %v1411
  %v1413 = vlaneseq
  %v1414 = vshrl.u32 %v1413, 7
  %v1415 = vsub.s32 %v1412, %v1414
  %v1416 = vrot.slane %v1402, %v1415
  %v1417 = vcombine.high %v1409, %v1409
  %v1418 = vcombine.high %v1416, %v1416
  %v1420 = vunpack.c.l.s4 1966171168
  %v1421 = vunpack.c.0.s8 %v1420
  %v1422 = vlaneseq
  %v1423 = vshrl.u32 %v1422, 7
  %v1424 = vsub.s32 %v1421, %v1423
  %v1425 = vrot.slane %v1409, %v1424
  %v1427 = vunpack.c.l.s4 1966171168
  %v1428 = vunpack.c.0.s8 %v1427
  %v1429 = vlaneseq
  %v1430 = vshrl.u32 %v1429, 7
  %v1431 = vsub.s32 %v1428, %v1430
  %v1432 = vrot.slane %v1416, %v1431
  %v1434 = vunpack.c.l.s4 1966171168
  %v1435 = vunpack.c.0.s8 %v1434
  %v1436 = vlaneseq
  %v1437 = vshrl.u32 %v1436, 7
  %v1438 = vsub.s32 %v1435, %v1437
  %v1439 = vrot.slane %v1417, %v1438
  %v1441 = vunpack.c.l.s4 1966171168
  %v1442 = vunpack.c.0.s8 %v1441
  %v1443 = vlaneseq
  %v1444 = vshrl.u32 %v1443, 7
  %v1445 = vsub.s32 %v1442, %v1444
  %v1446 = vrot.slane %v1418, %v1445
  %v1447 = vcombine.high %v1425, %v1425
  %v1448 = vcombine.high %v1432, %v1432
  %v1449 = vcombine.high %v1439, %v1439
  %v1450 = vcombine.high %v1446, %v1446
  %v1451 = vcombine.high %v1025, %v1025
  %v1453 = vunpack.c.l.s4 1966171168
  %v1454 = vunpack.c.0.s8 %v1453
  %v1455 = vlaneseq
  %v1456 = vshrl.u32 %v1455, 7
  %v1457 = vsub.s32 %v1454, %v1456
  %v1458 = vrot.slane %v1025, %v1457
  %v1460 = vunpack.c.l.s4 1966171168
  %v1461 = vunpack.c.0.s8 %v1460
  %v1462 = vlaneseq
  %v1463 = vshrl.u32 %v1462, 7
  %v1464 = vsub.s32 %v1461, %v1463
  %v1465 = vrot.slane %v1451, %v1464
  %v1466 = vcombine.high %v1458, %v1458
  %v1467 = vcombine.high %v1465, %v1465
  %v1469 = vunpack.c.l.s4 1966171168
  %v1470 = vunpack.c.0.s8 %v1469
  %v1471 = vlaneseq
  %v1472 = vshrl.u32 %v1471, 7
  %v1473 = vsub.s32 %v1470, %v1472
  %v1474 = vrot.slane %v1458, %v1473
  %v1476 = vunpack.c.l.s4 1966171168
  %v1477 = vunpack.c.0.s8 %v1476
  %v1478 = vlaneseq
  %v1479 = vshrl.u32 %v1478, 7
  %v1480 = vsub.s32 %v1477, %v1479
  %v1481 = vrot.slane %v1465, %v1480
  %v1483 = vunpack.c.l.s4 1966171168
  %v1484 = vunpack.c.0.s8 %v1483
  %v1485 = vlaneseq
  %v1486 = vshrl.u32 %v1485, 7
  %v1487 = vsub.s32 %v1484, %v1486
  %v1488 = vrot.slane %v1466, %v1487
  %v1490 = vunpack.c.l.s4 1966171168
  %v1491 = vunpack.c.0.s8 %v1490
  %v1492 = vlaneseq
  %v1493 = vshrl.u32 %v1492, 7
  %v1494 = vsub.s32 %v1491, %v1493
  %v1495 = vrot.slane %v1467, %v1494
  %v1496 = vcombine.high %v1474, %v1474
  %v1497 = vcombine.high %v1481, %v1481
  %v1498 = vcombine.high %v1488, %v1488
  %v1499 = vcombine.high %v1495, %v1495
  %v1500 = vcombine.high %v1028, %v1028
  %v1502 = vunpack.c.l.s4 1966171168
  %v1503 = vunpack.c.0.s8 %v1502
  %v1504 = vlaneseq
  %v1505 = vshrl.u32 %v1504, 7
  %v1506 = vsub.s32 %v1503, %v1505
  %v1507 = vrot.slane %v1028, %v1506
  %v1509 = vunpack.c.l.s4 1966171168
  %v1510 = vunpack.c.0.s8 %v1509
  %v1511 = vlaneseq
  %v1512 = vshrl.u32 %v1511, 7
  %v1513 = vsub.s32 %v1510, %v1512
  %v1514 = vrot.slane %v1500, %v1513
  %v1515 = vcombine.high %v1507, %v1507
  %v1516 = vcombine.high %v1514, %v1514
  %v1518 = vunpack.c.l.s4 1966171168
  %v1519 = vunpack.c.0.s8 %v1518
  %v1520 = vlaneseq
  %v1521 = vshrl.u32 %v1520, 7
  %v1522 = vsub.s32 %v1519, %v1521
  %v1523 = vrot.slane %v1507, %v1522
  %v1525 = vunpack.c.l.s4 1966171168
  %v1526 = vunpack.c.0.s8 %v1525
  %v1527 = vlaneseq
  %v1528 = vshrl.u32 %v1527, 7
  %v1529 = vsub.s32 %v1526, %v1528
  %v1530 = vrot.slane %v1514, %v1529
  %v1532 = vunpack.c.l.s4 1966171168
  %v1533 = vunpack.c.0.s8 %v1532
  %v1534 = vlaneseq
  %v1535 = vshrl.u32 %v1534, 7
  %v1536 = vsub.s32 %v1533, %v1535
  %v1537 = vrot.slane %v1515, %v1536
  %v1539 = vunpack.c.l.s4 1966171168
  %v1540 = vunpack.c.0.s8 %v1539
  %v1541 = vlaneseq
  %v1542 = vshrl.u32 %v1541, 7
  %v1543 = vsub.s32 %v1540, %v1542
  %v1544 = vrot.slane %v1516, %v1543
  %v1545 = vcombine.high %v1523, %v1523
  %v1546 = vcombine.high %v1530, %v1530
  %v1547 = vcombine.high %v1537, %v1537
  %v1548 = vcombine.high %v1544, %v1544
  %v1549 = vcombine.high %v1033, %v1033
  %v1551 = vunpack.c.l.s4 1966171168
  %v1552 = vunpack.c.0.s8 %v1551
  %v1553 = vlaneseq
  %v1554 = vshrl.u32 %v1553, 7
  %v1555 = vsub.s32 %v1552, %v1554
  %v1556 = vrot.slane %v1033, %v1555
  %v1558 = vunpack.c.l.s4 1966171168
  %v1559 = vunpack.c.0.s8 %v1558
  %v1560 = vlaneseq
  %v1561 = vshrl.u32 %v1560, 7
  %v1562 = vsub.s32 %v1559, %v1561
  %v1563 = vrot.slane %v1549, %v1562
  %v1564 = vcombine.high %v1556, %v1556
  %v1565 = vcombine.high %v1563, %v1563
  %v1567 = vunpack.c.l.s4 1966171168
  %v1568 = vunpack.c.0.s8 %v1567
  %v1569 = vlaneseq
  %v1570 = vshrl.u32 %v1569, 7
  %v1571 = vsub.s32 %v1568, %v1570
  %v1572 = vrot.slane %v1556, %v1571
  %v1574 = vunpack.c.l.s4 1966171168
  %v1575 = vunpack.c.0.s8 %v1574
  %v1576 = vlaneseq
  %v1577 = vshrl.u32 %v1576, 7
  %v1578 = vsub.s32 %v1575, %v1577
  %v1579 = vrot.slane %v1563, %v1578
  %v1581 = vunpack.c.l.s4 1966171168
  %v1582 = vunpack.c.0.s8 %v1581
  %v1583 = vlaneseq
  %v1584 = vshrl.u32 %v1583, 7
  %v1585 = vsub.s32 %v1582, %v1584
  %v1586 = vrot.slane %v1564, %v1585
  %v1588 = vunpack.c.l.s4 1966171168
  %v1589 = vunpack.c.0.s8 %v1588
  %v1590 = vlaneseq
  %v1591 = vshrl.u32 %v1590, 7
  %v1592 = vsub.s32 %v1589, %v1591
  %v1593 = vrot.slane %v1565, %v1592
  %v1594 = vcombine.high %v1572, %v1572
  %v1595 = vcombine.high %v1579, %v1579
  %v1596 = vcombine.high %v1586, %v1586
  %v1597 = vcombine.high %v1593, %v1593
  %v1598 = vcombine.high %v1036, %v1036
  %v1600 = vunpack.c.l.s4 1966171168
  %v1601 = vunpack.c.0.s8 %v1600
  %v1602 = vlaneseq
  %v1603 = vshrl.u32 %v1602, 7
  %v1604 = vsub.s32 %v1601, %v1603
  %v1605 = vrot.slane %v1036, %v1604
  %v1607 = vunpack.c.l.s4 1966171168
  %v1608 = vunpack.c.0.s8 %v1607
  %v1609 = vlaneseq
  %v1610 = vshrl.u32 %v1609, 7
  %v1611 = vsub.s32 %v1608, %v1610
  %v1612 = vrot.slane %v1598, %v1611
  %v1613 = vcombine.high %v1605, %v1605
  %v1614 = vcombine.high %v1612, %v1612
  %v1616 = vunpack.c.l.s4 1966171168
  %v1617 = vunpack.c.0.s8 %v1616
  %v1618 = vlaneseq
  %v1619 = vshrl.u32 %v1618, 7
  %v1620 = vsub.s32 %v1617, %v1619
  %v1621 = vrot.slane %v1605, %v1620
  %v1623 = vunpack.c.l.s4 1966171168
  %v1624 = vunpack.c.0.s8 %v1623
  %v1625 = vlaneseq
  %v1626 = vshrl.u32 %v1625, 7
  %v1627 = vsub.s32 %v1624, %v1626
  %v1628 = vrot.slane %v1612, %v1627
  %v1630 = vunpack.c.l.s4 1966171168
  %v1631 = vunpack.c.0.s8 %v1630
  %v1632 = vlaneseq
  %v1633 = vshrl.u32 %v1632, 7
  %v1634 = vsub.s32 %v1631, %v1633
  %v1635 = vrot.slane %v1613, %v1634
  %v1637 = vunpack.c.l.s4 1966171168
  %v1638 = vunpack.c.0.s8 %v1637
  %v1639 = vlaneseq
  %v1640 = vshrl.u32 %v1639, 7
  %v1641 = vsub.s32 %v1638, %v1640
  %v1642 = vrot.slane %v1614, %v1641
  %v1643 = vcombine.high %v1621, %v1621
  %v1644 = vcombine.high %v1628, %v1628
  %v1645 = vcombine.high %v1635, %v1635
  %v1646 = vcombine.high %v1642, %v1642
  %v1647 = vcombine.high %v1041, %v1041
  %v1649 = vunpack.c.l.s4 1966171168
  %v1650 = vunpack.c.0.s8 %v1649
  %v1651 = vlaneseq
  %v1652 = vshrl.u32 %v1651, 7
  %v1653 = vsub.s32 %v1650, %v1652
  %v1654 = vrot.slane %v1041, %v1653
  %v1656 = vunpack.c.l.s4 1966171168
  %v1657 = vunpack.c.0.s8 %v1656
  %v1658 = vlaneseq
  %v1659 = vshrl.u32 %v1658, 7
  %v1660 = vsub.s32 %v1657, %v1659
  %v1661 = vrot.slane %v1647, %v1660
  %v1662 = vcombine.high %v1654, %v1654
  %v1663 = vcombine.high %v1661, %v1661
  %v1665 = vunpack.c.l.s4 1966171168
  %v1666 = vunpack.c.0.s8 %v1665
  %v1667 = vlaneseq
  %v1668 = vshrl.u32 %v1667, 7
  %v1669 = vsub.s32 %v1666, %v1668
  %v1670 = vrot.slane %v1654, %v1669
  %v1672 = vunpack.c.l.s4 1966171168
  %v1673 = vunpack.c.0.s8 %v1672
  %v1674 = vlaneseq
  %v1675 = vshrl.u32 %v1674, 7
  %v1676 = vsub.s32 %v1673, %v1675
  %v1677 = vrot.slane %v1661, %v1676
  %v1679 = vunpack.c.l.s4 1966171168
  %v1680 = vunpack.c.0.s8 %v1679
  %v1681 = vlaneseq
  %v1682 = vshrl.u32 %v1681, 7
  %v1683 = vsub.s32 %v1680, %v1682
  %v1684 = vrot.slane %v1662, %v1683
  %v1686 = vunpack.c.l.s4 1966171168
  %v1687 = vunpack.c.0.s8 %v1686
  %v1688 = vlaneseq
  %v1689 = vshrl.u32 %v1688, 7
  %v1690 = vsub.s32 %v1687, %v1689
  %v1691 = vrot.slane %v1663, %v1690
  %v1692 = vcombine.high %v1670, %v1670
  %v1693 = vcombine.high %v1677, %v1677
  %v1694 = vcombine.high %v1684, %v1684
  %v1695 = vcombine.high %v1691, %v1691
  %v1696 = vcombine.high %v1044, %v1044
  %v1698 = vunpack.c.l.s4 1966171168
  %v1699 = vunpack.c.0.s8 %v1698
  %v1700 = vlaneseq
  %v1701 = vshrl.u32 %v1700, 7
  %v1702 = vsub.s32 %v1699, %v1701
  %v1703 = vrot.slane %v1044, %v1702
  %v1705 = vunpack.c.l.s4 1966171168
  %v1706 = vunpack.c.0.s8 %v1705
  %v1707 = vlaneseq
  %v1708 = vshrl.u32 %v1707, 7
  %v1709 = vsub.s32 %v1706, %v1708
  %v1710 = vrot.slane %v1696, %v1709
  %v1711 = vcombine.high %v1703, %v1703
  %v1712 = vcombine.high %v1710, %v1710
  %v1714 = vunpack.c.l.s4 1966171168
  %v1715 = vunpack.c.0.s8 %v1714
  %v1716 = vlaneseq
  %v1717 = vshrl.u32 %v1716, 7
  %v1718 = vsub.s32 %v1715, %v1717
  %v1719 = vrot.slane %v1703, %v1718
  %v1721 = vunpack.c.l.s4 1966171168
  %v1722 = vunpack.c.0.s8 %v1721
  %v1723 = vlaneseq
  %v1724 = vshrl.u32 %v1723, 7
  %v1725 = vsub.s32 %v1722, %v1724
  %v1726 = vrot.slane %v1710, %v1725
  %v1728 = vunpack.c.l.s4 1966171168
  %v1729 = vunpack.c.0.s8 %v1728
  %v1730 = vlaneseq
  %v1731 = vshrl.u32 %v1730, 7
  %v1732 = vsub.s32 %v1729, %v1731
  %v1733 = vrot.slane %v1711, %v1732
  %v1735 = vunpack.c.l.s4 1966171168
  %v1736 = vunpack.c.0.s8 %v1735
  %v1737 = vlaneseq
  %v1738 = vshrl.u32 %v1737, 7
  %v1739 = vsub.s32 %v1736, %v1738
  %v1740 = vrot.slane %v1712, %v1739
  %v1741 = vcombine.high %v1719, %v1719
  %v1742 = vcombine.high %v1726, %v1726
  %v1743 = vcombine.high %v1733, %v1733
  %v1744 = vcombine.high %v1740, %v1740
  %v1745 = vcombine.high %v1049, %v1049
  %v1747 = vunpack.c.l.s4 1966171168
  %v1748 = vunpack.c.0.s8 %v1747
  %v1749 = vlaneseq
  %v1750 = vshrl.u32 %v1749, 7
  %v1751 = vsub.s32 %v1748, %v1750
  %v1752 = vrot.slane %v1049, %v1751
  %v1754 = vunpack.c.l.s4 1966171168
  %v1755 = vunpack.c.0.s8 %v1754
  %v1756 = vlaneseq
  %v1757 = vshrl.u32 %v1756, 7
  %v1758 = vsub.s32 %v1755, %v1757
  %v1759 = vrot.slane %v1745, %v1758
  %v1760 = vcombine.high %v1752, %v1752
  %v1761 = vcombine.high %v1759, %v1759
  %v1763 = vunpack.c.l.s4 1966171168
  %v1764 = vunpack.c.0.s8 %v1763
  %v1765 = vlaneseq
  %v1766 = vshrl.u32 %v1765, 7
  %v1767 = vsub.s32 %v1764, %v1766
  %v1768 = vrot.slane %v1752, %v1767
  %v1770 = vunpack.c.l.s4 1966171168
  %v1771 = vunpack.c.0.s8 %v1770
  %v1772 = vlaneseq
  %v1773 = vshrl.u32 %v1772, 7
  %v1774 = vsub.s32 %v1771, %v1773
  %v1775 = vrot.slane %v1759, %v1774
  %v1777 = vunpack.c.l.s4 1966171168
  %v1778 = vunpack.c.0.s8 %v1777
  %v1779 = vlaneseq
  %v1780 = vshrl.u32 %v1779, 7
  %v1781 = vsub.s32 %v1778, %v1780
  %v1782 = vrot.slane %v1760, %v1781
  %v1784 = vunpack.c.l.s4 1966171168
  %v1785 = vunpack.c.0.s8 %v1784
  %v1786 = vlaneseq
  %v1787 = vshrl.u32 %v1786, 7
  %v1788 = vsub.s32 %v1785, %v1787
  %v1789 = vrot.slane %v1761, %v1788
  %v1790 = vcombine.high %v1768, %v1768
  %v1791 = vcombine.high %v1775, %v1775
  %v1792 = vcombine.high %v1782, %v1782
  %v1793 = vcombine.high %v1789, %v1789
  %v1794 = vcombine.high %v1052, %v1052
  %v1796 = vunpack.c.l.s4 1966171168
  %v1797 = vunpack.c.0.s8 %v1796
  %v1798 = vlaneseq
  %v1799 = vshrl.u32 %v1798, 7
  %v1800 = vsub.s32 %v1797, %v1799
  %v1801 = vrot.slane %v1052, %v1800
  %v1803 = vunpack.c.l.s4 1966171168
  %v1804 = vunpack.c.0.s8 %v1803
  %v1805 = vlaneseq
  %v1806 = vshrl.u32 %v1805, 7
  %v1807 = vsub.s32 %v1804, %v1806
  %v1808 = vrot.slane %v1794, %v1807
  %v1809 = vcombine.high %v1801, %v1801
  %v1810 = vcombine.high %v1808, %v1808
  %v1812 = vunpack.c.l.s4 1966171168
  %v1813 = vunpack.c.0.s8 %v1812
  %v1814 = vlaneseq
  %v1815 = vshrl.u32 %v1814, 7
  %v1816 = vsub.s32 %v1813, %v1815
  %v1817 = vrot.slane %v1801, %v1816
  %v1819 = vunpack.c.l.s4 1966171168
  %v1820 = vunpack.c.0.s8 %v1819
  %v1821 = vlaneseq
  %v1822 = vshrl.u32 %v1821, 7
  %v1823 = vsub.s32 %v1820, %v1822
  %v1824 = vrot.slane %v1808, %v1823
  %v1826 = vunpack.c.l.s4 1966171168
  %v1827 = vunpack.c.0.s8 %v1826
  %v1828 = vlaneseq
  %v1829 = vshrl.u32 %v1828, 7
  %v1830 = vsub.s32 %v1827, %v1829
  %v1831 = vrot.slane %v1809, %v1830
  %v1833 = vunpack.c.l.s4 1966171168
  %v1834 = vunpack.c.0.s8 %v1833
  %v1835 = vlaneseq
  %v1836 = vshrl.u32 %v1835, 7
  %v1837 = vsub.s32 %v1834, %v1836
  %v1838 = vrot.slane %v1810, %v1837
  %v1839 = vcombine.high %v1817, %v1817
  %v1840 = vcombine.high %v1824, %v1824
  %v1841 = vcombine.high %v1831, %v1831
  %v1842 = vcombine.high %v1838, %v1838
  %v1843 = vcombine.high %v1057, %v1057
  %v1845 = vunpack.c.l.s4 1966171168
  %v1846 = vunpack.c.0.s8 %v1845
  %v1847 = vlaneseq
  %v1848 = vshrl.u32 %v1847, 7
  %v1849 = vsub.s32 %v1846, %v1848
  %v1850 = vrot.slane %v1057, %v1849
  %v1852 = vunpack.c.l.s4 1966171168
  %v1853 = vunpack.c.0.s8 %v1852
  %v1854 = vlaneseq
  %v1855 = vshrl.u32 %v1854, 7
  %v1856 = vsub.s32 %v1853, %v1855
  %v1857 = vrot.slane %v1843, %v1856
  %v1858 = vcombine.high %v1850, %v1850
  %v1859 = vcombine.high %v1857, %v1857
  %v1861 = vunpack.c.l.s4 1966171168
  %v1862 = vunpack.c.0.s8 %v1861
  %v1863 = vlaneseq
  %v1864 = vshrl.u32 %v1863, 7
  %v1865 = vsub.s32 %v1862, %v1864
  %v1866 = vrot.slane %v1850, %v1865
  %v1868 = vunpack.c.l.s4 1966171168
  %v1869 = vunpack.c.0.s8 %v1868
  %v1870 = vlaneseq
  %v1871 = vshrl.u32 %v1870, 7
  %v1872 = vsub.s32 %v1869, %v1871
  %v1873 = vrot.slane %v1857, %v1872
  %v1875 = vunpack.c.l.s4 1966171168
  %v1876 = vunpack.c.0.s8 %v1875
  %v1877 = vlaneseq
  %v1878 = vshrl.u32 %v1877, 7
  %v1879 = vsub.s32 %v1876, %v1878
  %v1880 = vrot.slane %v1858, %v1879
  %v1882 = vunpack.c.l.s4 1966171168
  %v1883 = vunpack.c.0.s8 %v1882
  %v1884 = vlaneseq
  %v1885 = vshrl.u32 %v1884, 7
  %v1886 = vsub.s32 %v1883, %v1885
  %v1887 = vrot.slane %v1859, %v1886
  %v1888 = vcombine.high %v1866, %v1866
  %v1889 = vcombine.high %v1873, %v1873
  %v1890 = vcombine.high %v1880, %v1880
  %v1891 = vcombine.high %v1887, %v1887
  %v1892 = vcombine.high %v1060, %v1060
  %v1894 = vunpack.c.l.s4 1966171168
  %v1895 = vunpack.c.0.s8 %v1894
  %v1896 = vlaneseq
  %v1897 = vshrl.u32 %v1896, 7
  %v1898 = vsub.s32 %v1895, %v1897
  %v1899 = vrot.slane %v1060, %v1898
  %v1901 = vunpack.c.l.s4 1966171168
  %v1902 = vunpack.c.0.s8 %v1901
  %v1903 = vlaneseq
  %v1904 = vshrl.u32 %v1903, 7
  %v1905 = vsub.s32 %v1902, %v1904
  %v1906 = vrot.slane %v1892, %v1905
  %v1907 = vcombine.high %v1899, %v1899
  %v1908 = vcombine.high %v1906, %v1906
  %v1910 = vunpack.c.l.s4 1966171168
  %v1911 = vunpack.c.0.s8 %v1910
  %v1912 = vlaneseq
  %v1913 = vshrl.u32 %v1912, 7
  %v1914 = vsub.s32 %v1911, %v1913
  %v1915 = vrot.slane %v1899, %v1914
  %v1917 = vunpack.c.l.s4 1966171168
  %v1918 = vunpack.c.0.s8 %v1917
  %v1919 = vlaneseq
  %v1920 = vshrl.u32 %v1919, 7
  %v1921 = vsub.s32 %v1918, %v1920
  %v1922 = vrot.slane %v1906, %v1921
  %v1924 = vunpack.c.l.s4 1966171168
  %v1925 = vunpack.c.0.s8 %v1924
  %v1926 = vlaneseq
  %v1927 = vshrl.u32 %v1926, 7
  %v1928 = vsub.s32 %v1925, %v1927
  %v1929 = vrot.slane %v1907, %v1928
  %v1931 = vunpack.c.l.s4 1966171168
  %v1932 = vunpack.c.0.s8 %v1931
  %v1933 = vlaneseq
  %v1934 = vshrl.u32 %v1933, 7
  %v1935 = vsub.s32 %v1932, %v1934
  %v1936 = vrot.slane %v1908, %v1935
  %v1937 = vcombine.high %v1915, %v1915
  %v1938 = vcombine.high %v1922, %v1922
  %v1939 = vcombine.high %v1929, %v1929
  %v1940 = vcombine.high %v1936, %v1936
  %v1941 = vcombine.high %v1065, %v1065
  %v1943 = vunpack.c.l.s4 1966171168
  %v1944 = vunpack.c.0.s8 %v1943
  %v1945 = vlaneseq
  %v1946 = vshrl.u32 %v1945, 7
  %v1947 = vsub.s32 %v1944, %v1946
  %v1948 = vrot.slane %v1065, %v1947
  %v1950 = vunpack.c.l.s4 1966171168
  %v1951 = vunpack.c.0.s8 %v1950
  %v1952 = vlaneseq
  %v1953 = vshrl.u32 %v1952, 7
  %v1954 = vsub.s32 %v1951, %v1953
  %v1955 = vrot.slane %v1941, %v1954
  %v1956 = vcombine.high %v1948, %v1948
  %v1957 = vcombine.high %v1955, %v1955
  %v1959 = vunpack.c.l.s4 1966171168
  %v1960 = vunpack.c.0.s8 %v1959
  %v1961 = vlaneseq
  %v1962 = vshrl.u32 %v1961, 7
  %v1963 = vsub.s32 %v1960, %v1962
  %v1964 = vrot.slane %v1948, %v1963
  %v1966 = vunpack.c.l.s4 1966171168
  %v1967 = vunpack.c.0.s8 %v1966
  %v1968 = vlaneseq
  %v1969 = vshrl.u32 %v1968, 7
  %v1970 = vsub.s32 %v1967, %v1969
  %v1971 = vrot.slane %v1955, %v1970
  %v1973 = vunpack.c.l.s4 1966171168
  %v1974 = vunpack.c.0.s8 %v1973
  %v1975 = vlaneseq
  %v1976 = vshrl.u32 %v1975, 7
  %v1977 = vsub.s32 %v1974, %v1976
  %v1978 = vrot.slane %v1956, %v1977
  %v1980 = vunpack.c.l.s4 1966171168
  %v1981 = vunpack.c.0.s8 %v1980
  %v1982 = vlaneseq
  %v1983 = vshrl.u32 %v1982, 7
  %v1984 = vsub.s32 %v1981, %v1983
  %v1985 = vrot.slane %v1957, %v1984
  %v1986 = vcombine.high %v1964, %v1964
  %v1987 = vcombine.high %v1971, %v1971
  %v1988 = vcombine.high %v1978, %v1978
  %v1989 = vcombine.high %v1985, %v1985
  %v1990 = vcombine.high %v1068, %v1068
  %v1992 = vunpack.c.l.s4 1966171168
  %v1993 = vunpack.c.0.s8 %v1992
  %v1994 = vlaneseq
  %v1995 = vshrl.u32 %v1994, 7
  %v1996 = vsub.s32 %v1993, %v1995
  %v1997 = vrot.slane %v1068, %v1996
  %v1999 = vunpack.c.l.s4 1966171168
  %v2000 = vunpack.c.0.s8 %v1999
  %v2001 = vlaneseq
  %v2002 = vshrl.u32 %v2001, 7
  %v2003 = vsub.s32 %v2000, %v2002
  %v2004 = vrot.slane %v1990, %v2003
  %v2005 = vcombine.high %v1997, %v1997
  %v2006 = vcombine.high %v2004, %v2004
  %v2008 = vunpack.c.l.s4 1966171168
  %v2009 = vunpack.c.0.s8 %v2008
  %v2010 = vlaneseq
  %v2011 = vshrl.u32 %v2010, 7
  %v2012 = vsub.s32 %v2009, %v2011
  %v2013 = vrot.slane %v1997, %v2012
  %v2015 = vunpack.c.l.s4 1966171168
  %v2016 = vunpack.c.0.s8 %v2015
  %v2017 = vlaneseq
  %v2018 = vshrl.u32 %v2017, 7
  %v2019 = vsub.s32 %v2016, %v2018
  %v2020 = vrot.slane %v2004, %v2019
  %v2022 = vunpack.c.l.s4 1966171168
  %v2023 = vunpack.c.0.s8 %v2022
  %v2024 = vlaneseq
  %v2025 = vshrl.u32 %v2024, 7
  %v2026 = vsub.s32 %v2023, %v2025
  %v2027 = vrot.slane %v2005, %v2026
  %v2029 = vunpack.c.l.s4 1966171168
  %v2030 = vunpack.c.0.s8 %v2029
  %v2031 = vlaneseq
  %v2032 = vshrl.u32 %v2031, 7
  %v2033 = vsub.s32 %v2030, %v2032
  %v2034 = vrot.slane %v2006, %v2033
  %v2035 = vcombine.high %v2013, %v2013
  %v2036 = vcombine.high %v2020, %v2020
  %v2037 = vcombine.high %v2027, %v2027
  %v2038 = vcombine.high %v2034, %v2034
  %v2039 = vcombine.high %v1073, %v1073
  %v2041 = vunpack.c.l.s4 1966171168
  %v2042 = vunpack.c.0.s8 %v2041
  %v2043 = vlaneseq
  %v2044 = vshrl.u32 %v2043, 7
  %v2045 = vsub.s32 %v2042, %v2044
  %v2046 = vrot.slane %v1073, %v2045
  %v2048 = vunpack.c.l.s4 1966171168
  %v2049 = vunpack.c.0.s8 %v2048
  %v2050 = vlaneseq
  %v2051 = vshrl.u32 %v2050, 7
  %v2052 = vsub.s32 %v2049, %v2051
  %v2053 = vrot.slane %v2039, %v2052
  %v2054 = vcombine.high %v2046, %v2046
  %v2055 = vcombine.high %v2053, %v2053
  %v2057 = vunpack.c.l.s4 1966171168
  %v2058 = vunpack.c.0.s8 %v2057
  %v2059 = vlaneseq
  %v2060 = vshrl.u32 %v2059, 7
  %v2061 = vsub.s32 %v2058, %v2060
  %v2062 = vrot.slane %v2046, %v2061
  %v2064 = vunpack.c.l.s4 1966171168
  %v2065 = vunpack.c.0.s8 %v2064
  %v2066 = vlaneseq
  %v2067 = vshrl.u32 %v2066, 7
  %v2068 = vsub.s32 %v2065, %v2067
  %v2069 = vrot.slane %v2053, %v2068
  %v2071 = vunpack.c.l.s4 1966171168
  %v2072 = vunpack.c.0.s8 %v2071
  %v2073 = vlaneseq
  %v2074 = vshrl.u32 %v2073, 7
  %v2075 = vsub.s32 %v2072, %v2074
  %v2076 = vrot.slane %v2054, %v2075
  %v2078 = vunpack.c.l.s4 1966171168
  %v2079 = vunpack.c.0.s8 %v2078
  %v2080 = vlaneseq
  %v2081 = vshrl.u32 %v2080, 7
  %v2082 = vsub.s32 %v2079, %v2081
  %v2083 = vrot.slane %v2055, %v2082
  %v2084 = vcombine.high %v2062, %v2062
  %v2085 = vcombine.high %v2069, %v2069
  %v2086 = vcombine.high %v2076, %v2076
  %v2087 = vcombine.high %v2083, %v2083
  %v2088 = vcombine.high %v1076, %v1076
  %v2090 = vunpack.c.l.s4 1966171168
  %v2091 = vunpack.c.0.s8 %v2090
  %v2092 = vlaneseq
  %v2093 = vshrl.u32 %v2092, 7
  %v2094 = vsub.s32 %v2091, %v2093
  %v2095 = vrot.slane %v1076, %v2094
  %v2097 = vunpack.c.l.s4 1966171168
  %v2098 = vunpack.c.0.s8 %v2097
  %v2099 = vlaneseq
  %v2100 = vshrl.u32 %v2099, 7
  %v2101 = vsub.s32 %v2098, %v2100
  %v2102 = vrot.slane %v2088, %v2101
  %v2103 = vcombine.high %v2095, %v2095
  %v2104 = vcombine.high %v2102, %v2102
  %v2106 = vunpack.c.l.s4 1966171168
  %v2107 = vunpack.c.0.s8 %v2106
  %v2108 = vlaneseq
  %v2109 = vshrl.u32 %v2108, 7
  %v2110 = vsub.s32 %v2107, %v2109
  %v2111 = vrot.slane %v2095, %v2110
  %v2113 = vunpack.c.l.s4 1966171168
  %v2114 = vunpack.c.0.s8 %v2113
  %v2115 = vlaneseq
  %v2116 = vshrl.u32 %v2115, 7
  %v2117 = vsub.s32 %v2114, %v2116
  %v2118 = vrot.slane %v2102, %v2117
  %v2120 = vunpack.c.l.s4 1966171168
  %v2121 = vunpack.c.0.s8 %v2120
  %v2122 = vlaneseq
  %v2123 = vshrl.u32 %v2122, 7
  %v2124 = vsub.s32 %v2121, %v2123
  %v2125 = vrot.slane %v2103, %v2124
  %v2127 = vunpack.c.l.s4 1966171168
  %v2128 = vunpack.c.0.s8 %v2127
  %v2129 = vlaneseq
  %v2130 = vshrl.u32 %v2129, 7
  %v2131 = vsub.s32 %v2128, %v2130
  %v2132 = vrot.slane %v2104, %v2131
  %v2133 = vcombine.high %v2111, %v2111
  %v2134 = vcombine.high %v2118, %v2118
  %v2135 = vcombine.high %v2125, %v2125
  %v2136 = vcombine.high %v2132, %v2132
  %v2137 = vcombine.high %v1081, %v1081
  %v2139 = vunpack.c.l.s4 1966171168
  %v2140 = vunpack.c.0.s8 %v2139
  %v2141 = vlaneseq
  %v2142 = vshrl.u32 %v2141, 7
  %v2143 = vsub.s32 %v2140, %v2142
  %v2144 = vrot.slane %v1081, %v2143
  %v2146 = vunpack.c.l.s4 1966171168
  %v2147 = vunpack.c.0.s8 %v2146
  %v2148 = vlaneseq
  %v2149 = vshrl.u32 %v2148, 7
  %v2150 = vsub.s32 %v2147, %v2149
  %v2151 = vrot.slane %v2137, %v2150
  %v2152 = vcombine.high %v2144, %v2144
  %v2153 = vcombine.high %v2151, %v2151
  %v2155 = vunpack.c.l.s4 1966171168
  %v2156 = vunpack.c.0.s8 %v2155
  %v2157 = vlaneseq
  %v2158 = vshrl.u32 %v2157, 7
  %v2159 = vsub.s32 %v2156, %v2158
  %v2160 = vrot.slane %v2144, %v2159
  %v2162 = vunpack.c.l.s4 1966171168
  %v2163 = vunpack.c.0.s8 %v2162
  %v2164 = vlaneseq
  %v2165 = vshrl.u32 %v2164, 7
  %v2166 = vsub.s32 %v2163, %v2165
  %v2167 = vrot.slane %v2151, %v2166
  %v2169 = vunpack.c.l.s4 1966171168
  %v2170 = vunpack.c.0.s8 %v2169
  %v2171 = vlaneseq
  %v2172 = vshrl.u32 %v2171, 7
  %v2173 = vsub.s32 %v2170, %v2172
  %v2174 = vrot.slane %v2152, %v2173
  %v2176 = vunpack.c.l.s4 1966171168
  %v2177 = vunpack.c.0.s8 %v2176
  %v2178 = vlaneseq
  %v2179 = vshrl.u32 %v2178, 7
  %v2180 = vsub.s32 %v2177, %v2179
  %v2181 = vrot.slane %v2153, %v2180
  %v2182 = vcombine.high %v2160, %v2160
  %v2183 = vcombine.high %v2167, %v2167
  %v2184 = vcombine.high %v2174, %v2174
  %v2185 = vcombine.high %v2181, %v2181
  %v2186 = vcombine.high %v1084, %v1084
  %v2188 = vunpack.c.l.s4 1966171168
  %v2189 = vunpack.c.0.s8 %v2188
  %v2190 = vlaneseq
  %v2191 = vshrl.u32 %v2190, 7
  %v2192 = vsub.s32 %v2189, %v2191
  %v2193 = vrot.slane %v1084, %v2192
  %v2195 = vunpack.c.l.s4 1966171168
  %v2196 = vunpack.c.0.s8 %v2195
  %v2197 = vlaneseq
  %v2198 = vshrl.u32 %v2197, 7
  %v2199 = vsub.s32 %v2196, %v2198
  %v2200 = vrot.slane %v2186, %v2199
  %v2201 = vcombine.high %v2193, %v2193
  %v2202 = vcombine.high %v2200, %v2200
  %v2204 = vunpack.c.l.s4 1966171168
  %v2205 = vunpack.c.0.s8 %v2204
  %v2206 = vlaneseq
  %v2207 = vshrl.u32 %v2206, 7
  %v2208 = vsub.s32 %v2205, %v2207
  %v2209 = vrot.slane %v2193, %v2208
  %v2211 = vunpack.c.l.s4 1966171168
  %v2212 = vunpack.c.0.s8 %v2211
  %v2213 = vlaneseq
  %v2214 = vshrl.u32 %v2213, 7
  %v2215 = vsub.s32 %v2212, %v2214
  %v2216 = vrot.slane %v2200, %v2215
  %v2218 = vunpack.c.l.s4 1966171168
  %v2219 = vunpack.c.0.s8 %v2218
  %v2220 = vlaneseq
  %v2221 = vshrl.u32 %v2220, 7
  %v2222 = vsub.s32 %v2219, %v2221
  %v2223 = vrot.slane %v2201, %v2222
  %v2225 = vunpack.c.l.s4 1966171168
  %v2226 = vunpack.c.0.s8 %v2225
  %v2227 = vlaneseq
  %v2228 = vshrl.u32 %v2227, 7
  %v2229 = vsub.s32 %v2226, %v2228
  %v2230 = vrot.slane %v2202, %v2229
  %v2231 = vcombine.high %v2209, %v2209
  %v2232 = vcombine.high %v2216, %v2216
  %v2233 = vcombine.high %v2223, %v2223
  %v2234 = vcombine.high %v2230, %v2230
  %v2235 = vcombine.high %v1089, %v1089
  %v2237 = vunpack.c.l.s4 1966171168
  %v2238 = vunpack.c.0.s8 %v2237
  %v2239 = vlaneseq
  %v2240 = vshrl.u32 %v2239, 7
  %v2241 = vsub.s32 %v2238, %v2240
  %v2242 = vrot.slane %v1089, %v2241
  %v2244 = vunpack.c.l.s4 1966171168
  %v2245 = vunpack.c.0.s8 %v2244
  %v2246 = vlaneseq
  %v2247 = vshrl.u32 %v2246, 7
  %v2248 = vsub.s32 %v2245, %v2247
  %v2249 = vrot.slane %v2235, %v2248
  %v2250 = vcombine.high %v2242, %v2242
  %v2251 = vcombine.high %v2249, %v2249
  %v2253 = vunpack.c.l.s4 1966171168
  %v2254 = vunpack.c.0.s8 %v2253
  %v2255 = vlaneseq
  %v2256 = vshrl.u32 %v2255, 7
  %v2257 = vsub.s32 %v2254, %v2256
  %v2258 = vrot.slane %v2242, %v2257
  %v2260 = vunpack.c.l.s4 1966171168
  %v2261 = vunpack.c.0.s8 %v2260
  %v2262 = vlaneseq
  %v2263 = vshrl.u32 %v2262, 7
  %v2264 = vsub.s32 %v2261, %v2263
  %v2265 = vrot.slane %v2249, %v2264
  %v2267 = vunpack.c.l.s4 1966171168
  %v2268 = vunpack.c.0.s8 %v2267
  %v2269 = vlaneseq
  %v2270 = vshrl.u32 %v2269, 7
  %v2271 = vsub.s32 %v2268, %v2270
  %v2272 = vrot.slane %v2250, %v2271
  %v2274 = vunpack.c.l.s4 1966171168
  %v2275 = vunpack.c.0.s8 %v2274
  %v2276 = vlaneseq
  %v2277 = vshrl.u32 %v2276, 7
  %v2278 = vsub.s32 %v2275, %v2277
  %v2279 = vrot.slane %v2251, %v2278
  %v2280 = vcombine.high %v2258, %v2258
  %v2281 = vcombine.high %v2265, %v2265
  %v2282 = vcombine.high %v2272, %v2272
  %v2283 = vcombine.high %v2279, %v2279
  %v2284 = vcombine.high %v1092, %v1092
  %v2286 = vunpack.c.l.s4 1966171168
  %v2287 = vunpack.c.0.s8 %v2286
  %v2288 = vlaneseq
  %v2289 = vshrl.u32 %v2288, 7
  %v2290 = vsub.s32 %v2287, %v2289
  %v2291 = vrot.slane %v1092, %v2290
  %v2293 = vunpack.c.l.s4 1966171168
  %v2294 = vunpack.c.0.s8 %v2293
  %v2295 = vlaneseq
  %v2296 = vshrl.u32 %v2295, 7
  %v2297 = vsub.s32 %v2294, %v2296
  %v2298 = vrot.slane %v2284, %v2297
  %v2299 = vcombine.high %v2291, %v2291
  %v2300 = vcombine.high %v2298, %v2298
  %v2302 = vunpack.c.l.s4 1966171168
  %v2303 = vunpack.c.0.s8 %v2302
  %v2304 = vlaneseq
  %v2305 = vshrl.u32 %v2304, 7
  %v2306 = vsub.s32 %v2303, %v2305
  %v2307 = vrot.slane %v2291, %v2306
  %v2309 = vunpack.c.l.s4 1966171168
  %v2310 = vunpack.c.0.s8 %v2309
  %v2311 = vlaneseq
  %v2312 = vshrl.u32 %v2311, 7
  %v2313 = vsub.s32 %v2310, %v2312
  %v2314 = vrot.slane %v2298, %v2313
  %v2316 = vunpack.c.l.s4 1966171168
  %v2317 = vunpack.c.0.s8 %v2316
  %v2318 = vlaneseq
  %v2319 = vshrl.u32 %v2318, 7
  %v2320 = vsub.s32 %v2317, %v2319
  %v2321 = vrot.slane %v2299, %v2320
  %v2323 = vunpack.c.l.s4 1966171168
  %v2324 = vunpack.c.0.s8 %v2323
  %v2325 = vlaneseq
  %v2326 = vshrl.u32 %v2325, 7
  %v2327 = vsub.s32 %v2324, %v2326
  %v2328 = vrot.slane %v2300, %v2327
  %v2329 = vcombine.high %v2307, %v2307
  %v2330 = vcombine.high %v2314, %v2314
  %v2331 = vcombine.high %v2321, %v2321
  %v2332 = vcombine.high %v2328, %v2328
  %v2333 = vcombine.high %v1097, %v1097
  %v2335 = vunpack.c.l.s4 1966171168
  %v2336 = vunpack.c.0.s8 %v2335
  %v2337 = vlaneseq
  %v2338 = vshrl.u32 %v2337, 7
  %v2339 = vsub.s32 %v2336, %v2338
  %v2340 = vrot.slane %v1097, %v2339
  %v2342 = vunpack.c.l.s4 1966171168
  %v2343 = vunpack.c.0.s8 %v2342
  %v2344 = vlaneseq
  %v2345 = vshrl.u32 %v2344, 7
  %v2346 = vsub.s32 %v2343, %v2345
  %v2347 = vrot.slane %v2333, %v2346
  %v2348 = vcombine.high %v2340, %v2340
  %v2349 = vcombine.high %v2347, %v2347
  %v2351 = vunpack.c.l.s4 1966171168
  %v2352 = vunpack.c.0.s8 %v2351
  %v2353 = vlaneseq
  %v2354 = vshrl.u32 %v2353, 7
  %v2355 = vsub.s32 %v2352, %v2354
  %v2356 = vrot.slane %v2340, %v2355
  %v2358 = vunpack.c.l.s4 1966171168
  %v2359 = vunpack.c.0.s8 %v2358
  %v2360 = vlaneseq
  %v2361 = vshrl.u32 %v2360, 7
  %v2362 = vsub.s32 %v2359, %v2361
  %v2363 = vrot.slane %v2347, %v2362
  %v2365 = vunpack.c.l.s4 1966171168
  %v2366 = vunpack.c.0.s8 %v2365
  %v2367 = vlaneseq
  %v2368 = vshrl.u32 %v2367, 7
  %v2369 = vsub.s32 %v2366, %v2368
  %v2370 = vrot.slane %v2348, %v2369
  %v2372 = vunpack.c.l.s4 1966171168
  %v2373 = vunpack.c.0.s8 %v2372
  %v2374 = vlaneseq
  %v2375 = vshrl.u32 %v2374, 7
  %v2376 = vsub.s32 %v2373, %v2375
  %v2377 = vrot.slane %v2349, %v2376
  %v2378 = vcombine.high %v2356, %v2356
  %v2379 = vcombine.high %v2363, %v2363
  %v2380 = vcombine.high %v2370, %v2370
  %v2381 = vcombine.high %v2377, %v2377
  %v2382 = vcombine.high %v1100, %v1100
  %v2384 = vunpack.c.l.s4 1966171168
  %v2385 = vunpack.c.0.s8 %v2384
  %v2386 = vlaneseq
  %v2387 = vshrl.u32 %v2386, 7
  %v2388 = vsub.s32 %v2385, %v2387
  %v2389 = vrot.slane %v1100, %v2388
  %v2391 = vunpack.c.l.s4 1966171168
  %v2392 = vunpack.c.0.s8 %v2391
  %v2393 = vlaneseq
  %v2394 = vshrl.u32 %v2393, 7
  %v2395 = vsub.s32 %v2392, %v2394
  %v2396 = vrot.slane %v2382, %v2395
  %v2397 = vcombine.high %v2389, %v2389
  %v2398 = vcombine.high %v2396, %v2396
  %v2400 = vunpack.c.l.s4 1966171168
  %v2401 = vunpack.c.0.s8 %v2400
  %v2402 = vlaneseq
  %v2403 = vshrl.u32 %v2402, 7
  %v2404 = vsub.s32 %v2401, %v2403
  %v2405 = vrot.slane %v2389, %v2404
  %v2407 = vunpack.c.l.s4 1966171168
  %v2408 = vunpack.c.0.s8 %v2407
  %v2409 = vlaneseq
  %v2410 = vshrl.u32 %v2409, 7
  %v2411 = vsub.s32 %v2408, %v2410
  %v2412 = vrot.slane %v2396, %v2411
  %v2414 = vunpack.c.l.s4 1966171168
  %v2415 = vunpack.c.0.s8 %v2414
  %v2416 = vlaneseq
  %v2417 = vshrl.u32 %v2416, 7
  %v2418 = vsub.s32 %v2415, %v2417
  %v2419 = vrot.slane %v2397, %v2418
  %v2421 = vunpack.c.l.s4 1966171168
  %v2422 = vunpack.c.0.s8 %v2421
  %v2423 = vlaneseq
  %v2424 = vshrl.u32 %v2423, 7
  %v2425 = vsub.s32 %v2422, %v2424
  %v2426 = vrot.slane %v2398, %v2425
  %v2427 = vcombine.high %v2405, %v2405
  %v2428 = vcombine.high %v2412, %v2412
  %v2429 = vcombine.high %v2419, %v2419
  %v2430 = vcombine.high %v2426, %v2426
  %v2431 = vcombine.high %v1105, %v1105
  %v2433 = vunpack.c.l.s4 1966171168
  %v2434 = vunpack.c.0.s8 %v2433
  %v2435 = vlaneseq
  %v2436 = vshrl.u32 %v2435, 7
  %v2437 = vsub.s32 %v2434, %v2436
  %v2438 = vrot.slane %v1105, %v2437
  %v2440 = vunpack.c.l.s4 1966171168
  %v2441 = vunpack.c.0.s8 %v2440
  %v2442 = vlaneseq
  %v2443 = vshrl.u32 %v2442, 7
  %v2444 = vsub.s32 %v2441, %v2443
  %v2445 = vrot.slane %v2431, %v2444
  %v2446 = vcombine.high %v2438, %v2438
  %v2447 = vcombine.high %v2445, %v2445
  %v2449 = vunpack.c.l.s4 1966171168
  %v2450 = vunpack.c.0.s8 %v2449
  %v2451 = vlaneseq
  %v2452 = vshrl.u32 %v2451, 7
  %v2453 = vsub.s32 %v2450, %v2452
  %v2454 = vrot.slane %v2438, %v2453
  %v2456 = vunpack.c.l.s4 1966171168
  %v2457 = vunpack.c.0.s8 %v2456
  %v2458 = vlaneseq
  %v2459 = vshrl.u32 %v2458, 7
  %v2460 = vsub.s32 %v2457, %v2459
  %v2461 = vrot.slane %v2445, %v2460
  %v2463 = vunpack.c.l.s4 1966171168
  %v2464 = vunpack.c.0.s8 %v2463
  %v2465 = vlaneseq
  %v2466 = vshrl.u32 %v2465, 7
  %v2467 = vsub.s32 %v2464, %v2466
  %v2468 = vrot.slane %v2446, %v2467
  %v2470 = vunpack.c.l.s4 1966171168
  %v2471 = vunpack.c.0.s8 %v2470
  %v2472 = vlaneseq
  %v2473 = vshrl.u32 %v2472, 7
  %v2474 = vsub.s32 %v2471, %v2473
  %v2475 = vrot.slane %v2447, %v2474
  %v2476 = vcombine.high %v2454, %v2454
  %v2477 = vcombine.high %v2461, %v2461
  %v2478 = vcombine.high %v2468, %v2468
  %v2479 = vcombine.high %v2475, %v2475
  %v2480 = vcombine.high %v1108, %v1108
  %v2482 = vunpack.c.l.s4 1966171168
  %v2483 = vunpack.c.0.s8 %v2482
  %v2484 = vlaneseq
  %v2485 = vshrl.u32 %v2484, 7
  %v2486 = vsub.s32 %v2483, %v2485
  %v2487 = vrot.slane %v1108, %v2486
  %v2489 = vunpack.c.l.s4 1966171168
  %v2490 = vunpack.c.0.s8 %v2489
  %v2491 = vlaneseq
  %v2492 = vshrl.u32 %v2491, 7
  %v2493 = vsub.s32 %v2490, %v2492
  %v2494 = vrot.slane %v2480, %v2493
  %v2495 = vcombine.high %v2487, %v2487
  %v2496 = vcombine.high %v2494, %v2494
  %v2498 = vunpack.c.l.s4 1966171168
  %v2499 = vunpack.c.0.s8 %v2498
  %v2500 = vlaneseq
  %v2501 = vshrl.u32 %v2500, 7
  %v2502 = vsub.s32 %v2499, %v2501
  %v2503 = vrot.slane %v2487, %v2502
  %v2505 = vunpack.c.l.s4 1966171168
  %v2506 = vunpack.c.0.s8 %v2505
  %v2507 = vlaneseq
  %v2508 = vshrl.u32 %v2507, 7
  %v2509 = vsub.s32 %v2506, %v2508
  %v2510 = vrot.slane %v2494, %v2509
  %v2512 = vunpack.c.l.s4 1966171168
  %v2513 = vunpack.c.0.s8 %v2512
  %v2514 = vlaneseq
  %v2515 = vshrl.u32 %v2514, 7
  %v2516 = vsub.s32 %v2513, %v2515
  %v2517 = vrot.slane %v2495, %v2516
  %v2519 = vunpack.c.l.s4 1966171168
  %v2520 = vunpack.c.0.s8 %v2519
  %v2521 = vlaneseq
  %v2522 = vshrl.u32 %v2521, 7
  %v2523 = vsub.s32 %v2520, %v2522
  %v2524 = vrot.slane %v2496, %v2523
  %v2525 = vcombine.high %v2503, %v2503
  %v2526 = vcombine.high %v2510, %v2510
  %v2527 = vcombine.high %v2517, %v2517
  %v2528 = vcombine.high %v2524, %v2524
  %v2529 = vcombine.high %v1113, %v1113
  %v2531 = vunpack.c.l.s4 1966171168
  %v2532 = vunpack.c.0.s8 %v2531
  %v2533 = vlaneseq
  %v2534 = vshrl.u32 %v2533, 7
  %v2535 = vsub.s32 %v2532, %v2534
  %v2536 = vrot.slane %v1113, %v2535
  %v2538 = vunpack.c.l.s4 1966171168
  %v2539 = vunpack.c.0.s8 %v2538
  %v2540 = vlaneseq
  %v2541 = vshrl.u32 %v2540, 7
  %v2542 = vsub.s32 %v2539, %v2541
  %v2543 = vrot.slane %v2529, %v2542
  %v2544 = vcombine.high %v2536, %v2536
  %v2545 = vcombine.high %v2543, %v2543
  %v2547 = vunpack.c.l.s4 1966171168
  %v2548 = vunpack.c.0.s8 %v2547
  %v2549 = vlaneseq
  %v2550 = vshrl.u32 %v2549, 7
  %v2551 = vsub.s32 %v2548, %v2550
  %v2552 = vrot.slane %v2536, %v2551
  %v2554 = vunpack.c.l.s4 1966171168
  %v2555 = vunpack.c.0.s8 %v2554
  %v2556 = vlaneseq
  %v2557 = vshrl.u32 %v2556, 7
  %v2558 = vsub.s32 %v2555, %v2557
  %v2559 = vrot.slane %v2543, %v2558
  %v2561 = vunpack.c.l.s4 1966171168
  %v2562 = vunpack.c.0.s8 %v2561
  %v2563 = vlaneseq
  %v2564 = vshrl.u32 %v2563, 7
  %v2565 = vsub.s32 %v2562, %v2564
  %v2566 = vrot.slane %v2544, %v2565
  %v2568 = vunpack.c.l.s4 1966171168
  %v2569 = vunpack.c.0.s8 %v2568
  %v2570 = vlaneseq
  %v2571 = vshrl.u32 %v2570, 7
  %v2572 = vsub.s32 %v2569, %v2571
  %v2573 = vrot.slane %v2545, %v2572
  %v2574 = vcombine.high %v2552, %v2552
  %v2575 = vcombine.high %v2559, %v2559
  %v2576 = vcombine.high %v2566, %v2566
  %v2577 = vcombine.high %v2573, %v2573
  %v2578 = vcombine.high %v1116, %v1116
  %v2580 = vunpack.c.l.s4 1966171168
  %v2581 = vunpack.c.0.s8 %v2580
  %v2582 = vlaneseq
  %v2583 = vshrl.u32 %v2582, 7
  %v2584 = vsub.s32 %v2581, %v2583
  %v2585 = vrot.slane %v1116, %v2584
  %v2587 = vunpack.c.l.s4 1966171168
  %v2588 = vunpack.c.0.s8 %v2587
  %v2589 = vlaneseq
  %v2590 = vshrl.u32 %v2589, 7
  %v2591 = vsub.s32 %v2588, %v2590
  %v2592 = vrot.slane %v2578, %v2591
  %v2593 = vcombine.high %v2585, %v2585
  %v2594 = vcombine.high %v2592, %v2592
  %v2596 = vunpack.c.l.s4 1966171168
  %v2597 = vunpack.c.0.s8 %v2596
  %v2598 = vlaneseq
  %v2599 = vshrl.u32 %v2598, 7
  %v2600 = vsub.s32 %v2597, %v2599
  %v2601 = vrot.slane %v2585, %v2600
  %v2603 = vunpack.c.l.s4 1966171168
  %v2604 = vunpack.c.0.s8 %v2603
  %v2605 = vlaneseq
  %v2606 = vshrl.u32 %v2605, 7
  %v2607 = vsub.s32 %v2604, %v2606
  %v2608 = vrot.slane %v2592, %v2607
  %v2610 = vunpack.c.l.s4 1966171168
  %v2611 = vunpack.c.0.s8 %v2610
  %v2612 = vlaneseq
  %v2613 = vshrl.u32 %v2612, 7
  %v2614 = vsub.s32 %v2611, %v2613
  %v2615 = vrot.slane %v2593, %v2614
  %v2617 = vunpack.c.l.s4 1966171168
  %v2618 = vunpack.c.0.s8 %v2617
  %v2619 = vlaneseq
  %v2620 = vshrl.u32 %v2619, 7
  %v2621 = vsub.s32 %v2618, %v2620
  %v2622 = vrot.slane %v2594, %v2621
  %v2623 = vcombine.high %v2601, %v2601
  %v2624 = vcombine.high %v2608, %v2608
  %v2625 = vcombine.high %v2615, %v2615
  %v2626 = vcombine.high %v2622, %v2622
  %v2627 = vcombine.high %v1121, %v1121
  %v2629 = vunpack.c.l.s4 1966171168
  %v2630 = vunpack.c.0.s8 %v2629
  %v2631 = vlaneseq
  %v2632 = vshrl.u32 %v2631, 7
  %v2633 = vsub.s32 %v2630, %v2632
  %v2634 = vrot.slane %v1121, %v2633
  %v2636 = vunpack.c.l.s4 1966171168
  %v2637 = vunpack.c.0.s8 %v2636
  %v2638 = vlaneseq
  %v2639 = vshrl.u32 %v2638, 7
  %v2640 = vsub.s32 %v2637, %v2639
  %v2641 = vrot.slane %v2627, %v2640
  %v2642 = vcombine.high %v2634, %v2634
  %v2643 = vcombine.high %v2641, %v2641
  %v2645 = vunpack.c.l.s4 1966171168
  %v2646 = vunpack.c.0.s8 %v2645
  %v2647 = vlaneseq
  %v2648 = vshrl.u32 %v2647, 7
  %v2649 = vsub.s32 %v2646, %v2648
  %v2650 = vrot.slane %v2634, %v2649
  %v2652 = vunpack.c.l.s4 1966171168
  %v2653 = vunpack.c.0.s8 %v2652
  %v2654 = vlaneseq
  %v2655 = vshrl.u32 %v2654, 7
  %v2656 = vsub.s32 %v2653, %v2655
  %v2657 = vrot.slane %v2641, %v2656
  %v2659 = vunpack.c.l.s4 1966171168
  %v2660 = vunpack.c.0.s8 %v2659
  %v2661 = vlaneseq
  %v2662 = vshrl.u32 %v2661, 7
  %v2663 = vsub.s32 %v2660, %v2662
  %v2664 = vrot.slane %v2642, %v2663
  %v2666 = vunpack.c.l.s4 1966171168
  %v2667 = vunpack.c.0.s8 %v2666
  %v2668 = vlaneseq
  %v2669 = vshrl.u32 %v2668, 7
  %v2670 = vsub.s32 %v2667, %v2669
  %v2671 = vrot.slane %v2643, %v2670
  %v2672 = vcombine.high %v2650, %v2650
  %v2673 = vcombine.high %v2657, %v2657
  %v2674 = vcombine.high %v2664, %v2664
  %v2675 = vcombine.high %v2671, %v2671
  %v2676 = vcombine.high %v1124, %v1124
  %v2678 = vunpack.c.l.s4 1966171168
  %v2679 = vunpack.c.0.s8 %v2678
  %v2680 = vlaneseq
  %v2681 = vshrl.u32 %v2680, 7
  %v2682 = vsub.s32 %v2679, %v2681
  %v2683 = vrot.slane %v1124, %v2682
  %v2685 = vunpack.c.l.s4 1966171168
  %v2686 = vunpack.c.0.s8 %v2685
  %v2687 = vlaneseq
  %v2688 = vshrl.u32 %v2687, 7
  %v2689 = vsub.s32 %v2686, %v2688
  %v2690 = vrot.slane %v2676, %v2689
  %v2691 = vcombine.high %v2683, %v2683
  %v2692 = vcombine.high %v2690, %v2690
  %v2694 = vunpack.c.l.s4 1966171168
  %v2695 = vunpack.c.0.s8 %v2694
  %v2696 = vlaneseq
  %v2697 = vshrl.u32 %v2696, 7
  %v2698 = vsub.s32 %v2695, %v2697
  %v2699 = vrot.slane %v2683, %v2698
  %v2701 = vunpack.c.l.s4 1966171168
  %v2702 = vunpack.c.0.s8 %v2701
  %v2703 = vlaneseq
  %v2704 = vshrl.u32 %v2703, 7
  %v2705 = vsub.s32 %v2702, %v2704
  %v2706 = vrot.slane %v2690, %v2705
  %v2708 = vunpack.c.l.s4 1966171168
  %v2709 = vunpack.c.0.s8 %v2708
  %v2710 = vlaneseq
  %v2711 = vshrl.u32 %v2710, 7
  %v2712 = vsub.s32 %v2709, %v2711
  %v2713 = vrot.slane %v2691, %v2712
  %v2715 = vunpack.c.l.s4 1966171168
  %v2716 = vunpack.c.0.s8 %v2715
  %v2717 = vlaneseq
  %v2718 = vshrl.u32 %v2717, 7
  %v2719 = vsub.s32 %v2716, %v2718
  %v2720 = vrot.slane %v2692, %v2719
  %v2721 = vcombine.high %v2699, %v2699
  %v2722 = vcombine.high %v2706, %v2706
  %v2723 = vcombine.high %v2713, %v2713
  %v2724 = vcombine.high %v2720, %v2720
  %v2725 = vcombine.high %v1129, %v1129
  %v2727 = vunpack.c.l.s4 1966171168
  %v2728 = vunpack.c.0.s8 %v2727
  %v2729 = vlaneseq
  %v2730 = vshrl.u32 %v2729, 7
  %v2731 = vsub.s32 %v2728, %v2730
  %v2732 = vrot.slane %v1129, %v2731
  %v2734 = vunpack.c.l.s4 1966171168
  %v2735 = vunpack.c.0.s8 %v2734
  %v2736 = vlaneseq
  %v2737 = vshrl.u32 %v2736, 7
  %v2738 = vsub.s32 %v2735, %v2737
  %v2739 = vrot.slane %v2725, %v2738
  %v2740 = vcombine.high %v2732, %v2732
  %v2741 = vcombine.high %v2739, %v2739
  %v2743 = vunpack.c.l.s4 1966171168
  %v2744 = vunpack.c.0.s8 %v2743
  %v2745 = vlaneseq
  %v2746 = vshrl.u32 %v2745, 7
  %v2747 = vsub.s32 %v2744, %v2746
  %v2748 = vrot.slane %v2732, %v2747
  %v2750 = vunpack.c.l.s4 1966171168
  %v2751 = vunpack.c.0.s8 %v2750
  %v2752 = vlaneseq
  %v2753 = vshrl.u32 %v2752, 7
  %v2754 = vsub.s32 %v2751, %v2753
  %v2755 = vrot.slane %v2739, %v2754
  %v2757 = vunpack.c.l.s4 1966171168
  %v2758 = vunpack.c.0.s8 %v2757
  %v2759 = vlaneseq
  %v2760 = vshrl.u32 %v2759, 7
  %v2761 = vsub.s32 %v2758, %v2760
  %v2762 = vrot.slane %v2740, %v2761
  %v2764 = vunpack.c.l.s4 1966171168
  %v2765 = vunpack.c.0.s8 %v2764
  %v2766 = vlaneseq
  %v2767 = vshrl.u32 %v2766, 7
  %v2768 = vsub.s32 %v2765, %v2767
  %v2769 = vrot.slane %v2741, %v2768
  %v2770 = vcombine.high %v2748, %v2748
  %v2771 = vcombine.high %v2755, %v2755
  %v2772 = vcombine.high %v2762, %v2762
  %v2773 = vcombine.high %v2769, %v2769
  %v2774 = vcombine.high %v1132, %v1132
  %v2776 = vunpack.c.l.s4 1966171168
  %v2777 = vunpack.c.0.s8 %v2776
  %v2778 = vlaneseq
  %v2779 = vshrl.u32 %v2778, 7
  %v2780 = vsub.s32 %v2777, %v2779
  %v2781 = vrot.slane %v1132, %v2780
  %v2783 = vunpack.c.l.s4 1966171168
  %v2784 = vunpack.c.0.s8 %v2783
  %v2785 = vlaneseq
  %v2786 = vshrl.u32 %v2785, 7
  %v2787 = vsub.s32 %v2784, %v2786
  %v2788 = vrot.slane %v2774, %v2787
  %v2789 = vcombine.high %v2781, %v2781
  %v2790 = vcombine.high %v2788, %v2788
  %v2792 = vunpack.c.l.s4 1966171168
  %v2793 = vunpack.c.0.s8 %v2792
  %v2794 = vlaneseq
  %v2795 = vshrl.u32 %v2794, 7
  %v2796 = vsub.s32 %v2793, %v2795
  %v2797 = vrot.slane %v2781, %v2796
  %v2799 = vunpack.c.l.s4 1966171168
  %v2800 = vunpack.c.0.s8 %v2799
  %v2801 = vlaneseq
  %v2802 = vshrl.u32 %v2801, 7
  %v2803 = vsub.s32 %v2800, %v2802
  %v2804 = vrot.slane %v2788, %v2803
  %v2806 = vunpack.c.l.s4 1966171168
  %v2807 = vunpack.c.0.s8 %v2806
  %v2808 = vlaneseq
  %v2809 = vshrl.u32 %v2808, 7
  %v2810 = vsub.s32 %v2807, %v2809
  %v2811 = vrot.slane %v2789, %v2810
  %v2813 = vunpack.c.l.s4 1966171168
  %v2814 = vunpack.c.0.s8 %v2813
  %v2815 = vlaneseq
  %v2816 = vshrl.u32 %v2815, 7
  %v2817 = vsub.s32 %v2814, %v2816
  %v2818 = vrot.slane %v2790, %v2817
  %v2819 = vcombine.high %v2797, %v2797
  %v2820 = vcombine.high %v2804, %v2804
  %v2821 = vcombine.high %v2811, %v2811
  %v2822 = vcombine.high %v2818, %v2818
  %v2823 = vcombine.high %v1137, %v1137
  %v2825 = vunpack.c.l.s4 1966171168
  %v2826 = vunpack.c.0.s8 %v2825
  %v2827 = vlaneseq
  %v2828 = vshrl.u32 %v2827, 7
  %v2829 = vsub.s32 %v2826, %v2828
  %v2830 = vrot.slane %v1137, %v2829
  %v2832 = vunpack.c.l.s4 1966171168
  %v2833 = vunpack.c.0.s8 %v2832
  %v2834 = vlaneseq
  %v2835 = vshrl.u32 %v2834, 7
  %v2836 = vsub.s32 %v2833, %v2835
  %v2837 = vrot.slane %v2823, %v2836
  %v2838 = vcombine.high %v2830, %v2830
  %v2839 = vcombine.high %v2837, %v2837
  %v2841 = vunpack.c.l.s4 1966171168
  %v2842 = vunpack.c.0.s8 %v2841
  %v2843 = vlaneseq
  %v2844 = vshrl.u32 %v2843, 7
  %v2845 = vsub.s32 %v2842, %v2844
  %v2846 = vrot.slane %v2830, %v2845
  %v2848 = vunpack.c.l.s4 1966171168
  %v2849 = vunpack.c.0.s8 %v2848
  %v2850 = vlaneseq
  %v2851 = vshrl.u32 %v2850, 7
  %v2852 = vsub.s32 %v2849, %v2851
  %v2853 = vrot.slane %v2837, %v2852
  %v2855 = vunpack.c.l.s4 1966171168
  %v2856 = vunpack.c.0.s8 %v2855
  %v2857 = vlaneseq
  %v2858 = vshrl.u32 %v2857, 7
  %v2859 = vsub.s32 %v2856, %v2858
  %v2860 = vrot.slane %v2838, %v2859
  %v2862 = vunpack.c.l.s4 1966171168
  %v2863 = vunpack.c.0.s8 %v2862
  %v2864 = vlaneseq
  %v2865 = vshrl.u32 %v2864, 7
  %v2866 = vsub.s32 %v2863, %v2865
  %v2867 = vrot.slane %v2839, %v2866
  %v2868 = vcombine.high %v2846, %v2846
  %v2869 = vcombine.high %v2853, %v2853
  %v2870 = vcombine.high %v2860, %v2860
  %v2871 = vcombine.high %v2867, %v2867
  %v2872 = vcombine.high %v1140, %v1140
  %v2874 = vunpack.c.l.s4 1966171168
  %v2875 = vunpack.c.0.s8 %v2874
  %v2876 = vlaneseq
  %v2877 = vshrl.u32 %v2876, 7
  %v2878 = vsub.s32 %v2875, %v2877
  %v2879 = vrot.slane %v1140, %v2878
  %v2881 = vunpack.c.l.s4 1966171168
  %v2882 = vunpack.c.0.s8 %v2881
  %v2883 = vlaneseq
  %v2884 = vshrl.u32 %v2883, 7
  %v2885 = vsub.s32 %v2882, %v2884
  %v2886 = vrot.slane %v2872, %v2885
  %v2887 = vcombine.high %v2879, %v2879
  %v2888 = vcombine.high %v2886, %v2886
  %v2890 = vunpack.c.l.s4 1966171168
  %v2891 = vunpack.c.0.s8 %v2890
  %v2892 = vlaneseq
  %v2893 = vshrl.u32 %v2892, 7
  %v2894 = vsub.s32 %v2891, %v2893
  %v2895 = vrot.slane %v2879, %v2894
  %v2897 = vunpack.c.l.s4 1966171168
  %v2898 = vunpack.c.0.s8 %v2897
  %v2899 = vlaneseq
  %v2900 = vshrl.u32 %v2899, 7
  %v2901 = vsub.s32 %v2898, %v2900
  %v2902 = vrot.slane %v2886, %v2901
  %v2904 = vunpack.c.l.s4 1966171168
  %v2905 = vunpack.c.0.s8 %v2904
  %v2906 = vlaneseq
  %v2907 = vshrl.u32 %v2906, 7
  %v2908 = vsub.s32 %v2905, %v2907
  %v2909 = vrot.slane %v2887, %v2908
  %v2911 = vunpack.c.l.s4 1966171168
  %v2912 = vunpack.c.0.s8 %v2911
  %v2913 = vlaneseq
  %v2914 = vshrl.u32 %v2913, 7
  %v2915 = vsub.s32 %v2912, %v2914
  %v2916 = vrot.slane %v2888, %v2915
  %v2917 = vcombine.high %v2895, %v2895
  %v2918 = vcombine.high %v2902, %v2902
  %v2919 = vcombine.high %v2909, %v2909
  %v2920 = vcombine.high %v2916, %v2916
  %v2921 = vcombine.high %v1145, %v1145
  %v2923 = vunpack.c.l.s4 1966171168
  %v2924 = vunpack.c.0.s8 %v2923
  %v2925 = vlaneseq
  %v2926 = vshrl.u32 %v2925, 7
  %v2927 = vsub.s32 %v2924, %v2926
  %v2928 = vrot.slane %v1145, %v2927
  %v2930 = vunpack.c.l.s4 1966171168
  %v2931 = vunpack.c.0.s8 %v2930
  %v2932 = vlaneseq
  %v2933 = vshrl.u32 %v2932, 7
  %v2934 = vsub.s32 %v2931, %v2933
  %v2935 = vrot.slane %v2921, %v2934
  %v2936 = vcombine.high %v2928, %v2928
  %v2937 = vcombine.high %v2935, %v2935
  %v2939 = vunpack.c.l.s4 1966171168
  %v2940 = vunpack.c.0.s8 %v2939
  %v2941 = vlaneseq
  %v2942 = vshrl.u32 %v2941, 7
  %v2943 = vsub.s32 %v2940, %v2942
  %v2944 = vrot.slane %v2928, %v2943
  %v2946 = vunpack.c.l.s4 1966171168
  %v2947 = vunpack.c.0.s8 %v2946
  %v2948 = vlaneseq
  %v2949 = vshrl.u32 %v2948, 7
  %v2950 = vsub.s32 %v2947, %v2949
  %v2951 = vrot.slane %v2935, %v2950
  %v2953 = vunpack.c.l.s4 1966171168
  %v2954 = vunpack.c.0.s8 %v2953
  %v2955 = vlaneseq
  %v2956 = vshrl.u32 %v2955, 7
  %v2957 = vsub.s32 %v2954, %v2956
  %v2958 = vrot.slane %v2936, %v2957
  %v2960 = vunpack.c.l.s4 1966171168
  %v2961 = vunpack.c.0.s8 %v2960
  %v2962 = vlaneseq
  %v2963 = vshrl.u32 %v2962, 7
  %v2964 = vsub.s32 %v2961, %v2963
  %v2965 = vrot.slane %v2937, %v2964
  %v2966 = vcombine.high %v2944, %v2944
  %v2967 = vcombine.high %v2951, %v2951
  %v2968 = vcombine.high %v2958, %v2958
  %v2969 = vcombine.high %v2965, %v2965
  %v2970 = vcombine.high %v1148, %v1148
  %v2972 = vunpack.c.l.s4 1966171168
  %v2973 = vunpack.c.0.s8 %v2972
  %v2974 = vlaneseq
  %v2975 = vshrl.u32 %v2974, 7
  %v2976 = vsub.s32 %v2973, %v2975
  %v2977 = vrot.slane %v1148, %v2976
  %v2979 = vunpack.c.l.s4 1966171168
  %v2980 = vunpack.c.0.s8 %v2979
  %v2981 = vlaneseq
  %v2982 = vshrl.u32 %v2981, 7
  %v2983 = vsub.s32 %v2980, %v2982
  %v2984 = vrot.slane %v2970, %v2983
  %v2985 = vcombine.high %v2977, %v2977
  %v2986 = vcombine.high %v2984, %v2984
  %v2988 = vunpack.c.l.s4 1966171168
  %v2989 = vunpack.c.0.s8 %v2988
  %v2990 = vlaneseq
  %v2991 = vshrl.u32 %v2990, 7
  %v2992 = vsub.s32 %v2989, %v2991
  %v2993 = vrot.slane %v2977, %v2992
  %v2995 = vunpack.c.l.s4 1966171168
  %v2996 = vunpack.c.0.s8 %v2995
  %v2997 = vlaneseq
  %v2998 = vshrl.u32 %v2997, 7
  %v2999 = vsub.s32 %v2996, %v2998
  %v3000 = vrot.slane %v2984, %v2999
  %v3002 = vunpack.c.l.s4 1966171168
  %v3003 = vunpack.c.0.s8 %v3002
  %v3004 = vlaneseq
  %v3005 = vshrl.u32 %v3004, 7
  %v3006 = vsub.s32 %v3003, %v3005
  %v3007 = vrot.slane %v2985, %v3006
  %v3009 = vunpack.c.l.s4 1966171168
  %v3010 = vunpack.c.0.s8 %v3009
  %v3011 = vlaneseq
  %v3012 = vshrl.u32 %v3011, 7
  %v3013 = vsub.s32 %v3010, %v3012
  %v3014 = vrot.slane %v2986, %v3013
  %v3015 = vcombine.high %v2993, %v2993
  %v3016 = vcombine.high %v3000, %v3000
  %v3017 = vcombine.high %v3007, %v3007
  %v3018 = vcombine.high %v3014, %v3014
  %v3019 = vcombine.high %v1153, %v1153
  %v3021 = vunpack.c.l.s4 1966171168
  %v3022 = vunpack.c.0.s8 %v3021
  %v3023 = vlaneseq
  %v3024 = vshrl.u32 %v3023, 7
  %v3025 = vsub.s32 %v3022, %v3024
  %v3026 = vrot.slane %v1153, %v3025
  %v3028 = vunpack.c.l.s4 1966171168
  %v3029 = vunpack.c.0.s8 %v3028
  %v3030 = vlaneseq
  %v3031 = vshrl.u32 %v3030, 7
  %v3032 = vsub.s32 %v3029, %v3031
  %v3033 = vrot.slane %v3019, %v3032
  %v3034 = vcombine.high %v3026, %v3026
  %v3035 = vcombine.high %v3033, %v3033
  %v3037 = vunpack.c.l.s4 1966171168
  %v3038 = vunpack.c.0.s8 %v3037
  %v3039 = vlaneseq
  %v3040 = vshrl.u32 %v3039, 7
  %v3041 = vsub.s32 %v3038, %v3040
  %v3042 = vrot.slane %v3026, %v3041
  %v3044 = vunpack.c.l.s4 1966171168
  %v3045 = vunpack.c.0.s8 %v3044
  %v3046 = vlaneseq
  %v3047 = vshrl.u32 %v3046, 7
  %v3048 = vsub.s32 %v3045, %v3047
  %v3049 = vrot.slane %v3033, %v3048
  %v3051 = vunpack.c.l.s4 1966171168
  %v3052 = vunpack.c.0.s8 %v3051
  %v3053 = vlaneseq
  %v3054 = vshrl.u32 %v3053, 7
  %v3055 = vsub.s32 %v3052, %v3054
  %v3056 = vrot.slane %v3034, %v3055
  %v3058 = vunpack.c.l.s4 1966171168
  %v3059 = vunpack.c.0.s8 %v3058
  %v3060 = vlaneseq
  %v3061 = vshrl.u32 %v3060, 7
  %v3062 = vsub.s32 %v3059, %v3061
  %v3063 = vrot.slane %v3035, %v3062
  %v3064 = vcombine.high %v3042, %v3042
  %v3065 = vcombine.high %v3049, %v3049
  %v3066 = vcombine.high %v3056, %v3056
  %v3067 = vcombine.high %v3063, %v3063
  %v3068 = vcombine.high %v1156, %v1156
  %v3070 = vunpack.c.l.s4 1966171168
  %v3071 = vunpack.c.0.s8 %v3070
  %v3072 = vlaneseq
  %v3073 = vshrl.u32 %v3072, 7
  %v3074 = vsub.s32 %v3071, %v3073
  %v3075 = vrot.slane %v1156, %v3074
  %v3077 = vunpack.c.l.s4 1966171168
  %v3078 = vunpack.c.0.s8 %v3077
  %v3079 = vlaneseq
  %v3080 = vshrl.u32 %v3079, 7
  %v3081 = vsub.s32 %v3078, %v3080
  %v3082 = vrot.slane %v3068, %v3081
  %v3083 = vcombine.high %v3075, %v3075
  %v3084 = vcombine.high %v3082, %v3082
  %v3086 = vunpack.c.l.s4 1966171168
  %v3087 = vunpack.c.0.s8 %v3086
  %v3088 = vlaneseq
  %v3089 = vshrl.u32 %v3088, 7
  %v3090 = vsub.s32 %v3087, %v3089
  %v3091 = vrot.slane %v3075, %v3090
  %v3093 = vunpack.c.l.s4 1966171168
  %v3094 = vunpack.c.0.s8 %v3093
  %v3095 = vlaneseq
  %v3096 = vshrl.u32 %v3095, 7
  %v3097 = vsub.s32 %v3094, %v3096
  %v3098 = vrot.slane %v3082, %v3097
  %v3100 = vunpack.c.l.s4 1966171168
  %v3101 = vunpack.c.0.s8 %v3100
  %v3102 = vlaneseq
  %v3103 = vshrl.u32 %v3102, 7
  %v3104 = vsub.s32 %v3101, %v3103
  %v3105 = vrot.slane %v3083, %v3104
  %v3107 = vunpack.c.l.s4 1966171168
  %v3108 = vunpack.c.0.s8 %v3107
  %v3109 = vlaneseq
  %v3110 = vshrl.u32 %v3109, 7
  %v3111 = vsub.s32 %v3108, %v3110
  %v3112 = vrot.slane %v3084, %v3111
  %v3113 = vcombine.high %v3091, %v3091
  %v3114 = vcombine.high %v3098, %v3098
  %v3115 = vcombine.high %v3105, %v3105
  %v3116 = vcombine.high %v3112, %v3112
  %v3117 = vcombine.high %v1161, %v1161
  %v3119 = vunpack.c.l.s4 1966171168
  %v3120 = vunpack.c.0.s8 %v3119
  %v3121 = vlaneseq
  %v3122 = vshrl.u32 %v3121, 7
  %v3123 = vsub.s32 %v3120, %v3122
  %v3124 = vrot.slane %v1161, %v3123
  %v3126 = vunpack.c.l.s4 1966171168
  %v3127 = vunpack.c.0.s8 %v3126
  %v3128 = vlaneseq
  %v3129 = vshrl.u32 %v3128, 7
  %v3130 = vsub.s32 %v3127, %v3129
  %v3131 = vrot.slane %v3117, %v3130
  %v3132 = vcombine.high %v3124, %v3124
  %v3133 = vcombine.high %v3131, %v3131
  %v3135 = vunpack.c.l.s4 1966171168
  %v3136 = vunpack.c.0.s8 %v3135
  %v3137 = vlaneseq
  %v3138 = vshrl.u32 %v3137, 7
  %v3139 = vsub.s32 %v3136, %v3138
  %v3140 = vrot.slane %v3124, %v3139
  %v3142 = vunpack.c.l.s4 1966171168
  %v3143 = vunpack.c.0.s8 %v3142
  %v3144 = vlaneseq
  %v3145 = vshrl.u32 %v3144, 7
  %v3146 = vsub.s32 %v3143, %v3145
  %v3147 = vrot.slane %v3131, %v3146
  %v3149 = vunpack.c.l.s4 1966171168
  %v3150 = vunpack.c.0.s8 %v3149
  %v3151 = vlaneseq
  %v3152 = vshrl.u32 %v3151, 7
  %v3153 = vsub.s32 %v3150, %v3152
  %v3154 = vrot.slane %v3132, %v3153
  %v3156 = vunpack.c.l.s4 1966171168
  %v3157 = vunpack.c.0.s8 %v3156
  %v3158 = vlaneseq
  %v3159 = vshrl.u32 %v3158, 7
  %v3160 = vsub.s32 %v3157, %v3159
  %v3161 = vrot.slane %v3133, %v3160
  %v3162 = vcombine.high %v3140, %v3140
  %v3163 = vcombine.high %v3147, %v3147
  %v3164 = vcombine.high %v3154, %v3154
  %v3165 = vcombine.high %v3161, %v3161
  %v3166 = vcombine.high %v1164, %v1164
  %v3168 = vunpack.c.l.s4 1966171168
  %v3169 = vunpack.c.0.s8 %v3168
  %v3170 = vlaneseq
  %v3171 = vshrl.u32 %v3170, 7
  %v3172 = vsub.s32 %v3169, %v3171
  %v3173 = vrot.slane %v1164, %v3172
  %v3175 = vunpack.c.l.s4 1966171168
  %v3176 = vunpack.c.0.s8 %v3175
  %v3177 = vlaneseq
  %v3178 = vshrl.u32 %v3177, 7
  %v3179 = vsub.s32 %v3176, %v3178
  %v3180 = vrot.slane %v3166, %v3179
  %v3181 = vcombine.high %v3173, %v3173
  %v3182 = vcombine.high %v3180, %v3180
  %v3184 = vunpack.c.l.s4 1966171168
  %v3185 = vunpack.c.0.s8 %v3184
  %v3186 = vlaneseq
  %v3187 = vshrl.u32 %v3186, 7
  %v3188 = vsub.s32 %v3185, %v3187
  %v3189 = vrot.slane %v3173, %v3188
  %v3191 = vunpack.c.l.s4 1966171168
  %v3192 = vunpack.c.0.s8 %v3191
  %v3193 = vlaneseq
  %v3194 = vshrl.u32 %v3193, 7
  %v3195 = vsub.s32 %v3192, %v3194
  %v3196 = vrot.slane %v3180, %v3195
  %v3198 = vunpack.c.l.s4 1966171168
  %v3199 = vunpack.c.0.s8 %v3198
  %v3200 = vlaneseq
  %v3201 = vshrl.u32 %v3200, 7
  %v3202 = vsub.s32 %v3199, %v3201
  %v3203 = vrot.slane %v3181, %v3202
  %v3205 = vunpack.c.l.s4 1966171168
  %v3206 = vunpack.c.0.s8 %v3205
  %v3207 = vlaneseq
  %v3208 = vshrl.u32 %v3207, 7
  %v3209 = vsub.s32 %v3206, %v3208
  %v3210 = vrot.slane %v3182, %v3209
  %v3211 = vcombine.high %v3189, %v3189
  %v3212 = vcombine.high %v3196, %v3196
  %v3213 = vcombine.high %v3203, %v3203
  %v3214 = vcombine.high %v3210, %v3210
  %v3215 = vcombine.high %v1169, %v1169
  %v3217 = vunpack.c.l.s4 1966171168
  %v3218 = vunpack.c.0.s8 %v3217
  %v3219 = vlaneseq
  %v3220 = vshrl.u32 %v3219, 7
  %v3221 = vsub.s32 %v3218, %v3220
  %v3222 = vrot.slane %v1169, %v3221
  %v3224 = vunpack.c.l.s4 1966171168
  %v3225 = vunpack.c.0.s8 %v3224
  %v3226 = vlaneseq
  %v3227 = vshrl.u32 %v3226, 7
  %v3228 = vsub.s32 %v3225, %v3227
  %v3229 = vrot.slane %v3215, %v3228
  %v3230 = vcombine.high %v3222, %v3222
  %v3231 = vcombine.high %v3229, %v3229
  %v3233 = vunpack.c.l.s4 1966171168
  %v3234 = vunpack.c.0.s8 %v3233
  %v3235 = vlaneseq
  %v3236 = vshrl.u32 %v3235, 7
  %v3237 = vsub.s32 %v3234, %v3236
  %v3238 = vrot.slane %v3222, %v3237
  %v3240 = vunpack.c.l.s4 1966171168
  %v3241 = vunpack.c.0.s8 %v3240
  %v3242 = vlaneseq
  %v3243 = vshrl.u32 %v3242, 7
  %v3244 = vsub.s32 %v3241, %v3243
  %v3245 = vrot.slane %v3229, %v3244
  %v3247 = vunpack.c.l.s4 1966171168
  %v3248 = vunpack.c.0.s8 %v3247
  %v3249 = vlaneseq
  %v3250 = vshrl.u32 %v3249, 7
  %v3251 = vsub.s32 %v3248, %v3250
  %v3252 = vrot.slane %v3230, %v3251
  %v3254 = vunpack.c.l.s4 1966171168
  %v3255 = vunpack.c.0.s8 %v3254
  %v3256 = vlaneseq
  %v3257 = vshrl.u32 %v3256, 7
  %v3258 = vsub.s32 %v3255, %v3257
  %v3259 = vrot.slane %v3231, %v3258
  %v3260 = vcombine.high %v3238, %v3238
  %v3261 = vcombine.high %v3245, %v3245
  %v3262 = vcombine.high %v3252, %v3252
  %v3263 = vcombine.high %v3259, %v3259
  %v3264 = vcombine.high %v1172, %v1172
  %v3266 = vunpack.c.l.s4 1966171168
  %v3267 = vunpack.c.0.s8 %v3266
  %v3268 = vlaneseq
  %v3269 = vshrl.u32 %v3268, 7
  %v3270 = vsub.s32 %v3267, %v3269
  %v3271 = vrot.slane %v1172, %v3270
  %v3273 = vunpack.c.l.s4 1966171168
  %v3274 = vunpack.c.0.s8 %v3273
  %v3275 = vlaneseq
  %v3276 = vshrl.u32 %v3275, 7
  %v3277 = vsub.s32 %v3274, %v3276
  %v3278 = vrot.slane %v3264, %v3277
  %v3279 = vcombine.high %v3271, %v3271
  %v3280 = vcombine.high %v3278, %v3278
  %v3282 = vunpack.c.l.s4 1966171168
  %v3283 = vunpack.c.0.s8 %v3282
  %v3284 = vlaneseq
  %v3285 = vshrl.u32 %v3284, 7
  %v3286 = vsub.s32 %v3283, %v3285
  %v3287 = vrot.slane %v3271, %v3286
  %v3289 = vunpack.c.l.s4 1966171168
  %v3290 = vunpack.c.0.s8 %v3289
  %v3291 = vlaneseq
  %v3292 = vshrl.u32 %v3291, 7
  %v3293 = vsub.s32 %v3290, %v3292
  %v3294 = vrot.slane %v3278, %v3293
  %v3296 = vunpack.c.l.s4 1966171168
  %v3297 = vunpack.c.0.s8 %v3296
  %v3298 = vlaneseq
  %v3299 = vshrl.u32 %v3298, 7
  %v3300 = vsub.s32 %v3297, %v3299
  %v3301 = vrot.slane %v3279, %v3300
  %v3303 = vunpack.c.l.s4 1966171168
  %v3304 = vunpack.c.0.s8 %v3303
  %v3305 = vlaneseq
  %v3306 = vshrl.u32 %v3305, 7
  %v3307 = vsub.s32 %v3304, %v3306
  %v3308 = vrot.slane %v3280, %v3307
  %v3309 = vcombine.high %v3287, %v3287
  %v3310 = vcombine.high %v3294, %v3294
  %v3311 = vcombine.high %v3301, %v3301
  %v3312 = vcombine.high %v3308, %v3308
  %v3313 = vcombine.high %v1177, %v1177
  %v3315 = vunpack.c.l.s4 1966171168
  %v3316 = vunpack.c.0.s8 %v3315
  %v3317 = vlaneseq
  %v3318 = vshrl.u32 %v3317, 7
  %v3319 = vsub.s32 %v3316, %v3318
  %v3320 = vrot.slane %v1177, %v3319
  %v3322 = vunpack.c.l.s4 1966171168
  %v3323 = vunpack.c.0.s8 %v3322
  %v3324 = vlaneseq
  %v3325 = vshrl.u32 %v3324, 7
  %v3326 = vsub.s32 %v3323, %v3325
  %v3327 = vrot.slane %v3313, %v3326
  %v3328 = vcombine.high %v3320, %v3320
  %v3329 = vcombine.high %v3327, %v3327
  %v3331 = vunpack.c.l.s4 1966171168
  %v3332 = vunpack.c.0.s8 %v3331
  %v3333 = vlaneseq
  %v3334 = vshrl.u32 %v3333, 7
  %v3335 = vsub.s32 %v3332, %v3334
  %v3336 = vrot.slane %v3320, %v3335
  %v3338 = vunpack.c.l.s4 1966171168
  %v3339 = vunpack.c.0.s8 %v3338
  %v3340 = vlaneseq
  %v3341 = vshrl.u32 %v3340, 7
  %v3342 = vsub.s32 %v3339, %v3341
  %v3343 = vrot.slane %v3327, %v3342
  %v3345 = vunpack.c.l.s4 1966171168
  %v3346 = vunpack.c.0.s8 %v3345
  %v3347 = vlaneseq
  %v3348 = vshrl.u32 %v3347, 7
  %v3349 = vsub.s32 %v3346, %v3348
  %v3350 = vrot.slane %v3328, %v3349
  %v3352 = vunpack.c.l.s4 1966171168
  %v3353 = vunpack.c.0.s8 %v3352
  %v3354 = vlaneseq
  %v3355 = vshrl.u32 %v3354, 7
  %v3356 = vsub.s32 %v3353, %v3355
  %v3357 = vrot.slane %v3329, %v3356
  %v3358 = vcombine.high %v3336, %v3336
  %v3359 = vcombine.high %v3343, %v3343
  %v3360 = vcombine.high %v3350, %v3350
  %v3361 = vcombine.high %v3357, %v3357
  %v3362 = vcombine.high %v1180, %v1180
  %v3364 = vunpack.c.l.s4 1966171168
  %v3365 = vunpack.c.0.s8 %v3364
  %v3366 = vlaneseq
  %v3367 = vshrl.u32 %v3366, 7
  %v3368 = vsub.s32 %v3365, %v3367
  %v3369 = vrot.slane %v1180, %v3368
  %v3371 = vunpack.c.l.s4 1966171168
  %v3372 = vunpack.c.0.s8 %v3371
  %v3373 = vlaneseq
  %v3374 = vshrl.u32 %v3373, 7
  %v3375 = vsub.s32 %v3372, %v3374
  %v3376 = vrot.slane %v3362, %v3375
  %v3377 = vcombine.high %v3369, %v3369
  %v3378 = vcombine.high %v3376, %v3376
  %v3380 = vunpack.c.l.s4 1966171168
  %v3381 = vunpack.c.0.s8 %v3380
  %v3382 = vlaneseq
  %v3383 = vshrl.u32 %v3382, 7
  %v3384 = vsub.s32 %v3381, %v3383
  %v3385 = vrot.slane %v3369, %v3384
  %v3387 = vunpack.c.l.s4 1966171168
  %v3388 = vunpack.c.0.s8 %v3387
  %v3389 = vlaneseq
  %v3390 = vshrl.u32 %v3389, 7
  %v3391 = vsub.s32 %v3388, %v3390
  %v3392 = vrot.slane %v3376, %v3391
  %v3394 = vunpack.c.l.s4 1966171168
  %v3395 = vunpack.c.0.s8 %v3394
  %v3396 = vlaneseq
  %v3397 = vshrl.u32 %v3396, 7
  %v3398 = vsub.s32 %v3395, %v3397
  %v3399 = vrot.slane %v3377, %v3398
  %v3401 = vunpack.c.l.s4 1966171168
  %v3402 = vunpack.c.0.s8 %v3401
  %v3403 = vlaneseq
  %v3404 = vshrl.u32 %v3403, 7
  %v3405 = vsub.s32 %v3402, %v3404
  %v3406 = vrot.slane %v3378, %v3405
  %v3407 = vcombine.high %v3385, %v3385
  %v3408 = vcombine.high %v3392, %v3392
  %v3409 = vcombine.high %v3399, %v3399
  %v3410 = vcombine.high %v3406, %v3406
  %v3411 = vcombine.high %v1185, %v1185
  %v3413 = vunpack.c.l.s4 1966171168
  %v3414 = vunpack.c.0.s8 %v3413
  %v3415 = vlaneseq
  %v3416 = vshrl.u32 %v3415, 7
  %v3417 = vsub.s32 %v3414, %v3416
  %v3418 = vrot.slane %v1185, %v3417
  %v3420 = vunpack.c.l.s4 1966171168
  %v3421 = vunpack.c.0.s8 %v3420
  %v3422 = vlaneseq
  %v3423 = vshrl.u32 %v3422, 7
  %v3424 = vsub.s32 %v3421, %v3423
  %v3425 = vrot.slane %v3411, %v3424
  %v3426 = vcombine.high %v3418, %v3418
  %v3427 = vcombine.high %v3425, %v3425
  %v3429 = vunpack.c.l.s4 1966171168
  %v3430 = vunpack.c.0.s8 %v3429
  %v3431 = vlaneseq
  %v3432 = vshrl.u32 %v3431, 7
  %v3433 = vsub.s32 %v3430, %v3432
  %v3434 = vrot.slane %v3418, %v3433
  %v3436 = vunpack.c.l.s4 1966171168
  %v3437 = vunpack.c.0.s8 %v3436
  %v3438 = vlaneseq
  %v3439 = vshrl.u32 %v3438, 7
  %v3440 = vsub.s32 %v3437, %v3439
  %v3441 = vrot.slane %v3425, %v3440
  %v3443 = vunpack.c.l.s4 1966171168
  %v3444 = vunpack.c.0.s8 %v3443
  %v3445 = vlaneseq
  %v3446 = vshrl.u32 %v3445, 7
  %v3447 = vsub.s32 %v3444, %v3446
  %v3448 = vrot.slane %v3426, %v3447
  %v3450 = vunpack.c.l.s4 1966171168
  %v3451 = vunpack.c.0.s8 %v3450
  %v3452 = vlaneseq
  %v3453 = vshrl.u32 %v3452, 7
  %v3454 = vsub.s32 %v3451, %v3453
  %v3455 = vrot.slane %v3427, %v3454
  %v3456 = vcombine.high %v3434, %v3434
  %v3457 = vcombine.high %v3441, %v3441
  %v3458 = vcombine.high %v3448, %v3448
  %v3459 = vcombine.high %v3455, %v3455
  %v3460 = vcombine.high %v1188, %v1188
  %v3462 = vunpack.c.l.s4 1966171168
  %v3463 = vunpack.c.0.s8 %v3462
  %v3464 = vlaneseq
  %v3465 = vshrl.u32 %v3464, 7
  %v3466 = vsub.s32 %v3463, %v3465
  %v3467 = vrot.slane %v1188, %v3466
  %v3469 = vunpack.c.l.s4 1966171168
  %v3470 = vunpack.c.0.s8 %v3469
  %v3471 = vlaneseq
  %v3472 = vshrl.u32 %v3471, 7
  %v3473 = vsub.s32 %v3470, %v3472
  %v3474 = vrot.slane %v3460, %v3473
  %v3475 = vcombine.high %v3467, %v3467
  %v3476 = vcombine.high %v3474, %v3474
  %v3478 = vunpack.c.l.s4 1966171168
  %v3479 = vunpack.c.0.s8 %v3478
  %v3480 = vlaneseq
  %v3481 = vshrl.u32 %v3480, 7
  %v3482 = vsub.s32 %v3479, %v3481
  %v3483 = vrot.slane %v3467, %v3482
  %v3485 = vunpack.c.l.s4 1966171168
  %v3486 = vunpack.c.0.s8 %v3485
  %v3487 = vlaneseq
  %v3488 = vshrl.u32 %v3487, 7
  %v3489 = vsub.s32 %v3486, %v3488
  %v3490 = vrot.slane %v3474, %v3489
  %v3492 = vunpack.c.l.s4 1966171168
  %v3493 = vunpack.c.0.s8 %v3492
  %v3494 = vlaneseq
  %v3495 = vshrl.u32 %v3494, 7
  %v3496 = vsub.s32 %v3493, %v3495
  %v3497 = vrot.slane %v3475, %v3496
  %v3499 = vunpack.c.l.s4 1966171168
  %v3500 = vunpack.c.0.s8 %v3499
  %v3501 = vlaneseq
  %v3502 = vshrl.u32 %v3501, 7
  %v3503 = vsub.s32 %v3500, %v3502
  %v3504 = vrot.slane %v3476, %v3503
  %v3505 = vcombine.high %v3483, %v3483
  %v3506 = vcombine.high %v3490, %v3490
  %v3507 = vcombine.high %v3497, %v3497
  %v3508 = vcombine.high %v3504, %v3504
  %v3509 = vcombine.high %v1193, %v1193
  %v3511 = vunpack.c.l.s4 1966171168
  %v3512 = vunpack.c.0.s8 %v3511
  %v3513 = vlaneseq
  %v3514 = vshrl.u32 %v3513, 7
  %v3515 = vsub.s32 %v3512, %v3514
  %v3516 = vrot.slane %v1193, %v3515
  %v3518 = vunpack.c.l.s4 1966171168
  %v3519 = vunpack.c.0.s8 %v3518
  %v3520 = vlaneseq
  %v3521 = vshrl.u32 %v3520, 7
  %v3522 = vsub.s32 %v3519, %v3521
  %v3523 = vrot.slane %v3509, %v3522
  %v3524 = vcombine.high %v3516, %v3516
  %v3525 = vcombine.high %v3523, %v3523
  %v3527 = vunpack.c.l.s4 1966171168
  %v3528 = vunpack.c.0.s8 %v3527
  %v3529 = vlaneseq
  %v3530 = vshrl.u32 %v3529, 7
  %v3531 = vsub.s32 %v3528, %v3530
  %v3532 = vrot.slane %v3516, %v3531
  %v3534 = vunpack.c.l.s4 1966171168
  %v3535 = vunpack.c.0.s8 %v3534
  %v3536 = vlaneseq
  %v3537 = vshrl.u32 %v3536, 7
  %v3538 = vsub.s32 %v3535, %v3537
  %v3539 = vrot.slane %v3523, %v3538
  %v3541 = vunpack.c.l.s4 1966171168
  %v3542 = vunpack.c.0.s8 %v3541
  %v3543 = vlaneseq
  %v3544 = vshrl.u32 %v3543, 7
  %v3545 = vsub.s32 %v3542, %v3544
  %v3546 = vrot.slane %v3524, %v3545
  %v3548 = vunpack.c.l.s4 1966171168
  %v3549 = vunpack.c.0.s8 %v3548
  %v3550 = vlaneseq
  %v3551 = vshrl.u32 %v3550, 7
  %v3552 = vsub.s32 %v3549, %v3551
  %v3553 = vrot.slane %v3525, %v3552
  %v3554 = vcombine.high %v3532, %v3532
  %v3555 = vcombine.high %v3539, %v3539
  %v3556 = vcombine.high %v3546, %v3546
  %v3557 = vcombine.high %v3553, %v3553
  %v3558 = vcombine.high %v1196, %v1196
  %v3560 = vunpack.c.l.s4 1966171168
  %v3561 = vunpack.c.0.s8 %v3560
  %v3562 = vlaneseq
  %v3563 = vshrl.u32 %v3562, 7
  %v3564 = vsub.s32 %v3561, %v3563
  %v3565 = vrot.slane %v1196, %v3564
  %v3567 = vunpack.c.l.s4 1966171168
  %v3568 = vunpack.c.0.s8 %v3567
  %v3569 = vlaneseq
  %v3570 = vshrl.u32 %v3569, 7
  %v3571 = vsub.s32 %v3568, %v3570
  %v3572 = vrot.slane %v3558, %v3571
  %v3573 = vcombine.high %v3565, %v3565
  %v3574 = vcombine.high %v3572, %v3572
  %v3576 = vunpack.c.l.s4 1966171168
  %v3577 = vunpack.c.0.s8 %v3576
  %v3578 = vlaneseq
  %v3579 = vshrl.u32 %v3578, 7
  %v3580 = vsub.s32 %v3577, %v3579
  %v3581 = vrot.slane %v3565, %v3580
  %v3583 = vunpack.c.l.s4 1966171168
  %v3584 = vunpack.c.0.s8 %v3583
  %v3585 = vlaneseq
  %v3586 = vshrl.u32 %v3585, 7
  %v3587 = vsub.s32 %v3584, %v3586
  %v3588 = vrot.slane %v3572, %v3587
  %v3590 = vunpack.c.l.s4 1966171168
  %v3591 = vunpack.c.0.s8 %v3590
  %v3592 = vlaneseq
  %v3593 = vshrl.u32 %v3592, 7
  %v3594 = vsub.s32 %v3591, %v3593
  %v3595 = vrot.slane %v3573, %v3594
  %v3597 = vunpack.c.l.s4 1966171168
  %v3598 = vunpack.c.0.s8 %v3597
  %v3599 = vlaneseq
  %v3600 = vshrl.u32 %v3599, 7
  %v3601 = vsub.s32 %v3598, %v3600
  %v3602 = vrot.slane %v3574, %v3601
  %v3603 = vcombine.high %v3581, %v3581
  %v3604 = vcombine.high %v3588, %v3588
  %v3605 = vcombine.high %v3595, %v3595
  %v3606 = vcombine.high %v3602, %v3602
  %v3607 = vcombine.high %v1201, %v1201
  %v3609 = vunpack.c.l.s4 1966171168
  %v3610 = vunpack.c.0.s8 %v3609
  %v3611 = vlaneseq
  %v3612 = vshrl.u32 %v3611, 7
  %v3613 = vsub.s32 %v3610, %v3612
  %v3614 = vrot.slane %v1201, %v3613
  %v3616 = vunpack.c.l.s4 1966171168
  %v3617 = vunpack.c.0.s8 %v3616
  %v3618 = vlaneseq
  %v3619 = vshrl.u32 %v3618, 7
  %v3620 = vsub.s32 %v3617, %v3619
  %v3621 = vrot.slane %v3607, %v3620
  %v3622 = vcombine.high %v3614, %v3614
  %v3623 = vcombine.high %v3621, %v3621
  %v3625 = vunpack.c.l.s4 1966171168
  %v3626 = vunpack.c.0.s8 %v3625
  %v3627 = vlaneseq
  %v3628 = vshrl.u32 %v3627, 7
  %v3629 = vsub.s32 %v3626, %v3628
  %v3630 = vrot.slane %v3614, %v3629
  %v3632 = vunpack.c.l.s4 1966171168
  %v3633 = vunpack.c.0.s8 %v3632
  %v3634 = vlaneseq
  %v3635 = vshrl.u32 %v3634, 7
  %v3636 = vsub.s32 %v3633, %v3635
  %v3637 = vrot.slane %v3621, %v3636
  %v3639 = vunpack.c.l.s4 1966171168
  %v3640 = vunpack.c.0.s8 %v3639
  %v3641 = vlaneseq
  %v3642 = vshrl.u32 %v3641, 7
  %v3643 = vsub.s32 %v3640, %v3642
  %v3644 = vrot.slane %v3622, %v3643
  %v3646 = vunpack.c.l.s4 1966171168
  %v3647 = vunpack.c.0.s8 %v3646
  %v3648 = vlaneseq
  %v3649 = vshrl.u32 %v3648, 7
  %v3650 = vsub.s32 %v3647, %v3649
  %v3651 = vrot.slane %v3623, %v3650
  %v3652 = vcombine.high %v3630, %v3630
  %v3653 = vcombine.high %v3637, %v3637
  %v3654 = vcombine.high %v3644, %v3644
  %v3655 = vcombine.high %v3651, %v3651
  %v4048 = vld [vmem:[%s2] sm:$0x1]
  %v4049 = vmax.f32 %v1278, %v1292
  %v4050 = vmax.f32 %v1586, %v1594
  %v4051 = vmax.f32 %v1888, %v1890
  %v4052 = vmax.f32 %v2184, %v2167
  %v4053 = vmax.f32 %v2461, %v2475
  %v4054 = vmax.f32 %v2769, %v2771
  %v4055 = vmax.f32 %v3065, %v3067
  %v4056 = vmax.f32 %v3361, %v3385
  %v4057 = vmax.f32 %v4049, %v1300
  %v4058 = vmax.f32 %v4050, %v1596
  %v4059 = vmax.f32 %v4051, %v1873
  %v4060 = vmax.f32 %v4052, %v2181
  %v4061 = vmax.f32 %v4053, %v2477
  %v4062 = vmax.f32 %v4054, %v2773
  %v4063 = vmax.f32 %v4055, %v3091
  %v4064 = vmax.f32 %v4056, %v3399
  %v4065 = vmax.f32 %v4057, %v1303
  %v4066 = vmax.f32 %v4058, %v1621
  %v4067 = vmax.f32 %v4059, %v1929
  %v4068 = vmax.f32 %v4060, %v2231
  %v4069 = vmax.f32 %v4061, %v2527
  %v4070 = vmax.f32 %v4062, %v2804
  %v4071 = vmax.f32 %v4063, %v3112
  %v4072 = vmax.f32 %v4064, %v3408
  %v4073 = vmax.f32 %v4065, %v1327
  %v4074 = vmax.f32 %v4066, %v1635
  %v4075 = vmax.f32 %v4067, %v1937
  %v4076 = vmax.f32 %v4068, %v2233
  %v4077 = vmax.f32 %v4069, %v2510
  %v4078 = vmax.f32 %v4070, %v2818
  %v4079 = vmax.f32 %v4071, %v3114
  %v4080 = vmax.f32 %v4072, %v3410
  %v4081 = vmax.f32 %v4073, %v1341
  %v4082 = vmax.f32 %v4074, %v1643
  %v4083 = vmax.f32 %v4075, %v1939
  %v4084 = vmax.f32 %v4076, %v2216
  %v4085 = vmax.f32 %v4077, %v2524
  %v4086 = vmax.f32 %v4078, %v2820
  %v4087 = vmax.f32 %v4079, %v3116
  %v4088 = vmax.f32 %v4080, %v3434
  %v4089 = vmax.f32 %v4081, %v1350
  %v4090 = vmax.f32 %v4082, %v1646
  %v4091 = vmax.f32 %v4083, %v1964
  %v4092 = vmax.f32 %v4084, %v2272
  %v4093 = vmax.f32 %v4085, %v2574
  %v4094 = vmax.f32 %v4086, %v2870
  %v4095 = vmax.f32 %v4087, %v3147
  %v4096 = vmax.f32 %v4088, %v3455
  %v4097 = vmax.f32 %v4089, %v1352
  %v4098 = vmax.f32 %v4090, %v1670
  %v4099 = vmax.f32 %v4091, %v1978
  %v4100 = vmax.f32 %v4092, %v2280
  %v4101 = vmax.f32 %v4093, %v2576
  %v4102 = vmax.f32 %v4094, %v2853
  %v4103 = vmax.f32 %v4095, %v3161
  %v4104 = vmax.f32 %v4096, %v3457
  %v4105 = vmax.f32 %v4097, %v1376
  %v4106 = vmax.f32 %v4098, %v1684
  %v4107 = vmax.f32 %v4099, %v1986
  %v4108 = vmax.f32 %v4100, %v2282
  %v4109 = vmax.f32 %v4101, %v2559
  %v4110 = vmax.f32 %v4102, %v2867
  %v4111 = vmax.f32 %v4103, %v3163
  %v4112 = vmax.f32 %v4104, %v3459
  %v4114 = vlaneseq
  %v4115 = vshrl.u32 %v4114, 7
  %v4116 = vsub.s32 0, %v4115
  %v4117 = vrot.slane %v4048, %v4116
  %v4118 = vcombine.high %v4117, %v4117
  %v4120 = vunpack.c.l.s4 1966171168
  %v4121 = vunpack.c.0.s8 %v4120
  %v4122 = vlaneseq
  %v4123 = vshrl.u32 %v4122, 7
  %v4124 = vsub.s32 %v4121, %v4123
  %v4125 = vrot.slane %v4117, %v4124
  %v4127 = vunpack.c.l.s4 1966171168
  %v4128 = vunpack.c.0.s8 %v4127
  %v4129 = vlaneseq
  %v4130 = vshrl.u32 %v4129, 7
  %v4131 = vsub.s32 %v4128, %v4130
  %v4132 = vrot.slane %v4118, %v4131
  %v4133 = vcombine.high %v4125, %v4125
  %v4134 = vcombine.high %v4132, %v4132
  %v4136 = vunpack.c.l.s4 1966171168
  %v4137 = vunpack.c.0.s8 %v4136
  %v4138 = vlaneseq
  %v4139 = vshrl.u32 %v4138, 7
  %v4140 = vsub.s32 %v4137, %v4139
  %v4141 = vrot.slane %v4125, %v4140
  %v4143 = vunpack.c.l.s4 1966171168
  %v4144 = vunpack.c.0.s8 %v4143
  %v4145 = vlaneseq
  %v4146 = vshrl.u32 %v4145, 7
  %v4147 = vsub.s32 %v4144, %v4146
  %v4148 = vrot.slane %v4132, %v4147
  %v4150 = vunpack.c.l.s4 1966171168
  %v4151 = vunpack.c.0.s8 %v4150
  %v4152 = vlaneseq
  %v4153 = vshrl.u32 %v4152, 7
  %v4154 = vsub.s32 %v4151, %v4153
  %v4155 = vrot.slane %v4133, %v4154
  %v4157 = vunpack.c.l.s4 1966171168
  %v4158 = vunpack.c.0.s8 %v4157
  %v4159 = vlaneseq
  %v4160 = vshrl.u32 %v4159, 7
  %v4161 = vsub.s32 %v4158, %v4160
  %v4162 = vrot.slane %v4134, %v4161
  %v4163 = vcombine.high %v4141, %v4141
  %v4164 = vcombine.high %v4148, %v4148
  %v4165 = vcombine.high %v4155, %v4155
  %v4166 = vcombine.high %v4162, %v4162
  %v4175 = vadd.f32 %v4105, %v4141
  %v4176 = vadd.f32 %v4106, %v4155
  %v4177 = vadd.f32 %v4107, %v4163
  %v4178 = vadd.f32 %v4108, %v4165
  %v4179 = vadd.f32 %v4109, %v4148
  %v4180 = vadd.f32 %v4110, %v4162
  %v4181 = vadd.f32 %v4111, %v4164
  %v4182 = vadd.f32 %v4112, %v4166
  %v4183 = vmax.f32 %v4175, 0.0
  %v4184 = vmax.f32 %v4176, 0.0
  %v4185 = vmax.f32 %v4177, 0.0
  %v4186 = vmax.f32 %v4178, 0.0
  %v4187 = vmax.f32 %v4179, 0.0
  %v4188 = vmax.f32 %v4180, 0.0
  %v4189 = vmax.f32 %v4181, 0.0
  %v4190 = vmax.f32 %v4182, 0.0
  %v4191 = vmax.f32 %v1300, %v1302
  %v4192 = vmax.f32 %v1596, %v1579
  %v4193 = vmax.f32 %v1873, %v1887
  %v4194 = vmax.f32 %v2181, %v2183
  %v4195 = vmax.f32 %v2477, %v2479
  %v4196 = vmax.f32 %v2773, %v2797
  %v4197 = vmax.f32 %v3091, %v3105
  %v4198 = vmax.f32 %v3399, %v3407
  %v4199 = vmax.f32 %v4191, %v1285
  %v4200 = vmax.f32 %v4192, %v1593
  %v4201 = vmax.f32 %v4193, %v1889
  %v4202 = vmax.f32 %v4194, %v2185
  %v4203 = vmax.f32 %v4195, %v2503
  %v4204 = vmax.f32 %v4196, %v2811
  %v4205 = vmax.f32 %v4197, %v3113
  %v4206 = vmax.f32 %v4198, %v3409
  %v4207 = vmax.f32 %v4199, %v1341
  %v4208 = vmax.f32 %v4200, %v1643
  %v4209 = vmax.f32 %v4201, %v1939
  %v4210 = vmax.f32 %v4202, %v2216
  %v4211 = vmax.f32 %v4203, %v2524
  %v4212 = vmax.f32 %v4204, %v2820
  %v4213 = vmax.f32 %v4205, %v3116
  %v4214 = vmax.f32 %v4206, %v3434
  %v4215 = vmax.f32 %v4207, %v1349
  %v4216 = vmax.f32 %v4208, %v1645
  %v4217 = vmax.f32 %v4209, %v1922
  %v4218 = vmax.f32 %v4210, %v2230
  %v4219 = vmax.f32 %v4211, %v2526
  %v4220 = vmax.f32 %v4212, %v2822
  %v4221 = vmax.f32 %v4213, %v3140
  %v4222 = vmax.f32 %v4214, %v3448
  %v4223 = vmax.f32 %v4215, %v1351
  %v4224 = vmax.f32 %v4216, %v1628
  %v4225 = vmax.f32 %v4217, %v1936
  %v4226 = vmax.f32 %v4218, %v2232
  %v4227 = vmax.f32 %v4219, %v2528
  %v4228 = vmax.f32 %v4220, %v2846
  %v4229 = vmax.f32 %v4221, %v3154
  %v4230 = vmax.f32 %v4222, %v3456
  %v4231 = vmax.f32 %v4223, %v1376
  %v4232 = vmax.f32 %v4224, %v1684
  %v4233 = vmax.f32 %v4225, %v1986
  %v4234 = vmax.f32 %v4226, %v2282
  %v4235 = vmax.f32 %v4227, %v2559
  %v4236 = vmax.f32 %v4228, %v2867
  %v4237 = vmax.f32 %v4229, %v3163
  %v4238 = vmax.f32 %v4230, %v3459
  %v4239 = vmax.f32 %v4231, %v1390
  %v4240 = vmax.f32 %v4232, %v1692
  %v4241 = vmax.f32 %v4233, %v1988
  %v4242 = vmax.f32 %v4234, %v2265
  %v4243 = vmax.f32 %v4235, %v2573
  %v4244 = vmax.f32 %v4236, %v2869
  %v4245 = vmax.f32 %v4237, %v3165
  %v4246 = vmax.f32 %v4238, %v3483
  %v4247 = vmax.f32 %v4239, %v1398
  %v4248 = vmax.f32 %v4240, %v1694
  %v4249 = vmax.f32 %v4241, %v1971
  %v4250 = vmax.f32 %v4242, %v2279
  %v4251 = vmax.f32 %v4243, %v2575
  %v4252 = vmax.f32 %v4244, %v2871
  %v4253 = vmax.f32 %v4245, %v3189
  %v4254 = vmax.f32 %v4246, %v3497
  %v4255 = vadd.f32 %v4247, %v4141
  %v4256 = vadd.f32 %v4248, %v4155
  %v4257 = vadd.f32 %v4249, %v4163
  %v4258 = vadd.f32 %v4250, %v4165
  %v4259 = vadd.f32 %v4251, %v4148
  %v4260 = vadd.f32 %v4252, %v4162
  %v4261 = vadd.f32 %v4253, %v4164
  %v4262 = vadd.f32 %v4254, %v4166
  %v4263 = vmax.f32 %v4255, 0.0
  %v4264 = vmax.f32 %v4256, 0.0
  %v4265 = vmax.f32 %v4257, 0.0
  %v4266 = vmax.f32 %v4258, 0.0
  %v4267 = vmax.f32 %v4259, 0.0
  %v4268 = vmax.f32 %v4260, 0.0
  %v4269 = vmax.f32 %v4261, 0.0
  %v4270 = vmax.f32 %v4262, 0.0
  %v4271 = vmax.f32 %v1285, %v1299
  %v4272 = vmax.f32 %v1593, %v1595
  %v4273 = vmax.f32 %v1889, %v1891
  %v4274 = vmax.f32 %v2185, %v2209
  %v4275 = vmax.f32 %v2503, %v2517
  %v4276 = vmax.f32 %v2811, %v2819
  %v4277 = vmax.f32 %v3113, %v3115
  %v4278 = vmax.f32 %v3409, %v3392
  %v4279 = vmax.f32 %v4271, %v1301
  %v4280 = vmax.f32 %v4272, %v1597
  %v4281 = vmax.f32 %v4273, %v1915
  %v4282 = vmax.f32 %v4274, %v2223
  %v4283 = vmax.f32 %v4275, %v2525
  %v4284 = vmax.f32 %v4276, %v2821
  %v4285 = vmax.f32 %v4277, %v3098
  %v4286 = vmax.f32 %v4278, %v3406
  %v4287 = vmax.f32 %v4279, %v1351
  %v4288 = vmax.f32 %v4280, %v1628
  %v4289 = vmax.f32 %v4281, %v1936
  %v4290 = vmax.f32 %v4282, %v2232
  %v4291 = vmax.f32 %v4283, %v2528
  %v4292 = vmax.f32 %v4284, %v2846
  %v4293 = vmax.f32 %v4285, %v3154
  %v4294 = vmax.f32 %v4286, %v3456
  %v4295 = vmax.f32 %v4287, %v1334
  %v4296 = vmax.f32 %v4288, %v1642
  %v4297 = vmax.f32 %v4289, %v1938
  %v4298 = vmax.f32 %v4290, %v2234
  %v4299 = vmax.f32 %v4291, %v2552
  %v4300 = vmax.f32 %v4292, %v2860
  %v4301 = vmax.f32 %v4293, %v3162
  %v4302 = vmax.f32 %v4294, %v3458
  %v4303 = vmax.f32 %v4295, %v1348
  %v4304 = vmax.f32 %v4296, %v1644
  %v4305 = vmax.f32 %v4297, %v1940
  %v4306 = vmax.f32 %v4298, %v2258
  %v4307 = vmax.f32 %v4299, %v2566
  %v4308 = vmax.f32 %v4300, %v2868
  %v4309 = vmax.f32 %v4301, %v3164
  %v4310 = vmax.f32 %v4302, %v3441
  %v4311 = vmax.f32 %v4303, %v1398
  %v4312 = vmax.f32 %v4304, %v1694
  %v4313 = vmax.f32 %v4305, %v1971
  %v4314 = vmax.f32 %v4306, %v2279
  %v4315 = vmax.f32 %v4307, %v2575
  %v4316 = vmax.f32 %v4308, %v2871
  %v4317 = vmax.f32 %v4309, %v3189
  %v4318 = vmax.f32 %v4310, %v3497
  %v4319 = vmax.f32 %v4311, %v1400
  %v4320 = vmax.f32 %v4312, %v1677
  %v4321 = vmax.f32 %v4313, %v1985
  %v4322 = vmax.f32 %v4314, %v2281
  %v4323 = vmax.f32 %v4315, %v2577
  %v4324 = vmax.f32 %v4316, %v2895
  %v4325 = vmax.f32 %v4317, %v3203
  %v4326 = vmax.f32 %v4318, %v3505
  %v4327 = vmax.f32 %v4319, %v1383
  %v4328 = vmax.f32 %v4320, %v1691
  %v4329 = vmax.f32 %v4321, %v1987
  %v4330 = vmax.f32 %v4322, %v2283
  %v4331 = vmax.f32 %v4323, %v2601
  %v4332 = vmax.f32 %v4324, %v2909
  %v4333 = vmax.f32 %v4325, %v3211
  %v4334 = vmax.f32 %v4326, %v3507
  %v4335 = vadd.f32 %v4327, %v4141
  %v4336 = vadd.f32 %v4328, %v4155
  %v4337 = vadd.f32 %v4329, %v4163
  %v4338 = vadd.f32 %v4330, %v4165
  %v4339 = vadd.f32 %v4331, %v4148
  %v4340 = vadd.f32 %v4332, %v4162
  %v4341 = vadd.f32 %v4333, %v4164
  %v4342 = vadd.f32 %v4334, %v4166
  %v4343 = vmax.f32 %v4335, 0.0
  %v4344 = vmax.f32 %v4336, 0.0
  %v4345 = vmax.f32 %v4337, 0.0
  %v4346 = vmax.f32 %v4338, 0.0
  %v4347 = vmax.f32 %v4339, 0.0
  %v4348 = vmax.f32 %v4340, 0.0
  %v4349 = vmax.f32 %v4341, 0.0
  %v4350 = vmax.f32 %v4342, 0.0
  %v4351 = vmax.f32 %v1350, %v1352
  %v4352 = vmax.f32 %v1646, %v1670
  %v4353 = vmax.f32 %v1964, %v1978
  %v4354 = vmax.f32 %v2272, %v2280
  %v4355 = vmax.f32 %v2574, %v2576
  %v4356 = vmax.f32 %v2870, %v2853
  %v4357 = vmax.f32 %v3147, %v3161
  %v4358 = vmax.f32 %v3455, %v3457
  %v4359 = vmax.f32 %v4351, %v1376
  %v4360 = vmax.f32 %v4352, %v1684
  %v4361 = vmax.f32 %v4353, %v1986
  %v4362 = vmax.f32 %v4354, %v2282
  %v4363 = vmax.f32 %v4355, %v2559
  %v4364 = vmax.f32 %v4356, %v2867
  %v4365 = vmax.f32 %v4357, %v3163
  %v4366 = vmax.f32 %v4358, %v3459
  %v4367 = vmax.f32 %v4359, %v1397
  %v4368 = vmax.f32 %v4360, %v1693
  %v4369 = vmax.f32 %v4361, %v1989
  %v4370 = vmax.f32 %v4362, %v2307
  %v4371 = vmax.f32 %v4363, %v2615
  %v4372 = vmax.f32 %v4364, %v2917
  %v4373 = vmax.f32 %v4365, %v3213
  %v4374 = vmax.f32 %v4366, %v3490
  %v4375 = vmax.f32 %v4367, %v1399
  %v4376 = vmax.f32 %v4368, %v1695
  %v4377 = vmax.f32 %v4369, %v2013
  %v4378 = vmax.f32 %v4370, %v2321
  %v4379 = vmax.f32 %v4371, %v2623
  %v4380 = vmax.f32 %v4372, %v2919
  %v4381 = vmax.f32 %v4373, %v3196
  %v4382 = vmax.f32 %v4374, %v3504
  %v4383 = vmax.f32 %v4375, %v1401
  %v4384 = vmax.f32 %v4376, %v1719
  %v4385 = vmax.f32 %v4377, %v2027
  %v4386 = vmax.f32 %v4378, %v2329
  %v4387 = vmax.f32 %v4379, %v2625
  %v4388 = vmax.f32 %v4380, %v2902
  %v4389 = vmax.f32 %v4381, %v3210
  %v4390 = vmax.f32 %v4382, %v3506
  %v4391 = vmax.f32 %v4383, %v1432
  %v4392 = vmax.f32 %v4384, %v1740
  %v4393 = vmax.f32 %v4385, %v2036
  %v4394 = vmax.f32 %v4386, %v2332
  %v4395 = vmax.f32 %v4387, %v2650
  %v4396 = vmax.f32 %v4388, %v2958
  %v4397 = vmax.f32 %v4389, %v3260
  %v4398 = vmax.f32 %v4390, %v3556
  %v4399 = vmax.f32 %v4391, %v1446
  %v4400 = vmax.f32 %v4392, %v1742
  %v4401 = vmax.f32 %v4393, %v2038
  %v4402 = vmax.f32 %v4394, %v2356
  %v4403 = vmax.f32 %v4395, %v2664
  %v4404 = vmax.f32 %v4396, %v2966
  %v4405 = vmax.f32 %v4397, %v3262
  %v4406 = vmax.f32 %v4398, %v3539
  %v4407 = vmax.f32 %v4399, %v1448
  %v4408 = vmax.f32 %v4400, %v1744
  %v4409 = vmax.f32 %v4401, %v2062
  %v4410 = vmax.f32 %v4402, %v2370
  %v4411 = vmax.f32 %v4403, %v2672
  %v4412 = vmax.f32 %v4404, %v2968
  %v4413 = vmax.f32 %v4405, %v3245
  %v4414 = vmax.f32 %v4406, %v3553
  %v4415 = vadd.f32 %v4407, %v4141
  %v4416 = vadd.f32 %v4408, %v4155
  %v4417 = vadd.f32 %v4409, %v4163
  %v4418 = vadd.f32 %v4410, %v4165
  %v4419 = vadd.f32 %v4411, %v4148
  %v4420 = vadd.f32 %v4412, %v4162
  %v4421 = vadd.f32 %v4413, %v4164
  %v4422 = vadd.f32 %v4414, %v4166
  %v4423 = vmax.f32 %v4415, 0.0
  %v4424 = vmax.f32 %v4416, 0.0
  %v4425 = vmax.f32 %v4417, 0.0
  %v4426 = vmax.f32 %v4418, 0.0
  %v4427 = vmax.f32 %v4419, 0.0
  %v4428 = vmax.f32 %v4420, 0.0
  %v4429 = vmax.f32 %v4421, 0.0
  %v4430 = vmax.f32 %v4422, 0.0
  %v4431 = vmax.f32 %v1376, %v1390
  %v4432 = vmax.f32 %v1684, %v1692
  %v4433 = vmax.f32 %v1986, %v1988
  %v4434 = vmax.f32 %v2282, %v2265
  %v4435 = vmax.f32 %v2559, %v2573
  %v4436 = vmax.f32 %v2867, %v2869
  %v4437 = vmax.f32 %v3163, %v3165
  %v4438 = vmax.f32 %v3459, %v3483
  %v4439 = vmax.f32 %v4431, %v1398
  %v4440 = vmax.f32 %v4432, %v1694
  %v4441 = vmax.f32 %v4433, %v1971
  %v4442 = vmax.f32 %v4434, %v2279
  %v4443 = vmax.f32 %v4435, %v2575
  %v4444 = vmax.f32 %v4436, %v2871
  %v4445 = vmax.f32 %v4437, %v3189
  %v4446 = vmax.f32 %v4438, %v3497
  %v4447 = vmax.f32 %v4439, %v1401
  %v4448 = vmax.f32 %v4440, %v1719
  %v4449 = vmax.f32 %v4441, %v2027
  %v4450 = vmax.f32 %v4442, %v2329
  %v4451 = vmax.f32 %v4443, %v2625
  %v4452 = vmax.f32 %v4444, %v2902
  %v4453 = vmax.f32 %v4445, %v3210
  %v4454 = vmax.f32 %v4446, %v3506
  %v4455 = vmax.f32 %v4447, %v1425
  %v4456 = vmax.f32 %v4448, %v1733
  %v4457 = vmax.f32 %v4449, %v2035
  %v4458 = vmax.f32 %v4450, %v2331
  %v4459 = vmax.f32 %v4451, %v2608
  %v4460 = vmax.f32 %v4452, %v2916
  %v4461 = vmax.f32 %v4453, %v3212
  %v4462 = vmax.f32 %v4454, %v3508
  %v4463 = vmax.f32 %v4455, %v1439
  %v4464 = vmax.f32 %v4456, %v1741
  %v4465 = vmax.f32 %v4457, %v2037
  %v4466 = vmax.f32 %v4458, %v2314
  %v4467 = vmax.f32 %v4459, %v2622
  %v4468 = vmax.f32 %v4460, %v2918
  %v4469 = vmax.f32 %v4461, %v3214
  %v4470 = vmax.f32 %v4462, %v3532
  %v4471 = vmax.f32 %v4463, %v1448
  %v4472 = vmax.f32 %v4464, %v1744
  %v4473 = vmax.f32 %v4465, %v2062
  %v4474 = vmax.f32 %v4466, %v2370
  %v4475 = vmax.f32 %v4467, %v2672
  %v4476 = vmax.f32 %v4468, %v2968
  %v4477 = vmax.f32 %v4469, %v3245
  %v4478 = vmax.f32 %v4470, %v3553
  %v4479 = vmax.f32 %v4471, %v1450
  %v4480 = vmax.f32 %v4472, %v1768
  %v4481 = vmax.f32 %v4473, %v2076
  %v4482 = vmax.f32 %v4474, %v2378
  %v4483 = vmax.f32 %v4475, %v2674
  %v4484 = vmax.f32 %v4476, %v2951
  %v4485 = vmax.f32 %v4477, %v3259
  %v4486 = vmax.f32 %v4478, %v3555
  %v4487 = vmax.f32 %v4479, %v1474
  %v4488 = vmax.f32 %v4480, %v1782
  %v4489 = vmax.f32 %v4481, %v2084
  %v4490 = vmax.f32 %v4482, %v2380
  %v4491 = vmax.f32 %v4483, %v2657
  %v4492 = vmax.f32 %v4484, %v2965
  %v4493 = vmax.f32 %v4485, %v3261
  %v4494 = vmax.f32 %v4486, %v3557
  %v4495 = vadd.f32 %v4487, %v4141
  %v4496 = vadd.f32 %v4488, %v4155
  %v4497 = vadd.f32 %v4489, %v4163
  %v4498 = vadd.f32 %v4490, %v4165
  %v4499 = vadd.f32 %v4491, %v4148
  %v4500 = vadd.f32 %v4492, %v4162
  %v4501 = vadd.f32 %v4493, %v4164
  %v4502 = vadd.f32 %v4494, %v4166
  %v4503 = vmax.f32 %v4495, 0.0
  %v4504 = vmax.f32 %v4496, 0.0
  %v4505 = vmax.f32 %v4497, 0.0
  %v4506 = vmax.f32 %v4498, 0.0
  %v4507 = vmax.f32 %v4499, 0.0
  %v4508 = vmax.f32 %v4500, 0.0
  %v4509 = vmax.f32 %v4501, 0.0
  %v4510 = vmax.f32 %v4502, 0.0
  %v4511 = vmax.f32 %v1398, %v1400
  %v4512 = vmax.f32 %v1694, %v1677
  %v4513 = vmax.f32 %v1971, %v1985
  %v4514 = vmax.f32 %v2279, %v2281
  %v4515 = vmax.f32 %v2575, %v2577
  %v4516 = vmax.f32 %v2871, %v2895
  %v4517 = vmax.f32 %v3189, %v3203
  %v4518 = vmax.f32 %v3497, %v3505
  %v4519 = vmax.f32 %v4511, %v1383
  %v4520 = vmax.f32 %v4512, %v1691
  %v4521 = vmax.f32 %v4513, %v1987
  %v4522 = vmax.f32 %v4514, %v2283
  %v4523 = vmax.f32 %v4515, %v2601
  %v4524 = vmax.f32 %v4516, %v2909
  %v4525 = vmax.f32 %v4517, %v3211
  %v4526 = vmax.f32 %v4518, %v3507
  %v4527 = vmax.f32 %v4519, %v1439
  %v4528 = vmax.f32 %v4520, %v1741
  %v4529 = vmax.f32 %v4521, %v2037
  %v4530 = vmax.f32 %v4522, %v2314
  %v4531 = vmax.f32 %v4523, %v2622
  %v4532 = vmax.f32 %v4524, %v2918
  %v4533 = vmax.f32 %v4525, %v3214
  %v4534 = vmax.f32 %v4526, %v3532
  %v4535 = vmax.f32 %v4527, %v1447
  %v4536 = vmax.f32 %v4528, %v1743
  %v4537 = vmax.f32 %v4529, %v2020
  %v4538 = vmax.f32 %v4530, %v2328
  %v4539 = vmax.f32 %v4531, %v2624
  %v4540 = vmax.f32 %v4532, %v2920
  %v4541 = vmax.f32 %v4533, %v3238
  %v4542 = vmax.f32 %v4534, %v3546
  %v4543 = vmax.f32 %v4535, %v1449
  %v4544 = vmax.f32 %v4536, %v1726
  %v4545 = vmax.f32 %v4537, %v2034
  %v4546 = vmax.f32 %v4538, %v2330
  %v4547 = vmax.f32 %v4539, %v2626
  %v4548 = vmax.f32 %v4540, %v2944
  %v4549 = vmax.f32 %v4541, %v3252
  %v4550 = vmax.f32 %v4542, %v3554
  %v4551 = vmax.f32 %v4543, %v1474
  %v4552 = vmax.f32 %v4544, %v1782
  %v4553 = vmax.f32 %v4545, %v2084
  %v4554 = vmax.f32 %v4546, %v2380
  %v4555 = vmax.f32 %v4547, %v2657
  %v4556 = vmax.f32 %v4548, %v2965
  %v4557 = vmax.f32 %v4549, %v3261
  %v4558 = vmax.f32 %v4550, %v3557
  %v4559 = vmax.f32 %v4551, %v1488
  %v4560 = vmax.f32 %v4552, %v1790
  %v4561 = vmax.f32 %v4553, %v2086
  %v4562 = vmax.f32 %v4554, %v2363
  %v4563 = vmax.f32 %v4555, %v2671
  %v4564 = vmax.f32 %v4556, %v2967
  %v4565 = vmax.f32 %v4557, %v3263
  %v4566 = vmax.f32 %v4558, %v3581
  %v4567 = vmax.f32 %v4559, %v1496
  %v4568 = vmax.f32 %v4560, %v1792
  %v4569 = vmax.f32 %v4561, %v2069
  %v4570 = vmax.f32 %v4562, %v2377
  %v4571 = vmax.f32 %v4563, %v2673
  %v4572 = vmax.f32 %v4564, %v2969
  %v4573 = vmax.f32 %v4565, %v3287
  %v4574 = vmax.f32 %v4566, %v3595
  %v4575 = vadd.f32 %v4567, %v4141
  %v4576 = vadd.f32 %v4568, %v4155
  %v4577 = vadd.f32 %v4569, %v4163
  %v4578 = vadd.f32 %v4570, %v4165
  %v4579 = vadd.f32 %v4571, %v4148
  %v4580 = vadd.f32 %v4572, %v4162
  %v4581 = vadd.f32 %v4573, %v4164
  %v4582 = vadd.f32 %v4574, %v4166
  %v4583 = vmax.f32 %v4575, 0.0
  %v4584 = vmax.f32 %v4576, 0.0
  %v4585 = vmax.f32 %v4577, 0.0
  %v4586 = vmax.f32 %v4578, 0.0
  %v4587 = vmax.f32 %v4579, 0.0
  %v4588 = vmax.f32 %v4580, 0.0
  %v4589 = vmax.f32 %v4581, 0.0
  %v4590 = vmax.f32 %v4582, 0.0
  %v4591 = vmax.f32 %v1432, %v1446
  %v4592 = vmax.f32 %v1740, %v1742
  %v4593 = vmax.f32 %v2036, %v2038
  %v4594 = vmax.f32 %v2332, %v2356
  %v4595 = vmax.f32 %v2650, %v2664
  %v4596 = vmax.f32 %v2958, %v2966
  %v4597 = vmax.f32 %v3260, %v3262
  %v4598 = vmax.f32 %v3556, %v3539
  %v4599 = vmax.f32 %v4591, %v1448
  %v4600 = vmax.f32 %v4592, %v1744
  %v4601 = vmax.f32 %v4593, %v2062
  %v4602 = vmax.f32 %v4594, %v2370
  %v4603 = vmax.f32 %v4595, %v2672
  %v4604 = vmax.f32 %v4596, %v2968
  %v4605 = vmax.f32 %v4597, %v3245
  %v4606 = vmax.f32 %v4598, %v3553
  %v4607 = vmax.f32 %v4599, %v1498
  %v4608 = vmax.f32 %v4600, %v1775
  %v4609 = vmax.f32 %v4601, %v2083
  %v4610 = vmax.f32 %v4602, %v2379
  %v4611 = vmax.f32 %v4603, %v2675
  %v4612 = vmax.f32 %v4604, %v2993
  %v4613 = vmax.f32 %v4605, %v3301
  %v4614 = vmax.f32 %v4606, %v3603
  %v4615 = vmax.f32 %v4607, %v1481
  %v4616 = vmax.f32 %v4608, %v1789
  %v4617 = vmax.f32 %v4609, %v2085
  %v4618 = vmax.f32 %v4610, %v2381
  %v4619 = vmax.f32 %v4611, %v2699
  %v4620 = vmax.f32 %v4612, %v3007
  %v4621 = vmax.f32 %v4613, %v3309
  %v4622 = vmax.f32 %v4614, %v3605
  %v4623 = vmax.f32 %v4615, %v1495
  %v4624 = vmax.f32 %v4616, %v1791
  %v4625 = vmax.f32 %v4617, %v2087
  %v4626 = vmax.f32 %v4618, %v2405
  %v4627 = vmax.f32 %v4619, %v2713
  %v4628 = vmax.f32 %v4620, %v3015
  %v4629 = vmax.f32 %v4621, %v3311
  %v4630 = vmax.f32 %v4622, %v3588
  %v4631 = vmax.f32 %v4623, %v1545
  %v4632 = vmax.f32 %v4624, %v1841
  %v4633 = vmax.f32 %v4625, %v2118
  %v4634 = vmax.f32 %v4626, %v2426
  %v4635 = vmax.f32 %v4627, %v2722
  %v4636 = vmax.f32 %v4628, %v3018
  %v4637 = vmax.f32 %v4629, %v3336
  %v4638 = vmax.f32 %v4630, %v3644
  %v4639 = vmax.f32 %v4631, %v1547
  %v4640 = vmax.f32 %v4632, %v1824
  %v4641 = vmax.f32 %v4633, %v2132
  %v4642 = vmax.f32 %v4634, %v2428
  %v4643 = vmax.f32 %v4635, %v2724
  %v4644 = vmax.f32 %v4636, %v3042
  %v4645 = vmax.f32 %v4637, %v3350
  %v4646 = vmax.f32 %v4638, %v3652
  %v4647 = vmax.f32 %v4639, %v1530
  %v4648 = vmax.f32 %v4640, %v1838
  %v4649 = vmax.f32 %v4641, %v2134
  %v4650 = vmax.f32 %v4642, %v2430
  %v4651 = vmax.f32 %v4643, %v2748
  %v4652 = vmax.f32 %v4644, %v3056
  %v4653 = vmax.f32 %v4645, %v3358
  %v4654 = vmax.f32 %v4646, %v3654
  %v4655 = vadd.f32 %v4647, %v4141
  %v4656 = vadd.f32 %v4648, %v4155
  %v4657 = vadd.f32 %v4649, %v4163
  %v4658 = vadd.f32 %v4650, %v4165
  %v4659 = vadd.f32 %v4651, %v4148
  %v4660 = vadd.f32 %v4652, %v4162
  %v4661 = vadd.f32 %v4653, %v4164
  %v4662 = vadd.f32 %v4654, %v4166
  %v4663 = vmax.f32 %v4655, 0.0
  %v4664 = vmax.f32 %v4656, 0.0
  %v4665 = vmax.f32 %v4657, 0.0
  %v4666 = vmax.f32 %v4658, 0.0
  %v4667 = vmax.f32 %v4659, 0.0
  %v4668 = vmax.f32 %v4660, 0.0
  %v4669 = vmax.f32 %v4661, 0.0
  %v4670 = vmax.f32 %v4662, 0.0
  %v4671 = vmax.f32 %v1448, %v1450
  %v4672 = vmax.f32 %v1744, %v1768
  %v4673 = vmax.f32 %v2062, %v2076
  %v4674 = vmax.f32 %v2370, %v2378
  %v4675 = vmax.f32 %v2672, %v2674
  %v4676 = vmax.f32 %v2968, %v2951
  %v4677 = vmax.f32 %v3245, %v3259
  %v4678 = vmax.f32 %v3553, %v3555
  %v4679 = vmax.f32 %v4671, %v1474
  %v4680 = vmax.f32 %v4672, %v1782
  %v4681 = vmax.f32 %v4673, %v2084
  %v4682 = vmax.f32 %v4674, %v2380
  %v4683 = vmax.f32 %v4675, %v2657
  %v4684 = vmax.f32 %v4676, %v2965
  %v4685 = vmax.f32 %v4677, %v3261
  %v4686 = vmax.f32 %v4678, %v3557
  %v4687 = vmax.f32 %v4679, %v1495
  %v4688 = vmax.f32 %v4680, %v1791
  %v4689 = vmax.f32 %v4681, %v2087
  %v4690 = vmax.f32 %v4682, %v2405
  %v4691 = vmax.f32 %v4683, %v2713
  %v4692 = vmax.f32 %v4684, %v3015
  %v4693 = vmax.f32 %v4685, %v3311
  %v4694 = vmax.f32 %v4686, %v3588
  %v4695 = vmax.f32 %v4687, %v1497
  %v4696 = vmax.f32 %v4688, %v1793
  %v4697 = vmax.f32 %v4689, %v2111
  %v4698 = vmax.f32 %v4690, %v2419
  %v4699 = vmax.f32 %v4691, %v2721
  %v4700 = vmax.f32 %v4692, %v3017
  %v4701 = vmax.f32 %v4693, %v3294
  %v4702 = vmax.f32 %v4694, %v3602
  %v4703 = vmax.f32 %v4695, %v1499
  %v4704 = vmax.f32 %v4696, %v1817
  %v4705 = vmax.f32 %v4697, %v2125
  %v4706 = vmax.f32 %v4698, %v2427
  %v4707 = vmax.f32 %v4699, %v2723
  %v4708 = vmax.f32 %v4700, %v3000
  %v4709 = vmax.f32 %v4701, %v3308
  %v4710 = vmax.f32 %v4702, %v3604
  %v4711 = vmax.f32 %v4703, %v1530
  %v4712 = vmax.f32 %v4704, %v1838
  %v4713 = vmax.f32 %v4705, %v2134
  %v4714 = vmax.f32 %v4706, %v2430
  %v4715 = vmax.f32 %v4707, %v2748
  %v4716 = vmax.f32 %v4708, %v3056
  %v4717 = vmax.f32 %v4709, %v3358
  %v4718 = vmax.f32 %v4710, %v3654
  %v4719 = vmax.f32 %v4711, %v1544
  %v4720 = vmax.f32 %v4712, %v1840
  %v4721 = vmax.f32 %v4713, %v2136
  %v4722 = vmax.f32 %v4714, %v2454
  %v4723 = vmax.f32 %v4715, %v2762
  %v4724 = vmax.f32 %v4716, %v3064
  %v4725 = vmax.f32 %v4717, %v3360
  %v4726 = vmax.f32 %v4718, %v3637
  %v4727 = vmax.f32 %v4719, %v1546
  %v4728 = vmax.f32 %v4720, %v1842
  %v4729 = vmax.f32 %v4721, %v2160
  %v4730 = vmax.f32 %v4722, %v2468
  %v4731 = vmax.f32 %v4723, %v2770
  %v4732 = vmax.f32 %v4724, %v3066
  %v4733 = vmax.f32 %v4725, %v3343
  %v4734 = vmax.f32 %v4726, %v3651
  %v4735 = vadd.f32 %v4727, %v4141
  %v4736 = vadd.f32 %v4728, %v4155
  %v4737 = vadd.f32 %v4729, %v4163
  %v4738 = vadd.f32 %v4730, %v4165
  %v4739 = vadd.f32 %v4731, %v4148
  %v4740 = vadd.f32 %v4732, %v4162
  %v4741 = vadd.f32 %v4733, %v4164
  %v4742 = vadd.f32 %v4734, %v4166
  %v4743 = vmax.f32 %v4735, 0.0
  %v4744 = vmax.f32 %v4736, 0.0
  %v4745 = vmax.f32 %v4737, 0.0
  %v4746 = vmax.f32 %v4738, 0.0
  %v4747 = vmax.f32 %v4739, 0.0
  %v4748 = vmax.f32 %v4740, 0.0
  %v4749 = vmax.f32 %v4741, 0.0
  %v4750 = vmax.f32 %v4742, 0.0
  %v4751 = vmax.f32 %v1474, %v1488
  %v4752 = vmax.f32 %v1782, %v1790
  %v4753 = vmax.f32 %v2084, %v2086
  %v4754 = vmax.f32 %v2380, %v2363
  %v4755 = vmax.f32 %v2657, %v2671
  %v4756 = vmax.f32 %v2965, %v2967
  %v4757 = vmax.f32 %v3261, %v3263
  %v4758 = vmax.f32 %v3557, %v3581
  %v4759 = vmax.f32 %v4751, %v1496
  %v4760 = vmax.f32 %v4752, %v1792
  %v4761 = vmax.f32 %v4753, %v2069
  %v4762 = vmax.f32 %v4754, %v2377
  %v4763 = vmax.f32 %v4755, %v2673
  %v4764 = vmax.f32 %v4756, %v2969
  %v4765 = vmax.f32 %v4757, %v3287
  %v4766 = vmax.f32 %v4758, %v3595
  %v4767 = vmax.f32 %v4759, %v1499
  %v4768 = vmax.f32 %v4760, %v1817
  %v4769 = vmax.f32 %v4761, %v2125
  %v4770 = vmax.f32 %v4762, %v2427
  %v4771 = vmax.f32 %v4763, %v2723
  %v4772 = vmax.f32 %v4764, %v3000
  %v4773 = vmax.f32 %v4765, %v3308
  %v4774 = vmax.f32 %v4766, %v3604
  %v4775 = vmax.f32 %v4767, %v1523
  %v4776 = vmax.f32 %v4768, %v1831
  %v4777 = vmax.f32 %v4769, %v2133
  %v4778 = vmax.f32 %v4770, %v2429
  %v4779 = vmax.f32 %v4771, %v2706
  %v4780 = vmax.f32 %v4772, %v3014
  %v4781 = vmax.f32 %v4773, %v3310
  %v4782 = vmax.f32 %v4774, %v3606
  %v4783 = vmax.f32 %v4775, %v1537
  %v4784 = vmax.f32 %v4776, %v1839
  %v4785 = vmax.f32 %v4777, %v2135
  %v4786 = vmax.f32 %v4778, %v2412
  %v4787 = vmax.f32 %v4779, %v2720
  %v4788 = vmax.f32 %v4780, %v3016
  %v4789 = vmax.f32 %v4781, %v3312
  %v4790 = vmax.f32 %v4782, %v3630
  %v4791 = vmax.f32 %v4783, %v1546
  %v4792 = vmax.f32 %v4784, %v1842
  %v4793 = vmax.f32 %v4785, %v2160
  %v4794 = vmax.f32 %v4786, %v2468
  %v4795 = vmax.f32 %v4787, %v2770
  %v4796 = vmax.f32 %v4788, %v3066
  %v4797 = vmax.f32 %v4789, %v3343
  %v4798 = vmax.f32 %v4790, %v3651
  %v4799 = vmax.f32 %v4791, %v1548
  %v4800 = vmax.f32 %v4792, %v1866
  %v4801 = vmax.f32 %v4793, %v2174
  %v4802 = vmax.f32 %v4794, %v2476
  %v4803 = vmax.f32 %v4795, %v2772
  %v4804 = vmax.f32 %v4796, %v3049
  %v4805 = vmax.f32 %v4797, %v3357
  %v4806 = vmax.f32 %v4798, %v3653
  %v4807 = vmax.f32 %v4799, %v1572
  %v4808 = vmax.f32 %v4800, %v1880
  %v4809 = vmax.f32 %v4801, %v2182
  %v4810 = vmax.f32 %v4802, %v2478
  %v4811 = vmax.f32 %v4803, %v2755
  %v4812 = vmax.f32 %v4804, %v3063
  %v4813 = vmax.f32 %v4805, %v3359
  %v4814 = vmax.f32 %v4806, %v3655
  %v4815 = vadd.f32 %v4807, %v4141
  %v4816 = vadd.f32 %v4808, %v4155
  %v4817 = vadd.f32 %v4809, %v4163
  %v4818 = vadd.f32 %v4810, %v4165
  %v4819 = vadd.f32 %v4811, %v4148
  %v4820 = vadd.f32 %v4812, %v4162
  %v4821 = vadd.f32 %v4813, %v4164
  %v4822 = vadd.f32 %v4814, %v4166
  %v4823 = vmax.f32 %v4815, 0.0
  %v4824 = vmax.f32 %v4816, 0.0
  %v4825 = vmax.f32 %v4817, 0.0
  %v4826 = vmax.f32 %v4818, 0.0
  %v4827 = vmax.f32 %v4819, 0.0
  %v4828 = vmax.f32 %v4820, 0.0
  %v4829 = vmax.f32 %v4821, 0.0
  %v4830 = vmax.f32 %v4822, 0.0
  %v4839 = vcombine.low %v4183, %v4184
  %v4840 = vcombine.low %v4185, %v4186
  %v4841 = vcombine.low %v4187, %v4188
  %v4842 = vcombine.low %v4189, %v4190
  %v4844 = vunpack.c.l.s4 1966171168
  %v4845 = vunpack.c.0.s8 %v4844
  %v4846 = vlaneseq
  %v4847 = vshrl.u32 %v4846, 7
  %v4848 = vsub.s32 %v4845, %v4847
  %v4849 = vrot.slane %v4839, %v4848
  %v4851 = vunpack.c.l.s4 1966171168
  %v4852 = vunpack.c.0.s8 %v4851
  %v4853 = vlaneseq
  %v4854 = vshrl.u32 %v4853, 7
  %v4855 = vsub.s32 %v4852, %v4854
  %v4856 = vrot.slane %v4840, %v4855
  %v4858 = vunpack.c.l.s4 1966171168
  %v4859 = vunpack.c.0.s8 %v4858
  %v4860 = vlaneseq
  %v4861 = vshrl.u32 %v4860, 7
  %v4862 = vsub.s32 %v4859, %v4861
  %v4863 = vrot.slane %v4841, %v4862
  %v4865 = vunpack.c.l.s4 1966171168
  %v4866 = vunpack.c.0.s8 %v4865
  %v4867 = vlaneseq
  %v4868 = vshrl.u32 %v4867, 7
  %v4869 = vsub.s32 %v4866, %v4868
  %v4870 = vrot.slane %v4842, %v4869
  %v4871 = vcombine.low %v4849, %v4856
  %v4872 = vcombine.low %v4863, %v4870
  %v4874 = vunpack.c.l.s4 1966171168
  %v4875 = vunpack.c.0.s8 %v4874
  %v4876 = vlaneseq
  %v4877 = vshrl.u32 %v4876, 7
  %v4878 = vsub.s32 %v4875, %v4877
  %v4879 = vrot.slane %v4871, %v4878
  %v4881 = vunpack.c.l.s4 1966171168
  %v4882 = vunpack.c.0.s8 %v4881
  %v4883 = vlaneseq
  %v4884 = vshrl.u32 %v4883, 7
  %v4885 = vsub.s32 %v4882, %v4884
  %v4886 = vrot.slane %v4872, %v4885
  %v4887 = vcombine.low %v4879, %v4886
  %v4897 = vcombine.low %v4263, %v4264
  %v4898 = vcombine.low %v4265, %v4266
  %v4899 = vcombine.low %v4267, %v4268
  %v4900 = vcombine.low %v4269, %v4270
  %v4902 = vunpack.c.l.s4 1966171168
  %v4903 = vunpack.c.0.s8 %v4902
  %v4904 = vlaneseq
  %v4905 = vshrl.u32 %v4904, 7
  %v4906 = vsub.s32 %v4903, %v4905
  %v4907 = vrot.slane %v4897, %v4906
  %v4909 = vunpack.c.l.s4 1966171168
  %v4910 = vunpack.c.0.s8 %v4909
  %v4911 = vlaneseq
  %v4912 = vshrl.u32 %v4911, 7
  %v4913 = vsub.s32 %v4910, %v4912
  %v4914 = vrot.slane %v4898, %v4913
  %v4916 = vunpack.c.l.s4 1966171168
  %v4917 = vunpack.c.0.s8 %v4916
  %v4918 = vlaneseq
  %v4919 = vshrl.u32 %v4918, 7
  %v4920 = vsub.s32 %v4917, %v4919
  %v4921 = vrot.slane %v4899, %v4920
  %v4923 = vunpack.c.l.s4 1966171168
  %v4924 = vunpack.c.0.s8 %v4923
  %v4925 = vlaneseq
  %v4926 = vshrl.u32 %v4925, 7
  %v4927 = vsub.s32 %v4924, %v4926
  %v4928 = vrot.slane %v4900, %v4927
  %v4929 = vcombine.low %v4907, %v4914
  %v4930 = vcombine.low %v4921, %v4928
  %v4932 = vunpack.c.l.s4 1966171168
  %v4933 = vunpack.c.0.s8 %v4932
  %v4934 = vlaneseq
  %v4935 = vshrl.u32 %v4934, 7
  %v4936 = vsub.s32 %v4933, %v4935
  %v4937 = vrot.slane %v4929, %v4936
  %v4939 = vunpack.c.l.s4 1966171168
  %v4940 = vunpack.c.0.s8 %v4939
  %v4941 = vlaneseq
  %v4942 = vshrl.u32 %v4941, 7
  %v4943 = vsub.s32 %v4940, %v4942
  %v4944 = vrot.slane %v4930, %v4943
  %v4945 = vcombine.low %v4937, %v4944
  %4946 = vrot.lane.b32.xlu0 %v4945, 64
  %v4947 = vpop.permute.xlu0 %4946
  %v4957 = vcombine.low %v4343, %v4344
  %v4958 = vcombine.low %v4345, %v4346
  %v4959 = vcombine.low %v4347, %v4348
  %v4960 = vcombine.low %v4349, %v4350
  %v4962 = vunpack.c.l.s4 1966171168
  %v4963 = vunpack.c.0.s8 %v4962
  %v4964 = vlaneseq
  %v4965 = vshrl.u32 %v4964, 7
  %v4966 = vsub.s32 %v4963, %v4965
  %v4967 = vrot.slane %v4957, %v4966
  %v4969 = vunpack.c.l.s4 1966171168
  %v4970 = vunpack.c.0.s8 %v4969
  %v4971 = vlaneseq
  %v4972 = vshrl.u32 %v4971, 7
  %v4973 = vsub.s32 %v4970, %v4972
  %v4974 = vrot.slane %v4958, %v4973
  %v4976 = vunpack.c.l.s4 1966171168
  %v4977 = vunpack.c.0.s8 %v4976
  %v4978 = vlaneseq
  %v4979 = vshrl.u32 %v4978, 7
  %v4980 = vsub.s32 %v4977, %v4979
  %v4981 = vrot.slane %v4959, %v4980
  %v4983 = vunpack.c.l.s4 1966171168
  %v4984 = vunpack.c.0.s8 %v4983
  %v4985 = vlaneseq
  %v4986 = vshrl.u32 %v4985, 7
  %v4987 = vsub.s32 %v4984, %v4986
  %v4988 = vrot.slane %v4960, %v4987
  %v4989 = vcombine.low %v4967, %v4974
  %v4990 = vcombine.low %v4981, %v4988
  %v4992 = vunpack.c.l.s4 1966171168
  %v4993 = vunpack.c.0.s8 %v4992
  %v4994 = vlaneseq
  %v4995 = vshrl.u32 %v4994, 7
  %v4996 = vsub.s32 %v4993, %v4995
  %v4997 = vrot.slane %v4989, %v4996
  %v4999 = vunpack.c.l.s4 1966171168
  %v5000 = vunpack.c.0.s8 %v4999
  %v5001 = vlaneseq
  %v5002 = vshrl.u32 %v5001, 7
  %v5003 = vsub.s32 %v5000, %v5002
  %v5004 = vrot.slane %v4990, %v5003
  %v5005 = vcombine.low %v4997, %v5004
  %v5015 = vcombine.low %v4423, %v4424
  %v5016 = vcombine.low %v4425, %v4426
  %v5017 = vcombine.low %v4427, %v4428
  %v5018 = vcombine.low %v4429, %v4430
  %v5020 = vunpack.c.l.s4 1966171168
  %v5021 = vunpack.c.0.s8 %v5020
  %v5022 = vlaneseq
  %v5023 = vshrl.u32 %v5022, 7
  %v5024 = vsub.s32 %v5021, %v5023
  %v5025 = vrot.slane %v5015, %v5024
  %v5027 = vunpack.c.l.s4 1966171168
  %v5028 = vunpack.c.0.s8 %v5027
  %v5029 = vlaneseq
  %v5030 = vshrl.u32 %v5029, 7
  %v5031 = vsub.s32 %v5028, %v5030
  %v5032 = vrot.slane %v5016, %v5031
  %v5034 = vunpack.c.l.s4 1966171168
  %v5035 = vunpack.c.0.s8 %v5034
  %v5036 = vlaneseq
  %v5037 = vshrl.u32 %v5036, 7
  %v5038 = vsub.s32 %v5035, %v5037
  %v5039 = vrot.slane %v5017, %v5038
  %v5041 = vunpack.c.l.s4 1966171168
  %v5042 = vunpack.c.0.s8 %v5041
  %v5043 = vlaneseq
  %v5044 = vshrl.u32 %v5043, 7
  %v5045 = vsub.s32 %v5042, %v5044
  %v5046 = vrot.slane %v5018, %v5045
  %v5047 = vcombine.low %v5025, %v5032
  %v5048 = vcombine.low %v5039, %v5046
  %v5050 = vunpack.c.l.s4 1966171168
  %v5051 = vunpack.c.0.s8 %v5050
  %v5052 = vlaneseq
  %v5053 = vshrl.u32 %v5052, 7
  %v5054 = vsub.s32 %v5051, %v5053
  %v5055 = vrot.slane %v5047, %v5054
  %v5057 = vunpack.c.l.s4 1966171168
  %v5058 = vunpack.c.0.s8 %v5057
  %v5059 = vlaneseq
  %v5060 = vshrl.u32 %v5059, 7
  %v5061 = vsub.s32 %v5058, %v5060
  %v5062 = vrot.slane %v5048, %v5061
  %v5063 = vcombine.low %v5055, %v5062
  %5064 = vrot.lane.b32.xlu0 %v5063, 64
  %v5065 = vpop.permute.xlu0 %5064
  %v5075 = vcombine.low %v4503, %v4504
  %v5076 = vcombine.low %v4505, %v4506
  %v5077 = vcombine.low %v4507, %v4508
  %v5078 = vcombine.low %v4509, %v4510
  %v5080 = vunpack.c.l.s4 1966171168
  %v5081 = vunpack.c.0.s8 %v5080
  %v5082 = vlaneseq
  %v5083 = vshrl.u32 %v5082, 7
  %v5084 = vsub.s32 %v5081, %v5083
  %v5085 = vrot.slane %v5075, %v5084
  %v5087 = vunpack.c.l.s4 1966171168
  %v5088 = vunpack.c.0.s8 %v5087
  %v5089 = vlaneseq
  %v5090 = vshrl.u32 %v5089, 7
  %v5091 = vsub.s32 %v5088, %v5090
  %v5092 = vrot.slane %v5076, %v5091
  %v5094 = vunpack.c.l.s4 1966171168
  %v5095 = vunpack.c.0.s8 %v5094
  %v5096 = vlaneseq
  %v5097 = vshrl.u32 %v5096, 7
  %v5098 = vsub.s32 %v5095, %v5097
  %v5099 = vrot.slane %v5077, %v5098
  %v5101 = vunpack.c.l.s4 1966171168
  %v5102 = vunpack.c.0.s8 %v5101
  %v5103 = vlaneseq
  %v5104 = vshrl.u32 %v5103, 7
  %v5105 = vsub.s32 %v5102, %v5104
  %v5106 = vrot.slane %v5078, %v5105
  %v5107 = vcombine.low %v5085, %v5092
  %v5108 = vcombine.low %v5099, %v5106
  %v5110 = vunpack.c.l.s4 1966171168
  %v5111 = vunpack.c.0.s8 %v5110
  %v5112 = vlaneseq
  %v5113 = vshrl.u32 %v5112, 7
  %v5114 = vsub.s32 %v5111, %v5113
  %v5115 = vrot.slane %v5107, %v5114
  %v5117 = vunpack.c.l.s4 1966171168
  %v5118 = vunpack.c.0.s8 %v5117
  %v5119 = vlaneseq
  %v5120 = vshrl.u32 %v5119, 7
  %v5121 = vsub.s32 %v5118, %v5120
  %v5122 = vrot.slane %v5108, %v5121
  %v5123 = vcombine.low %v5115, %v5122
  %v5133 = vcombine.low %v4583, %v4584
  %v5134 = vcombine.low %v4585, %v4586
  %v5135 = vcombine.low %v4587, %v4588
  %v5136 = vcombine.low %v4589, %v4590
  %v5138 = vunpack.c.l.s4 1966171168
  %v5139 = vunpack.c.0.s8 %v5138
  %v5140 = vlaneseq
  %v5141 = vshrl.u32 %v5140, 7
  %v5142 = vsub.s32 %v5139, %v5141
  %v5143 = vrot.slane %v5133, %v5142
  %v5145 = vunpack.c.l.s4 1966171168
  %v5146 = vunpack.c.0.s8 %v5145
  %v5147 = vlaneseq
  %v5148 = vshrl.u32 %v5147, 7
  %v5149 = vsub.s32 %v5146, %v5148
  %v5150 = vrot.slane %v5134, %v5149
  %v5152 = vunpack.c.l.s4 1966171168
  %v5153 = vunpack.c.0.s8 %v5152
  %v5154 = vlaneseq
  %v5155 = vshrl.u32 %v5154, 7
  %v5156 = vsub.s32 %v5153, %v5155
  %v5157 = vrot.slane %v5135, %v5156
  %v5159 = vunpack.c.l.s4 1966171168
  %v5160 = vunpack.c.0.s8 %v5159
  %v5161 = vlaneseq
  %v5162 = vshrl.u32 %v5161, 7
  %v5163 = vsub.s32 %v5160, %v5162
  %v5164 = vrot.slane %v5136, %v5163
  %v5165 = vcombine.low %v5143, %v5150
  %v5166 = vcombine.low %v5157, %v5164
  %v5168 = vunpack.c.l.s4 1966171168
  %v5169 = vunpack.c.0.s8 %v5168
  %v5170 = vlaneseq
  %v5171 = vshrl.u32 %v5170, 7
  %v5172 = vsub.s32 %v5169, %v5171
  %v5173 = vrot.slane %v5165, %v5172
  %v5175 = vunpack.c.l.s4 1966171168
  %v5176 = vunpack.c.0.s8 %v5175
  %v5177 = vlaneseq
  %v5178 = vshrl.u32 %v5177, 7
  %v5179 = vsub.s32 %v5176, %v5178
  %v5180 = vrot.slane %v5166, %v5179
  %v5181 = vcombine.low %v5173, %v5180
  %5182 = vrot.lane.b32.xlu0 %v5181, 64
  %v5183 = vpop.permute.xlu0 %5182
  %v5193 = vcombine.low %v4663, %v4664
  %v5194 = vcombine.low %v4665, %v4666
  %v5195 = vcombine.low %v4667, %v4668
  %v5196 = vcombine.low %v4669, %v4670
  %v5198 = vunpack.c.l.s4 1966171168
  %v5199 = vunpack.c.0.s8 %v5198
  %v5200 = vlaneseq
  %v5201 = vshrl.u32 %v5200, 7
  %v5202 = vsub.s32 %v5199, %v5201
  %v5203 = vrot.slane %v5193, %v5202
  %v5205 = vunpack.c.l.s4 1966171168
  %v5206 = vunpack.c.0.s8 %v5205
  %v5207 = vlaneseq
  %v5208 = vshrl.u32 %v5207, 7
  %v5209 = vsub.s32 %v5206, %v5208
  %v5210 = vrot.slane %v5194, %v5209
  %v5212 = vunpack.c.l.s4 1966171168
  %v5213 = vunpack.c.0.s8 %v5212
  %v5214 = vlaneseq
  %v5215 = vshrl.u32 %v5214, 7
  %v5216 = vsub.s32 %v5213, %v5215
  %v5217 = vrot.slane %v5195, %v5216
  %v5219 = vunpack.c.l.s4 1966171168
  %v5220 = vunpack.c.0.s8 %v5219
  %v5221 = vlaneseq
  %v5222 = vshrl.u32 %v5221, 7
  %v5223 = vsub.s32 %v5220, %v5222
  %v5224 = vrot.slane %v5196, %v5223
  %v5225 = vcombine.low %v5203, %v5210
  %v5226 = vcombine.low %v5217, %v5224
  %v5228 = vunpack.c.l.s4 1966171168
  %v5229 = vunpack.c.0.s8 %v5228
  %v5230 = vlaneseq
  %v5231 = vshrl.u32 %v5230, 7
  %v5232 = vsub.s32 %v5229, %v5231
  %v5233 = vrot.slane %v5225, %v5232
  %v5235 = vunpack.c.l.s4 1966171168
  %v5236 = vunpack.c.0.s8 %v5235
  %v5237 = vlaneseq
  %v5238 = vshrl.u32 %v5237, 7
  %v5239 = vsub.s32 %v5236, %v5238
  %v5240 = vrot.slane %v5226, %v5239
  %v5241 = vcombine.low %v5233, %v5240
  %v5251 = vcombine.low %v4743, %v4744
  %v5252 = vcombine.low %v4745, %v4746
  %v5253 = vcombine.low %v4747, %v4748
  %v5254 = vcombine.low %v4749, %v4750
  %v5256 = vunpack.c.l.s4 1966171168
  %v5257 = vunpack.c.0.s8 %v5256
  %v5258 = vlaneseq
  %v5259 = vshrl.u32 %v5258, 7
  %v5260 = vsub.s32 %v5257, %v5259
  %v5261 = vrot.slane %v5251, %v5260
  %v5263 = vunpack.c.l.s4 1966171168
  %v5264 = vunpack.c.0.s8 %v5263
  %v5265 = vlaneseq
  %v5266 = vshrl.u32 %v5265, 7
  %v5267 = vsub.s32 %v5264, %v5266
  %v5268 = vrot.slane %v5252, %v5267
  %v5270 = vunpack.c.l.s4 1966171168
  %v5271 = vunpack.c.0.s8 %v5270
  %v5272 = vlaneseq
  %v5273 = vshrl.u32 %v5272, 7
  %v5274 = vsub.s32 %v5271, %v5273
  %v5275 = vrot.slane %v5253, %v5274
  %v5277 = vunpack.c.l.s4 1966171168
  %v5278 = vunpack.c.0.s8 %v5277
  %v5279 = vlaneseq
  %v5280 = vshrl.u32 %v5279, 7
  %v5281 = vsub.s32 %v5278, %v5280
  %v5282 = vrot.slane %v5254, %v5281
  %v5283 = vcombine.low %v5261, %v5268
  %v5284 = vcombine.low %v5275, %v5282
  %v5286 = vunpack.c.l.s4 1966171168
  %v5287 = vunpack.c.0.s8 %v5286
  %v5288 = vlaneseq
  %v5289 = vshrl.u32 %v5288, 7
  %v5290 = vsub.s32 %v5287, %v5289
  %v5291 = vrot.slane %v5283, %v5290
  %v5293 = vunpack.c.l.s4 1966171168
  %v5294 = vunpack.c.0.s8 %v5293
  %v5295 = vlaneseq
  %v5296 = vshrl.u32 %v5295, 7
  %v5297 = vsub.s32 %v5294, %v5296
  %v5298 = vrot.slane %v5284, %v5297
  %v5299 = vcombine.low %v5291, %v5298
  %5300 = vrot.lane.b32.xlu0 %v5299, 64
  %v5301 = vpop.permute.xlu0 %5300
  %v5311 = vcombine.low %v4823, %v4824
  %v5312 = vcombine.low %v4825, %v4826
  %v5313 = vcombine.low %v4827, %v4828
  %v5314 = vcombine.low %v4829, %v4830
  %v5316 = vunpack.c.l.s4 1966171168
  %v5317 = vunpack.c.0.s8 %v5316
  %v5318 = vlaneseq
  %v5319 = vshrl.u32 %v5318, 7
  %v5320 = vsub.s32 %v5317, %v5319
  %v5321 = vrot.slane %v5311, %v5320
  %v5323 = vunpack.c.l.s4 1966171168
  %v5324 = vunpack.c.0.s8 %v5323
  %v5325 = vlaneseq
  %v5326 = vshrl.u32 %v5325, 7
  %v5327 = vsub.s32 %v5324, %v5326
  %v5328 = vrot.slane %v5312, %v5327
  %v5330 = vunpack.c.l.s4 1966171168
  %v5331 = vunpack.c.0.s8 %v5330
  %v5332 = vlaneseq
  %v5333 = vshrl.u32 %v5332, 7
  %v5334 = vsub.s32 %v5331, %v5333
  %v5335 = vrot.slane %v5313, %v5334
  %v5337 = vunpack.c.l.s4 1966171168
  %v5338 = vunpack.c.0.s8 %v5337
  %v5339 = vlaneseq
  %v5340 = vshrl.u32 %v5339, 7
  %v5341 = vsub.s32 %v5338, %v5340
  %v5342 = vrot.slane %v5314, %v5341
  %v5343 = vcombine.low %v5321, %v5328
  %v5344 = vcombine.low %v5335, %v5342
  %v5346 = vunpack.c.l.s4 1966171168
  %v5347 = vunpack.c.0.s8 %v5346
  %v5348 = vlaneseq
  %v5349 = vshrl.u32 %v5348, 7
  %v5350 = vsub.s32 %v5347, %v5349
  %v5351 = vrot.slane %v5343, %v5350
  %v5353 = vunpack.c.l.s4 1966171168
  %v5354 = vunpack.c.0.s8 %v5353
  %v5355 = vlaneseq
  %v5356 = vshrl.u32 %v5355, 7
  %v5357 = vsub.s32 %v5354, %v5356
  %v5358 = vrot.slane %v5344, %v5357
  %v5359 = vcombine.low %v5351, %v5358
  %vm5361 = vcmask 523264
  %v5362 = vsel %vm5361, %v4887, %v4947
  %v5363 = vsel %vm5361, %v5005, %v5065
  %v5364 = vsel %vm5361, %v5123, %v5183
  %v5365 = vsel %vm5361, %v5241, %v5301
  %v5366 = vpack.c.bf16 %v5362, %v5362
  %v5367 = vpack.c.bf16 %v5363, %v5363
  %v5368 = vpack.c.bf16 %v5364, %v5364
  %v5369 = vpack.c.bf16 %v5365, %v5365
  %v5370 = vpack.c.bf16 %v5359, %v5359
  %v5371 = vld [vmem:[%s3] sm:$0xff]
  %v5372 = vld [vmem:[%s3 + $0x8] sm:$0xff]
  %v5373 = vld [vmem:[%s3 + $0x10] sm:$0xff]
  %v5374 = vld [vmem:[%s3 + $0x18] sm:$0xff]
  %v5375 = vld [vmem:[%s3 + $0x20] sm:$0xff]
  %v5376 = vld [vmem:[%s3 + $0x28] sm:$0xff]
  %v5377 = vld [vmem:[%s3 + $0x30] sm:$0xff]
  %v5378 = vld [vmem:[%s3 + $0x38] sm:$0xff]
  %v5379 = vld [vmem:[%s3 + $0x40] sm:$0xff]
  %v5380 = vld [vmem:[%s3 + $0x48] sm:$0xff]
  %v5381 = vld [vmem:[%s3 + $0x50] sm:$0xff]
  %v5382 = vld [vmem:[%s3 + $0x58] sm:$0xff]
  %v5383 = vld [vmem:[%s3 + $0x60] sm:$0xff]
  %v5384 = vld [vmem:[%s3 + $0x68] sm:$0xff]
  %v5385 = vld [vmem:[%s3 + $0x70] sm:$0xff]
  %v5386 = vld [vmem:[%s3 + $0x78] sm:$0xff]
  %v5387 = vld [vmem:[%s3 + $0x80] sm:$0xff]
  %v5388 = vld [vmem:[%s3 + $0x88] sm:$0xff]
  %v5389 = vld [vmem:[%s3 + $0x90] sm:$0xff]
  %v5390 = vld [vmem:[%s3 + $0x98] sm:$0xff]
  %v5391 = vld [vmem:[%s3 + $0xa0] sm:$0xff]
  %v5392 = vld [vmem:[%s3 + $0xa8] sm:$0xff]
  %v5393 = vld [vmem:[%s3 + $0xb0] sm:$0xff]
  %v5394 = vld [vmem:[%s3 + $0xb8] sm:$0xff]
  %v5395 = vld [vmem:[%s3 + $0xc0] sm:$0xff]
  %v5396 = vld [vmem:[%s3 + $0xc8] sm:$0xff]
  %v5397 = vld [vmem:[%s3 + $0xd0] sm:$0xff]
  %v5398 = vld [vmem:[%s3 + $0xd8] sm:$0xff]
  %v5399 = vld [vmem:[%s3 + $0xe0] sm:$0xff]
  %v5400 = vld [vmem:[%s3 + $0xe8] sm:$0xff]
  %v5401 = vld [vmem:[%s3 + $0xf0] sm:$0xff]
  %v5402 = vld [vmem:[%s3 + $0xf8] sm:$0xff]
  %v5403 = vld [vmem:[%s3 + $0x100] sm:$0xff]
  %v5404 = vld [vmem:[%s3 + $0x108] sm:$0xff]
  %v5405 = vld [vmem:[%s3 + $0x110] sm:$0xff]
  %v5406 = vld [vmem:[%s3 + $0x118] sm:$0xff]
  %v5407 = vld [vmem:[%s3 + $0x120] sm:$0xff]
  %v5408 = vld [vmem:[%s3 + $0x128] sm:$0xff]
  %v5409 = vld [vmem:[%s3 + $0x130] sm:$0xff]
  %v5410 = vld [vmem:[%s3 + $0x138] sm:$0xff]
  %v5411 = vld [vmem:[%s3 + $0x140] sm:$0xff]
  %v5412 = vld [vmem:[%s3 + $0x148] sm:$0xff]
  %v5413 = vld [vmem:[%s3 + $0x150] sm:$0xff]
  %v5414 = vld [vmem:[%s3 + $0x158] sm:$0xff]
  %v5415 = vld [vmem:[%s3 + $0x160] sm:$0xff]
  %v5416 = vld [vmem:[%s3 + $0x168] sm:$0xff]
  %v5417 = vld [vmem:[%s3 + $0x170] sm:$0xff]
  %v5418 = vld [vmem:[%s3 + $0x178] sm:$0xff]
  %v5419 = vld [vmem:[%s3 + $0x180] sm:$0xff]
  %v5420 = vld [vmem:[%s3 + $0x188] sm:$0xff]
  %v5421 = vld [vmem:[%s3 + $0x190] sm:$0xff]
  %v5422 = vld [vmem:[%s3 + $0x198] sm:$0xff]
  %v5423 = vld [vmem:[%s3 + $0x1a0] sm:$0xff]
  %v5424 = vld [vmem:[%s3 + $0x1a8] sm:$0xff]
  %v5425 = vld [vmem:[%s3 + $0x1b0] sm:$0xff]
  %v5426 = vld [vmem:[%s3 + $0x1b8] sm:$0xff]
  %v5427 = vld [vmem:[%s3 + $0x1c0] sm:$0xff]
  %v5428 = vld [vmem:[%s3 + $0x1c8] sm:$0xff]
  %v5429 = vld [vmem:[%s3 + $0x1d0] sm:$0xff]
  %v5430 = vld [vmem:[%s3 + $0x1d8] sm:$0xff]
  %v5431 = vld [vmem:[%s3 + $0x1e0] sm:$0xff]
  %v5432 = vld [vmem:[%s3 + $0x1e8] sm:$0xff]
  %v5433 = vld [vmem:[%s3 + $0x1f0] sm:$0xff]
  %v5434 = vld [vmem:[%s3 + $0x1f8] sm:$0xff]
  %v5435 = vld [vmem:[%s3 + $0x200] sm:$0xff]
  %v5436 = vld [vmem:[%s3 + $0x208] sm:$0xff]
  %v5437 = vld [vmem:[%s3 + $0x210] sm:$0xff]
  %v5438 = vld [vmem:[%s3 + $0x218] sm:$0xff]
  %v5439 = vld [vmem:[%s3 + $0x220] sm:$0xff]
  %v5440 = vld [vmem:[%s3 + $0x228] sm:$0xff]
  %v5441 = vld [vmem:[%s3 + $0x230] sm:$0xff]
  %v5442 = vld [vmem:[%s3 + $0x238] sm:$0xff]
  %v5443 = vld [vmem:[%s3 + $0x240] sm:$0xff]
  %v5444 = vld [vmem:[%s3 + $0x248] sm:$0xff]
  %v5445 = vld [vmem:[%s3 + $0x250] sm:$0xff]
  %v5446 = vld [vmem:[%s3 + $0x258] sm:$0xff]
  %v5447 = vld [vmem:[%s3 + $0x260] sm:$0xff]
  %v5448 = vld [vmem:[%s3 + $0x268] sm:$0xff]
  %v5449 = vld [vmem:[%s3 + $0x270] sm:$0xff]
  %v5450 = vld [vmem:[%s3 + $0x278] sm:$0xff]
  %v5451 = vld [vmem:[%s3 + $0x280] sm:$0xff]
  %v5452 = vld [vmem:[%s3 + $0x288] sm:$0xff]
  %v5453 = vld [vmem:[%s3 + $0x290] sm:$0xff]
  %v5454 = vld [vmem:[%s3 + $0x298] sm:$0xff]
  %v5455 = vld [vmem:[%s3 + $0x2a0] sm:$0xff]
  %v5456 = vld [vmem:[%s3 + $0x2a8] sm:$0xff]
  %v5457 = vld [vmem:[%s3 + $0x2b0] sm:$0xff]
  %v5458 = vld [vmem:[%s3 + $0x2b8] sm:$0xff]
  %v5459 = vld [vmem:[%s3 + $0x2c0] sm:$0xff]
  %v5460 = vld [vmem:[%s3 + $0x2c8] sm:$0xff]
  %v5461 = vld [vmem:[%s3 + $0x2d0] sm:$0xff]
  %v5462 = vld [vmem:[%s3 + $0x2d8] sm:$0xff]
  %v5463 = vld [vmem:[%s3 + $0x2e0] sm:$0xff]
  %v5464 = vld [vmem:[%s3 + $0x2e8] sm:$0xff]
  %v5465 = vld [vmem:[%s3 + $0x2f0] sm:$0xff]
  %v5466 = vld [vmem:[%s3 + $0x2f8] sm:$0xff]
  %v5467 = vld [vmem:[%s3 + $0x300] sm:$0xff]
  %v5468 = vld [vmem:[%s3 + $0x308] sm:$0xff]
  %v5469 = vld [vmem:[%s3 + $0x310] sm:$0xff]
  %v5470 = vld [vmem:[%s3 + $0x318] sm:$0xff]
  %v5471 = vld [vmem:[%s3 + $0x320] sm:$0xff]
  %v5472 = vld [vmem:[%s3 + $0x328] sm:$0xff]
  %v5473 = vld [vmem:[%s3 + $0x330] sm:$0xff]
  %v5474 = vld [vmem:[%s3 + $0x338] sm:$0xff]
  %v5475 = vld [vmem:[%s3 + $0x340] sm:$0xff]
  %v5476 = vld [vmem:[%s3 + $0x348] sm:$0xff]
  %v5477 = vld [vmem:[%s3 + $0x350] sm:$0xff]
  %v5478 = vld [vmem:[%s3 + $0x358] sm:$0xff]
  %v5479 = vld [vmem:[%s3 + $0x360] sm:$0xff]
  %v5480 = vld [vmem:[%s3 + $0x368] sm:$0xff]
  %v5481 = vld [vmem:[%s3 + $0x370] sm:$0xff]
  %v5482 = vld [vmem:[%s3 + $0x378] sm:$0xff]
  %v5483 = vld [vmem:[%s3 + $0x380] sm:$0xff]
  %v5484 = vld [vmem:[%s3 + $0x388] sm:$0xff]
  %v5485 = vld [vmem:[%s3 + $0x390] sm:$0xff]
  %v5486 = vld [vmem:[%s3 + $0x398] sm:$0xff]
  %v5487 = vld [vmem:[%s3 + $0x3a0] sm:$0xff]
  %v5488 = vld [vmem:[%s3 + $0x3a8] sm:$0xff]
  %v5489 = vld [vmem:[%s3 + $0x3b0] sm:$0xff]
  %v5490 = vld [vmem:[%s3 + $0x3b8] sm:$0xff]
  %v5491 = vld [vmem:[%s3 + $0x3c0] sm:$0xff]
  %v5492 = vld [vmem:[%s3 + $0x3c8] sm:$0xff]
  %v5493 = vld [vmem:[%s3 + $0x3d0] sm:$0xff]
  %v5494 = vld [vmem:[%s3 + $0x3d8] sm:$0xff]
  %v5495 = vld [vmem:[%s3 + $0x3e0] sm:$0xff]
  %v5496 = vld [vmem:[%s3 + $0x3e8] sm:$0xff]
  %v5497 = vld [vmem:[%s3 + $0x3f0] sm:$0xff]
  %v5498 = vld [vmem:[%s3 + $0x3f8] sm:$0xff]
  %v5499 = vld [vmem:[%s3 + $0x400] sm:$0xff]
  %v5500 = vld [vmem:[%s3 + $0x408] sm:$0xff]
  %v5501 = vld [vmem:[%s3 + $0x410] sm:$0xff]
  %v5502 = vld [vmem:[%s3 + $0x418] sm:$0xff]
  %v5503 = vld [vmem:[%s3 + $0x420] sm:$0xff]
  %v5504 = vld [vmem:[%s3 + $0x428] sm:$0xff]
  %v5505 = vld [vmem:[%s3 + $0x430] sm:$0xff]
  %v5506 = vld [vmem:[%s3 + $0x438] sm:$0xff]
  %v5507 = vld [vmem:[%s3 + $0x440] sm:$0xff]
  %v5508 = vld [vmem:[%s3 + $0x448] sm:$0xff]
  %v5509 = vld [vmem:[%s3 + $0x450] sm:$0xff]
  %v5510 = vld [vmem:[%s3 + $0x458] sm:$0xff]
  %v5511 = vld [vmem:[%s3 + $0x460] sm:$0xff]
  %v5512 = vld [vmem:[%s3 + $0x468] sm:$0xff]
  %v5513 = vld [vmem:[%s3 + $0x470] sm:$0xff]
  %v5514 = vld [vmem:[%s3 + $0x478] sm:$0xff]
  %v5515 = vld [vmem:[%s3 + $0x480] sm:$0xff]
  %v5516 = vld [vmem:[%s3 + $0x488] sm:$0xff]
  %v5517 = vld [vmem:[%s3 + $0x490] sm:$0xff]
  %v5518 = vld [vmem:[%s3 + $0x498] sm:$0xff]
  %v5519 = vld [vmem:[%s3 + $0x4a0] sm:$0xff]
  %v5520 = vld [vmem:[%s3 + $0x4a8] sm:$0xff]
  %v5521 = vld [vmem:[%s3 + $0x4b0] sm:$0xff]
  %v5522 = vld [vmem:[%s3 + $0x4b8] sm:$0xff]
  %v5523 = vld [vmem:[%s3 + $0x4c0] sm:$0xff]
  %v5524 = vld [vmem:[%s3 + $0x4c8] sm:$0xff]
  %v5525 = vld [vmem:[%s3 + $0x4d0] sm:$0xff]
  %v5526 = vld [vmem:[%s3 + $0x4d8] sm:$0xff]
  %v5527 = vld [vmem:[%s3 + $0x4e0] sm:$0xff]
  %v5528 = vld [vmem:[%s3 + $0x4e8] sm:$0xff]
  %v5529 = vld [vmem:[%s3 + $0x4f0] sm:$0xff]
  %v5530 = vld [vmem:[%s3 + $0x4f8] sm:$0xff]
  %v5531 = vld [vmem:[%s3 + $0x500] sm:$0xff]
  %v5532 = vld [vmem:[%s3 + $0x508] sm:$0xff]
  %v5533 = vld [vmem:[%s3 + $0x510] sm:$0xff]
  %v5534 = vld [vmem:[%s3 + $0x518] sm:$0xff]
  %v5535 = vld [vmem:[%s3 + $0x520] sm:$0xff]
  %v5536 = vld [vmem:[%s3 + $0x528] sm:$0xff]
  %v5537 = vld [vmem:[%s3 + $0x530] sm:$0xff]
  %v5538 = vld [vmem:[%s3 + $0x538] sm:$0xff]
  %v5539 = vld [vmem:[%s3 + $0x540] sm:$0xff]
  %v5540 = vld [vmem:[%s3 + $0x548] sm:$0xff]
  %v5541 = vld [vmem:[%s3 + $0x550] sm:$0xff]
  %v5542 = vld [vmem:[%s3 + $0x558] sm:$0xff]
  %v5543 = vld [vmem:[%s3 + $0x560] sm:$0xff]
  %v5544 = vld [vmem:[%s3 + $0x568] sm:$0xff]
  %v5545 = vld [vmem:[%s3 + $0x570] sm:$0xff]
  %v5546 = vld [vmem:[%s3 + $0x578] sm:$0xff]
  %v5547 = vld [vmem:[%s3 + $0x580] sm:$0xff]
  %v5548 = vld [vmem:[%s3 + $0x588] sm:$0xff]
  %v5549 = vld [vmem:[%s3 + $0x590] sm:$0xff]
  %v5550 = vld [vmem:[%s3 + $0x598] sm:$0xff]
  %v5551 = vld [vmem:[%s3 + $0x5a0] sm:$0xff]
  %v5552 = vld [vmem:[%s3 + $0x5a8] sm:$0xff]
  %v5553 = vld [vmem:[%s3 + $0x5b0] sm:$0xff]
  %v5554 = vld [vmem:[%s3 + $0x5b8] sm:$0xff]
  %v5555 = vld [vmem:[%s3 + $0x5c0] sm:$0xff]
  %v5556 = vld [vmem:[%s3 + $0x5c8] sm:$0xff]
  %v5557 = vld [vmem:[%s3 + $0x5d0] sm:$0xff]
  %v5558 = vld [vmem:[%s3 + $0x5d8] sm:$0xff]
  %v5559 = vld [vmem:[%s3 + $0x5e0] sm:$0xff]
  %v5560 = vld [vmem:[%s3 + $0x5e8] sm:$0xff]
  %v5561 = vld [vmem:[%s3 + $0x5f0] sm:$0xff]
  %v5562 = vld [vmem:[%s3 + $0x5f8] sm:$0xff]
  %v5563 = vld [vmem:[%s3 + $0x600] sm:$0xff]
  %v5564 = vld [vmem:[%s3 + $0x608] sm:$0xff]
  %v5565 = vld [vmem:[%s3 + $0x610] sm:$0xff]
  %v5566 = vld [vmem:[%s3 + $0x618] sm:$0xff]
  %v5567 = vld [vmem:[%s3 + $0x620] sm:$0xff]
  %v5568 = vld [vmem:[%s3 + $0x628] sm:$0xff]
  %v5569 = vld [vmem:[%s3 + $0x630] sm:$0xff]
  %v5570 = vld [vmem:[%s3 + $0x638] sm:$0xff]
  %v5571 = vld [vmem:[%s3 + $0x640] sm:$0xff]
  %v5572 = vld [vmem:[%s3 + $0x648] sm:$0xff]
  %v5573 = vld [vmem:[%s3 + $0x650] sm:$0xff]
  %v5574 = vld [vmem:[%s3 + $0x658] sm:$0xff]
  %v5575 = vld [vmem:[%s3 + $0x660] sm:$0xff]
  %v5576 = vld [vmem:[%s3 + $0x668] sm:$0xff]
  %v5577 = vld [vmem:[%s3 + $0x670] sm:$0xff]
  %v5578 = vld [vmem:[%s3 + $0x678] sm:$0xff]
  %v5579 = vld [vmem:[%s3 + $0x680] sm:$0xff]
  %v5580 = vld [vmem:[%s3 + $0x688] sm:$0xff]
  %v5581 = vld [vmem:[%s3 + $0x690] sm:$0xff]
  %v5582 = vld [vmem:[%s3 + $0x698] sm:$0xff]
  %v5583 = vld [vmem:[%s3 + $0x6a0] sm:$0xff]
  %v5584 = vld [vmem:[%s3 + $0x6a8] sm:$0xff]
  %v5585 = vld [vmem:[%s3 + $0x6b0] sm:$0xff]
  %v5586 = vld [vmem:[%s3 + $0x6b8] sm:$0xff]
  %v5587 = vld [vmem:[%s3 + $0x6c0] sm:$0xff]
  %v5588 = vld [vmem:[%s3 + $0x6c8] sm:$0xff]
  %v5589 = vld [vmem:[%s3 + $0x6d0] sm:$0xff]
  %v5590 = vld [vmem:[%s3 + $0x6d8] sm:$0xff]
  %v5591 = vld [vmem:[%s3 + $0x6e0] sm:$0xff]
  %v5592 = vld [vmem:[%s3 + $0x6e8] sm:$0xff]
  %v5593 = vld [vmem:[%s3 + $0x6f0] sm:$0xff]
  %v5594 = vld [vmem:[%s3 + $0x6f8] sm:$0xff]
  %v5595 = vld [vmem:[%s3 + $0x700] sm:$0xff]
  %v5596 = vld [vmem:[%s3 + $0x708] sm:$0xff]
  %v5597 = vld [vmem:[%s3 + $0x710] sm:$0xff]
  %v5598 = vld [vmem:[%s3 + $0x718] sm:$0xff]
  %v5599 = vld [vmem:[%s3 + $0x720] sm:$0xff]
  %v5600 = vld [vmem:[%s3 + $0x728] sm:$0xff]
  %v5601 = vld [vmem:[%s3 + $0x730] sm:$0xff]
  %v5602 = vld [vmem:[%s3 + $0x738] sm:$0xff]
  %v5603 = vld [vmem:[%s3 + $0x740] sm:$0xff]
  %v5604 = vld [vmem:[%s3 + $0x748] sm:$0xff]
  %v5605 = vld [vmem:[%s3 + $0x750] sm:$0xff]
  %v5606 = vld [vmem:[%s3 + $0x758] sm:$0xff]
  %v5607 = vld [vmem:[%s3 + $0x760] sm:$0xff]
  %v5608 = vld [vmem:[%s3 + $0x768] sm:$0xff]
  %v5609 = vld [vmem:[%s3 + $0x770] sm:$0xff]
  %v5610 = vld [vmem:[%s3 + $0x778] sm:$0xff]
  %v5611 = vld [vmem:[%s3 + $0x780] sm:$0xff]
  %v5612 = vld [vmem:[%s3 + $0x788] sm:$0xff]
  %v5613 = vld [vmem:[%s3 + $0x790] sm:$0xff]
  %v5614 = vld [vmem:[%s3 + $0x798] sm:$0xff]
  %v5615 = vld [vmem:[%s3 + $0x7a0] sm:$0xff]
  %v5616 = vld [vmem:[%s3 + $0x7a8] sm:$0xff]
  %v5617 = vld [vmem:[%s3 + $0x7b0] sm:$0xff]
  %v5618 = vld [vmem:[%s3 + $0x7b8] sm:$0xff]
  %v5619 = vld [vmem:[%s3 + $0x7c0] sm:$0xff]
  %v5620 = vld [vmem:[%s3 + $0x7c8] sm:$0xff]
  %v5621 = vld [vmem:[%s3 + $0x7d0] sm:$0xff]
  %v5622 = vld [vmem:[%s3 + $0x7d8] sm:$0xff]
  %v5623 = vld [vmem:[%s3 + $0x7e0] sm:$0xff]
  %v5624 = vld [vmem:[%s3 + $0x7e8] sm:$0xff]
  %v5625 = vld [vmem:[%s3 + $0x7f0] sm:$0xff]
  %v5626 = vld [vmem:[%s3 + $0x7f8] sm:$0xff]
  %v5627 = vld [vmem:[%s3 + $0x800] sm:$0xff]
  %v5628 = vld [vmem:[%s3 + $0x808] sm:$0xff]
  %v5629 = vld [vmem:[%s3 + $0x810] sm:$0xff]
  %v5630 = vld [vmem:[%s3 + $0x818] sm:$0xff]
  %v5631 = vld [vmem:[%s3 + $0x820] sm:$0xff]
  %v5632 = vld [vmem:[%s3 + $0x828] sm:$0xff]
  %v5633 = vld [vmem:[%s3 + $0x830] sm:$0xff]
  %v5634 = vld [vmem:[%s3 + $0x838] sm:$0xff]
  %v5635 = vld [vmem:[%s3 + $0x840] sm:$0xff]
  %v5636 = vld [vmem:[%s3 + $0x848] sm:$0xff]
  %v5637 = vld [vmem:[%s3 + $0x850] sm:$0xff]
  %v5638 = vld [vmem:[%s3 + $0x858] sm:$0xff]
  %v5639 = vld [vmem:[%s3 + $0x860] sm:$0xff]
  %v5640 = vld [vmem:[%s3 + $0x868] sm:$0xff]
  %v5641 = vld [vmem:[%s3 + $0x870] sm:$0xff]
  %v5642 = vld [vmem:[%s3 + $0x878] sm:$0xff]
  %v5643 = vld [vmem:[%s3 + $0x880] sm:$0xff]
  %v5644 = vld [vmem:[%s3 + $0x888] sm:$0xff]
  %v5645 = vld [vmem:[%s3 + $0x890] sm:$0xff]
  %v5646 = vld [vmem:[%s3 + $0x898] sm:$0xff]
  %v5647 = vld [vmem:[%s3 + $0x8a0] sm:$0xff]
  %v5648 = vld [vmem:[%s3 + $0x8a8] sm:$0xff]
  %v5649 = vld [vmem:[%s3 + $0x8b0] sm:$0xff]
  %v5650 = vld [vmem:[%s3 + $0x8b8] sm:$0xff]
  %v5651 = vld [vmem:[%s3 + $0x8c0] sm:$0xff]
  %v5652 = vld [vmem:[%s3 + $0x8c8] sm:$0xff]
  %v5653 = vld [vmem:[%s3 + $0x8d0] sm:$0xff]
  %v5654 = vld [vmem:[%s3 + $0x8d8] sm:$0xff]
  %v5655 = vld [vmem:[%s3 + $0x8e0] sm:$0xff]
  %v5656 = vld [vmem:[%s3 + $0x8e8] sm:$0xff]
  %v5657 = vld [vmem:[%s3 + $0x8f0] sm:$0xff]
  %v5658 = vld [vmem:[%s3 + $0x8f8] sm:$0xff]
  %v5659 = vld [vmem:[%s3 + $0x900] sm:$0xff]
  %v5660 = vld [vmem:[%s3 + $0x908] sm:$0xff]
  %v5661 = vld [vmem:[%s3 + $0x910] sm:$0xff]
  %v5662 = vld [vmem:[%s3 + $0x918] sm:$0xff]
  %v5663 = vld [vmem:[%s3 + $0x920] sm:$0xff]
  %v5664 = vld [vmem:[%s3 + $0x928] sm:$0xff]
  %v5665 = vld [vmem:[%s3 + $0x930] sm:$0xff]
  %v5666 = vld [vmem:[%s3 + $0x938] sm:$0xff]
  %v5667 = vld [vmem:[%s3 + $0x940] sm:$0xff]
  %v5668 = vld [vmem:[%s3 + $0x948] sm:$0xff]
  %v5669 = vld [vmem:[%s3 + $0x950] sm:$0xff]
  %v5670 = vld [vmem:[%s3 + $0x958] sm:$0xff]
  %v5671 = vld [vmem:[%s3 + $0x960] sm:$0xff]
  %v5672 = vld [vmem:[%s3 + $0x968] sm:$0xff]
  %v5673 = vld [vmem:[%s3 + $0x970] sm:$0xff]
  %v5674 = vld [vmem:[%s3 + $0x978] sm:$0xff]
  %v5675 = vld [vmem:[%s3 + $0x980] sm:$0xff]
  %v5676 = vld [vmem:[%s3 + $0x988] sm:$0xff]
  %v5677 = vld [vmem:[%s3 + $0x990] sm:$0xff]
  %v5678 = vld [vmem:[%s3 + $0x998] sm:$0xff]
  %v5679 = vld [vmem:[%s3 + $0x9a0] sm:$0xff]
  %v5680 = vld [vmem:[%s3 + $0x9a8] sm:$0xff]
  %v5681 = vld [vmem:[%s3 + $0x9b0] sm:$0xff]
  %v5682 = vld [vmem:[%s3 + $0x9b8] sm:$0xff]
  %v5683 = vld [vmem:[%s3 + $0x9c0] sm:$0xff]
  %v5684 = vld [vmem:[%s3 + $0x9c8] sm:$0xff]
  %v5685 = vld [vmem:[%s3 + $0x9d0] sm:$0xff]
  %v5686 = vld [vmem:[%s3 + $0x9d8] sm:$0xff]
  %v5687 = vld [vmem:[%s3 + $0x9e0] sm:$0xff]
  %v5688 = vld [vmem:[%s3 + $0x9e8] sm:$0xff]
  %v5689 = vld [vmem:[%s3 + $0x9f0] sm:$0xff]
  %v5690 = vld [vmem:[%s3 + $0x9f8] sm:$0xff]
  %v5691 = vld [vmem:[%s3 + $0xa00] sm:$0xff]
  %v5692 = vld [vmem:[%s3 + $0xa08] sm:$0xff]
  %v5693 = vld [vmem:[%s3 + $0xa10] sm:$0xff]
  %v5694 = vld [vmem:[%s3 + $0xa18] sm:$0xff]
  %v5695 = vld [vmem:[%s3 + $0xa20] sm:$0xff]
  %v5696 = vld [vmem:[%s3 + $0xa28] sm:$0xff]
  %v5697 = vld [vmem:[%s3 + $0xa30] sm:$0xff]
  %v5698 = vld [vmem:[%s3 + $0xa38] sm:$0xff]
  %v5699 = vld [vmem:[%s3 + $0xa40] sm:$0xff]
  %v5700 = vld [vmem:[%s3 + $0xa48] sm:$0xff]
  %v5701 = vld [vmem:[%s3 + $0xa50] sm:$0xff]
  %v5702 = vld [vmem:[%s3 + $0xa58] sm:$0xff]
  %v5703 = vld [vmem:[%s3 + $0xa60] sm:$0xff]
  %v5704 = vld [vmem:[%s3 + $0xa68] sm:$0xff]
  %v5705 = vld [vmem:[%s3 + $0xa70] sm:$0xff]
  %v5706 = vld [vmem:[%s3 + $0xa78] sm:$0xff]
  %v5707 = vld [vmem:[%s3 + $0xa80] sm:$0xff]
  %v5708 = vld [vmem:[%s3 + $0xa88] sm:$0xff]
  %v5709 = vld [vmem:[%s3 + $0xa90] sm:$0xff]
  %v5710 = vld [vmem:[%s3 + $0xa98] sm:$0xff]
  %v5711 = vld [vmem:[%s3 + $0xaa0] sm:$0xff]
  %v5712 = vld [vmem:[%s3 + $0xaa8] sm:$0xff]
  %v5713 = vld [vmem:[%s3 + $0xab0] sm:$0xff]
  %v5714 = vld [vmem:[%s3 + $0xab8] sm:$0xff]
  %v5715 = vld [vmem:[%s3 + $0xac0] sm:$0xff]
  %v5716 = vld [vmem:[%s3 + $0xac8] sm:$0xff]
  %v5717 = vld [vmem:[%s3 + $0xad0] sm:$0xff]
  %v5718 = vld [vmem:[%s3 + $0xad8] sm:$0xff]
  %v5719 = vld [vmem:[%s3 + $0xae0] sm:$0xff]
  %v5720 = vld [vmem:[%s3 + $0xae8] sm:$0xff]
  %v5721 = vld [vmem:[%s3 + $0xaf0] sm:$0xff]
  %v5722 = vld [vmem:[%s3 + $0xaf8] sm:$0xff]
  %v5723 = vld [vmem:[%s3 + $0xb00] sm:$0xff]
  %v5724 = vld [vmem:[%s3 + $0xb08] sm:$0xff]
  %v5725 = vld [vmem:[%s3 + $0xb10] sm:$0xff]
  %v5726 = vld [vmem:[%s3 + $0xb18] sm:$0xff]
  %v5727 = vld [vmem:[%s3 + $0xb20] sm:$0xff]
  %v5728 = vld [vmem:[%s3 + $0xb28] sm:$0xff]
  %v5729 = vld [vmem:[%s3 + $0xb30] sm:$0xff]
  %v5730 = vld [vmem:[%s3 + $0xb38] sm:$0xff]
  %v5731 = vld [vmem:[%s3 + $0xb40] sm:$0xff]
  %v5732 = vld [vmem:[%s3 + $0xb48] sm:$0xff]
  %v5733 = vld [vmem:[%s3 + $0xb50] sm:$0xff]
  %v5734 = vld [vmem:[%s3 + $0xb58] sm:$0xff]
  %v5735 = vld [vmem:[%s3 + $0xb60] sm:$0xff]
  %v5736 = vld [vmem:[%s3 + $0xb68] sm:$0xff]
  %v5737 = vld [vmem:[%s3 + $0xb70] sm:$0xff]
  %v5738 = vld [vmem:[%s3 + $0xb78] sm:$0xff]
  %v5739 = vld [vmem:[%s3 + $0xb80] sm:$0xff]
  %v5740 = vld [vmem:[%s3 + $0xb88] sm:$0xff]
  %v5741 = vld [vmem:[%s3 + $0xb90] sm:$0xff]
  %v5742 = vld [vmem:[%s3 + $0xb98] sm:$0xff]
  %v5743 = vld [vmem:[%s3 + $0xba0] sm:$0xff]
  %v5744 = vld [vmem:[%s3 + $0xba8] sm:$0xff]
  %v5745 = vld [vmem:[%s3 + $0xbb0] sm:$0xff]
  %v5746 = vld [vmem:[%s3 + $0xbb8] sm:$0xff]
  %v5747 = vld [vmem:[%s3 + $0xbc0] sm:$0xff]
  %v5748 = vld [vmem:[%s3 + $0xbc8] sm:$0xff]
  %v5749 = vld [vmem:[%s3 + $0xbd0] sm:$0xff]
  %v5750 = vld [vmem:[%s3 + $0xbd8] sm:$0xff]
  %v5751 = vld [vmem:[%s3 + $0xbe0] sm:$0xff]
  %v5752 = vld [vmem:[%s3 + $0xbe8] sm:$0xff]
  %v5753 = vld [vmem:[%s3 + $0xbf0] sm:$0xff]
  %v5754 = vld [vmem:[%s3 + $0xbf8] sm:$0xff]
  %v5755 = vld [vmem:[%s3 + $0xc00] sm:$0xff]
  %v5756 = vld [vmem:[%s3 + $0xc08] sm:$0xff]
  %v5757 = vld [vmem:[%s3 + $0xc10] sm:$0xff]
  %v5758 = vld [vmem:[%s3 + $0xc18] sm:$0xff]
  %v5759 = vld [vmem:[%s3 + $0xc20] sm:$0xff]
  %v5760 = vld [vmem:[%s3 + $0xc28] sm:$0xff]
  %v5761 = vld [vmem:[%s3 + $0xc30] sm:$0xff]
  %v5762 = vld [vmem:[%s3 + $0xc38] sm:$0xff]
  %v5763 = vld [vmem:[%s3 + $0xc40] sm:$0xff]
  %v5764 = vld [vmem:[%s3 + $0xc48] sm:$0xff]
  %v5765 = vld [vmem:[%s3 + $0xc50] sm:$0xff]
  %v5766 = vld [vmem:[%s3 + $0xc58] sm:$0xff]
  %v5767 = vld [vmem:[%s3 + $0xc60] sm:$0xff]
  %v5768 = vld [vmem:[%s3 + $0xc68] sm:$0xff]
  %v5769 = vld [vmem:[%s3 + $0xc70] sm:$0xff]
  %v5770 = vld [vmem:[%s3 + $0xc78] sm:$0xff]
  %v5771 = vld [vmem:[%s3 + $0xc80] sm:$0xff]
  %v5772 = vld [vmem:[%s3 + $0xc88] sm:$0xff]
  %v5773 = vld [vmem:[%s3 + $0xc90] sm:$0xff]
  %v5774 = vld [vmem:[%s3 + $0xc98] sm:$0xff]
  %v5775 = vld [vmem:[%s3 + $0xca0] sm:$0xff]
  %v5776 = vld [vmem:[%s3 + $0xca8] sm:$0xff]
  %v5777 = vld [vmem:[%s3 + $0xcb0] sm:$0xff]
  %v5778 = vld [vmem:[%s3 + $0xcb8] sm:$0xff]
  %v5779 = vld [vmem:[%s3 + $0xcc0] sm:$0xff]
  %v5780 = vld [vmem:[%s3 + $0xcc8] sm:$0xff]
  %v5781 = vld [vmem:[%s3 + $0xcd0] sm:$0xff]
  %v5782 = vld [vmem:[%s3 + $0xcd8] sm:$0xff]
  %v5783 = vld [vmem:[%s3 + $0xce0] sm:$0xff]
  %v5784 = vld [vmem:[%s3 + $0xce8] sm:$0xff]
  %v5785 = vld [vmem:[%s3 + $0xcf0] sm:$0xff]
  %v5786 = vld [vmem:[%s3 + $0xcf8] sm:$0xff]
  %v5787 = vld [vmem:[%s3 + $0xd00] sm:$0xff]
  %v5788 = vld [vmem:[%s3 + $0xd08] sm:$0xff]
  %v5789 = vld [vmem:[%s3 + $0xd10] sm:$0xff]
  %v5790 = vld [vmem:[%s3 + $0xd18] sm:$0xff]
  %v5791 = vld [vmem:[%s3 + $0xd20] sm:$0xff]
  %v5792 = vld [vmem:[%s3 + $0xd28] sm:$0xff]
  %v5793 = vld [vmem:[%s3 + $0xd30] sm:$0xff]
  %v5794 = vld [vmem:[%s3 + $0xd38] sm:$0xff]
  %v5795 = vld [vmem:[%s3 + $0xd40] sm:$0xff]
  %v5796 = vld [vmem:[%s3 + $0xd48] sm:$0xff]
  %v5797 = vld [vmem:[%s3 + $0xd50] sm:$0xff]
  %v5798 = vld [vmem:[%s3 + $0xd58] sm:$0xff]
  %v5799 = vld [vmem:[%s3 + $0xd60] sm:$0xff]
  %v5800 = vld [vmem:[%s3 + $0xd68] sm:$0xff]
  %v5801 = vld [vmem:[%s3 + $0xd70] sm:$0xff]
  %v5802 = vld [vmem:[%s3 + $0xd78] sm:$0xff]
  %v5803 = vld [vmem:[%s3 + $0xd80] sm:$0xff]
  %v5804 = vld [vmem:[%s3 + $0xd88] sm:$0xff]
  %v5805 = vld [vmem:[%s3 + $0xd90] sm:$0xff]
  %v5806 = vld [vmem:[%s3 + $0xd98] sm:$0xff]
  %v5807 = vld [vmem:[%s3 + $0xda0] sm:$0xff]
  %v5808 = vld [vmem:[%s3 + $0xda8] sm:$0xff]
  %v5809 = vld [vmem:[%s3 + $0xdb0] sm:$0xff]
  %v5810 = vld [vmem:[%s3 + $0xdb8] sm:$0xff]
  %v5811 = vld [vmem:[%s3 + $0xdc0] sm:$0xff]
  %v5812 = vld [vmem:[%s3 + $0xdc8] sm:$0xff]
  %v5813 = vld [vmem:[%s3 + $0xdd0] sm:$0xff]
  %v5814 = vld [vmem:[%s3 + $0xdd8] sm:$0xff]
  %v5815 = vld [vmem:[%s3 + $0xde0] sm:$0xff]
  %v5816 = vld [vmem:[%s3 + $0xde8] sm:$0xff]
  %v5817 = vld [vmem:[%s3 + $0xdf0] sm:$0xff]
  %v5818 = vld [vmem:[%s3 + $0xdf8] sm:$0xff]
  %v5819 = vld [vmem:[%s3 + $0xe00] sm:$0xff]
  %v5820 = vld [vmem:[%s3 + $0xe08] sm:$0xff]
  %v5821 = vld [vmem:[%s3 + $0xe10] sm:$0xff]
  %v5822 = vld [vmem:[%s3 + $0xe18] sm:$0xff]
  %v5823 = vld [vmem:[%s3 + $0xe20] sm:$0xff]
  %v5824 = vld [vmem:[%s3 + $0xe28] sm:$0xff]
  %v5825 = vld [vmem:[%s3 + $0xe30] sm:$0xff]
  %v5826 = vld [vmem:[%s3 + $0xe38] sm:$0xff]
  %v5827 = vld [vmem:[%s3 + $0xe40] sm:$0xff]
  %v5828 = vld [vmem:[%s3 + $0xe48] sm:$0xff]
  %v5829 = vld [vmem:[%s3 + $0xe50] sm:$0xff]
  %v5830 = vld [vmem:[%s3 + $0xe58] sm:$0xff]
  %v5831 = vld [vmem:[%s3 + $0xe60] sm:$0xff]
  %v5832 = vld [vmem:[%s3 + $0xe68] sm:$0xff]
  %v5833 = vld [vmem:[%s3 + $0xe70] sm:$0xff]
  %v5834 = vld [vmem:[%s3 + $0xe78] sm:$0xff]
  %v5835 = vld [vmem:[%s3 + $0xe80] sm:$0xff]
  %v5836 = vld [vmem:[%s3 + $0xe88] sm:$0xff]
  %v5837 = vld [vmem:[%s3 + $0xe90] sm:$0xff]
  %v5838 = vld [vmem:[%s3 + $0xe98] sm:$0xff]
  %v5839 = vld [vmem:[%s3 + $0xea0] sm:$0xff]
  %v5840 = vld [vmem:[%s3 + $0xea8] sm:$0xff]
  %v5841 = vld [vmem:[%s3 + $0xeb0] sm:$0xff]
  %v5842 = vld [vmem:[%s3 + $0xeb8] sm:$0xff]
  %v5843 = vld [vmem:[%s3 + $0xec0] sm:$0xff]
  %v5844 = vld [vmem:[%s3 + $0xec8] sm:$0xff]
  %v5845 = vld [vmem:[%s3 + $0xed0] sm:$0xff]
  %v5846 = vld [vmem:[%s3 + $0xed8] sm:$0xff]
  %v5847 = vld [vmem:[%s3 + $0xee0] sm:$0xff]
  %v5848 = vld [vmem:[%s3 + $0xee8] sm:$0xff]
  %v5849 = vld [vmem:[%s3 + $0xef0] sm:$0xff]
  %v5850 = vld [vmem:[%s3 + $0xef8] sm:$0xff]
  %v5851 = vld [vmem:[%s3 + $0xf00] sm:$0xff]
  %v5852 = vld [vmem:[%s3 + $0xf08] sm:$0xff]
  %v5853 = vld [vmem:[%s3 + $0xf10] sm:$0xff]
  %v5854 = vld [vmem:[%s3 + $0xf18] sm:$0xff]
  %v5855 = vld [vmem:[%s3 + $0xf20] sm:$0xff]
  %v5856 = vld [vmem:[%s3 + $0xf28] sm:$0xff]
  %v5857 = vld [vmem:[%s3 + $0xf30] sm:$0xff]
  %v5858 = vld [vmem:[%s3 + $0xf38] sm:$0xff]
  %v5859 = vld [vmem:[%s3 + $0xf40] sm:$0xff]
  %v5860 = vld [vmem:[%s3 + $0xf48] sm:$0xff]
  %v5861 = vld [vmem:[%s3 + $0xf50] sm:$0xff]
  %v5862 = vld [vmem:[%s3 + $0xf58] sm:$0xff]
  %v5863 = vld [vmem:[%s3 + $0xf60] sm:$0xff]
  %v5864 = vld [vmem:[%s3 + $0xf68] sm:$0xff]
  %v5865 = vld [vmem:[%s3 + $0xf70] sm:$0xff]
  %v5866 = vld [vmem:[%s3 + $0xf78] sm:$0xff]
  %v5867 = vld [vmem:[%s3 + $0xf80] sm:$0xff]
  %v5868 = vld [vmem:[%s3 + $0xf88] sm:$0xff]
  %v5869 = vld [vmem:[%s3 + $0xf90] sm:$0xff]
  %v5870 = vld [vmem:[%s3 + $0xf98] sm:$0xff]
  %v5871 = vld [vmem:[%s3 + $0xfa0] sm:$0xff]
  %v5872 = vld [vmem:[%s3 + $0xfa8] sm:$0xff]
  %v5873 = vld [vmem:[%s3 + $0xfb0] sm:$0xff]
  %v5874 = vld [vmem:[%s3 + $0xfb8] sm:$0xff]
  %v5875 = vld [vmem:[%s3 + $0xfc0] sm:$0xff]
  %v5876 = vld [vmem:[%s3 + $0xfc8] sm:$0xff]
  %v5877 = vld [vmem:[%s3 + $0xfd0] sm:$0xff]
  %v5878 = vld [vmem:[%s3 + $0xfd8] sm:$0xff]
  %v5879 = vld [vmem:[%s3 + $0xfe0] sm:$0xff]
  %v5880 = vld [vmem:[%s3 + $0xfe8] sm:$0xff]
  %v5881 = vld [vmem:[%s3 + $0xff0] sm:$0xff]
  %v5882 = vld [vmem:[%s3 + $0xff8] sm:$0xff]
  %v5883 = vld [vmem:[%s3 + $0x1000] sm:$0xff]
  %v5884 = vld [vmem:[%s3 + $0x1008] sm:$0xff]
  %v5885 = vld [vmem:[%s3 + $0x1010] sm:$0xff]
  %v5886 = vld [vmem:[%s3 + $0x1018] sm:$0xff]
  %v5887 = vld [vmem:[%s3 + $0x1020] sm:$0xff]
  %v5888 = vld [vmem:[%s3 + $0x1028] sm:$0xff]
  %v5889 = vld [vmem:[%s3 + $0x1030] sm:$0xff]
  %v5890 = vld [vmem:[%s3 + $0x1038] sm:$0xff]
  %v5891 = vld [vmem:[%s3 + $0x1040] sm:$0xff]
  %v5892 = vld [vmem:[%s3 + $0x1048] sm:$0xff]
  %v5893 = vld [vmem:[%s3 + $0x1050] sm:$0xff]
  %v5894 = vld [vmem:[%s3 + $0x1058] sm:$0xff]
  %v5895 = vld [vmem:[%s3 + $0x1060] sm:$0xff]
  %v5896 = vld [vmem:[%s3 + $0x1068] sm:$0xff]
  %v5897 = vld [vmem:[%s3 + $0x1070] sm:$0xff]
  %v5898 = vld [vmem:[%s3 + $0x1078] sm:$0xff]
  %v5899 = vld [vmem:[%s3 + $0x1080] sm:$0xff]
  %v5900 = vld [vmem:[%s3 + $0x1088] sm:$0xff]
  %v5901 = vld [vmem:[%s3 + $0x1090] sm:$0xff]
  %v5902 = vld [vmem:[%s3 + $0x1098] sm:$0xff]
  %v5903 = vld [vmem:[%s3 + $0x10a0] sm:$0xff]
  %v5904 = vld [vmem:[%s3 + $0x10a8] sm:$0xff]
  %v5905 = vld [vmem:[%s3 + $0x10b0] sm:$0xff]
  %v5906 = vld [vmem:[%s3 + $0x10b8] sm:$0xff]
  %v5907 = vld [vmem:[%s3 + $0x10c0] sm:$0xff]
  %v5908 = vld [vmem:[%s3 + $0x10c8] sm:$0xff]
  %v5909 = vld [vmem:[%s3 + $0x10d0] sm:$0xff]
  %v5910 = vld [vmem:[%s3 + $0x10d8] sm:$0xff]
  %v5911 = vld [vmem:[%s3 + $0x10e0] sm:$0xff]
  %v5912 = vld [vmem:[%s3 + $0x10e8] sm:$0xff]
  %v5913 = vld [vmem:[%s3 + $0x10f0] sm:$0xff]
  %v5914 = vld [vmem:[%s3 + $0x10f8] sm:$0xff]
  %v5915 = vld [vmem:[%s3 + $0x1100] sm:$0xff]
  %v5916 = vld [vmem:[%s3 + $0x1108] sm:$0xff]
  %v5917 = vld [vmem:[%s3 + $0x1110] sm:$0xff]
  %v5918 = vld [vmem:[%s3 + $0x1118] sm:$0xff]
  %v5919 = vld [vmem:[%s3 + $0x1120] sm:$0xff]
  %v5920 = vld [vmem:[%s3 + $0x1128] sm:$0xff]
  %v5921 = vld [vmem:[%s3 + $0x1130] sm:$0xff]
  %v5922 = vld [vmem:[%s3 + $0x1138] sm:$0xff]
  %v5923 = vld [vmem:[%s3 + $0x1140] sm:$0xff]
  %v5924 = vld [vmem:[%s3 + $0x1148] sm:$0xff]
  %v5925 = vld [vmem:[%s3 + $0x1150] sm:$0xff]
  %v5926 = vld [vmem:[%s3 + $0x1158] sm:$0xff]
  %v5927 = vld [vmem:[%s3 + $0x1160] sm:$0xff]
  %v5928 = vld [vmem:[%s3 + $0x1168] sm:$0xff]
  %v5929 = vld [vmem:[%s3 + $0x1170] sm:$0xff]
  %v5930 = vld [vmem:[%s3 + $0x1178] sm:$0xff]
  %v5931 = vld [vmem:[%s3 + $0x1180] sm:$0xff]
  %v5932 = vld [vmem:[%s3 + $0x1188] sm:$0xff]
  %v5933 = vld [vmem:[%s3 + $0x1190] sm:$0xff]
  %v5934 = vld [vmem:[%s3 + $0x1198] sm:$0xff]
  %v5935 = vld [vmem:[%s3 + $0x11a0] sm:$0xff]
  %v5936 = vld [vmem:[%s3 + $0x11a8] sm:$0xff]
  %v5937 = vld [vmem:[%s3 + $0x11b0] sm:$0xff]
  %v5938 = vld [vmem:[%s3 + $0x11b8] sm:$0xff]
  %v5939 = vld [vmem:[%s3 + $0x11c0] sm:$0xff]
  %v5940 = vld [vmem:[%s3 + $0x11c8] sm:$0xff]
  %v5941 = vld [vmem:[%s3 + $0x11d0] sm:$0xff]
  %v5942 = vld [vmem:[%s3 + $0x11d8] sm:$0xff]
  %v5943 = vld [vmem:[%s3 + $0x11e0] sm:$0xff]
  %v5944 = vld [vmem:[%s3 + $0x11e8] sm:$0xff]
  %v5945 = vld [vmem:[%s3 + $0x11f0] sm:$0xff]
  %v5946 = vld [vmem:[%s3 + $0x11f8] sm:$0xff]
  %v5947 = vld [vmem:[%s3 + $0x1200] sm:$0xff]
  %v5948 = vld [vmem:[%s3 + $0x1208] sm:$0xff]
  %v5949 = vld [vmem:[%s3 + $0x1210] sm:$0xff]
  %v5950 = vld [vmem:[%s3 + $0x1218] sm:$0xff]
  %v5951 = vld [vmem:[%s3 + $0x1220] sm:$0xff]
  %v5952 = vld [vmem:[%s3 + $0x1228] sm:$0xff]
  %v5953 = vld [vmem:[%s3 + $0x1230] sm:$0xff]
  %v5954 = vld [vmem:[%s3 + $0x1238] sm:$0xff]
  %v5955 = vld [vmem:[%s3 + $0x1240] sm:$0xff]
  %v5956 = vld [vmem:[%s3 + $0x1248] sm:$0xff]
  %v5957 = vld [vmem:[%s3 + $0x1250] sm:$0xff]
  %v5958 = vld [vmem:[%s3 + $0x1258] sm:$0xff]
  %v5959 = vld [vmem:[%s3 + $0x1260] sm:$0xff]
  %v5960 = vld [vmem:[%s3 + $0x1268] sm:$0xff]
  %v5961 = vld [vmem:[%s3 + $0x1270] sm:$0xff]
  %v5962 = vld [vmem:[%s3 + $0x1278] sm:$0xff]
  %v5963 = vld [vmem:[%s3 + $0x1280] sm:$0xff]
  %v5964 = vld [vmem:[%s3 + $0x1288] sm:$0xff]
  %v5965 = vld [vmem:[%s3 + $0x1290] sm:$0xff]
  %v5966 = vld [vmem:[%s3 + $0x1298] sm:$0xff]
  %v5967 = vld [vmem:[%s3 + $0x12a0] sm:$0xff]
  %v5968 = vld [vmem:[%s3 + $0x12a8] sm:$0xff]
  %v5969 = vld [vmem:[%s3 + $0x12b0] sm:$0xff]
  %v5970 = vld [vmem:[%s3 + $0x12b8] sm:$0xff]
  %v5971 = vld [vmem:[%s3 + $0x12c0] sm:$0xff]
  %v5972 = vld [vmem:[%s3 + $0x12c8] sm:$0xff]
  %v5973 = vld [vmem:[%s3 + $0x12d0] sm:$0xff]
  %v5974 = vld [vmem:[%s3 + $0x12d8] sm:$0xff]
  %v5975 = vld [vmem:[%s3 + $0x12e0] sm:$0xff]
  %v5976 = vld [vmem:[%s3 + $0x12e8] sm:$0xff]
  %v5977 = vld [vmem:[%s3 + $0x12f0] sm:$0xff]
  %v5978 = vld [vmem:[%s3 + $0x12f8] sm:$0xff]
  %v5979 = vld [vmem:[%s3 + $0x1300] sm:$0xff]
  %v5980 = vld [vmem:[%s3 + $0x1308] sm:$0xff]
  %v5981 = vld [vmem:[%s3 + $0x1310] sm:$0xff]
  %v5982 = vld [vmem:[%s3 + $0x1318] sm:$0xff]
  %v5983 = vld [vmem:[%s3 + $0x1320] sm:$0xff]
  %v5984 = vld [vmem:[%s3 + $0x1328] sm:$0xff]
  %v5985 = vld [vmem:[%s3 + $0x1330] sm:$0xff]
  %v5986 = vld [vmem:[%s3 + $0x1338] sm:$0xff]
  %v5987 = vld [vmem:[%s3 + $0x1340] sm:$0xff]
  %v5988 = vld [vmem:[%s3 + $0x1348] sm:$0xff]
  %v5989 = vld [vmem:[%s3 + $0x1350] sm:$0xff]
  %v5990 = vld [vmem:[%s3 + $0x1358] sm:$0xff]
  %v5991 = vld [vmem:[%s3 + $0x1360] sm:$0xff]
  %v5992 = vld [vmem:[%s3 + $0x1368] sm:$0xff]
  %v5993 = vld [vmem:[%s3 + $0x1370] sm:$0xff]
  %v5994 = vld [vmem:[%s3 + $0x1378] sm:$0xff]
  %v5995 = vld [vmem:[%s3 + $0x1380] sm:$0xff]
  %v5996 = vld [vmem:[%s3 + $0x1388] sm:$0xff]
  %v5997 = vld [vmem:[%s3 + $0x1390] sm:$0xff]
  %v5998 = vld [vmem:[%s3 + $0x1398] sm:$0xff]
  %v5999 = vld [vmem:[%s3 + $0x13a0] sm:$0xff]
  %v6000 = vld [vmem:[%s3 + $0x13a8] sm:$0xff]
  %v6001 = vld [vmem:[%s3 + $0x13b0] sm:$0xff]
  %v6002 = vld [vmem:[%s3 + $0x13b8] sm:$0xff]
  %v6003 = vld [vmem:[%s3 + $0x13c0] sm:$0xff]
  %v6004 = vld [vmem:[%s3 + $0x13c8] sm:$0xff]
  %v6005 = vld [vmem:[%s3 + $0x13d0] sm:$0xff]
  %v6006 = vld [vmem:[%s3 + $0x13d8] sm:$0xff]
  %v6007 = vld [vmem:[%s3 + $0x13e0] sm:$0xff]
  %v6008 = vld [vmem:[%s3 + $0x13e8] sm:$0xff]
  %v6009 = vld [vmem:[%s3 + $0x13f0] sm:$0xff]
  %v6010 = vld [vmem:[%s3 + $0x13f8] sm:$0xff]
  %v6011 = vld [vmem:[%s3 + $0x1400] sm:$0xff]
  %v6012 = vld [vmem:[%s3 + $0x1408] sm:$0xff]
  %v6013 = vld [vmem:[%s3 + $0x1410] sm:$0xff]
  %v6014 = vld [vmem:[%s3 + $0x1418] sm:$0xff]
  %v6015 = vld [vmem:[%s3 + $0x1420] sm:$0xff]
  %v6016 = vld [vmem:[%s3 + $0x1428] sm:$0xff]
  %v6017 = vld [vmem:[%s3 + $0x1430] sm:$0xff]
  %v6018 = vld [vmem:[%s3 + $0x1438] sm:$0xff]
  %v6667 = vunpack.c.l.b16 %v5371
  %v6668 = vunpack.c.h.b16 %v5371
  %v6669 = vunpack.c.l.b16 %v5372
  %v6670 = vunpack.c.h.b16 %v5372
  %v6671 = vunpack.c.l.b16 %v5373
  %v6672 = vunpack.c.h.b16 %v5373
  %v6673 = vunpack.c.l.b16 %v5374
  %v6674 = vunpack.c.h.b16 %v5374
  %v6675 = vunpack.c.l.b16 %v5375
  %v6676 = vunpack.c.h.b16 %v5375
  %v6677 = vunpack.c.l.b16 %v5376
  %v6678 = vunpack.c.h.b16 %v5376
  %v6679 = vunpack.c.l.b16 %v5377
  %v6680 = vunpack.c.h.b16 %v5377
  %v6681 = vunpack.c.l.b16 %v5378
  %v6682 = vunpack.c.h.b16 %v5378
  %v6683 = vunpack.c.l.b16 %v5379
  %v6684 = vunpack.c.h.b16 %v5379
  %v6685 = vunpack.c.l.b16 %v5380
  %v6686 = vunpack.c.h.b16 %v5380
  %v6687 = vunpack.c.l.b16 %v5381
  %v6688 = vunpack.c.h.b16 %v5381
  %v6689 = vunpack.c.l.b16 %v5382
  %v6690 = vunpack.c.h.b16 %v5382
  %v6691 = vunpack.c.l.b16 %v5383
  %v6692 = vunpack.c.h.b16 %v5383
  %v6693 = vunpack.c.l.b16 %v5384
  %v6694 = vunpack.c.h.b16 %v5384
  %v6695 = vunpack.c.l.b16 %v5385
  %v6696 = vunpack.c.h.b16 %v5385
  %v6697 = vunpack.c.l.b16 %v5386
  %v6698 = vunpack.c.h.b16 %v5386
  %v6699 = vunpack.c.l.b16 %v5387
  %v6700 = vunpack.c.h.b16 %v5387
  %v6701 = vunpack.c.l.b16 %v5388
  %v6702 = vunpack.c.h.b16 %v5388
  %v6703 = vunpack.c.l.b16 %v5389
  %v6704 = vunpack.c.h.b16 %v5389
  %v6705 = vunpack.c.l.b16 %v5390
  %v6706 = vunpack.c.h.b16 %v5390
  %v6707 = vunpack.c.l.b16 %v5391
  %v6708 = vunpack.c.h.b16 %v5391
  %v6709 = vunpack.c.l.b16 %v5392
  %v6710 = vunpack.c.h.b16 %v5392
  %v6711 = vunpack.c.l.b16 %v5393
  %v6712 = vunpack.c.h.b16 %v5393
  %v6713 = vunpack.c.l.b16 %v5394
  %v6714 = vunpack.c.h.b16 %v5394
  %v6715 = vunpack.c.l.b16 %v5395
  %v6716 = vunpack.c.h.b16 %v5395
  %v6717 = vunpack.c.l.b16 %v5396
  %v6718 = vunpack.c.h.b16 %v5396
  %v6719 = vunpack.c.l.b16 %v5397
  %v6720 = vunpack.c.h.b16 %v5397
  %v6721 = vunpack.c.l.b16 %v5398
  %v6722 = vunpack.c.h.b16 %v5398
  %v6723 = vunpack.c.l.b16 %v5399
  %v6724 = vunpack.c.h.b16 %v5399
  %v6725 = vunpack.c.l.b16 %v5400
  %v6726 = vunpack.c.h.b16 %v5400
  %v6727 = vunpack.c.l.b16 %v5401
  %v6728 = vunpack.c.h.b16 %v5401
  %v6729 = vunpack.c.l.b16 %v5402
  %v6730 = vunpack.c.h.b16 %v5402
  %v6731 = vunpack.c.l.b16 %v5403
  %v6732 = vunpack.c.h.b16 %v5403
  %v6733 = vunpack.c.l.b16 %v5404
  %v6734 = vunpack.c.h.b16 %v5404
  %v6735 = vunpack.c.l.b16 %v5405
  %v6736 = vunpack.c.h.b16 %v5405
  %v6737 = vunpack.c.l.b16 %v5406
  %v6738 = vunpack.c.h.b16 %v5406
  %v6739 = vunpack.c.l.b16 %v5407
  %v6740 = vunpack.c.h.b16 %v5407
  %v6741 = vunpack.c.l.b16 %v5408
  %v6742 = vunpack.c.h.b16 %v5408
  %v6743 = vunpack.c.l.b16 %v5409
  %v6744 = vunpack.c.h.b16 %v5409
  %v6745 = vunpack.c.l.b16 %v5410
  %v6746 = vunpack.c.h.b16 %v5410
  %v6747 = vunpack.c.l.b16 %v5411
  %v6748 = vunpack.c.h.b16 %v5411
  %v6749 = vunpack.c.l.b16 %v5412
  %v6750 = vunpack.c.h.b16 %v5412
  %v6751 = vunpack.c.l.b16 %v5413
  %v6752 = vunpack.c.h.b16 %v5413
  %v6753 = vunpack.c.l.b16 %v5414
  %v6754 = vunpack.c.h.b16 %v5414
  %v6755 = vunpack.c.l.b16 %v5415
  %v6756 = vunpack.c.h.b16 %v5415
  %v6757 = vunpack.c.l.b16 %v5416
  %v6758 = vunpack.c.h.b16 %v5416
  %v6759 = vunpack.c.l.b16 %v5417
  %v6760 = vunpack.c.h.b16 %v5417
  %v6761 = vunpack.c.l.b16 %v5418
  %v6762 = vunpack.c.h.b16 %v5418
  %v6763 = vunpack.c.l.b16 %v5419
  %v6764 = vunpack.c.h.b16 %v5419
  %v6765 = vunpack.c.l.b16 %v5420
  %v6766 = vunpack.c.h.b16 %v5420
  %v6767 = vunpack.c.l.b16 %v5421
  %v6768 = vunpack.c.h.b16 %v5421
  %v6769 = vunpack.c.l.b16 %v5422
  %v6770 = vunpack.c.h.b16 %v5422
  %v6771 = vunpack.c.l.b16 %v5423
  %v6772 = vunpack.c.h.b16 %v5423
  %v6773 = vunpack.c.l.b16 %v5424
  %v6774 = vunpack.c.h.b16 %v5424
  %v6775 = vunpack.c.l.b16 %v5425
  %v6776 = vunpack.c.h.b16 %v5425
  %v6777 = vunpack.c.l.b16 %v5426
  %v6778 = vunpack.c.h.b16 %v5426
  %v6779 = vunpack.c.l.b16 %v5427
  %v6780 = vunpack.c.h.b16 %v5427
  %v6781 = vunpack.c.l.b16 %v5428
  %v6782 = vunpack.c.h.b16 %v5428
  %v6783 = vunpack.c.l.b16 %v5429
  %v6784 = vunpack.c.h.b16 %v5429
  %v6785 = vunpack.c.l.b16 %v5430
  %v6786 = vunpack.c.h.b16 %v5430
  %v6787 = vunpack.c.l.b16 %v5431
  %v6788 = vunpack.c.h.b16 %v5431
  %v6789 = vunpack.c.l.b16 %v5432
  %v6790 = vunpack.c.h.b16 %v5432
  %v6791 = vunpack.c.l.b16 %v5433
  %v6792 = vunpack.c.h.b16 %v5433
  %v6793 = vunpack.c.l.b16 %v5434
  %v6794 = vunpack.c.h.b16 %v5434
  %v6795 = vunpack.c.l.b16 %v5435
  %v6796 = vunpack.c.h.b16 %v5435
  %v6797 = vunpack.c.l.b16 %v5436
  %v6798 = vunpack.c.h.b16 %v5436
  %v6799 = vunpack.c.l.b16 %v5437
  %v6800 = vunpack.c.h.b16 %v5437
  %v6801 = vunpack.c.l.b16 %v5438
  %v6802 = vunpack.c.h.b16 %v5438
  %v6803 = vunpack.c.l.b16 %v5439
  %v6804 = vunpack.c.h.b16 %v5439
  %v6805 = vunpack.c.l.b16 %v5440
  %v6806 = vunpack.c.h.b16 %v5440
  %v6807 = vunpack.c.l.b16 %v5441
  %v6808 = vunpack.c.h.b16 %v5441
  %v6809 = vunpack.c.l.b16 %v5442
  %v6810 = vunpack.c.h.b16 %v5442
  %v6811 = vunpack.c.l.b16 %v5443
  %v6812 = vunpack.c.h.b16 %v5443
  %v6813 = vunpack.c.l.b16 %v5444
  %v6814 = vunpack.c.h.b16 %v5444
  %v6815 = vunpack.c.l.b16 %v5445
  %v6816 = vunpack.c.h.b16 %v5445
  %v6817 = vunpack.c.l.b16 %v5446
  %v6818 = vunpack.c.h.b16 %v5446
  %v6819 = vunpack.c.l.b16 %v5447
  %v6820 = vunpack.c.h.b16 %v5447
  %v6821 = vunpack.c.l.b16 %v5448
  %v6822 = vunpack.c.h.b16 %v5448
  %v6823 = vunpack.c.l.b16 %v5449
  %v6824 = vunpack.c.h.b16 %v5449
  %v6825 = vunpack.c.l.b16 %v5450
  %v6826 = vunpack.c.h.b16 %v5450
  %v6827 = vunpack.c.l.b16 %v5451
  %v6828 = vunpack.c.h.b16 %v5451
  %v6829 = vunpack.c.l.b16 %v5452
  %v6830 = vunpack.c.h.b16 %v5452
  %v6831 = vunpack.c.l.b16 %v5453
  %v6832 = vunpack.c.h.b16 %v5453
  %v6833 = vunpack.c.l.b16 %v5454
  %v6834 = vunpack.c.h.b16 %v5454
  %v6835 = vunpack.c.l.b16 %v5455
  %v6836 = vunpack.c.h.b16 %v5455
  %v6837 = vunpack.c.l.b16 %v5456
  %v6838 = vunpack.c.h.b16 %v5456
  %v6839 = vunpack.c.l.b16 %v5457
  %v6840 = vunpack.c.h.b16 %v5457
  %v6841 = vunpack.c.l.b16 %v5458
  %v6842 = vunpack.c.h.b16 %v5458
  %v6843 = vunpack.c.l.b16 %v5459
  %v6844 = vunpack.c.h.b16 %v5459
  %v6845 = vunpack.c.l.b16 %v5460
  %v6846 = vunpack.c.h.b16 %v5460
  %v6847 = vunpack.c.l.b16 %v5461
  %v6848 = vunpack.c.h.b16 %v5461
  %v6849 = vunpack.c.l.b16 %v5462
  %v6850 = vunpack.c.h.b16 %v5462
  %v6851 = vunpack.c.l.b16 %v5463
  %v6852 = vunpack.c.h.b16 %v5463
  %v6853 = vunpack.c.l.b16 %v5464
  %v6854 = vunpack.c.h.b16 %v5464
  %v6855 = vunpack.c.l.b16 %v5465
  %v6856 = vunpack.c.h.b16 %v5465
  %v6857 = vunpack.c.l.b16 %v5466
  %v6858 = vunpack.c.h.b16 %v5466
  %v6859 = vunpack.c.l.b16 %v5467
  %v6860 = vunpack.c.h.b16 %v5467
  %v6861 = vunpack.c.l.b16 %v5468
  %v6862 = vunpack.c.h.b16 %v5468
  %v6863 = vunpack.c.l.b16 %v5469
  %v6864 = vunpack.c.h.b16 %v5469
  %v6865 = vunpack.c.l.b16 %v5470
  %v6866 = vunpack.c.h.b16 %v5470
  %v6867 = vunpack.c.l.b16 %v5471
  %v6868 = vunpack.c.h.b16 %v5471
  %v6869 = vunpack.c.l.b16 %v5472
  %v6870 = vunpack.c.h.b16 %v5472
  %v6871 = vunpack.c.l.b16 %v5473
  %v6872 = vunpack.c.h.b16 %v5473
  %v6873 = vunpack.c.l.b16 %v5474
  %v6874 = vunpack.c.h.b16 %v5474
  %v6875 = vunpack.c.l.b16 %v5475
  %v6876 = vunpack.c.h.b16 %v5475
  %v6877 = vunpack.c.l.b16 %v5476
  %v6878 = vunpack.c.h.b16 %v5476
  %v6879 = vunpack.c.l.b16 %v5477
  %v6880 = vunpack.c.h.b16 %v5477
  %v6881 = vunpack.c.l.b16 %v5478
  %v6882 = vunpack.c.h.b16 %v5478
  %v6883 = vunpack.c.l.b16 %v5479
  %v6884 = vunpack.c.h.b16 %v5479
  %v6885 = vunpack.c.l.b16 %v5480
  %v6886 = vunpack.c.h.b16 %v5480
  %v6887 = vunpack.c.l.b16 %v5481
  %v6888 = vunpack.c.h.b16 %v5481
  %v6889 = vunpack.c.l.b16 %v5482
  %v6890 = vunpack.c.h.b16 %v5482
  %v6891 = vunpack.c.l.b16 %v5483
  %v6892 = vunpack.c.h.b16 %v5483
  %v6893 = vunpack.c.l.b16 %v5484
  %v6894 = vunpack.c.h.b16 %v5484
  %v6895 = vunpack.c.l.b16 %v5485
  %v6896 = vunpack.c.h.b16 %v5485
  %v6897 = vunpack.c.l.b16 %v5486
  %v6898 = vunpack.c.h.b16 %v5486
  %v6899 = vunpack.c.l.b16 %v5487
  %v6900 = vunpack.c.h.b16 %v5487
  %v6901 = vunpack.c.l.b16 %v5488
  %v6902 = vunpack.c.h.b16 %v5488
  %v6903 = vunpack.c.l.b16 %v5489
  %v6904 = vunpack.c.h.b16 %v5489
  %v6905 = vunpack.c.l.b16 %v5490
  %v6906 = vunpack.c.h.b16 %v5490
  %v6907 = vunpack.c.l.b16 %v5491
  %v6908 = vunpack.c.h.b16 %v5491
  %v6909 = vunpack.c.l.b16 %v5492
  %v6910 = vunpack.c.h.b16 %v5492
  %v6911 = vunpack.c.l.b16 %v5493
  %v6912 = vunpack.c.h.b16 %v5493
  %v6913 = vunpack.c.l.b16 %v5494
  %v6914 = vunpack.c.h.b16 %v5494
  %v6915 = vunpack.c.l.b16 %v5495
  %v6916 = vunpack.c.h.b16 %v5495
  %v6917 = vunpack.c.l.b16 %v5496
  %v6918 = vunpack.c.h.b16 %v5496
  %v6919 = vunpack.c.l.b16 %v5497
  %v6920 = vunpack.c.h.b16 %v5497
  %v6921 = vunpack.c.l.b16 %v5498
  %v6922 = vunpack.c.h.b16 %v5498
  %v6923 = vunpack.c.l.b16 %v5499
  %v6924 = vunpack.c.h.b16 %v5499
  %v6925 = vunpack.c.l.b16 %v5500
  %v6926 = vunpack.c.h.b16 %v5500
  %v6927 = vunpack.c.l.b16 %v5501
  %v6928 = vunpack.c.h.b16 %v5501
  %v6929 = vunpack.c.l.b16 %v5502
  %v6930 = vunpack.c.h.b16 %v5502
  %v6931 = vunpack.c.l.b16 %v5503
  %v6932 = vunpack.c.h.b16 %v5503
  %v6933 = vunpack.c.l.b16 %v5504
  %v6934 = vunpack.c.h.b16 %v5504
  %v6935 = vunpack.c.l.b16 %v5505
  %v6936 = vunpack.c.h.b16 %v5505
  %v6937 = vunpack.c.l.b16 %v5506
  %v6938 = vunpack.c.h.b16 %v5506
  %v6939 = vunpack.c.l.b16 %v5507
  %v6940 = vunpack.c.h.b16 %v5507
  %v6941 = vunpack.c.l.b16 %v5508
  %v6942 = vunpack.c.h.b16 %v5508
  %v6943 = vunpack.c.l.b16 %v5509
  %v6944 = vunpack.c.h.b16 %v5509
  %v6945 = vunpack.c.l.b16 %v5510
  %v6946 = vunpack.c.h.b16 %v5510
  %v6947 = vunpack.c.l.b16 %v5511
  %v6948 = vunpack.c.h.b16 %v5511
  %v6949 = vunpack.c.l.b16 %v5512
  %v6950 = vunpack.c.h.b16 %v5512
  %v6951 = vunpack.c.l.b16 %v5513
  %v6952 = vunpack.c.h.b16 %v5513
  %v6953 = vunpack.c.l.b16 %v5514
  %v6954 = vunpack.c.h.b16 %v5514
  %v6955 = vunpack.c.l.b16 %v5515
  %v6956 = vunpack.c.h.b16 %v5515
  %v6957 = vunpack.c.l.b16 %v5516
  %v6958 = vunpack.c.h.b16 %v5516
  %v6959 = vunpack.c.l.b16 %v5517
  %v6960 = vunpack.c.h.b16 %v5517
  %v6961 = vunpack.c.l.b16 %v5518
  %v6962 = vunpack.c.h.b16 %v5518
  %v6963 = vunpack.c.l.b16 %v5519
  %v6964 = vunpack.c.h.b16 %v5519
  %v6965 = vunpack.c.l.b16 %v5520
  %v6966 = vunpack.c.h.b16 %v5520
  %v6967 = vunpack.c.l.b16 %v5521
  %v6968 = vunpack.c.h.b16 %v5521
  %v6969 = vunpack.c.l.b16 %v5522
  %v6970 = vunpack.c.h.b16 %v5522
  %v6971 = vunpack.c.l.b16 %v5523
  %v6972 = vunpack.c.h.b16 %v5523
  %v6973 = vunpack.c.l.b16 %v5524
  %v6974 = vunpack.c.h.b16 %v5524
  %v6975 = vunpack.c.l.b16 %v5525
  %v6976 = vunpack.c.h.b16 %v5525
  %v6977 = vunpack.c.l.b16 %v5526
  %v6978 = vunpack.c.h.b16 %v5526
  %v6979 = vunpack.c.l.b16 %v5527
  %v6980 = vunpack.c.h.b16 %v5527
  %v6981 = vunpack.c.l.b16 %v5528
  %v6982 = vunpack.c.h.b16 %v5528
  %v6983 = vunpack.c.l.b16 %v5529
  %v6984 = vunpack.c.h.b16 %v5529
  %v6985 = vunpack.c.l.b16 %v5530
  %v6986 = vunpack.c.h.b16 %v5530
  %v6987 = vunpack.c.l.b16 %v5531
  %v6988 = vunpack.c.h.b16 %v5531
  %v6989 = vunpack.c.l.b16 %v5532
  %v6990 = vunpack.c.h.b16 %v5532
  %v6991 = vunpack.c.l.b16 %v5533
  %v6992 = vunpack.c.h.b16 %v5533
  %v6993 = vunpack.c.l.b16 %v5534
  %v6994 = vunpack.c.h.b16 %v5534
  %v6995 = vunpack.c.l.b16 %v5535
  %v6996 = vunpack.c.h.b16 %v5535
  %v6997 = vunpack.c.l.b16 %v5536
  %v6998 = vunpack.c.h.b16 %v5536
  %v6999 = vunpack.c.l.b16 %v5537
  %v7000 = vunpack.c.h.b16 %v5537
  %v7001 = vunpack.c.l.b16 %v5538
  %v7002 = vunpack.c.h.b16 %v5538
  %v7003 = vunpack.c.l.b16 %v5539
  %v7004 = vunpack.c.h.b16 %v5539
  %v7005 = vunpack.c.l.b16 %v5540
  %v7006 = vunpack.c.h.b16 %v5540
  %v7007 = vunpack.c.l.b16 %v5541
  %v7008 = vunpack.c.h.b16 %v5541
  %v7009 = vunpack.c.l.b16 %v5542
  %v7010 = vunpack.c.h.b16 %v5542
  %v7011 = vunpack.c.l.b16 %v5543
  %v7012 = vunpack.c.h.b16 %v5543
  %v7013 = vunpack.c.l.b16 %v5544
  %v7014 = vunpack.c.h.b16 %v5544
  %v7015 = vunpack.c.l.b16 %v5545
  %v7016 = vunpack.c.h.b16 %v5545
  %v7017 = vunpack.c.l.b16 %v5546
  %v7018 = vunpack.c.h.b16 %v5546
  %v7019 = vunpack.c.l.b16 %v5547
  %v7020 = vunpack.c.h.b16 %v5547
  %v7021 = vunpack.c.l.b16 %v5548
  %v7022 = vunpack.c.h.b16 %v5548
  %v7023 = vunpack.c.l.b16 %v5549
  %v7024 = vunpack.c.h.b16 %v5549
  %v7025 = vunpack.c.l.b16 %v5550
  %v7026 = vunpack.c.h.b16 %v5550
  %v7027 = vunpack.c.l.b16 %v5551
  %v7028 = vunpack.c.h.b16 %v5551
  %v7029 = vunpack.c.l.b16 %v5552
  %v7030 = vunpack.c.h.b16 %v5552
  %v7031 = vunpack.c.l.b16 %v5553
  %v7032 = vunpack.c.h.b16 %v5553
  %v7033 = vunpack.c.l.b16 %v5554
  %v7034 = vunpack.c.h.b16 %v5554
  %v7035 = vunpack.c.l.b16 %v5555
  %v7036 = vunpack.c.h.b16 %v5555
  %v7037 = vunpack.c.l.b16 %v5556
  %v7038 = vunpack.c.h.b16 %v5556
  %v7039 = vunpack.c.l.b16 %v5557
  %v7040 = vunpack.c.h.b16 %v5557
  %v7041 = vunpack.c.l.b16 %v5558
  %v7042 = vunpack.c.h.b16 %v5558
  %v7043 = vunpack.c.l.b16 %v5559
  %v7044 = vunpack.c.h.b16 %v5559
  %v7045 = vunpack.c.l.b16 %v5560
  %v7046 = vunpack.c.h.b16 %v5560
  %v7047 = vunpack.c.l.b16 %v5561
  %v7048 = vunpack.c.h.b16 %v5561
  %v7049 = vunpack.c.l.b16 %v5562
  %v7050 = vunpack.c.h.b16 %v5562
  %v7051 = vunpack.c.l.b16 %v5563
  %v7052 = vunpack.c.h.b16 %v5563
  %v7053 = vunpack.c.l.b16 %v5564
  %v7054 = vunpack.c.h.b16 %v5564
  %v7055 = vunpack.c.l.b16 %v5565
  %v7056 = vunpack.c.h.b16 %v5565
  %v7057 = vunpack.c.l.b16 %v5566
  %v7058 = vunpack.c.h.b16 %v5566
  %v7059 = vunpack.c.l.b16 %v5567
  %v7060 = vunpack.c.h.b16 %v5567
  %v7061 = vunpack.c.l.b16 %v5568
  %v7062 = vunpack.c.h.b16 %v5568
  %v7063 = vunpack.c.l.b16 %v5569
  %v7064 = vunpack.c.h.b16 %v5569
  %v7065 = vunpack.c.l.b16 %v5570
  %v7066 = vunpack.c.h.b16 %v5570
  %v7067 = vunpack.c.l.b16 %v5571
  %v7068 = vunpack.c.h.b16 %v5571
  %v7069 = vunpack.c.l.b16 %v5572
  %v7070 = vunpack.c.h.b16 %v5572
  %v7071 = vunpack.c.l.b16 %v5573
  %v7072 = vunpack.c.h.b16 %v5573
  %v7073 = vunpack.c.l.b16 %v5574
  %v7074 = vunpack.c.h.b16 %v5574
  %v7075 = vunpack.c.l.b16 %v5575
  %v7076 = vunpack.c.h.b16 %v5575
  %v7077 = vunpack.c.l.b16 %v5576
  %v7078 = vunpack.c.h.b16 %v5576
  %v7079 = vunpack.c.l.b16 %v5577
  %v7080 = vunpack.c.h.b16 %v5577
  %v7081 = vunpack.c.l.b16 %v5578
  %v7082 = vunpack.c.h.b16 %v5578
  %v7083 = vunpack.c.l.b16 %v5579
  %v7084 = vunpack.c.h.b16 %v5579
  %v7085 = vunpack.c.l.b16 %v5580
  %v7086 = vunpack.c.h.b16 %v5580
  %v7087 = vunpack.c.l.b16 %v5581
  %v7088 = vunpack.c.h.b16 %v5581
  %v7089 = vunpack.c.l.b16 %v5582
  %v7090 = vunpack.c.h.b16 %v5582
  %v7091 = vunpack.c.l.b16 %v5583
  %v7092 = vunpack.c.h.b16 %v5583
  %v7093 = vunpack.c.l.b16 %v5584
  %v7094 = vunpack.c.h.b16 %v5584
  %v7095 = vunpack.c.l.b16 %v5585
  %v7096 = vunpack.c.h.b16 %v5585
  %v7097 = vunpack.c.l.b16 %v5586
  %v7098 = vunpack.c.h.b16 %v5586
  %v7099 = vunpack.c.l.b16 %v5587
  %v7100 = vunpack.c.h.b16 %v5587
  %v7101 = vunpack.c.l.b16 %v5588
  %v7102 = vunpack.c.h.b16 %v5588
  %v7103 = vunpack.c.l.b16 %v5589
  %v7104 = vunpack.c.h.b16 %v5589
  %v7105 = vunpack.c.l.b16 %v5590
  %v7106 = vunpack.c.h.b16 %v5590
  %v7107 = vunpack.c.l.b16 %v5591
  %v7108 = vunpack.c.h.b16 %v5591
  %v7109 = vunpack.c.l.b16 %v5592
  %v7110 = vunpack.c.h.b16 %v5592
  %v7111 = vunpack.c.l.b16 %v5593
  %v7112 = vunpack.c.h.b16 %v5593
  %v7113 = vunpack.c.l.b16 %v5594
  %v7114 = vunpack.c.h.b16 %v5594
  %v7115 = vunpack.c.l.b16 %v5595
  %v7116 = vunpack.c.h.b16 %v5595
  %v7117 = vunpack.c.l.b16 %v5596
  %v7118 = vunpack.c.h.b16 %v5596
  %v7119 = vunpack.c.l.b16 %v5597
  %v7120 = vunpack.c.h.b16 %v5597
  %v7121 = vunpack.c.l.b16 %v5598
  %v7122 = vunpack.c.h.b16 %v5598
  %v7123 = vunpack.c.l.b16 %v5599
  %v7124 = vunpack.c.h.b16 %v5599
  %v7125 = vunpack.c.l.b16 %v5600
  %v7126 = vunpack.c.h.b16 %v5600
  %v7127 = vunpack.c.l.b16 %v5601
  %v7128 = vunpack.c.h.b16 %v5601
  %v7129 = vunpack.c.l.b16 %v5602
  %v7130 = vunpack.c.h.b16 %v5602
  %v7131 = vunpack.c.l.b16 %v5603
  %v7132 = vunpack.c.h.b16 %v5603
  %v7133 = vunpack.c.l.b16 %v5604
  %v7134 = vunpack.c.h.b16 %v5604
  %v7135 = vunpack.c.l.b16 %v5605
  %v7136 = vunpack.c.h.b16 %v5605
  %v7137 = vunpack.c.l.b16 %v5606
  %v7138 = vunpack.c.h.b16 %v5606
  %v7139 = vunpack.c.l.b16 %v5607
  %v7140 = vunpack.c.h.b16 %v5607
  %v7141 = vunpack.c.l.b16 %v5608
  %v7142 = vunpack.c.h.b16 %v5608
  %v7143 = vunpack.c.l.b16 %v5609
  %v7144 = vunpack.c.h.b16 %v5609
  %v7145 = vunpack.c.l.b16 %v5610
  %v7146 = vunpack.c.h.b16 %v5610
  %v7147 = vunpack.c.l.b16 %v5611
  %v7148 = vunpack.c.h.b16 %v5611
  %v7149 = vunpack.c.l.b16 %v5612
  %v7150 = vunpack.c.h.b16 %v5612
  %v7151 = vunpack.c.l.b16 %v5613
  %v7152 = vunpack.c.h.b16 %v5613
  %v7153 = vunpack.c.l.b16 %v5614
  %v7154 = vunpack.c.h.b16 %v5614
  %v7155 = vunpack.c.l.b16 %v5615
  %v7156 = vunpack.c.h.b16 %v5615
  %v7157 = vunpack.c.l.b16 %v5616
  %v7158 = vunpack.c.h.b16 %v5616
  %v7159 = vunpack.c.l.b16 %v5617
  %v7160 = vunpack.c.h.b16 %v5617
  %v7161 = vunpack.c.l.b16 %v5618
  %v7162 = vunpack.c.h.b16 %v5618
  %v7163 = vunpack.c.l.b16 %v5619
  %v7164 = vunpack.c.h.b16 %v5619
  %v7165 = vunpack.c.l.b16 %v5620
  %v7166 = vunpack.c.h.b16 %v5620
  %v7167 = vunpack.c.l.b16 %v5621
  %v7168 = vunpack.c.h.b16 %v5621
  %v7169 = vunpack.c.l.b16 %v5622
  %v7170 = vunpack.c.h.b16 %v5622
  %v7171 = vunpack.c.l.b16 %v5623
  %v7172 = vunpack.c.h.b16 %v5623
  %v7173 = vunpack.c.l.b16 %v5624
  %v7174 = vunpack.c.h.b16 %v5624
  %v7175 = vunpack.c.l.b16 %v5625
  %v7176 = vunpack.c.h.b16 %v5625
  %v7177 = vunpack.c.l.b16 %v5626
  %v7178 = vunpack.c.h.b16 %v5626
  %v7179 = vunpack.c.l.b16 %v5627
  %v7180 = vunpack.c.h.b16 %v5627
  %v7181 = vunpack.c.l.b16 %v5628
  %v7182 = vunpack.c.h.b16 %v5628
  %v7183 = vunpack.c.l.b16 %v5629
  %v7184 = vunpack.c.h.b16 %v5629
  %v7185 = vunpack.c.l.b16 %v5630
  %v7186 = vunpack.c.h.b16 %v5630
  %v7187 = vunpack.c.l.b16 %v5631
  %v7188 = vunpack.c.h.b16 %v5631
  %v7189 = vunpack.c.l.b16 %v5632
  %v7190 = vunpack.c.h.b16 %v5632
  %v7191 = vunpack.c.l.b16 %v5633
  %v7192 = vunpack.c.h.b16 %v5633
  %v7193 = vunpack.c.l.b16 %v5634
  %v7194 = vunpack.c.h.b16 %v5634
  %v7195 = vunpack.c.l.b16 %v5635
  %v7196 = vunpack.c.h.b16 %v5635
  %v7197 = vunpack.c.l.b16 %v5636
  %v7198 = vunpack.c.h.b16 %v5636
  %v7199 = vunpack.c.l.b16 %v5637
  %v7200 = vunpack.c.h.b16 %v5637
  %v7201 = vunpack.c.l.b16 %v5638
  %v7202 = vunpack.c.h.b16 %v5638
  %v7203 = vunpack.c.l.b16 %v5639
  %v7204 = vunpack.c.h.b16 %v5639
  %v7205 = vunpack.c.l.b16 %v5640
  %v7206 = vunpack.c.h.b16 %v5640
  %v7207 = vunpack.c.l.b16 %v5641
  %v7208 = vunpack.c.h.b16 %v5641
  %v7209 = vunpack.c.l.b16 %v5642
  %v7210 = vunpack.c.h.b16 %v5642
  %v7211 = vunpack.c.l.b16 %v5643
  %v7212 = vunpack.c.h.b16 %v5643
  %v7213 = vunpack.c.l.b16 %v5644
  %v7214 = vunpack.c.h.b16 %v5644
  %v7215 = vunpack.c.l.b16 %v5645
  %v7216 = vunpack.c.h.b16 %v5645
  %v7217 = vunpack.c.l.b16 %v5646
  %v7218 = vunpack.c.h.b16 %v5646
  %v7219 = vunpack.c.l.b16 %v5647
  %v7220 = vunpack.c.h.b16 %v5647
  %v7221 = vunpack.c.l.b16 %v5648
  %v7222 = vunpack.c.h.b16 %v5648
  %v7223 = vunpack.c.l.b16 %v5649
  %v7224 = vunpack.c.h.b16 %v5649
  %v7225 = vunpack.c.l.b16 %v5650
  %v7226 = vunpack.c.h.b16 %v5650
  %v7227 = vunpack.c.l.b16 %v5651
  %v7228 = vunpack.c.h.b16 %v5651
  %v7229 = vunpack.c.l.b16 %v5652
  %v7230 = vunpack.c.h.b16 %v5652
  %v7231 = vunpack.c.l.b16 %v5653
  %v7232 = vunpack.c.h.b16 %v5653
  %v7233 = vunpack.c.l.b16 %v5654
  %v7234 = vunpack.c.h.b16 %v5654
  %v7235 = vunpack.c.l.b16 %v5655
  %v7236 = vunpack.c.h.b16 %v5655
  %v7237 = vunpack.c.l.b16 %v5656
  %v7238 = vunpack.c.h.b16 %v5656
  %v7239 = vunpack.c.l.b16 %v5657
  %v7240 = vunpack.c.h.b16 %v5657
  %v7241 = vunpack.c.l.b16 %v5658
  %v7242 = vunpack.c.h.b16 %v5658
  %v7243 = vunpack.c.l.b16 %v5659
  %v7244 = vunpack.c.h.b16 %v5659
  %v7245 = vunpack.c.l.b16 %v5660
  %v7246 = vunpack.c.h.b16 %v5660
  %v7247 = vunpack.c.l.b16 %v5661
  %v7248 = vunpack.c.h.b16 %v5661
  %v7249 = vunpack.c.l.b16 %v5662
  %v7250 = vunpack.c.h.b16 %v5662
  %v7251 = vunpack.c.l.b16 %v5663
  %v7252 = vunpack.c.h.b16 %v5663
  %v7253 = vunpack.c.l.b16 %v5664
  %v7254 = vunpack.c.h.b16 %v5664
  %v7255 = vunpack.c.l.b16 %v5665
  %v7256 = vunpack.c.h.b16 %v5665
  %v7257 = vunpack.c.l.b16 %v5666
  %v7258 = vunpack.c.h.b16 %v5666
  %v7259 = vunpack.c.l.b16 %v5667
  %v7260 = vunpack.c.h.b16 %v5667
  %v7261 = vunpack.c.l.b16 %v5668
  %v7262 = vunpack.c.h.b16 %v5668
  %v7263 = vunpack.c.l.b16 %v5669
  %v7264 = vunpack.c.h.b16 %v5669
  %v7265 = vunpack.c.l.b16 %v5670
  %v7266 = vunpack.c.h.b16 %v5670
  %v7267 = vunpack.c.l.b16 %v5671
  %v7268 = vunpack.c.h.b16 %v5671
  %v7269 = vunpack.c.l.b16 %v5672
  %v7270 = vunpack.c.h.b16 %v5672
  %v7271 = vunpack.c.l.b16 %v5673
  %v7272 = vunpack.c.h.b16 %v5673
  %v7273 = vunpack.c.l.b16 %v5674
  %v7274 = vunpack.c.h.b16 %v5674
  %v7275 = vunpack.c.l.b16 %v5675
  %v7276 = vunpack.c.h.b16 %v5675
  %v7277 = vunpack.c.l.b16 %v5676
  %v7278 = vunpack.c.h.b16 %v5676
  %v7279 = vunpack.c.l.b16 %v5677
  %v7280 = vunpack.c.h.b16 %v5677
  %v7281 = vunpack.c.l.b16 %v5678
  %v7282 = vunpack.c.h.b16 %v5678
  %v7283 = vunpack.c.l.b16 %v5679
  %v7284 = vunpack.c.h.b16 %v5679
  %v7285 = vunpack.c.l.b16 %v5680
  %v7286 = vunpack.c.h.b16 %v5680
  %v7287 = vunpack.c.l.b16 %v5681
  %v7288 = vunpack.c.h.b16 %v5681
  %v7289 = vunpack.c.l.b16 %v5682
  %v7290 = vunpack.c.h.b16 %v5682
  %v7291 = vunpack.c.l.b16 %v5683
  %v7292 = vunpack.c.h.b16 %v5683
  %v7293 = vunpack.c.l.b16 %v5684
  %v7294 = vunpack.c.h.b16 %v5684
  %v7295 = vunpack.c.l.b16 %v5685
  %v7296 = vunpack.c.h.b16 %v5685
  %v7297 = vunpack.c.l.b16 %v5686
  %v7298 = vunpack.c.h.b16 %v5686
  %v7299 = vunpack.c.l.b16 %v5687
  %v7300 = vunpack.c.h.b16 %v5687
  %v7301 = vunpack.c.l.b16 %v5688
  %v7302 = vunpack.c.h.b16 %v5688
  %v7303 = vunpack.c.l.b16 %v5689
  %v7304 = vunpack.c.h.b16 %v5689
  %v7305 = vunpack.c.l.b16 %v5690
  %v7306 = vunpack.c.h.b16 %v5690
  %v7307 = vunpack.c.l.b16 %v5691
  %v7308 = vunpack.c.h.b16 %v5691
  %v7309 = vunpack.c.l.b16 %v5692
  %v7310 = vunpack.c.h.b16 %v5692
  %v7311 = vunpack.c.l.b16 %v5693
  %v7312 = vunpack.c.h.b16 %v5693
  %v7313 = vunpack.c.l.b16 %v5694
  %v7314 = vunpack.c.h.b16 %v5694
  %v7315 = vunpack.c.l.b16 %v5695
  %v7316 = vunpack.c.h.b16 %v5695
  %v7317 = vunpack.c.l.b16 %v5696
  %v7318 = vunpack.c.h.b16 %v5696
  %v7319 = vunpack.c.l.b16 %v5697
  %v7320 = vunpack.c.h.b16 %v5697
  %v7321 = vunpack.c.l.b16 %v5698
  %v7322 = vunpack.c.h.b16 %v5698
  %v7323 = vunpack.c.l.b16 %v5699
  %v7324 = vunpack.c.h.b16 %v5699
  %v7325 = vunpack.c.l.b16 %v5700
  %v7326 = vunpack.c.h.b16 %v5700
  %v7327 = vunpack.c.l.b16 %v5701
  %v7328 = vunpack.c.h.b16 %v5701
  %v7329 = vunpack.c.l.b16 %v5702
  %v7330 = vunpack.c.h.b16 %v5702
  %v7331 = vunpack.c.l.b16 %v5703
  %v7332 = vunpack.c.h.b16 %v5703
  %v7333 = vunpack.c.l.b16 %v5704
  %v7334 = vunpack.c.h.b16 %v5704
  %v7335 = vunpack.c.l.b16 %v5705
  %v7336 = vunpack.c.h.b16 %v5705
  %v7337 = vunpack.c.l.b16 %v5706
  %v7338 = vunpack.c.h.b16 %v5706
  %v7339 = vunpack.c.l.b16 %v5707
  %v7340 = vunpack.c.h.b16 %v5707
  %v7341 = vunpack.c.l.b16 %v5708
  %v7342 = vunpack.c.h.b16 %v5708
  %v7343 = vunpack.c.l.b16 %v5709
  %v7344 = vunpack.c.h.b16 %v5709
  %v7345 = vunpack.c.l.b16 %v5710
  %v7346 = vunpack.c.h.b16 %v5710
  %v7347 = vunpack.c.l.b16 %v5711
  %v7348 = vunpack.c.h.b16 %v5711
  %v7349 = vunpack.c.l.b16 %v5712
  %v7350 = vunpack.c.h.b16 %v5712
  %v7351 = vunpack.c.l.b16 %v5713
  %v7352 = vunpack.c.h.b16 %v5713
  %v7353 = vunpack.c.l.b16 %v5714
  %v7354 = vunpack.c.h.b16 %v5714
  %v7355 = vunpack.c.l.b16 %v5715
  %v7356 = vunpack.c.h.b16 %v5715
  %v7357 = vunpack.c.l.b16 %v5716
  %v7358 = vunpack.c.h.b16 %v5716
  %v7359 = vunpack.c.l.b16 %v5717
  %v7360 = vunpack.c.h.b16 %v5717
  %v7361 = vunpack.c.l.b16 %v5718
  %v7362 = vunpack.c.h.b16 %v5718
  %v7363 = vunpack.c.l.b16 %v5719
  %v7364 = vunpack.c.h.b16 %v5719
  %v7365 = vunpack.c.l.b16 %v5720
  %v7366 = vunpack.c.h.b16 %v5720
  %v7367 = vunpack.c.l.b16 %v5721
  %v7368 = vunpack.c.h.b16 %v5721
  %v7369 = vunpack.c.l.b16 %v5722
  %v7370 = vunpack.c.h.b16 %v5722
  %v7371 = vunpack.c.l.b16 %v5723
  %v7372 = vunpack.c.h.b16 %v5723
  %v7373 = vunpack.c.l.b16 %v5724
  %v7374 = vunpack.c.h.b16 %v5724
  %v7375 = vunpack.c.l.b16 %v5725
  %v7376 = vunpack.c.h.b16 %v5725
  %v7377 = vunpack.c.l.b16 %v5726
  %v7378 = vunpack.c.h.b16 %v5726
  %v7379 = vunpack.c.l.b16 %v5727
  %v7380 = vunpack.c.h.b16 %v5727
  %v7381 = vunpack.c.l.b16 %v5728
  %v7382 = vunpack.c.h.b16 %v5728
  %v7383 = vunpack.c.l.b16 %v5729
  %v7384 = vunpack.c.h.b16 %v5729
  %v7385 = vunpack.c.l.b16 %v5730
  %v7386 = vunpack.c.h.b16 %v5730
  %v7387 = vunpack.c.l.b16 %v5731
  %v7388 = vunpack.c.h.b16 %v5731
  %v7389 = vunpack.c.l.b16 %v5732
  %v7390 = vunpack.c.h.b16 %v5732
  %v7391 = vunpack.c.l.b16 %v5733
  %v7392 = vunpack.c.h.b16 %v5733
  %v7393 = vunpack.c.l.b16 %v5734
  %v7394 = vunpack.c.h.b16 %v5734
  %v7395 = vunpack.c.l.b16 %v5735
  %v7396 = vunpack.c.h.b16 %v5735
  %v7397 = vunpack.c.l.b16 %v5736
  %v7398 = vunpack.c.h.b16 %v5736
  %v7399 = vunpack.c.l.b16 %v5737
  %v7400 = vunpack.c.h.b16 %v5737
  %v7401 = vunpack.c.l.b16 %v5738
  %v7402 = vunpack.c.h.b16 %v5738
  %v7403 = vunpack.c.l.b16 %v5739
  %v7404 = vunpack.c.h.b16 %v5739
  %v7405 = vunpack.c.l.b16 %v5740
  %v7406 = vunpack.c.h.b16 %v5740
  %v7407 = vunpack.c.l.b16 %v5741
  %v7408 = vunpack.c.h.b16 %v5741
  %v7409 = vunpack.c.l.b16 %v5742
  %v7410 = vunpack.c.h.b16 %v5742
  %v7411 = vunpack.c.l.b16 %v5743
  %v7412 = vunpack.c.h.b16 %v5743
  %v7413 = vunpack.c.l.b16 %v5744
  %v7414 = vunpack.c.h.b16 %v5744
  %v7415 = vunpack.c.l.b16 %v5745
  %v7416 = vunpack.c.h.b16 %v5745
  %v7417 = vunpack.c.l.b16 %v5746
  %v7418 = vunpack.c.h.b16 %v5746
  %v7419 = vunpack.c.l.b16 %v5747
  %v7420 = vunpack.c.h.b16 %v5747
  %v7421 = vunpack.c.l.b16 %v5748
  %v7422 = vunpack.c.h.b16 %v5748
  %v7423 = vunpack.c.l.b16 %v5749
  %v7424 = vunpack.c.h.b16 %v5749
  %v7425 = vunpack.c.l.b16 %v5750
  %v7426 = vunpack.c.h.b16 %v5750
  %v7427 = vunpack.c.l.b16 %v5751
  %v7428 = vunpack.c.h.b16 %v5751
  %v7429 = vunpack.c.l.b16 %v5752
  %v7430 = vunpack.c.h.b16 %v5752
  %v7431 = vunpack.c.l.b16 %v5753
  %v7432 = vunpack.c.h.b16 %v5753
  %v7433 = vunpack.c.l.b16 %v5754
  %v7434 = vunpack.c.h.b16 %v5754
  %v7435 = vunpack.c.l.b16 %v5755
  %v7436 = vunpack.c.h.b16 %v5755
  %v7437 = vunpack.c.l.b16 %v5756
  %v7438 = vunpack.c.h.b16 %v5756
  %v7439 = vunpack.c.l.b16 %v5757
  %v7440 = vunpack.c.h.b16 %v5757
  %v7441 = vunpack.c.l.b16 %v5758
  %v7442 = vunpack.c.h.b16 %v5758
  %v7443 = vunpack.c.l.b16 %v5759
  %v7444 = vunpack.c.h.b16 %v5759
  %v7445 = vunpack.c.l.b16 %v5760
  %v7446 = vunpack.c.h.b16 %v5760
  %v7447 = vunpack.c.l.b16 %v5761
  %v7448 = vunpack.c.h.b16 %v5761
  %v7449 = vunpack.c.l.b16 %v5762
  %v7450 = vunpack.c.h.b16 %v5762
  %v7451 = vunpack.c.l.b16 %v5763
  %v7452 = vunpack.c.h.b16 %v5763
  %v7453 = vunpack.c.l.b16 %v5764
  %v7454 = vunpack.c.h.b16 %v5764
  %v7455 = vunpack.c.l.b16 %v5765
  %v7456 = vunpack.c.h.b16 %v5765
  %v7457 = vunpack.c.l.b16 %v5766
  %v7458 = vunpack.c.h.b16 %v5766
  %v7459 = vunpack.c.l.b16 %v5767
  %v7460 = vunpack.c.h.b16 %v5767
  %v7461 = vunpack.c.l.b16 %v5768
  %v7462 = vunpack.c.h.b16 %v5768
  %v7463 = vunpack.c.l.b16 %v5769
  %v7464 = vunpack.c.h.b16 %v5769
  %v7465 = vunpack.c.l.b16 %v5770
  %v7466 = vunpack.c.h.b16 %v5770
  %v7467 = vunpack.c.l.b16 %v5771
  %v7468 = vunpack.c.h.b16 %v5771
  %v7469 = vunpack.c.l.b16 %v5772
  %v7470 = vunpack.c.h.b16 %v5772
  %v7471 = vunpack.c.l.b16 %v5773
  %v7472 = vunpack.c.h.b16 %v5773
  %v7473 = vunpack.c.l.b16 %v5774
  %v7474 = vunpack.c.h.b16 %v5774
  %v7475 = vunpack.c.l.b16 %v5775
  %v7476 = vunpack.c.h.b16 %v5775
  %v7477 = vunpack.c.l.b16 %v5776
  %v7478 = vunpack.c.h.b16 %v5776
  %v7479 = vunpack.c.l.b16 %v5777
  %v7480 = vunpack.c.h.b16 %v5777
  %v7481 = vunpack.c.l.b16 %v5778
  %v7482 = vunpack.c.h.b16 %v5778
  %v7483 = vunpack.c.l.b16 %v5779
  %v7484 = vunpack.c.h.b16 %v5779
  %v7485 = vunpack.c.l.b16 %v5780
  %v7486 = vunpack.c.h.b16 %v5780
  %v7487 = vunpack.c.l.b16 %v5781
  %v7488 = vunpack.c.h.b16 %v5781
  %v7489 = vunpack.c.l.b16 %v5782
  %v7490 = vunpack.c.h.b16 %v5782
  %v7491 = vunpack.c.l.b16 %v5783
  %v7492 = vunpack.c.h.b16 %v5783
  %v7493 = vunpack.c.l.b16 %v5784
  %v7494 = vunpack.c.h.b16 %v5784
  %v7495 = vunpack.c.l.b16 %v5785
  %v7496 = vunpack.c.h.b16 %v5785
  %v7497 = vunpack.c.l.b16 %v5786
  %v7498 = vunpack.c.h.b16 %v5786
  %v7499 = vunpack.c.l.b16 %v5787
  %v7500 = vunpack.c.h.b16 %v5787
  %v7501 = vunpack.c.l.b16 %v5788
  %v7502 = vunpack.c.h.b16 %v5788
  %v7503 = vunpack.c.l.b16 %v5789
  %v7504 = vunpack.c.h.b16 %v5789
  %v7505 = vunpack.c.l.b16 %v5790
  %v7506 = vunpack.c.h.b16 %v5790
  %v7507 = vunpack.c.l.b16 %v5791
  %v7508 = vunpack.c.h.b16 %v5791
  %v7509 = vunpack.c.l.b16 %v5792
  %v7510 = vunpack.c.h.b16 %v5792
  %v7511 = vunpack.c.l.b16 %v5793
  %v7512 = vunpack.c.h.b16 %v5793
  %v7513 = vunpack.c.l.b16 %v5794
  %v7514 = vunpack.c.h.b16 %v5794
  %v7515 = vunpack.c.l.b16 %v5795
  %v7516 = vunpack.c.h.b16 %v5795
  %v7517 = vunpack.c.l.b16 %v5796
  %v7518 = vunpack.c.h.b16 %v5796
  %v7519 = vunpack.c.l.b16 %v5797
  %v7520 = vunpack.c.h.b16 %v5797
  %v7521 = vunpack.c.l.b16 %v5798
  %v7522 = vunpack.c.h.b16 %v5798
  %v7523 = vunpack.c.l.b16 %v5799
  %v7524 = vunpack.c.h.b16 %v5799
  %v7525 = vunpack.c.l.b16 %v5800
  %v7526 = vunpack.c.h.b16 %v5800
  %v7527 = vunpack.c.l.b16 %v5801
  %v7528 = vunpack.c.h.b16 %v5801
  %v7529 = vunpack.c.l.b16 %v5802
  %v7530 = vunpack.c.h.b16 %v5802
  %v7531 = vunpack.c.l.b16 %v5803
  %v7532 = vunpack.c.h.b16 %v5803
  %v7533 = vunpack.c.l.b16 %v5804
  %v7534 = vunpack.c.h.b16 %v5804
  %v7535 = vunpack.c.l.b16 %v5805
  %v7536 = vunpack.c.h.b16 %v5805
  %v7537 = vunpack.c.l.b16 %v5806
  %v7538 = vunpack.c.h.b16 %v5806
  %v7539 = vunpack.c.l.b16 %v5807
  %v7540 = vunpack.c.h.b16 %v5807
  %v7541 = vunpack.c.l.b16 %v5808
  %v7542 = vunpack.c.h.b16 %v5808
  %v7543 = vunpack.c.l.b16 %v5809
  %v7544 = vunpack.c.h.b16 %v5809
  %v7545 = vunpack.c.l.b16 %v5810
  %v7546 = vunpack.c.h.b16 %v5810
  %v7547 = vunpack.c.l.b16 %v5811
  %v7548 = vunpack.c.h.b16 %v5811
  %v7549 = vunpack.c.l.b16 %v5812
  %v7550 = vunpack.c.h.b16 %v5812
  %v7551 = vunpack.c.l.b16 %v5813
  %v7552 = vunpack.c.h.b16 %v5813
  %v7553 = vunpack.c.l.b16 %v5814
  %v7554 = vunpack.c.h.b16 %v5814
  %v7555 = vunpack.c.l.b16 %v5815
  %v7556 = vunpack.c.h.b16 %v5815
  %v7557 = vunpack.c.l.b16 %v5816
  %v7558 = vunpack.c.h.b16 %v5816
  %v7559 = vunpack.c.l.b16 %v5817
  %v7560 = vunpack.c.h.b16 %v5817
  %v7561 = vunpack.c.l.b16 %v5818
  %v7562 = vunpack.c.h.b16 %v5818
  %v7563 = vunpack.c.l.b16 %v5819
  %v7564 = vunpack.c.h.b16 %v5819
  %v7565 = vunpack.c.l.b16 %v5820
  %v7566 = vunpack.c.h.b16 %v5820
  %v7567 = vunpack.c.l.b16 %v5821
  %v7568 = vunpack.c.h.b16 %v5821
  %v7569 = vunpack.c.l.b16 %v5822
  %v7570 = vunpack.c.h.b16 %v5822
  %v7571 = vunpack.c.l.b16 %v5823
  %v7572 = vunpack.c.h.b16 %v5823
  %v7573 = vunpack.c.l.b16 %v5824
  %v7574 = vunpack.c.h.b16 %v5824
  %v7575 = vunpack.c.l.b16 %v5825
  %v7576 = vunpack.c.h.b16 %v5825
  %v7577 = vunpack.c.l.b16 %v5826
  %v7578 = vunpack.c.h.b16 %v5826
  %v7579 = vunpack.c.l.b16 %v5827
  %v7580 = vunpack.c.h.b16 %v5827
  %v7581 = vunpack.c.l.b16 %v5828
  %v7582 = vunpack.c.h.b16 %v5828
  %v7583 = vunpack.c.l.b16 %v5829
  %v7584 = vunpack.c.h.b16 %v5829
  %v7585 = vunpack.c.l.b16 %v5830
  %v7586 = vunpack.c.h.b16 %v5830
  %v7587 = vunpack.c.l.b16 %v5831
  %v7588 = vunpack.c.h.b16 %v5831
  %v7589 = vunpack.c.l.b16 %v5832
  %v7590 = vunpack.c.h.b16 %v5832
  %v7591 = vunpack.c.l.b16 %v5833
  %v7592 = vunpack.c.h.b16 %v5833
  %v7593 = vunpack.c.l.b16 %v5834
  %v7594 = vunpack.c.h.b16 %v5834
  %v7595 = vunpack.c.l.b16 %v5835
  %v7596 = vunpack.c.h.b16 %v5835
  %v7597 = vunpack.c.l.b16 %v5836
  %v7598 = vunpack.c.h.b16 %v5836
  %v7599 = vunpack.c.l.b16 %v5837
  %v7600 = vunpack.c.h.b16 %v5837
  %v7601 = vunpack.c.l.b16 %v5838
  %v7602 = vunpack.c.h.b16 %v5838
  %v7603 = vunpack.c.l.b16 %v5839
  %v7604 = vunpack.c.h.b16 %v5839
  %v7605 = vunpack.c.l.b16 %v5840
  %v7606 = vunpack.c.h.b16 %v5840
  %v7607 = vunpack.c.l.b16 %v5841
  %v7608 = vunpack.c.h.b16 %v5841
  %v7609 = vunpack.c.l.b16 %v5842
  %v7610 = vunpack.c.h.b16 %v5842
  %v7611 = vunpack.c.l.b16 %v5843
  %v7612 = vunpack.c.h.b16 %v5843
  %v7613 = vunpack.c.l.b16 %v5844
  %v7614 = vunpack.c.h.b16 %v5844
  %v7615 = vunpack.c.l.b16 %v5845
  %v7616 = vunpack.c.h.b16 %v5845
  %v7617 = vunpack.c.l.b16 %v5846
  %v7618 = vunpack.c.h.b16 %v5846
  %v7619 = vunpack.c.l.b16 %v5847
  %v7620 = vunpack.c.h.b16 %v5847
  %v7621 = vunpack.c.l.b16 %v5848
  %v7622 = vunpack.c.h.b16 %v5848
  %v7623 = vunpack.c.l.b16 %v5849
  %v7624 = vunpack.c.h.b16 %v5849
  %v7625 = vunpack.c.l.b16 %v5850
  %v7626 = vunpack.c.h.b16 %v5850
  %v7627 = vunpack.c.l.b16 %v5851
  %v7628 = vunpack.c.h.b16 %v5851
  %v7629 = vunpack.c.l.b16 %v5852
  %v7630 = vunpack.c.h.b16 %v5852
  %v7631 = vunpack.c.l.b16 %v5853
  %v7632 = vunpack.c.h.b16 %v5853
  %v7633 = vunpack.c.l.b16 %v5854
  %v7634 = vunpack.c.h.b16 %v5854
  %v7635 = vunpack.c.l.b16 %v5855
  %v7636 = vunpack.c.h.b16 %v5855
  %v7637 = vunpack.c.l.b16 %v5856
  %v7638 = vunpack.c.h.b16 %v5856
  %v7639 = vunpack.c.l.b16 %v5857
  %v7640 = vunpack.c.h.b16 %v5857
  %v7641 = vunpack.c.l.b16 %v5858
  %v7642 = vunpack.c.h.b16 %v5858
  %v7643 = vunpack.c.l.b16 %v5859
  %v7644 = vunpack.c.h.b16 %v5859
  %v7645 = vunpack.c.l.b16 %v5860
  %v7646 = vunpack.c.h.b16 %v5860
  %v7647 = vunpack.c.l.b16 %v5861
  %v7648 = vunpack.c.h.b16 %v5861
  %v7649 = vunpack.c.l.b16 %v5862
  %v7650 = vunpack.c.h.b16 %v5862
  %v7651 = vunpack.c.l.b16 %v5863
  %v7652 = vunpack.c.h.b16 %v5863
  %v7653 = vunpack.c.l.b16 %v5864
  %v7654 = vunpack.c.h.b16 %v5864
  %v7655 = vunpack.c.l.b16 %v5865
  %v7656 = vunpack.c.h.b16 %v5865
  %v7657 = vunpack.c.l.b16 %v5866
  %v7658 = vunpack.c.h.b16 %v5866
  %v7659 = vunpack.c.l.b16 %v5867
  %v7660 = vunpack.c.h.b16 %v5867
  %v7661 = vunpack.c.l.b16 %v5868
  %v7662 = vunpack.c.h.b16 %v5868
  %v7663 = vunpack.c.l.b16 %v5869
  %v7664 = vunpack.c.h.b16 %v5869
  %v7665 = vunpack.c.l.b16 %v5870
  %v7666 = vunpack.c.h.b16 %v5870
  %v7667 = vunpack.c.l.b16 %v5871
  %v7668 = vunpack.c.h.b16 %v5871
  %v7669 = vunpack.c.l.b16 %v5872
  %v7670 = vunpack.c.h.b16 %v5872
  %v7671 = vunpack.c.l.b16 %v5873
  %v7672 = vunpack.c.h.b16 %v5873
  %v7673 = vunpack.c.l.b16 %v5874
  %v7674 = vunpack.c.h.b16 %v5874
  %v7675 = vunpack.c.l.b16 %v5875
  %v7676 = vunpack.c.h.b16 %v5875
  %v7677 = vunpack.c.l.b16 %v5876
  %v7678 = vunpack.c.h.b16 %v5876
  %v7679 = vunpack.c.l.b16 %v5877
  %v7680 = vunpack.c.h.b16 %v5877
  %v7681 = vunpack.c.l.b16 %v5878
  %v7682 = vunpack.c.h.b16 %v5878
  %v7683 = vunpack.c.l.b16 %v5879
  %v7684 = vunpack.c.h.b16 %v5879
  %v7685 = vunpack.c.l.b16 %v5880
  %v7686 = vunpack.c.h.b16 %v5880
  %v7687 = vunpack.c.l.b16 %v5881
  %v7688 = vunpack.c.h.b16 %v5881
  %v7689 = vunpack.c.l.b16 %v5882
  %v7690 = vunpack.c.h.b16 %v5882
  %v7691 = vunpack.c.l.b16 %v5883
  %v7692 = vunpack.c.h.b16 %v5883
  %v7693 = vunpack.c.l.b16 %v5884
  %v7694 = vunpack.c.h.b16 %v5884
  %v7695 = vunpack.c.l.b16 %v5885
  %v7696 = vunpack.c.h.b16 %v5885
  %v7697 = vunpack.c.l.b16 %v5886
  %v7698 = vunpack.c.h.b16 %v5886
  %v7699 = vunpack.c.l.b16 %v5887
  %v7700 = vunpack.c.h.b16 %v5887
  %v7701 = vunpack.c.l.b16 %v5888
  %v7702 = vunpack.c.h.b16 %v5888
  %v7703 = vunpack.c.l.b16 %v5889
  %v7704 = vunpack.c.h.b16 %v5889
  %v7705 = vunpack.c.l.b16 %v5890
  %v7706 = vunpack.c.h.b16 %v5890
  %v7707 = vunpack.c.l.b16 %v5891
  %v7708 = vunpack.c.h.b16 %v5891
  %v7709 = vunpack.c.l.b16 %v5892
  %v7710 = vunpack.c.h.b16 %v5892
  %v7711 = vunpack.c.l.b16 %v5893
  %v7712 = vunpack.c.h.b16 %v5893
  %v7713 = vunpack.c.l.b16 %v5894
  %v7714 = vunpack.c.h.b16 %v5894
  %v7715 = vunpack.c.l.b16 %v5895
  %v7716 = vunpack.c.h.b16 %v5895
  %v7717 = vunpack.c.l.b16 %v5896
  %v7718 = vunpack.c.h.b16 %v5896
  %v7719 = vunpack.c.l.b16 %v5897
  %v7720 = vunpack.c.h.b16 %v5897
  %v7721 = vunpack.c.l.b16 %v5898
  %v7722 = vunpack.c.h.b16 %v5898
  %v7723 = vunpack.c.l.b16 %v5899
  %v7724 = vunpack.c.h.b16 %v5899
  %v7725 = vunpack.c.l.b16 %v5900
  %v7726 = vunpack.c.h.b16 %v5900
  %v7727 = vunpack.c.l.b16 %v5901
  %v7728 = vunpack.c.h.b16 %v5901
  %v7729 = vunpack.c.l.b16 %v5902
  %v7730 = vunpack.c.h.b16 %v5902
  %v7731 = vunpack.c.l.b16 %v5903
  %v7732 = vunpack.c.h.b16 %v5903
  %v7733 = vunpack.c.l.b16 %v5904
  %v7734 = vunpack.c.h.b16 %v5904
  %v7735 = vunpack.c.l.b16 %v5905
  %v7736 = vunpack.c.h.b16 %v5905
  %v7737 = vunpack.c.l.b16 %v5906
  %v7738 = vunpack.c.h.b16 %v5906
  %v7739 = vunpack.c.l.b16 %v5907
  %v7740 = vunpack.c.h.b16 %v5907
  %v7741 = vunpack.c.l.b16 %v5908
  %v7742 = vunpack.c.h.b16 %v5908
  %v7743 = vunpack.c.l.b16 %v5909
  %v7744 = vunpack.c.h.b16 %v5909
  %v7745 = vunpack.c.l.b16 %v5910
  %v7746 = vunpack.c.h.b16 %v5910
  %v7747 = vunpack.c.l.b16 %v5911
  %v7748 = vunpack.c.h.b16 %v5911
  %v7749 = vunpack.c.l.b16 %v5912
  %v7750 = vunpack.c.h.b16 %v5912
  %v7751 = vunpack.c.l.b16 %v5913
  %v7752 = vunpack.c.h.b16 %v5913
  %v7753 = vunpack.c.l.b16 %v5914
  %v7754 = vunpack.c.h.b16 %v5914
  %v7755 = vunpack.c.l.b16 %v5915
  %v7756 = vunpack.c.h.b16 %v5915
  %v7757 = vunpack.c.l.b16 %v5916
  %v7758 = vunpack.c.h.b16 %v5916
  %v7759 = vunpack.c.l.b16 %v5917
  %v7760 = vunpack.c.h.b16 %v5917
  %v7761 = vunpack.c.l.b16 %v5918
  %v7762 = vunpack.c.h.b16 %v5918
  %v7763 = vunpack.c.l.b16 %v5919
  %v7764 = vunpack.c.h.b16 %v5919
  %v7765 = vunpack.c.l.b16 %v5920
  %v7766 = vunpack.c.h.b16 %v5920
  %v7767 = vunpack.c.l.b16 %v5921
  %v7768 = vunpack.c.h.b16 %v5921
  %v7769 = vunpack.c.l.b16 %v5922
  %v7770 = vunpack.c.h.b16 %v5922
  %v7771 = vunpack.c.l.b16 %v5923
  %v7772 = vunpack.c.h.b16 %v5923
  %v7773 = vunpack.c.l.b16 %v5924
  %v7774 = vunpack.c.h.b16 %v5924
  %v7775 = vunpack.c.l.b16 %v5925
  %v7776 = vunpack.c.h.b16 %v5925
  %v7777 = vunpack.c.l.b16 %v5926
  %v7778 = vunpack.c.h.b16 %v5926
  %v7779 = vunpack.c.l.b16 %v5927
  %v7780 = vunpack.c.h.b16 %v5927
  %v7781 = vunpack.c.l.b16 %v5928
  %v7782 = vunpack.c.h.b16 %v5928
  %v7783 = vunpack.c.l.b16 %v5929
  %v7784 = vunpack.c.h.b16 %v5929
  %v7785 = vunpack.c.l.b16 %v5930
  %v7786 = vunpack.c.h.b16 %v5930
  %v7787 = vunpack.c.l.b16 %v5931
  %v7788 = vunpack.c.h.b16 %v5931
  %v7789 = vunpack.c.l.b16 %v5932
  %v7790 = vunpack.c.h.b16 %v5932
  %v7791 = vunpack.c.l.b16 %v5933
  %v7792 = vunpack.c.h.b16 %v5933
  %v7793 = vunpack.c.l.b16 %v5934
  %v7794 = vunpack.c.h.b16 %v5934
  %v7795 = vunpack.c.l.b16 %v5935
  %v7796 = vunpack.c.h.b16 %v5935
  %v7797 = vunpack.c.l.b16 %v5936
  %v7798 = vunpack.c.h.b16 %v5936
  %v7799 = vunpack.c.l.b16 %v5937
  %v7800 = vunpack.c.h.b16 %v5937
  %v7801 = vunpack.c.l.b16 %v5938
  %v7802 = vunpack.c.h.b16 %v5938
  %v7803 = vunpack.c.l.b16 %v5939
  %v7804 = vunpack.c.h.b16 %v5939
  %v7805 = vunpack.c.l.b16 %v5940
  %v7806 = vunpack.c.h.b16 %v5940
  %v7807 = vunpack.c.l.b16 %v5941
  %v7808 = vunpack.c.h.b16 %v5941
  %v7809 = vunpack.c.l.b16 %v5942
  %v7810 = vunpack.c.h.b16 %v5942
  %v7811 = vunpack.c.l.b16 %v5943
  %v7812 = vunpack.c.h.b16 %v5943
  %v7813 = vunpack.c.l.b16 %v5944
  %v7814 = vunpack.c.h.b16 %v5944
  %v7815 = vunpack.c.l.b16 %v5945
  %v7816 = vunpack.c.h.b16 %v5945
  %v7817 = vunpack.c.l.b16 %v5946
  %v7818 = vunpack.c.h.b16 %v5946
  %v7819 = vunpack.c.l.b16 %v5947
  %v7820 = vunpack.c.h.b16 %v5947
  %v7821 = vunpack.c.l.b16 %v5948
  %v7822 = vunpack.c.h.b16 %v5948
  %v7823 = vunpack.c.l.b16 %v5949
  %v7824 = vunpack.c.h.b16 %v5949
  %v7825 = vunpack.c.l.b16 %v5950
  %v7826 = vunpack.c.h.b16 %v5950
  %v7827 = vunpack.c.l.b16 %v5951
  %v7828 = vunpack.c.h.b16 %v5951
  %v7829 = vunpack.c.l.b16 %v5952
  %v7830 = vunpack.c.h.b16 %v5952
  %v7831 = vunpack.c.l.b16 %v5953
  %v7832 = vunpack.c.h.b16 %v5953
  %v7833 = vunpack.c.l.b16 %v5954
  %v7834 = vunpack.c.h.b16 %v5954
  %v7835 = vunpack.c.l.b16 %v5955
  %v7836 = vunpack.c.h.b16 %v5955
  %v7837 = vunpack.c.l.b16 %v5956
  %v7838 = vunpack.c.h.b16 %v5956
  %v7839 = vunpack.c.l.b16 %v5957
  %v7840 = vunpack.c.h.b16 %v5957
  %v7841 = vunpack.c.l.b16 %v5958
  %v7842 = vunpack.c.h.b16 %v5958
  %v7843 = vunpack.c.l.b16 %v5959
  %v7844 = vunpack.c.h.b16 %v5959
  %v7845 = vunpack.c.l.b16 %v5960
  %v7846 = vunpack.c.h.b16 %v5960
  %v7847 = vunpack.c.l.b16 %v5961
  %v7848 = vunpack.c.h.b16 %v5961
  %v7849 = vunpack.c.l.b16 %v5962
  %v7850 = vunpack.c.h.b16 %v5962
  %v7851 = vunpack.c.l.b16 %v5963
  %v7852 = vunpack.c.h.b16 %v5963
  %v7853 = vunpack.c.l.b16 %v5964
  %v7854 = vunpack.c.h.b16 %v5964
  %v7855 = vunpack.c.l.b16 %v5965
  %v7856 = vunpack.c.h.b16 %v5965
  %v7857 = vunpack.c.l.b16 %v5966
  %v7858 = vunpack.c.h.b16 %v5966
  %v7859 = vunpack.c.l.b16 %v5967
  %v7860 = vunpack.c.h.b16 %v5967
  %v7861 = vunpack.c.l.b16 %v5968
  %v7862 = vunpack.c.h.b16 %v5968
  %v7863 = vunpack.c.l.b16 %v5969
  %v7864 = vunpack.c.h.b16 %v5969
  %v7865 = vunpack.c.l.b16 %v5970
  %v7866 = vunpack.c.h.b16 %v5970
  %v7867 = vunpack.c.l.b16 %v5971
  %v7868 = vunpack.c.h.b16 %v5971
  %v7869 = vunpack.c.l.b16 %v5972
  %v7870 = vunpack.c.h.b16 %v5972
  %v7871 = vunpack.c.l.b16 %v5973
  %v7872 = vunpack.c.h.b16 %v5973
  %v7873 = vunpack.c.l.b16 %v5974
  %v7874 = vunpack.c.h.b16 %v5974
  %v7875 = vunpack.c.l.b16 %v5975
  %v7876 = vunpack.c.h.b16 %v5975
  %v7877 = vunpack.c.l.b16 %v5976
  %v7878 = vunpack.c.h.b16 %v5976
  %v7879 = vunpack.c.l.b16 %v5977
  %v7880 = vunpack.c.h.b16 %v5977
  %v7881 = vunpack.c.l.b16 %v5978
  %v7882 = vunpack.c.h.b16 %v5978
  %v7883 = vunpack.c.l.b16 %v5979
  %v7884 = vunpack.c.h.b16 %v5979
  %v7885 = vunpack.c.l.b16 %v5980
  %v7886 = vunpack.c.h.b16 %v5980
  %v7887 = vunpack.c.l.b16 %v5981
  %v7888 = vunpack.c.h.b16 %v5981
  %v7889 = vunpack.c.l.b16 %v5982
  %v7890 = vunpack.c.h.b16 %v5982
  %v7891 = vunpack.c.l.b16 %v5983
  %v7892 = vunpack.c.h.b16 %v5983
  %v7893 = vunpack.c.l.b16 %v5984
  %v7894 = vunpack.c.h.b16 %v5984
  %v7895 = vunpack.c.l.b16 %v5985
  %v7896 = vunpack.c.h.b16 %v5985
  %v7897 = vunpack.c.l.b16 %v5986
  %v7898 = vunpack.c.h.b16 %v5986
  %v7899 = vunpack.c.l.b16 %v5987
  %v7900 = vunpack.c.h.b16 %v5987
  %v7901 = vunpack.c.l.b16 %v5988
  %v7902 = vunpack.c.h.b16 %v5988
  %v7903 = vunpack.c.l.b16 %v5989
  %v7904 = vunpack.c.h.b16 %v5989
  %v7905 = vunpack.c.l.b16 %v5990
  %v7906 = vunpack.c.h.b16 %v5990
  %v7907 = vunpack.c.l.b16 %v5991
  %v7908 = vunpack.c.h.b16 %v5991
  %v7909 = vunpack.c.l.b16 %v5992
  %v7910 = vunpack.c.h.b16 %v5992
  %v7911 = vunpack.c.l.b16 %v5993
  %v7912 = vunpack.c.h.b16 %v5993
  %v7913 = vunpack.c.l.b16 %v5994
  %v7914 = vunpack.c.h.b16 %v5994
  %v7915 = vunpack.c.l.b16 %v5995
  %v7916 = vunpack.c.h.b16 %v5995
  %v7917 = vunpack.c.l.b16 %v5996
  %v7918 = vunpack.c.h.b16 %v5996
  %v7919 = vunpack.c.l.b16 %v5997
  %v7920 = vunpack.c.h.b16 %v5997
  %v7921 = vunpack.c.l.b16 %v5998
  %v7922 = vunpack.c.h.b16 %v5998
  %v7923 = vunpack.c.l.b16 %v5999
  %v7924 = vunpack.c.h.b16 %v5999
  %v7925 = vunpack.c.l.b16 %v6000
  %v7926 = vunpack.c.h.b16 %v6000
  %v7927 = vunpack.c.l.b16 %v6001
  %v7928 = vunpack.c.h.b16 %v6001
  %v7929 = vunpack.c.l.b16 %v6002
  %v7930 = vunpack.c.h.b16 %v6002
  %v7931 = vunpack.c.l.b16 %v6003
  %v7932 = vunpack.c.h.b16 %v6003
  %v7933 = vunpack.c.l.b16 %v6004
  %v7934 = vunpack.c.h.b16 %v6004
  %v7935 = vunpack.c.l.b16 %v6005
  %v7936 = vunpack.c.h.b16 %v6005
  %v7937 = vunpack.c.l.b16 %v6006
  %v7938 = vunpack.c.h.b16 %v6006
  %v7939 = vunpack.c.l.b16 %v6007
  %v7940 = vunpack.c.h.b16 %v6007
  %v7941 = vunpack.c.l.b16 %v6008
  %v7942 = vunpack.c.h.b16 %v6008
  %v7943 = vunpack.c.l.b16 %v6009
  %v7944 = vunpack.c.h.b16 %v6009
  %v7945 = vunpack.c.l.b16 %v6010
  %v7946 = vunpack.c.h.b16 %v6010
  %v7947 = vunpack.c.l.b16 %v6011
  %v7948 = vunpack.c.h.b16 %v6011
  %v7949 = vunpack.c.l.b16 %v6012
  %v7950 = vunpack.c.h.b16 %v6012
  %v7951 = vunpack.c.l.b16 %v6013
  %v7952 = vunpack.c.h.b16 %v6013
  %v7953 = vunpack.c.l.b16 %v6014
  %v7954 = vunpack.c.h.b16 %v6014
  %v7955 = vunpack.c.l.b16 %v6015
  %v7956 = vunpack.c.h.b16 %v6015
  %v7957 = vunpack.c.l.b16 %v6016
  %v7958 = vunpack.c.h.b16 %v6016
  %v7959 = vunpack.c.l.b16 %v6017
  %v7960 = vunpack.c.h.b16 %v6017
  %v7961 = vunpack.c.l.b16 %v6018
  %v7962 = vunpack.c.h.b16 %v6018
  %v7963 = vpack.c.b16 %v6685, %v6667
  %v7964 = vpack.c.b16 %v6686, %v6668
  %v7965 = vpack.c.b16 %v6687, %v6669
  %v7966 = vpack.c.b16 %v6688, %v6670
  %v7967 = vpack.c.b16 %v6689, %v6671
  %v7968 = vpack.c.b16 %v6690, %v6672
  %v7969 = vpack.c.b16 %v6691, %v6673
  %v7970 = vpack.c.b16 %v6692, %v6674
  %v7971 = vpack.c.b16 %v6693, %v6675
  %v7972 = vpack.c.b16 %v6694, %v6676
  %v7973 = vpack.c.b16 %v6695, %v6677
  %v7974 = vpack.c.b16 %v6696, %v6678
  %v7975 = vpack.c.b16 %v6697, %v6679
  %v7976 = vpack.c.b16 %v6698, %v6680
  %v7977 = vpack.c.b16 %v6699, %v6681
  %v7978 = vpack.c.b16 %v6700, %v6682
  %v7979 = vpack.c.b16 %v6701, %v6683
  %v7980 = vpack.c.b16 %v6702, %v6684
  %v7981 = vpack.c.b16 %v6721, %v6703
  %v7982 = vpack.c.b16 %v6722, %v6704
  %v7983 = vpack.c.b16 %v6723, %v6705
  %v7984 = vpack.c.b16 %v6724, %v6706
  %v7985 = vpack.c.b16 %v6725, %v6707
  %v7986 = vpack.c.b16 %v6726, %v6708
  %v7987 = vpack.c.b16 %v6727, %v6709
  %v7988 = vpack.c.b16 %v6728, %v6710
  %v7989 = vpack.c.b16 %v6729, %v6711
  %v7990 = vpack.c.b16 %v6730, %v6712
  %v7991 = vpack.c.b16 %v6731, %v6713
  %v7992 = vpack.c.b16 %v6732, %v6714
  %v7993 = vpack.c.b16 %v6733, %v6715
  %v7994 = vpack.c.b16 %v6734, %v6716
  %v7995 = vpack.c.b16 %v6735, %v6717
  %v7996 = vpack.c.b16 %v6736, %v6718
  %v7997 = vpack.c.b16 %v6737, %v6719
  %v7998 = vpack.c.b16 %v6738, %v6720
  %v7999 = vpack.c.b16 %v6757, %v6739
  %v8000 = vpack.c.b16 %v6758, %v6740
  %v8001 = vpack.c.b16 %v6759, %v6741
  %v8002 = vpack.c.b16 %v6760, %v6742
  %v8003 = vpack.c.b16 %v6761, %v6743
  %v8004 = vpack.c.b16 %v6762, %v6744
  %v8005 = vpack.c.b16 %v6763, %v6745
  %v8006 = vpack.c.b16 %v6764, %v6746
  %v8007 = vpack.c.b16 %v6765, %v6747
  %v8008 = vpack.c.b16 %v6766, %v6748
  %v8009 = vpack.c.b16 %v6767, %v6749
  %v8010 = vpack.c.b16 %v6768, %v6750
  %v8011 = vpack.c.b16 %v6769, %v6751
  %v8012 = vpack.c.b16 %v6770, %v6752
  %v8013 = vpack.c.b16 %v6771, %v6753
  %v8014 = vpack.c.b16 %v6772, %v6754
  %v8015 = vpack.c.b16 %v6773, %v6755
  %v8016 = vpack.c.b16 %v6774, %v6756
  %v8017 = vpack.c.b16 %v6793, %v6775
  %v8018 = vpack.c.b16 %v6794, %v6776
  %v8019 = vpack.c.b16 %v6795, %v6777
  %v8020 = vpack.c.b16 %v6796, %v6778
  %v8021 = vpack.c.b16 %v6797, %v6779
  %v8022 = vpack.c.b16 %v6798, %v6780
  %v8023 = vpack.c.b16 %v6799, %v6781
  %v8024 = vpack.c.b16 %v6800, %v6782
  %v8025 = vpack.c.b16 %v6801, %v6783
  %v8026 = vpack.c.b16 %v6802, %v6784
  %v8027 = vpack.c.b16 %v6803, %v6785
  %v8028 = vpack.c.b16 %v6804, %v6786
  %v8029 = vpack.c.b16 %v6805, %v6787
  %v8030 = vpack.c.b16 %v6806, %v6788
  %v8031 = vpack.c.b16 %v6807, %v6789
  %v8032 = vpack.c.b16 %v6808, %v6790
  %v8033 = vpack.c.b16 %v6809, %v6791
  %v8034 = vpack.c.b16 %v6810, %v6792
  %v8035 = vpack.c.b16 %v6829, %v6811
  %v8036 = vpack.c.b16 %v6830, %v6812
  %v8037 = vpack.c.b16 %v6831, %v6813
  %v8038 = vpack.c.b16 %v6832, %v6814
  %v8039 = vpack.c.b16 %v6833, %v6815
  %v8040 = vpack.c.b16 %v6834, %v6816
  %v8041 = vpack.c.b16 %v6835, %v6817
  %v8042 = vpack.c.b16 %v6836, %v6818
  %v8043 = vpack.c.b16 %v6837, %v6819
  %v8044 = vpack.c.b16 %v6838, %v6820
  %v8045 = vpack.c.b16 %v6839, %v6821
  %v8046 = vpack.c.b16 %v6840, %v6822
  %v8047 = vpack.c.b16 %v6841, %v6823
  %v8048 = vpack.c.b16 %v6842, %v6824
  %v8049 = vpack.c.b16 %v6843, %v6825
  %v8050 = vpack.c.b16 %v6844, %v6826
  %v8051 = vpack.c.b16 %v6845, %v6827
  %v8052 = vpack.c.b16 %v6846, %v6828
  %v8053 = vpack.c.b16 %v6865, %v6847
  %v8054 = vpack.c.b16 %v6866, %v6848
  %v8055 = vpack.c.b16 %v6867, %v6849
  %v8056 = vpack.c.b16 %v6868, %v6850
  %v8057 = vpack.c.b16 %v6869, %v6851
  %v8058 = vpack.c.b16 %v6870, %v6852
  %v8059 = vpack.c.b16 %v6871, %v6853
  %v8060 = vpack.c.b16 %v6872, %v6854
  %v8061 = vpack.c.b16 %v6873, %v6855
  %v8062 = vpack.c.b16 %v6874, %v6856
  %v8063 = vpack.c.b16 %v6875, %v6857
  %v8064 = vpack.c.b16 %v6876, %v6858
  %v8065 = vpack.c.b16 %v6877, %v6859
  %v8066 = vpack.c.b16 %v6878, %v6860
  %v8067 = vpack.c.b16 %v6879, %v6861
  %v8068 = vpack.c.b16 %v6880, %v6862
  %v8069 = vpack.c.b16 %v6881, %v6863
  %v8070 = vpack.c.b16 %v6882, %v6864
  %v8071 = vpack.c.b16 %v6901, %v6883
  %v8072 = vpack.c.b16 %v6902, %v6884
  %v8073 = vpack.c.b16 %v6903, %v6885
  %v8074 = vpack.c.b16 %v6904, %v6886
  %v8075 = vpack.c.b16 %v6905, %v6887
  %v8076 = vpack.c.b16 %v6906, %v6888
  %v8077 = vpack.c.b16 %v6907, %v6889
  %v8078 = vpack.c.b16 %v6908, %v6890
  %v8079 = vpack.c.b16 %v6909, %v6891
  %v8080 = vpack.c.b16 %v6910, %v6892
  %v8081 = vpack.c.b16 %v6911, %v6893
  %v8082 = vpack.c.b16 %v6912, %v6894
  %v8083 = vpack.c.b16 %v6913, %v6895
  %v8084 = vpack.c.b16 %v6914, %v6896
  %v8085 = vpack.c.b16 %v6915, %v6897
  %v8086 = vpack.c.b16 %v6916, %v6898
  %v8087 = vpack.c.b16 %v6917, %v6899
  %v8088 = vpack.c.b16 %v6918, %v6900
  %v8089 = vpack.c.b16 %v6937, %v6919
  %v8090 = vpack.c.b16 %v6938, %v6920
  %v8091 = vpack.c.b16 %v6939, %v6921
  %v8092 = vpack.c.b16 %v6940, %v6922
  %v8093 = vpack.c.b16 %v6941, %v6923
  %v8094 = vpack.c.b16 %v6942, %v6924
  %v8095 = vpack.c.b16 %v6943, %v6925
  %v8096 = vpack.c.b16 %v6944, %v6926
  %v8097 = vpack.c.b16 %v6945, %v6927
  %v8098 = vpack.c.b16 %v6946, %v6928
  %v8099 = vpack.c.b16 %v6947, %v6929
  %v8100 = vpack.c.b16 %v6948, %v6930
  %v8101 = vpack.c.b16 %v6949, %v6931
  %v8102 = vpack.c.b16 %v6950, %v6932
  %v8103 = vpack.c.b16 %v6951, %v6933
  %v8104 = vpack.c.b16 %v6952, %v6934
  %v8105 = vpack.c.b16 %v6953, %v6935
  %v8106 = vpack.c.b16 %v6954, %v6936
  %v8107 = vpack.c.b16 %v6973, %v6955
  %v8108 = vpack.c.b16 %v6974, %v6956
  %v8109 = vpack.c.b16 %v6975, %v6957
  %v8110 = vpack.c.b16 %v6976, %v6958
  %v8111 = vpack.c.b16 %v6977, %v6959
  %v8112 = vpack.c.b16 %v6978, %v6960
  %v8113 = vpack.c.b16 %v6979, %v6961
  %v8114 = vpack.c.b16 %v6980, %v6962
  %v8115 = vpack.c.b16 %v6981, %v6963
  %v8116 = vpack.c.b16 %v6982, %v6964
  %v8117 = vpack.c.b16 %v6983, %v6965
  %v8118 = vpack.c.b16 %v6984, %v6966
  %v8119 = vpack.c.b16 %v6985, %v6967
  %v8120 = vpack.c.b16 %v6986, %v6968
  %v8121 = vpack.c.b16 %v6987, %v6969
  %v8122 = vpack.c.b16 %v6988, %v6970
  %v8123 = vpack.c.b16 %v6989, %v6971
  %v8124 = vpack.c.b16 %v6990, %v6972
  %v8125 = vpack.c.b16 %v7009, %v6991
  %v8126 = vpack.c.b16 %v7010, %v6992
  %v8127 = vpack.c.b16 %v7011, %v6993
  %v8128 = vpack.c.b16 %v7012, %v6994
  %v8129 = vpack.c.b16 %v7013, %v6995
  %v8130 = vpack.c.b16 %v7014, %v6996
  %v8131 = vpack.c.b16 %v7015, %v6997
  %v8132 = vpack.c.b16 %v7016, %v6998
  %v8133 = vpack.c.b16 %v7017, %v6999
  %v8134 = vpack.c.b16 %v7018, %v7000
  %v8135 = vpack.c.b16 %v7019, %v7001
  %v8136 = vpack.c.b16 %v7020, %v7002
  %v8137 = vpack.c.b16 %v7021, %v7003
  %v8138 = vpack.c.b16 %v7022, %v7004
  %v8139 = vpack.c.b16 %v7023, %v7005
  %v8140 = vpack.c.b16 %v7024, %v7006
  %v8141 = vpack.c.b16 %v7025, %v7007
  %v8142 = vpack.c.b16 %v7026, %v7008
  %v8143 = vpack.c.b16 %v7045, %v7027
  %v8144 = vpack.c.b16 %v7046, %v7028
  %v8145 = vpack.c.b16 %v7047, %v7029
  %v8146 = vpack.c.b16 %v7048, %v7030
  %v8147 = vpack.c.b16 %v7049, %v7031
  %v8148 = vpack.c.b16 %v7050, %v7032
  %v8149 = vpack.c.b16 %v7051, %v7033
  %v8150 = vpack.c.b16 %v7052, %v7034
  %v8151 = vpack.c.b16 %v7053, %v7035
  %v8152 = vpack.c.b16 %v7054, %v7036
  %v8153 = vpack.c.b16 %v7055, %v7037
  %v8154 = vpack.c.b16 %v7056, %v7038
  %v8155 = vpack.c.b16 %v7057, %v7039
  %v8156 = vpack.c.b16 %v7058, %v7040
  %v8157 = vpack.c.b16 %v7059, %v7041
  %v8158 = vpack.c.b16 %v7060, %v7042
  %v8159 = vpack.c.b16 %v7061, %v7043
  %v8160 = vpack.c.b16 %v7062, %v7044
  %v8161 = vpack.c.b16 %v7081, %v7063
  %v8162 = vpack.c.b16 %v7082, %v7064
  %v8163 = vpack.c.b16 %v7083, %v7065
  %v8164 = vpack.c.b16 %v7084, %v7066
  %v8165 = vpack.c.b16 %v7085, %v7067
  %v8166 = vpack.c.b16 %v7086, %v7068
  %v8167 = vpack.c.b16 %v7087, %v7069
  %v8168 = vpack.c.b16 %v7088, %v7070
  %v8169 = vpack.c.b16 %v7089, %v7071
  %v8170 = vpack.c.b16 %v7090, %v7072
  %v8171 = vpack.c.b16 %v7091, %v7073
  %v8172 = vpack.c.b16 %v7092, %v7074
  %v8173 = vpack.c.b16 %v7093, %v7075
  %v8174 = vpack.c.b16 %v7094, %v7076
  %v8175 = vpack.c.b16 %v7095, %v7077
  %v8176 = vpack.c.b16 %v7096, %v7078
  %v8177 = vpack.c.b16 %v7097, %v7079
  %v8178 = vpack.c.b16 %v7098, %v7080
  %v8179 = vpack.c.b16 %v7117, %v7099
  %v8180 = vpack.c.b16 %v7118, %v7100
  %v8181 = vpack.c.b16 %v7119, %v7101
  %v8182 = vpack.c.b16 %v7120, %v7102
  %v8183 = vpack.c.b16 %v7121, %v7103
  %v8184 = vpack.c.b16 %v7122, %v7104
  %v8185 = vpack.c.b16 %v7123, %v7105
  %v8186 = vpack.c.b16 %v7124, %v7106
  %v8187 = vpack.c.b16 %v7125, %v7107
  %v8188 = vpack.c.b16 %v7126, %v7108
  %v8189 = vpack.c.b16 %v7127, %v7109
  %v8190 = vpack.c.b16 %v7128, %v7110
  %v8191 = vpack.c.b16 %v7129, %v7111
  %v8192 = vpack.c.b16 %v7130, %v7112
  %v8193 = vpack.c.b16 %v7131, %v7113
  %v8194 = vpack.c.b16 %v7132, %v7114
  %v8195 = vpack.c.b16 %v7133, %v7115
  %v8196 = vpack.c.b16 %v7134, %v7116
  %v8197 = vpack.c.b16 %v7153, %v7135
  %v8198 = vpack.c.b16 %v7154, %v7136
  %v8199 = vpack.c.b16 %v7155, %v7137
  %v8200 = vpack.c.b16 %v7156, %v7138
  %v8201 = vpack.c.b16 %v7157, %v7139
  %v8202 = vpack.c.b16 %v7158, %v7140
  %v8203 = vpack.c.b16 %v7159, %v7141
  %v8204 = vpack.c.b16 %v7160, %v7142
  %v8205 = vpack.c.b16 %v7161, %v7143
  %v8206 = vpack.c.b16 %v7162, %v7144
  %v8207 = vpack.c.b16 %v7163, %v7145
  %v8208 = vpack.c.b16 %v7164, %v7146
  %v8209 = vpack.c.b16 %v7165, %v7147
  %v8210 = vpack.c.b16 %v7166, %v7148
  %v8211 = vpack.c.b16 %v7167, %v7149
  %v8212 = vpack.c.b16 %v7168, %v7150
  %v8213 = vpack.c.b16 %v7169, %v7151
  %v8214 = vpack.c.b16 %v7170, %v7152
  %v8215 = vpack.c.b16 %v7189, %v7171
  %v8216 = vpack.c.b16 %v7190, %v7172
  %v8217 = vpack.c.b16 %v7191, %v7173
  %v8218 = vpack.c.b16 %v7192, %v7174
  %v8219 = vpack.c.b16 %v7193, %v7175
  %v8220 = vpack.c.b16 %v7194, %v7176
  %v8221 = vpack.c.b16 %v7195, %v7177
  %v8222 = vpack.c.b16 %v7196, %v7178
  %v8223 = vpack.c.b16 %v7197, %v7179
  %v8224 = vpack.c.b16 %v7198, %v7180
  %v8225 = vpack.c.b16 %v7199, %v7181
  %v8226 = vpack.c.b16 %v7200, %v7182
  %v8227 = vpack.c.b16 %v7201, %v7183
  %v8228 = vpack.c.b16 %v7202, %v7184
  %v8229 = vpack.c.b16 %v7203, %v7185
  %v8230 = vpack.c.b16 %v7204, %v7186
  %v8231 = vpack.c.b16 %v7205, %v7187
  %v8232 = vpack.c.b16 %v7206, %v7188
  %v8233 = vpack.c.b16 %v7225, %v7207
  %v8234 = vpack.c.b16 %v7226, %v7208
  %v8235 = vpack.c.b16 %v7227, %v7209
  %v8236 = vpack.c.b16 %v7228, %v7210
  %v8237 = vpack.c.b16 %v7229, %v7211
  %v8238 = vpack.c.b16 %v7230, %v7212
  %v8239 = vpack.c.b16 %v7231, %v7213
  %v8240 = vpack.c.b16 %v7232, %v7214
  %v8241 = vpack.c.b16 %v7233, %v7215
  %v8242 = vpack.c.b16 %v7234, %v7216
  %v8243 = vpack.c.b16 %v7235, %v7217
  %v8244 = vpack.c.b16 %v7236, %v7218
  %v8245 = vpack.c.b16 %v7237, %v7219
  %v8246 = vpack.c.b16 %v7238, %v7220
  %v8247 = vpack.c.b16 %v7239, %v7221
  %v8248 = vpack.c.b16 %v7240, %v7222
  %v8249 = vpack.c.b16 %v7241, %v7223
  %v8250 = vpack.c.b16 %v7242, %v7224
  %v8251 = vpack.c.b16 %v7261, %v7243
  %v8252 = vpack.c.b16 %v7262, %v7244
  %v8253 = vpack.c.b16 %v7263, %v7245
  %v8254 = vpack.c.b16 %v7264, %v7246
  %v8255 = vpack.c.b16 %v7265, %v7247
  %v8256 = vpack.c.b16 %v7266, %v7248
  %v8257 = vpack.c.b16 %v7267, %v7249
  %v8258 = vpack.c.b16 %v7268, %v7250
  %v8259 = vpack.c.b16 %v7269, %v7251
  %v8260 = vpack.c.b16 %v7270, %v7252
  %v8261 = vpack.c.b16 %v7271, %v7253
  %v8262 = vpack.c.b16 %v7272, %v7254
  %v8263 = vpack.c.b16 %v7273, %v7255
  %v8264 = vpack.c.b16 %v7274, %v7256
  %v8265 = vpack.c.b16 %v7275, %v7257
  %v8266 = vpack.c.b16 %v7276, %v7258
  %v8267 = vpack.c.b16 %v7277, %v7259
  %v8268 = vpack.c.b16 %v7278, %v7260
  %v8269 = vpack.c.b16 %v7297, %v7279
  %v8270 = vpack.c.b16 %v7298, %v7280
  %v8271 = vpack.c.b16 %v7299, %v7281
  %v8272 = vpack.c.b16 %v7300, %v7282
  %v8273 = vpack.c.b16 %v7301, %v7283
  %v8274 = vpack.c.b16 %v7302, %v7284
  %v8275 = vpack.c.b16 %v7303, %v7285
  %v8276 = vpack.c.b16 %v7304, %v7286
  %v8277 = vpack.c.b16 %v7305, %v7287
  %v8278 = vpack.c.b16 %v7306, %v7288
  %v8279 = vpack.c.b16 %v7307, %v7289
  %v8280 = vpack.c.b16 %v7308, %v7290
  %v8281 = vpack.c.b16 %v7309, %v7291
  %v8282 = vpack.c.b16 %v7310, %v7292
  %v8283 = vpack.c.b16 %v7311, %v7293
  %v8284 = vpack.c.b16 %v7312, %v7294
  %v8285 = vpack.c.b16 %v7313, %v7295
  %v8286 = vpack.c.b16 %v7314, %v7296
  %v8287 = vpack.c.b16 %v7333, %v7315
  %v8288 = vpack.c.b16 %v7334, %v7316
  %v8289 = vpack.c.b16 %v7335, %v7317
  %v8290 = vpack.c.b16 %v7336, %v7318
  %v8291 = vpack.c.b16 %v7337, %v7319
  %v8292 = vpack.c.b16 %v7338, %v7320
  %v8293 = vpack.c.b16 %v7339, %v7321
  %v8294 = vpack.c.b16 %v7340, %v7322
  %v8295 = vpack.c.b16 %v7341, %v7323
  %v8296 = vpack.c.b16 %v7342, %v7324
  %v8297 = vpack.c.b16 %v7343, %v7325
  %v8298 = vpack.c.b16 %v7344, %v7326
  %v8299 = vpack.c.b16 %v7345, %v7327
  %v8300 = vpack.c.b16 %v7346, %v7328
  %v8301 = vpack.c.b16 %v7347, %v7329
  %v8302 = vpack.c.b16 %v7348, %v7330
  %v8303 = vpack.c.b16 %v7349, %v7331
  %v8304 = vpack.c.b16 %v7350, %v7332
  %v8305 = vpack.c.b16 %v7369, %v7351
  %v8306 = vpack.c.b16 %v7370, %v7352
  %v8307 = vpack.c.b16 %v7371, %v7353
  %v8308 = vpack.c.b16 %v7372, %v7354
  %v8309 = vpack.c.b16 %v7373, %v7355
  %v8310 = vpack.c.b16 %v7374, %v7356
  %v8311 = vpack.c.b16 %v7375, %v7357
  %v8312 = vpack.c.b16 %v7376, %v7358
  %v8313 = vpack.c.b16 %v7377, %v7359
  %v8314 = vpack.c.b16 %v7378, %v7360
  %v8315 = vpack.c.b16 %v7379, %v7361
  %v8316 = vpack.c.b16 %v7380, %v7362
  %v8317 = vpack.c.b16 %v7381, %v7363
  %v8318 = vpack.c.b16 %v7382, %v7364
  %v8319 = vpack.c.b16 %v7383, %v7365
  %v8320 = vpack.c.b16 %v7384, %v7366
  %v8321 = vpack.c.b16 %v7385, %v7367
  %v8322 = vpack.c.b16 %v7386, %v7368
  %v8323 = vpack.c.b16 %v7405, %v7387
  %v8324 = vpack.c.b16 %v7406, %v7388
  %v8325 = vpack.c.b16 %v7407, %v7389
  %v8326 = vpack.c.b16 %v7408, %v7390
  %v8327 = vpack.c.b16 %v7409, %v7391
  %v8328 = vpack.c.b16 %v7410, %v7392
  %v8329 = vpack.c.b16 %v7411, %v7393
  %v8330 = vpack.c.b16 %v7412, %v7394
  %v8331 = vpack.c.b16 %v7413, %v7395
  %v8332 = vpack.c.b16 %v7414, %v7396
  %v8333 = vpack.c.b16 %v7415, %v7397
  %v8334 = vpack.c.b16 %v7416, %v7398
  %v8335 = vpack.c.b16 %v7417, %v7399
  %v8336 = vpack.c.b16 %v7418, %v7400
  %v8337 = vpack.c.b16 %v7419, %v7401
  %v8338 = vpack.c.b16 %v7420, %v7402
  %v8339 = vpack.c.b16 %v7421, %v7403
  %v8340 = vpack.c.b16 %v7422, %v7404
  %v8341 = vpack.c.b16 %v7441, %v7423
  %v8342 = vpack.c.b16 %v7442, %v7424
  %v8343 = vpack.c.b16 %v7443, %v7425
  %v8344 = vpack.c.b16 %v7444, %v7426
  %v8345 = vpack.c.b16 %v7445, %v7427
  %v8346 = vpack.c.b16 %v7446, %v7428
  %v8347 = vpack.c.b16 %v7447, %v7429
  %v8348 = vpack.c.b16 %v7448, %v7430
  %v8349 = vpack.c.b16 %v7449, %v7431
  %v8350 = vpack.c.b16 %v7450, %v7432
  %v8351 = vpack.c.b16 %v7451, %v7433
  %v8352 = vpack.c.b16 %v7452, %v7434
  %v8353 = vpack.c.b16 %v7453, %v7435
  %v8354 = vpack.c.b16 %v7454, %v7436
  %v8355 = vpack.c.b16 %v7455, %v7437
  %v8356 = vpack.c.b16 %v7456, %v7438
  %v8357 = vpack.c.b16 %v7457, %v7439
  %v8358 = vpack.c.b16 %v7458, %v7440
  %v8359 = vpack.c.b16 %v7477, %v7459
  %v8360 = vpack.c.b16 %v7478, %v7460
  %v8361 = vpack.c.b16 %v7479, %v7461
  %v8362 = vpack.c.b16 %v7480, %v7462
  %v8363 = vpack.c.b16 %v7481, %v7463
  %v8364 = vpack.c.b16 %v7482, %v7464
  %v8365 = vpack.c.b16 %v7483, %v7465
  %v8366 = vpack.c.b16 %v7484, %v7466
  %v8367 = vpack.c.b16 %v7485, %v7467
  %v8368 = vpack.c.b16 %v7486, %v7468
  %v8369 = vpack.c.b16 %v7487, %v7469
  %v8370 = vpack.c.b16 %v7488, %v7470
  %v8371 = vpack.c.b16 %v7489, %v7471
  %v8372 = vpack.c.b16 %v7490, %v7472
  %v8373 = vpack.c.b16 %v7491, %v7473
  %v8374 = vpack.c.b16 %v7492, %v7474
  %v8375 = vpack.c.b16 %v7493, %v7475
  %v8376 = vpack.c.b16 %v7494, %v7476
  %v8377 = vpack.c.b16 %v7513, %v7495
  %v8378 = vpack.c.b16 %v7514, %v7496
  %v8379 = vpack.c.b16 %v7515, %v7497
  %v8380 = vpack.c.b16 %v7516, %v7498
  %v8381 = vpack.c.b16 %v7517, %v7499
  %v8382 = vpack.c.b16 %v7518, %v7500
  %v8383 = vpack.c.b16 %v7519, %v7501
  %v8384 = vpack.c.b16 %v7520, %v7502
  %v8385 = vpack.c.b16 %v7521, %v7503
  %v8386 = vpack.c.b16 %v7522, %v7504
  %v8387 = vpack.c.b16 %v7523, %v7505
  %v8388 = vpack.c.b16 %v7524, %v7506
  %v8389 = vpack.c.b16 %v7525, %v7507
  %v8390 = vpack.c.b16 %v7526, %v7508
  %v8391 = vpack.c.b16 %v7527, %v7509
  %v8392 = vpack.c.b16 %v7528, %v7510
  %v8393 = vpack.c.b16 %v7529, %v7511
  %v8394 = vpack.c.b16 %v7530, %v7512
  %v8395 = vpack.c.b16 %v7549, %v7531
  %v8396 = vpack.c.b16 %v7550, %v7532
  %v8397 = vpack.c.b16 %v7551, %v7533
  %v8398 = vpack.c.b16 %v7552, %v7534
  %v8399 = vpack.c.b16 %v7553, %v7535
  %v8400 = vpack.c.b16 %v7554, %v7536
  %v8401 = vpack.c.b16 %v7555, %v7537
  %v8402 = vpack.c.b16 %v7556, %v7538
  %v8403 = vpack.c.b16 %v7557, %v7539
  %v8404 = vpack.c.b16 %v7558, %v7540
  %v8405 = vpack.c.b16 %v7559, %v7541
  %v8406 = vpack.c.b16 %v7560, %v7542
  %v8407 = vpack.c.b16 %v7561, %v7543
  %v8408 = vpack.c.b16 %v7562, %v7544
  %v8409 = vpack.c.b16 %v7563, %v7545
  %v8410 = vpack.c.b16 %v7564, %v7546
  %v8411 = vpack.c.b16 %v7565, %v7547
  %v8412 = vpack.c.b16 %v7566, %v7548
  %v8413 = vpack.c.b16 %v7585, %v7567
  %v8414 = vpack.c.b16 %v7586, %v7568
  %v8415 = vpack.c.b16 %v7587, %v7569
  %v8416 = vpack.c.b16 %v7588, %v7570
  %v8417 = vpack.c.b16 %v7589, %v7571
  %v8418 = vpack.c.b16 %v7590, %v7572
  %v8419 = vpack.c.b16 %v7591, %v7573
  %v8420 = vpack.c.b16 %v7592, %v7574
  %v8421 = vpack.c.b16 %v7593, %v7575
  %v8422 = vpack.c.b16 %v7594, %v7576
  %v8423 = vpack.c.b16 %v7595, %v7577
  %v8424 = vpack.c.b16 %v7596, %v7578
  %v8425 = vpack.c.b16 %v7597, %v7579
  %v8426 = vpack.c.b16 %v7598, %v7580
  %v8427 = vpack.c.b16 %v7599, %v7581
  %v8428 = vpack.c.b16 %v7600, %v7582
  %v8429 = vpack.c.b16 %v7601, %v7583
  %v8430 = vpack.c.b16 %v7602, %v7584
  %v8431 = vpack.c.b16 %v7621, %v7603
  %v8432 = vpack.c.b16 %v7622, %v7604
  %v8433 = vpack.c.b16 %v7623, %v7605
  %v8434 = vpack.c.b16 %v7624, %v7606
  %v8435 = vpack.c.b16 %v7625, %v7607
  %v8436 = vpack.c.b16 %v7626, %v7608
  %v8437 = vpack.c.b16 %v7627, %v7609
  %v8438 = vpack.c.b16 %v7628, %v7610
  %v8439 = vpack.c.b16 %v7629, %v7611
  %v8440 = vpack.c.b16 %v7630, %v7612
  %v8441 = vpack.c.b16 %v7631, %v7613
  %v8442 = vpack.c.b16 %v7632, %v7614
  %v8443 = vpack.c.b16 %v7633, %v7615
  %v8444 = vpack.c.b16 %v7634, %v7616
  %v8445 = vpack.c.b16 %v7635, %v7617
  %v8446 = vpack.c.b16 %v7636, %v7618
  %v8447 = vpack.c.b16 %v7637, %v7619
  %v8448 = vpack.c.b16 %v7638, %v7620
  %v8449 = vpack.c.b16 %v7657, %v7639
  %v8450 = vpack.c.b16 %v7658, %v7640
  %v8451 = vpack.c.b16 %v7659, %v7641
  %v8452 = vpack.c.b16 %v7660, %v7642
  %v8453 = vpack.c.b16 %v7661, %v7643
  %v8454 = vpack.c.b16 %v7662, %v7644
  %v8455 = vpack.c.b16 %v7663, %v7645
  %v8456 = vpack.c.b16 %v7664, %v7646
  %v8457 = vpack.c.b16 %v7665, %v7647
  %v8458 = vpack.c.b16 %v7666, %v7648
  %v8459 = vpack.c.b16 %v7667, %v7649
  %v8460 = vpack.c.b16 %v7668, %v7650
  %v8461 = vpack.c.b16 %v7669, %v7651
  %v8462 = vpack.c.b16 %v7670, %v7652
  %v8463 = vpack.c.b16 %v7671, %v7653
  %v8464 = vpack.c.b16 %v7672, %v7654
  %v8465 = vpack.c.b16 %v7673, %v7655
  %v8466 = vpack.c.b16 %v7674, %v7656
  %v8467 = vpack.c.b16 %v7693, %v7675
  %v8468 = vpack.c.b16 %v7694, %v7676
  %v8469 = vpack.c.b16 %v7695, %v7677
  %v8470 = vpack.c.b16 %v7696, %v7678
  %v8471 = vpack.c.b16 %v7697, %v7679
  %v8472 = vpack.c.b16 %v7698, %v7680
  %v8473 = vpack.c.b16 %v7699, %v7681
  %v8474 = vpack.c.b16 %v7700, %v7682
  %v8475 = vpack.c.b16 %v7701, %v7683
  %v8476 = vpack.c.b16 %v7702, %v7684
  %v8477 = vpack.c.b16 %v7703, %v7685
  %v8478 = vpack.c.b16 %v7704, %v7686
  %v8479 = vpack.c.b16 %v7705, %v7687
  %v8480 = vpack.c.b16 %v7706, %v7688
  %v8481 = vpack.c.b16 %v7707, %v7689
  %v8482 = vpack.c.b16 %v7708, %v7690
  %v8483 = vpack.c.b16 %v7709, %v7691
  %v8484 = vpack.c.b16 %v7710, %v7692
  %v8485 = vpack.c.b16 %v7729, %v7711
  %v8486 = vpack.c.b16 %v7730, %v7712
  %v8487 = vpack.c.b16 %v7731, %v7713
  %v8488 = vpack.c.b16 %v7732, %v7714
  %v8489 = vpack.c.b16 %v7733, %v7715
  %v8490 = vpack.c.b16 %v7734, %v7716
  %v8491 = vpack.c.b16 %v7735, %v7717
  %v8492 = vpack.c.b16 %v7736, %v7718
  %v8493 = vpack.c.b16 %v7737, %v7719
  %v8494 = vpack.c.b16 %v7738, %v7720
  %v8495 = vpack.c.b16 %v7739, %v7721
  %v8496 = vpack.c.b16 %v7740, %v7722
  %v8497 = vpack.c.b16 %v7741, %v7723
  %v8498 = vpack.c.b16 %v7742, %v7724
  %v8499 = vpack.c.b16 %v7743, %v7725
  %v8500 = vpack.c.b16 %v7744, %v7726
  %v8501 = vpack.c.b16 %v7745, %v7727
  %v8502 = vpack.c.b16 %v7746, %v7728
  %v8503 = vpack.c.b16 %v7765, %v7747
  %v8504 = vpack.c.b16 %v7766, %v7748
  %v8505 = vpack.c.b16 %v7767, %v7749
  %v8506 = vpack.c.b16 %v7768, %v7750
  %v8507 = vpack.c.b16 %v7769, %v7751
  %v8508 = vpack.c.b16 %v7770, %v7752
  %v8509 = vpack.c.b16 %v7771, %v7753
  %v8510 = vpack.c.b16 %v7772, %v7754
  %v8511 = vpack.c.b16 %v7773, %v7755
  %v8512 = vpack.c.b16 %v7774, %v7756
  %v8513 = vpack.c.b16 %v7775, %v7757
  %v8514 = vpack.c.b16 %v7776, %v7758
  %v8515 = vpack.c.b16 %v7777, %v7759
  %v8516 = vpack.c.b16 %v7778, %v7760
  %v8517 = vpack.c.b16 %v7779, %v7761
  %v8518 = vpack.c.b16 %v7780, %v7762
  %v8519 = vpack.c.b16 %v7781, %v7763
  %v8520 = vpack.c.b16 %v7782, %v7764
  %v8521 = vpack.c.b16 %v7801, %v7783
  %v8522 = vpack.c.b16 %v7802, %v7784
  %v8523 = vpack.c.b16 %v7803, %v7785
  %v8524 = vpack.c.b16 %v7804, %v7786
  %v8525 = vpack.c.b16 %v7805, %v7787
  %v8526 = vpack.c.b16 %v7806, %v7788
  %v8527 = vpack.c.b16 %v7807, %v7789
  %v8528 = vpack.c.b16 %v7808, %v7790
  %v8529 = vpack.c.b16 %v7809, %v7791
  %v8530 = vpack.c.b16 %v7810, %v7792
  %v8531 = vpack.c.b16 %v7811, %v7793
  %v8532 = vpack.c.b16 %v7812, %v7794
  %v8533 = vpack.c.b16 %v7813, %v7795
  %v8534 = vpack.c.b16 %v7814, %v7796
  %v8535 = vpack.c.b16 %v7815, %v7797
  %v8536 = vpack.c.b16 %v7816, %v7798
  %v8537 = vpack.c.b16 %v7817, %v7799
  %v8538 = vpack.c.b16 %v7818, %v7800
  %v8539 = vpack.c.b16 %v7837, %v7819
  %v8540 = vpack.c.b16 %v7838, %v7820
  %v8541 = vpack.c.b16 %v7839, %v7821
  %v8542 = vpack.c.b16 %v7840, %v7822
  %v8543 = vpack.c.b16 %v7841, %v7823
  %v8544 = vpack.c.b16 %v7842, %v7824
  %v8545 = vpack.c.b16 %v7843, %v7825
  %v8546 = vpack.c.b16 %v7844, %v7826
  %v8547 = vpack.c.b16 %v7845, %v7827
  %v8548 = vpack.c.b16 %v7846, %v7828
  %v8549 = vpack.c.b16 %v7847, %v7829
  %v8550 = vpack.c.b16 %v7848, %v7830
  %v8551 = vpack.c.b16 %v7849, %v7831
  %v8552 = vpack.c.b16 %v7850, %v7832
  %v8553 = vpack.c.b16 %v7851, %v7833
  %v8554 = vpack.c.b16 %v7852, %v7834
  %v8555 = vpack.c.b16 %v7853, %v7835
  %v8556 = vpack.c.b16 %v7854, %v7836
  %v8557 = vpack.c.b16 %v7873, %v7855
  %v8558 = vpack.c.b16 %v7874, %v7856
  %v8559 = vpack.c.b16 %v7875, %v7857
  %v8560 = vpack.c.b16 %v7876, %v7858
  %v8561 = vpack.c.b16 %v7877, %v7859
  %v8562 = vpack.c.b16 %v7878, %v7860
  %v8563 = vpack.c.b16 %v7879, %v7861
  %v8564 = vpack.c.b16 %v7880, %v7862
  %v8565 = vpack.c.b16 %v7881, %v7863
  %v8566 = vpack.c.b16 %v7882, %v7864
  %v8567 = vpack.c.b16 %v7883, %v7865
  %v8568 = vpack.c.b16 %v7884, %v7866
  %v8569 = vpack.c.b16 %v7885, %v7867
  %v8570 = vpack.c.b16 %v7886, %v7868
  %v8571 = vpack.c.b16 %v7887, %v7869
  %v8572 = vpack.c.b16 %v7888, %v7870
  %v8573 = vpack.c.b16 %v7889, %v7871
  %v8574 = vpack.c.b16 %v7890, %v7872
  %v8575 = vpack.c.b16 %v7909, %v7891
  %v8576 = vpack.c.b16 %v7910, %v7892
  %v8577 = vpack.c.b16 %v7911, %v7893
  %v8578 = vpack.c.b16 %v7912, %v7894
  %v8579 = vpack.c.b16 %v7913, %v7895
  %v8580 = vpack.c.b16 %v7914, %v7896
  %v8581 = vpack.c.b16 %v7915, %v7897
  %v8582 = vpack.c.b16 %v7916, %v7898
  %v8583 = vpack.c.b16 %v7917, %v7899
  %v8584 = vpack.c.b16 %v7918, %v7900
  %v8585 = vpack.c.b16 %v7919, %v7901
  %v8586 = vpack.c.b16 %v7920, %v7902
  %v8587 = vpack.c.b16 %v7921, %v7903
  %v8588 = vpack.c.b16 %v7922, %v7904
  %v8589 = vpack.c.b16 %v7923, %v7905
  %v8590 = vpack.c.b16 %v7924, %v7906
  %v8591 = vpack.c.b16 %v7925, %v7907
  %v8592 = vpack.c.b16 %v7926, %v7908
  %v8593 = vpack.c.b16 %v7945, %v7927
  %v8594 = vpack.c.b16 %v7946, %v7928
  %v8595 = vpack.c.b16 %v7947, %v7929
  %v8596 = vpack.c.b16 %v7948, %v7930
  %v8597 = vpack.c.b16 %v7949, %v7931
  %v8598 = vpack.c.b16 %v7950, %v7932
  %v8599 = vpack.c.b16 %v7951, %v7933
  %v8600 = vpack.c.b16 %v7952, %v7934
  %v8601 = vpack.c.b16 %v7953, %v7935
  %v8602 = vpack.c.b16 %v7954, %v7936
  %v8603 = vpack.c.b16 %v7955, %v7937
  %v8604 = vpack.c.b16 %v7956, %v7938
  %v8605 = vpack.c.b16 %v7957, %v7939
  %v8606 = vpack.c.b16 %v7958, %v7940
  %v8607 = vpack.c.b16 %v7959, %v7941
  %v8608 = vpack.c.b16 %v7960, %v7942
  %v8609 = vpack.c.b16 %v7961, %v7943
  %v8610 = vpack.c.b16 %v7962, %v7944
  %v9260 = vsel %vm5361, %v5370, 0
  %9262 = vmatprep.subr.bf16.mxu0 %v7964
  %9263 = vmatpush1.bf16.msra.mxu0 %v7963
  %9264 = vmatprep.subr.bf16.mxu0 %v7982
  %9265 = vmatpush1.bf16.msra.mxu0 %v7981
  %9266 = vmatprep.subr.bf16.mxu0 %v8000
  %9267 = vmatpush1.bf16.msra.mxu0 %v7999
  %9268 = vmatprep.subr.bf16.mxu0 %v8018
  %9269 = vmatpush1.bf16.msra.mxu0 %v8017
  %9270 = vmatprep.subr.bf16.mxu0 %v8036
  %9271 = vmatpush1.bf16.msra.mxu0 %v8035
  %9272 = vmatprep.subr.bf16.mxu0 %v8054
  %9273 = vmatpush1.bf16.msra.mxu0 %v8053
  %9274 = vmatprep.subr.bf16.mxu0 %v8072
  %9275 = vmatpush1.bf16.msra.mxu0 %v8071
  %9276 = vmatprep.subr.bf16.mxu0 %v8090
  %9277 = vmatpush1.bf16.msra.mxu0 %v8089
  %9278 = vmatprep.subr.bf16.mxu0 %v8108
  %9279 = vmatpush1.bf16.msra.mxu0 %v8107
  %9280 = vmatprep.subr.bf16.mxu0 %v8126
  %9281 = vmatpush1.bf16.msra.mxu0 %v8125
  %9282 = vmatprep.subr.bf16.mxu0 %v8144
  %9283 = vmatpush1.bf16.msra.mxu0 %v8143
  %9284 = vmatprep.subr.bf16.mxu0 %v8162
  %9285 = vmatpush1.bf16.msra.mxu0 %v8161
  %9286 = vmatprep.subr.bf16.mxu0 %v8180
  %9287 = vmatpush1.bf16.msra.mxu0 %v8179
  %9288 = vmatprep.subr.bf16.mxu0 %v8198
  %9289 = vmatpush1.bf16.msra.mxu0 %v8197
  %9290 = vmatprep.subr.bf16.mxu0 %v8216
  %9291 = vmatpush1.bf16.msra.mxu0 %v8215
  %9292 = vmatprep.subr.bf16.mxu0 %v8234
  %9293 = vmatpush1.bf16.msra.mxu0 %v8233
  %9294 = vmatprep.mubr.bf16.mxu0 %v5367
  %9295 = vmatmul.mubr.bf16.gmra.mrb[0].mxu0 %v5366
  %v9296 = vpop.f32.mrb[0].mxu0
  %v9297 = vadd.f32 0.0, %v9296
  %v9298 = vpop.f32.mrb[0].mxu0
  %v9299 = vadd.f32 0.0, %v9298
  %v9300 = vpop.f32.mrb[0].mxu0
  %v9301 = vpop.f32.mrb[0].mxu0
  %9302 = vdwg.mxu0
  %9303 = vmatprep.subr.bf16.mxu0 %v8252
  %9304 = vmatpush1.bf16.msra.mxu0 %v8251
  %9305 = vmatprep.subr.bf16.mxu0 %v8270
  %9306 = vmatpush1.bf16.msra.mxu0 %v8269
  %9307 = vmatprep.subr.bf16.mxu0 %v8288
  %9308 = vmatpush1.bf16.msra.mxu0 %v8287
  %9309 = vmatprep.subr.bf16.mxu0 %v8306
  %9310 = vmatpush1.bf16.msra.mxu0 %v8305
  %9311 = vmatprep.subr.bf16.mxu0 %v8324
  %9312 = vmatpush1.bf16.msra.mxu0 %v8323
  %9313 = vmatprep.subr.bf16.mxu0 %v8342
  %9314 = vmatpush1.bf16.msra.mxu0 %v8341
  %9315 = vmatprep.subr.bf16.mxu0 %v8360
  %9316 = vmatpush1.bf16.msra.mxu0 %v8359
  %9317 = vmatprep.subr.bf16.mxu0 %v8378
  %9318 = vmatpush1.bf16.msra.mxu0 %v8377
  %9319 = vmatprep.subr.bf16.mxu0 %v8396
  %9320 = vmatpush1.bf16.msra.mxu0 %v8395
  %9321 = vmatprep.subr.bf16.mxu0 %v8414
  %9322 = vmatpush1.bf16.msra.mxu0 %v8413
  %9323 = vmatprep.subr.bf16.mxu0 %v8432
  %9324 = vmatpush1.bf16.msra.mxu0 %v8431
  %9325 = vmatprep.subr.bf16.mxu0 %v8450
  %9326 = vmatpush1.bf16.msra.mxu0 %v8449
  %9327 = vmatprep.subr.bf16.mxu0 %v8468
  %9328 = vmatpush1.bf16.msra.mxu0 %v8467
  %9329 = vmatprep.subr.bf16.mxu0 %v8486
  %9330 = vmatpush1.bf16.msra.mxu0 %v8485
  %9331 = vmatprep.subr.bf16.mxu0 %v8504
  %9332 = vmatpush1.bf16.msra.mxu0 %v8503
  %9333 = vmatprep.subr.bf16.mxu0 %v8522
  %9334 = vmatpush1.bf16.msra.mxu0 %v8521
  %9335 = vmatprep.mubr.bf16.mxu0 %v5369
  %9336 = vmatmul.mubr.bf16.gmra.mrb[0].mxu0 %v5368
  %v9337 = vpop.f32.mrb[0].mxu0
  %v9338 = vadd.f32 %v9297, %v9337
  %v9339 = vpop.f32.mrb[0].mxu0
  %v9340 = vadd.f32 %v9299, %v9339
  %v9341 = vpop.f32.mrb[0].mxu0
  %v9342 = vpop.f32.mrb[0].mxu0
  %9343 = vdwg.mxu0
  %9344 = vmatprep.subr.bf16.mxu0 %v8540
  %9345 = vmatpush1.bf16.msra.mxu0 %v8539
  %9346 = vmatprep.subr.bf16.mxu0 %v8558
  %9347 = vmatpush1.bf16.msra.mxu0 %v8557
  %9348 = vmatprep.subr.bf16.mxu0 %v8576
  %9349 = vmatpush1.bf16.msra.mxu0 %v8575
  %9350 = vmatprep.subr.bf16.mxu0 %v8594
  %9351 = vmatpush1.bf16.msra.mxu0 %v8593
  %9352 = vmatprep.subr.bf16.mxu0 0
  %9353 = vmatpush1.bf16.msra.mxu0 0
  %9354 = vmatprep.subr.bf16.mxu0 0
  %9355 = vmatpush1.bf16.msra.mxu0 0
  %9356 = vmatprep.subr.bf16.mxu0 0
  %9357 = vmatpush1.bf16.msra.mxu0 0
  %9358 = vmatprep.subr.bf16.mxu0 0
  %9359 = vmatpush1.bf16.msra.mxu0 0
  %9360 = vmatprep.subr.bf16.mxu0 0
  %9361 = vmatpush1.bf16.msra.mxu0 0
  %9362 = vmatprep.subr.bf16.mxu0 0
  %9363 = vmatpush1.bf16.msra.mxu0 0
  %9364 = vmatprep.subr.bf16.mxu0 0
  %9365 = vmatpush1.bf16.msra.mxu0 0
  %9366 = vmatprep.subr.bf16.mxu0 0
  %9367 = vmatpush1.bf16.msra.mxu0 0
  %9368 = vmatprep.subr.bf16.mxu0 0
  %9369 = vmatpush1.bf16.msra.mxu0 0
  %9370 = vmatprep.subr.bf16.mxu0 0
  %9371 = vmatpush1.bf16.msra.mxu0 0
  %9372 = vmatprep.subr.bf16.mxu0 0
  %9373 = vmatpush1.bf16.msra.mxu0 0
  %9374 = vmatprep.subr.bf16.mxu0 0
  %9375 = vmatpush1.bf16.msra.mxu0 0
  %9376 = vmatprep.mubr.bf16.mxu0 0
  %9377 = vmatmul.mubr.bf16.gmra.mrb[0].mxu0 %v9260
  %v9378 = vpop.f32.mrb[0].mxu0
  %v9379 = vadd.f32 %v9338, %v9378
  %v9380 = vpop.f32.mrb[0].mxu0
  %v9381 = vadd.f32 %v9340, %v9380
  %v9382 = vpop.f32.mrb[0].mxu0
  %v9383 = vpop.f32.mrb[0].mxu0
  %9384 = vdwg.mxu0
  %9385 = vmatprep.subr.bf16.mxu0 %v7966
  %9386 = vmatpush1.bf16.msra.mxu0 %v7965
  %9387 = vmatprep.subr.bf16.mxu0 %v7984
  %9388 = vmatpush1.bf16.msra.mxu0 %v7983
  %9389 = vmatprep.subr.bf16.mxu0 %v8002
  %9390 = vmatpush1.bf16.msra.mxu0 %v8001
  %9391 = vmatprep.subr.bf16.mxu0 %v8020
  %9392 = vmatpush1.bf16.msra.mxu0 %v8019
  %9393 = vmatprep.subr.bf16.mxu0 %v8038
  %9394 = vmatpush1.bf16.msra.mxu0 %v8037
  %9395 = vmatprep.subr.bf16.mxu0 %v8056
  %9396 = vmatpush1.bf16.msra.mxu0 %v8055
  %9397 = vmatprep.subr.bf16.mxu0 %v8074
  %9398 = vmatpush1.bf16.msra.mxu0 %v8073
  %9399 = vmatprep.subr.bf16.mxu0 %v8092
  %9400 = vmatpush1.bf16.msra.mxu0 %v8091
  %9401 = vmatprep.subr.bf16.mxu0 %v8110
  %9402 = vmatpush1.bf16.msra.mxu0 %v8109
  %9403 = vmatprep.subr.bf16.mxu0 %v8128
  %9404 = vmatpush1.bf16.msra.mxu0 %v8127
  %9405 = vmatprep.subr.bf16.mxu0 %v8146
  %9406 = vmatpush1.bf16.msra.mxu0 %v8145
  %9407 = vmatprep.subr.bf16.mxu0 %v8164
  %9408 = vmatpush1.bf16.msra.mxu0 %v8163
  %9409 = vmatprep.subr.bf16.mxu0 %v8182
  %9410 = vmatpush1.bf16.msra.mxu0 %v8181
  %9411 = vmatprep.subr.bf16.mxu0 %v8200
  %9412 = vmatpush1.bf16.msra.mxu0 %v8199
  %9413 = vmatprep.subr.bf16.mxu0 %v8218
  %9414 = vmatpush1.bf16.msra.mxu0 %v8217
  %9415 = vmatprep.subr.bf16.mxu0 %v8236
  %9416 = vmatpush1.bf16.msra.mxu0 %v8235
  %9417 = vmatprep.mubr.bf16.mxu0 %v5367
  %9418 = vmatmul.mubr.bf16.gmra.mrb[0].mxu0 %v5366
  %v9419 = vpop.f32.mrb[0].mxu0
  %v9420 = vadd.f32 0.0, %v9419
  %v9421 = vpop.f32.mrb[0].mxu0
  %v9422 = vadd.f32 0.0, %v9421
  %v9423 = vpop.f32.mrb[0].mxu0
  %v9424 = vpop.f32.mrb[0].mxu0
  %9425 = vdwg.mxu0
  %9426 = vmatprep.subr.bf16.mxu0 %v8254
  %9427 = vmatpush1.bf16.msra.mxu0 %v8253
  %9428 = vmatprep.subr.bf16.mxu0 %v8272
  %9429 = vmatpush1.bf16.msra.mxu0 %v8271
  %9430 = vmatprep.subr.bf16.mxu0 %v8290
  %9431 = vmatpush1.bf16.msra.mxu0 %v8289
  %9432 = vmatprep.subr.bf16.mxu0 %v8308
  %9433 = vmatpush1.bf16.msra.mxu0 %v8307
  %9434 = vmatprep.subr.bf16.mxu0 %v8326
  %9435 = vmatpush1.bf16.msra.mxu0 %v8325
  %9436 = vmatprep.subr.bf16.mxu0 %v8344
  %9437 = vmatpush1.bf16.msra.mxu0 %v8343
  %9438 = vmatprep.subr.bf16.mxu0 %v8362
  %9439 = vmatpush1.bf16.msra.mxu0 %v8361
  %9440 = vmatprep.subr.bf16.mxu0 %v8380
  %9441 = vmatpush1.bf16.msra.mxu0 %v8379
  %9442 = vmatprep.subr.bf16.mxu0 %v8398
  %9443 = vmatpush1.bf16.msra.mxu0 %v8397
  %9444 = vmatprep.subr.bf16.mxu0 %v8416
  %9445 = vmatpush1.bf16.msra.mxu0 %v8415
  %9446 = vmatprep.subr.bf16.mxu0 %v8434
  %9447 = vmatpush1.bf16.msra.mxu0 %v8433
  %9448 = vmatprep.subr.bf16.mxu0 %v8452
  %9449 = vmatpush1.bf16.msra.mxu0 %v8451
  %9450 = vmatprep.subr.bf16.mxu0 %v8470
  %9451 = vmatpush1.bf16.msra.mxu0 %v8469
  %9452 = vmatprep.subr.bf16.mxu0 %v8488
  %9453 = vmatpush1.bf16.msra.mxu0 %v8487
  %9454 = vmatprep.subr.bf16.mxu0 %v8506
  %9455 = vmatpush1.bf16.msra.mxu0 %v8505
  %9456 = vmatprep.subr.bf16.mxu0 %v8524
  %9457 = vmatpush1.bf16.msra.mxu0 %v8523
  %9458 = vmatprep.mubr.bf16.mxu0 %v5369
  %9459 = vmatmul.mubr.bf16.gmra.mrb[0].mxu0 %v5368
  %v9460 = vpop.f32.mrb[0].mxu0
  %v9461 = vadd.f32 %v9420, %v9460
  %v9462 = vpop.f32.mrb[0].mxu0
  %v9463 = vadd.f32 %v9422, %v9462
  %v9464 = vpop.f32.mrb[0].mxu0
  %v9465 = vpop.f32.mrb[0].mxu0
  %9466 = vdwg.mxu0
  %9467 = vmatprep.subr.bf16.mxu0 %v8542
  %9468 = vmatpush1.bf16.msra.mxu0 %v8541
  %9469 = vmatprep.subr.bf16.mxu0 %v8560
  %9470 = vmatpush1.bf16.msra.mxu0 %v8559
  %9471 = vmatprep.subr.bf16.mxu0 %v8578
  %9472 = vmatpush1.bf16.msra.mxu0 %v8577
  %9473 = vmatprep.subr.bf16.mxu0 %v8596
  %9474 = vmatpush1.bf16.msra.mxu0 %v8595
  %9475 = vmatprep.subr.bf16.mxu0 0
  %9476 = vmatpush1.bf16.msra.mxu0 0
  %9477 = vmatprep.subr.bf16.mxu0 0
  %9478 = vmatpush1.bf16.msra.mxu0 0
  %9479 = vmatprep.subr.bf16.mxu0 0
  %9480 = vmatpush1.bf16.msra.mxu0 0
  %9481 = vmatprep.subr.bf16.mxu0 0
  %9482 = vmatpush1.bf16.msra.mxu0 0
  %9483 = vmatprep.subr.bf16.mxu0 0
  %9484 = vmatpush1.bf16.msra.mxu0 0
  %9485 = vmatprep.subr.bf16.mxu0 0
  %9486 = vmatpush1.bf16.msra.mxu0 0
  %9487 = vmatprep.subr.bf16.mxu0 0
  %9488 = vmatpush1.bf16.msra.mxu0 0
  %9489 = vmatprep.subr.bf16.mxu0 0
  %9490 = vmatpush1.bf16.msra.mxu0 0
  %9491 = vmatprep.subr.bf16.mxu0 0
  %9492 = vmatpush1.bf16.msra.mxu0 0
  %9493 = vmatprep.subr.bf16.mxu0 0
  %9494 = vmatpush1.bf16.msra.mxu0 0
  %9495 = vmatprep.subr.bf16.mxu0 0
  %9496 = vmatpush1.bf16.msra.mxu0 0
  %9497 = vmatprep.subr.bf16.mxu0 0
  %9498 = vmatpush1.bf16.msra.mxu0 0
  %9499 = vmatprep.mubr.bf16.mxu0 0
  %9500 = vmatmul.mubr.bf16.gmra.mrb[0].mxu0 %v9260
  %v9501 = vpop.f32.mrb[0].mxu0
  %v9502 = vadd.f32 %v9461, %v9501
  %v9503 = vpop.f32.mrb[0].mxu0
  %v9504 = vadd.f32 %v9463, %v9503
  %v9505 = vpop.f32.mrb[0].mxu0
  %v9506 = vpop.f32.mrb[0].mxu0
  %9507 = vdwg.mxu0
  %9508 = vmatprep.subr.bf16.mxu0 %v7968
  %9509 = vmatpush1.bf16.msra.mxu0 %v7967
  %9510 = vmatprep.subr.bf16.mxu0 %v7986
  %9511 = vmatpush1.bf16.msra.mxu0 %v7985
  %9512 = vmatprep.subr.bf16.mxu0 %v8004
  %9513 = vmatpush1.bf16.msra.mxu0 %v8003
  %9514 = vmatprep.subr.bf16.mxu0 %v8022
  %9515 = vmatpush1.bf16.msra.mxu0 %v8021
  %9516 = vmatprep.subr.bf16.mxu0 %v8040
  %9517 = vmatpush1.bf16.msra.mxu0 %v8039
  %9518 = vmatprep.subr.bf16.mxu0 %v8058
  %9519 = vmatpush1.bf16.msra.mxu0 %v8057
  %9520 = vmatprep.subr.bf16.mxu0 %v8076
  %9521 = vmatpush1.bf16.msra.mxu0 %v8075
  %9522 = vmatprep.subr.bf16.mxu0 %v8094
  %9523 = vmatpush1.bf16.msra.mxu0 %v8093
  %9524 = vmatprep.subr.bf16.mxu0 %v8112
  %9525 = vmatpush1.bf16.msra.mxu0 %v8111
  %9526 = vmatprep.subr.bf16.mxu0 %v8130
  %9527 = vmatpush1.bf16.msra.mxu0 %v8129
  %9528 = vmatprep.subr.bf16.mxu0 %v8148
  %9529 = vmatpush1.bf16.msra.mxu0 %v8147
  %9530 = vmatprep.subr.bf16.mxu0 %v8166
  %9531 = vmatpush1.bf16.msra.mxu0 %v8165
  %9532 = vmatprep.subr.bf16.mxu0 %v8184
  %9533 = vmatpush1.bf16.msra.mxu0 %v8183
  %9534 = vmatprep.subr.bf16.mxu0 %v8202
  %9535 = vmatpush1.bf16.msra.mxu0 %v8201
  %9536 = vmatprep.subr.bf16.mxu0 %v8220
  %9537 = vmatpush1.bf16.msra.mxu0 %v8219
  %9538 = vmatprep.subr.bf16.mxu0 %v8238
  %9539 = vmatpush1.bf16.msra.mxu0 %v8237
  %9540 = vmatprep.mubr.bf16.mxu0 %v5367
  %9541 = vmatmul.mubr.bf16.gmra.mrb[0].mxu0 %v5366
  %v9542 = vpop.f32.mrb[0].mxu0
  %v9543 = vadd.f32 0.0, %v9542
  %v9544 = vpop.f32.mrb[0].mxu0
  %v9545 = vadd.f32 0.0, %v9544
  %v9546 = vpop.f32.mrb[0].mxu0
  %v9547 = vpop.f32.mrb[0].mxu0
  %9548 = vdwg.mxu0
  %9549 = vmatprep.subr.bf16.mxu0 %v8256
  %9550 = vmatpush1.bf16.msra.mxu0 %v8255
  %9551 = vmatprep.subr.bf16.mxu0 %v8274
  %9552 = vmatpush1.bf16.msra.mxu0 %v8273
  %9553 = vmatprep.subr.bf16.mxu0 %v8292
  %9554 = vmatpush1.bf16.msra.mxu0 %v8291
  %9555 = vmatprep.subr.bf16.mxu0 %v8310
  %9556 = vmatpush1.bf16.msra.mxu0 %v8309
  %9557 = vmatprep.subr.bf16.mxu0 %v8328
  %9558 = vmatpush1.bf16.msra.mxu0 %v8327
  %9559 = vmatprep.subr.bf16.mxu0 %v8346
  %9560 = vmatpush1.bf16.msra.mxu0 %v8345
  %9561 = vmatprep.subr.bf16.mxu0 %v8364
  %9562 = vmatpush1.bf16.msra.mxu0 %v8363
  %9563 = vmatprep.subr.bf16.mxu0 %v8382
  %9564 = vmatpush1.bf16.msra.mxu0 %v8381
  %9565 = vmatprep.subr.bf16.mxu0 %v8400
  %9566 = vmatpush1.bf16.msra.mxu0 %v8399
  %9567 = vmatprep.subr.bf16.mxu0 %v8418
  %9568 = vmatpush1.bf16.msra.mxu0 %v8417
  %9569 = vmatprep.subr.bf16.mxu0 %v8436
  %9570 = vmatpush1.bf16.msra.mxu0 %v8435
  %9571 = vmatprep.subr.bf16.mxu0 %v8454
  %9572 = vmatpush1.bf16.msra.mxu0 %v8453
  %9573 = vmatprep.subr.bf16.mxu0 %v8472
  %9574 = vmatpush1.bf16.msra.mxu0 %v8471
  %9575 = vmatprep.subr.bf16.mxu0 %v8490
  %9576 = vmatpush1.bf16.msra.mxu0 %v8489
  %9577 = vmatprep.subr.bf16.mxu0 %v8508
  %9578 = vmatpush1.bf16.msra.mxu0 %v8507
  %9579 = vmatprep.subr.bf16.mxu0 %v8526
  %9580 = vmatpush1.bf16.msra.mxu0 %v8525
  %9581 = vmatprep.mubr.bf16.mxu0 %v5369
  %9582 = vmatmul.mubr.bf16.gmra.mrb[0].mxu0 %v5368
  %v9583 = vpop.f32.mrb[0].mxu0
  %v9584 = vadd.f32 %v9543, %v9583
  %v9585 = vpop.f32.mrb[0].mxu0
  %v9586 = vadd.f32 %v9545, %v9585
  %v9587 = vpop.f32.mrb[0].mxu0
  %v9588 = vpop.f32.mrb[0].mxu0
  %9589 = vdwg.mxu0
  %9590 = vmatprep.subr.bf16.mxu0 %v8544
  %9591 = vmatpush1.bf16.msra.mxu0 %v8543
  %9592 = vmatprep.subr.bf16.mxu0 %v8562
  %9593 = vmatpush1.bf16.msra.mxu0 %v8561
  %9594 = vmatprep.subr.bf16.mxu0 %v8580
  %9595 = vmatpush1.bf16.msra.mxu0 %v8579
  %9596 = vmatprep.subr.bf16.mxu0 %v8598
  %9597 = vmatpush1.bf16.msra.mxu0 %v8597
  %9598 = vmatprep.subr.bf16.mxu0 0
  %9599 = vmatpush1.bf16.msra.mxu0 0
  %9600 = vmatprep.subr.bf16.mxu0 0
  %9601 = vmatpush1.bf16.msra.mxu0 0
  %9602 = vmatprep.subr.bf16.mxu0 0
  %9603 = vmatpush1.bf16.msra.mxu0 0
  %9604 = vmatprep.subr.bf16.mxu0 0
  %9605 = vmatpush1.bf16.msra.mxu0 0
  %9606 = vmatprep.subr.bf16.mxu0 0
  %9607 = vmatpush1.bf16.msra.mxu0 0
  %9608 = vmatprep.subr.bf16.mxu0 0
  %9609 = vmatpush1.bf16.msra.mxu0 0
  %9610 = vmatprep.subr.bf16.mxu0 0
  %9611 = vmatpush1.bf16.msra.mxu0 0
  %9612 = vmatprep.subr.bf16.mxu0 0
  %9613 = vmatpush1.bf16.msra.mxu0 0
  %9614 = vmatprep.subr.bf16.mxu0 0
  %9615 = vmatpush1.bf16.msra.mxu0 0
  %9616 = vmatprep.subr.bf16.mxu0 0
  %9617 = vmatpush1.bf16.msra.mxu0 0
  %9618 = vmatprep.subr.bf16.mxu0 0
  %9619 = vmatpush1.bf16.msra.mxu0 0
  %9620 = vmatprep.subr.bf16.mxu0 0
  %9621 = vmatpush1.bf16.msra.mxu0 0
  %9622 = vmatprep.mubr.bf16.mxu0 0
  %9623 = vmatmul.mubr.bf16.gmra.mrb[0].mxu0 %v9260
  %v9624 = vpop.f32.mrb[0].mxu0
  %v9625 = vadd.f32 %v9584, %v9624
  %v9626 = vpop.f32.mrb[0].mxu0
  %v9627 = vadd.f32 %v9586, %v9626
  %v9628 = vpop.f32.mrb[0].mxu0
  %v9629 = vpop.f32.mrb[0].mxu0
  %9630 = vdwg.mxu0
  %9631 = vmatprep.subr.bf16.mxu0 %v7970
  %9632 = vmatpush1.bf16.msra.mxu0 %v7969
  %9633 = vmatprep.subr.bf16.mxu0 %v7988
  %9634 = vmatpush1.bf16.msra.mxu0 %v7987
  %9635 = vmatprep.subr.bf16.mxu0 %v8006
  %9636 = vmatpush1.bf16.msra.mxu0 %v8005
  %9637 = vmatprep.subr.bf16.mxu0 %v8024
  %9638 = vmatpush1.bf16.msra.mxu0 %v8023
  %9639 = vmatprep.subr.bf16.mxu0 %v8042
  %9640 = vmatpush1.bf16.msra.mxu0 %v8041
  %9641 = vmatprep.subr.bf16.mxu0 %v8060
  %9642 = vmatpush1.bf16.msra.mxu0 %v8059
  %9643 = vmatprep.subr.bf16.mxu0 %v8078
  %9644 = vmatpush1.bf16.msra.mxu0 %v8077
  %9645 = vmatprep.subr.bf16.mxu0 %v8096
  %9646 = vmatpush1.bf16.msra.mxu0 %v8095
  %9647 = vmatprep.subr.bf16.mxu0 %v8114
  %9648 = vmatpush1.bf16.msra.mxu0 %v8113
  %9649 = vmatprep.subr.bf16.mxu0 %v8132
  %9650 = vmatpush1.bf16.msra.mxu0 %v8131
  %9651 = vmatprep.subr.bf16.mxu0 %v8150
  %9652 = vmatpush1.bf16.msra.mxu0 %v8149
  %9653 = vmatprep.subr.bf16.mxu0 %v8168
  %9654 = vmatpush1.bf16.msra.mxu0 %v8167
  %9655 = vmatprep.subr.bf16.mxu0 %v8186
  %9656 = vmatpush1.bf16.msra.mxu0 %v8185
  %9657 = vmatprep.subr.bf16.mxu0 %v8204
  %9658 = vmatpush1.bf16.msra.mxu0 %v8203
  %9659 = vmatprep.subr.bf16.mxu0 %v8222
  %9660 = vmatpush1.bf16.msra.mxu0 %v8221
  %9661 = vmatprep.subr.bf16.mxu0 %v8240
  %9662 = vmatpush1.bf16.msra.mxu0 %v8239
  %9663 = vmatprep.mubr.bf16.mxu0 %v5367
  %9664 = vmatmul.mubr.bf16.gmra.mrb[0].mxu0 %v5366
  %v9665 = vpop.f32.mrb[0].mxu0
  %v9666 = vadd.f32 0.0, %v9665
  %v9667 = vpop.f32.mrb[0].mxu0
  %v9668 = vadd.f32 0.0, %v9667
  %v9669 = vpop.f32.mrb[0].mxu0
  %v9670 = vpop.f32.mrb[0].mxu0
  %9671 = vdwg.mxu0
  %9672 = vmatprep.subr.bf16.mxu0 %v8258
  %9673 = vmatpush1.bf16.msra.mxu0 %v8257
  %9674 = vmatprep.subr.bf16.mxu0 %v8276
  %9675 = vmatpush1.bf16.msra.mxu0 %v8275
  %9676 = vmatprep.subr.bf16.mxu0 %v8294
  %9677 = vmatpush1.bf16.msra.mxu0 %v8293
  %9678 = vmatprep.subr.bf16.mxu0 %v8312
  %9679 = vmatpush1.bf16.msra.mxu0 %v8311
  %9680 = vmatprep.subr.bf16.mxu0 %v8330
  %9681 = vmatpush1.bf16.msra.mxu0 %v8329
  %9682 = vmatprep.subr.bf16.mxu0 %v8348
  %9683 = vmatpush1.bf16.msra.mxu0 %v8347
  %9684 = vmatprep.subr.bf16.mxu0 %v8366
  %9685 = vmatpush1.bf16.msra.mxu0 %v8365
  %9686 = vmatprep.subr.bf16.mxu0 %v8384
  %9687 = vmatpush1.bf16.msra.mxu0 %v8383
  %9688 = vmatprep.subr.bf16.mxu0 %v8402
  %9689 = vmatpush1.bf16.msra.mxu0 %v8401
  %9690 = vmatprep.subr.bf16.mxu0 %v8420
  %9691 = vmatpush1.bf16.msra.mxu0 %v8419
  %9692 = vmatprep.subr.bf16.mxu0 %v8438
  %9693 = vmatpush1.bf16.msra.mxu0 %v8437
  %9694 = vmatprep.subr.bf16.mxu0 %v8456
  %9695 = vmatpush1.bf16.msra.mxu0 %v8455
  %9696 = vmatprep.subr.bf16.mxu0 %v8474
  %9697 = vmatpush1.bf16.msra.mxu0 %v8473
  %9698 = vmatprep.subr.bf16.mxu0 %v8492
  %9699 = vmatpush1.bf16.msra.mxu0 %v8491
  %9700 = vmatprep.subr.bf16.mxu0 %v8510
  %9701 = vmatpush1.bf16.msra.mxu0 %v8509
  %9702 = vmatprep.subr.bf16.mxu0 %v8528
  %9703 = vmatpush1.bf16.msra.mxu0 %v8527
  %9704 = vmatprep.mubr.bf16.mxu0 %v5369
  %9705 = vmatmul.mubr.bf16.gmra.mrb[0].mxu0 %v5368
  %v9706 = vpop.f32.mrb[0].mxu0
  %v9707 = vadd.f32 %v9666, %v9706
  %v9708 = vpop.f32.mrb[0].mxu0
  %v9709 = vadd.f32 %v9668, %v9708
  %v9710 = vpop.f32.mrb[0].mxu0
  %v9711 = vpop.f32.mrb[0].mxu0
  %9712 = vdwg.mxu0
  %9713 = vmatprep.subr.bf16.mxu0 %v8546
  %9714 = vmatpush1.bf16.msra.mxu0 %v8545
  %9715 = vmatprep.subr.bf16.mxu0 %v8564
  %9716 = vmatpush1.bf16.msra.mxu0 %v8563
  %9717 = vmatprep.subr.bf16.mxu0 %v8582
  %9718 = vmatpush1.bf16.msra.mxu0 %v8581
  %9719 = vmatprep.subr.bf16.mxu0 %v8600
  %9720 = vmatpush1.bf16.msra.mxu0 %v8599
  %9721 = vmatprep.subr.bf16.mxu0 0
  %9722 = vmatpush1.bf16.msra.mxu0 0
  %9723 = vmatprep.subr.bf16.mxu0 0
  %9724 = vmatpush1.bf16.msra.mxu0 0
  %9725 = vmatprep.subr.bf16.mxu0 0
  %9726 = vmatpush1.bf16.msra.mxu0 0
  %9727 = vmatprep.subr.bf16.mxu0 0
  %9728 = vmatpush1.bf16.msra.mxu0 0
  %9729 = vmatprep.subr.bf16.mxu0 0
  %9730 = vmatpush1.bf16.msra.mxu0 0
  %9731 = vmatprep.subr.bf16.mxu0 0
  %9732 = vmatpush1.bf16.msra.mxu0 0
  %9733 = vmatprep.subr.bf16.mxu0 0
  %9734 = vmatpush1.bf16.msra.mxu0 0
  %9735 = vmatprep.subr.bf16.mxu0 0
  %9736 = vmatpush1.bf16.msra.mxu0 0
  %9737 = vmatprep.subr.bf16.mxu0 0
  %9738 = vmatpush1.bf16.msra.mxu0 0
  %9739 = vmatprep.subr.bf16.mxu0 0
  %9740 = vmatpush1.bf16.msra.mxu0 0
  %9741 = vmatprep.subr.bf16.mxu0 0
  %9742 = vmatpush1.bf16.msra.mxu0 0
  %9743 = vmatprep.subr.bf16.mxu0 0
  %9744 = vmatpush1.bf16.msra.mxu0 0
  %9745 = vmatprep.mubr.bf16.mxu0 0
  %9746 = vmatmul.mubr.bf16.gmra.mrb[0].mxu0 %v9260
  %v9747 = vpop.f32.mrb[0].mxu0
  %v9748 = vadd.f32 %v9707, %v9747
  %v9749 = vpop.f32.mrb[0].mxu0
  %v9750 = vadd.f32 %v9709, %v9749
  %v9751 = vpop.f32.mrb[0].mxu0
  %v9752 = vpop.f32.mrb[0].mxu0
  %9753 = vdwg.mxu0
  %9754 = vmatprep.subr.bf16.mxu0 %v7972
  %9755 = vmatpush1.bf16.msra.mxu0 %v7971
  %9756 = vmatprep.subr.bf16.mxu0 %v7990
  %9757 = vmatpush1.bf16.msra.mxu0 %v7989
  %9758 = vmatprep.subr.bf16.mxu0 %v8008
  %9759 = vmatpush1.bf16.msra.mxu0 %v8007
  %9760 = vmatprep.subr.bf16.mxu0 %v8026
  %9761 = vmatpush1.bf16.msra.mxu0 %v8025
  %9762 = vmatprep.subr.bf16.mxu0 %v8044
  %9763 = vmatpush1.bf16.msra.mxu0 %v8043
  %9764 = vmatprep.subr.bf16.mxu0 %v8062
  %9765 = vmatpush1.bf16.msra.mxu0 %v8061
  %9766 = vmatprep.subr.bf16.mxu0 %v8080
  %9767 = vmatpush1.bf16.msra.mxu0 %v8079
  %9768 = vmatprep.subr.bf16.mxu0 %v8098
  %9769 = vmatpush1.bf16.msra.mxu0 %v8097
  %9770 = vmatprep.subr.bf16.mxu0 %v8116
  %9771 = vmatpush1.bf16.msra.mxu0 %v8115
  %9772 = vmatprep.subr.bf16.mxu0 %v8134
  %9773 = vmatpush1.bf16.msra.mxu0 %v8133
  %9774 = vmatprep.subr.bf16.mxu0 %v8152
  %9775 = vmatpush1.bf16.msra.mxu0 %v8151
  %9776 = vmatprep.subr.bf16.mxu0 %v8170
  %9777 = vmatpush1.bf16.msra.mxu0 %v8169
  %9778 = vmatprep.subr.bf16.mxu0 %v8188
  %9779 = vmatpush1.bf16.msra.mxu0 %v8187
  %9780 = vmatprep.subr.bf16.mxu0 %v8206
  %9781 = vmatpush1.bf16.msra.mxu0 %v8205
  %9782 = vmatprep.subr.bf16.mxu0 %v8224
  %9783 = vmatpush1.bf16.msra.mxu0 %v8223
  %9784 = vmatprep.subr.bf16.mxu0 %v8242
  %9785 = vmatpush1.bf16.msra.mxu0 %v8241
  %9786 = vmatprep.mubr.bf16.mxu0 %v5367
  %9787 = vmatmul.mubr.bf16.gmra.mrb[0].mxu0 %v5366
  %v9788 = vpop.f32.mrb[0].mxu0
  %v9789 = vadd.f32 0.0, %v9788
  %v9790 = vpop.f32.mrb[0].mxu0
  %v9791 = vadd.f32 0.0, %v9790
  %v9792 = vpop.f32.mrb[0].mxu0
  %v9793 = vpop.f32.mrb[0].mxu0
  %9794 = vdwg.mxu0
  %9795 = vmatprep.subr.bf16.mxu0 %v8260
  %9796 = vmatpush1.bf16.msra.mxu0 %v8259
  %9797 = vmatprep.subr.bf16.mxu0 %v8278
  %9798 = vmatpush1.bf16.msra.mxu0 %v8277
  %9799 = vmatprep.subr.bf16.mxu0 %v8296
  %9800 = vmatpush1.bf16.msra.mxu0 %v8295
  %9801 = vmatprep.subr.bf16.mxu0 %v8314
  %9802 = vmatpush1.bf16.msra.mxu0 %v8313
  %9803 = vmatprep.subr.bf16.mxu0 %v8332
  %9804 = vmatpush1.bf16.msra.mxu0 %v8331
  %9805 = vmatprep.subr.bf16.mxu0 %v8350
  %9806 = vmatpush1.bf16.msra.mxu0 %v8349
  %9807 = vmatprep.subr.bf16.mxu0 %v8368
  %9808 = vmatpush1.bf16.msra.mxu0 %v8367
  %9809 = vmatprep.subr.bf16.mxu0 %v8386
  %9810 = vmatpush1.bf16.msra.mxu0 %v8385
  %9811 = vmatprep.subr.bf16.mxu0 %v8404
  %9812 = vmatpush1.bf16.msra.mxu0 %v8403
  %9813 = vmatprep.subr.bf16.mxu0 %v8422
  %9814 = vmatpush1.bf16.msra.mxu0 %v8421
  %9815 = vmatprep.subr.bf16.mxu0 %v8440
  %9816 = vmatpush1.bf16.msra.mxu0 %v8439
  %9817 = vmatprep.subr.bf16.mxu0 %v8458
  %9818 = vmatpush1.bf16.msra.mxu0 %v8457
  %9819 = vmatprep.subr.bf16.mxu0 %v8476
  %9820 = vmatpush1.bf16.msra.mxu0 %v8475
  %9821 = vmatprep.subr.bf16.mxu0 %v8494
  %9822 = vmatpush1.bf16.msra.mxu0 %v8493
  %9823 = vmatprep.subr.bf16.mxu0 %v8512
  %9824 = vmatpush1.bf16.msra.mxu0 %v8511
  %9825 = vmatprep.subr.bf16.mxu0 %v8530
  %9826 = vmatpush1.bf16.msra.mxu0 %v8529
  %9827 = vmatprep.mubr.bf16.mxu0 %v5369
  %9828 = vmatmul.mubr.bf16.gmra.mrb[0].mxu0 %v5368
  %v9829 = vpop.f32.mrb[0].mxu0
  %v9830 = vadd.f32 %v9789, %v9829
  %v9831 = vpop.f32.mrb[0].mxu0
  %v9832 = vadd.f32 %v9791, %v9831
  %v9833 = vpop.f32.mrb[0].mxu0
  %v9834 = vpop.f32.mrb[0].mxu0
  %9835 = vdwg.mxu0
  %9836 = vmatprep.subr.bf16.mxu0 %v8548
  %9837 = vmatpush1.bf16.msra.mxu0 %v8547
  %9838 = vmatprep.subr.bf16.mxu0 %v8566
  %9839 = vmatpush1.bf16.msra.mxu0 %v8565
  %9840 = vmatprep.subr.bf16.mxu0 %v8584
  %9841 = vmatpush1.bf16.msra.mxu0 %v8583
  %9842 = vmatprep.subr.bf16.mxu0 %v8602
  %9843 = vmatpush1.bf16.msra.mxu0 %v8601
  %9844 = vmatprep.subr.bf16.mxu0 0
  %9845 = vmatpush1.bf16.msra.mxu0 0
  %9846 = vmatprep.subr.bf16.mxu0 0
  %9847 = vmatpush1.bf16.msra.mxu0 0
  %9848 = vmatprep.subr.bf16.mxu0 0
  %9849 = vmatpush1.bf16.msra.mxu0 0
  %9850 = vmatprep.subr.bf16.mxu0 0
  %9851 = vmatpush1.bf16.msra.mxu0 0
  %9852 = vmatprep.subr.bf16.mxu0 0
  %9853 = vmatpush1.bf16.msra.mxu0 0
  %9854 = vmatprep.subr.bf16.mxu0 0
  %9855 = vmatpush1.bf16.msra.mxu0 0
  %9856 = vmatprep.subr.bf16.mxu0 0
  %9857 = vmatpush1.bf16.msra.mxu0 0
  %9858 = vmatprep.subr.bf16.mxu0 0
  %9859 = vmatpush1.bf16.msra.mxu0 0
  %9860 = vmatprep.subr.bf16.mxu0 0
  %9861 = vmatpush1.bf16.msra.mxu0 0
  %9862 = vmatprep.subr.bf16.mxu0 0
  %9863 = vmatpush1.bf16.msra.mxu0 0
  %9864 = vmatprep.subr.bf16.mxu0 0
  %9865 = vmatpush1.bf16.msra.mxu0 0
  %9866 = vmatprep.subr.bf16.mxu0 0
  %9867 = vmatpush1.bf16.msra.mxu0 0
  %9868 = vmatprep.mubr.bf16.mxu0 0
  %9869 = vmatmul.mubr.bf16.gmra.mrb[0].mxu0 %v9260
  %v9870 = vpop.f32.mrb[0].mxu0
  %v9871 = vadd.f32 %v9830, %v9870
  %v9872 = vpop.f32.mrb[0].mxu0
  %v9873 = vadd.f32 %v9832, %v9872
  %v9874 = vpop.f32.mrb[0].mxu0
  %v9875 = vpop.f32.mrb[0].mxu0
  %9876 = vdwg.mxu0
  %9877 = vmatprep.subr.bf16.mxu0 %v7974
  %9878 = vmatpush1.bf16.msra.mxu0 %v7973
  %9879 = vmatprep.subr.bf16.mxu0 %v7992
  %9880 = vmatpush1.bf16.msra.mxu0 %v7991
  %9881 = vmatprep.subr.bf16.mxu0 %v8010
  %9882 = vmatpush1.bf16.msra.mxu0 %v8009
  %9883 = vmatprep.subr.bf16.mxu0 %v8028
  %9884 = vmatpush1.bf16.msra.mxu0 %v8027
  %9885 = vmatprep.subr.bf16.mxu0 %v8046
  %9886 = vmatpush1.bf16.msra.mxu0 %v8045
  %9887 = vmatprep.subr.bf16.mxu0 %v8064
  %9888 = vmatpush1.bf16.msra.mxu0 %v8063
  %9889 = vmatprep.subr.bf16.mxu0 %v8082
  %9890 = vmatpush1.bf16.msra.mxu0 %v8081
  %9891 = vmatprep.subr.bf16.mxu0 %v8100
  %9892 = vmatpush1.bf16.msra.mxu0 %v8099
  %9893 = vmatprep.subr.bf16.mxu0 %v8118
  %9894 = vmatpush1.bf16.msra.mxu0 %v8117
  %9895 = vmatprep.subr.bf16.mxu0 %v8136
  %9896 = vmatpush1.bf16.msra.mxu0 %v8135
  %9897 = vmatprep.subr.bf16.mxu0 %v8154
  %9898 = vmatpush1.bf16.msra.mxu0 %v8153
  %9899 = vmatprep.subr.bf16.mxu0 %v8172
  %9900 = vmatpush1.bf16.msra.mxu0 %v8171
  %9901 = vmatprep.subr.bf16.mxu0 %v8190
  %9902 = vmatpush1.bf16.msra.mxu0 %v8189
  %9903 = vmatprep.subr.bf16.mxu0 %v8208
  %9904 = vmatpush1.bf16.msra.mxu0 %v8207
  %9905 = vmatprep.subr.bf16.mxu0 %v8226
  %9906 = vmatpush1.bf16.msra.mxu0 %v8225
  %9907 = vmatprep.subr.bf16.mxu0 %v8244
  %9908 = vmatpush1.bf16.msra.mxu0 %v8243
  %9909 = vmatprep.mubr.bf16.mxu0 %v5367
  %9910 = vmatmul.mubr.bf16.gmra.mrb[0].mxu0 %v5366
  %v9911 = vpop.f32.mrb[0].mxu0
  %v9912 = vadd.f32 0.0, %v9911
  %v9913 = vpop.f32.mrb[0].mxu0
  %v9914 = vadd.f32 0.0, %v9913
  %v9915 = vpop.f32.mrb[0].mxu0
  %v9916 = vpop.f32.mrb[0].mxu0
  %9917 = vdwg.mxu0
  %9918 = vmatprep.subr.bf16.mxu0 %v8262
  %9919 = vmatpush1.bf16.msra.mxu0 %v8261
  %9920 = vmatprep.subr.bf16.mxu0 %v8280
  %9921 = vmatpush1.bf16.msra.mxu0 %v8279
  %9922 = vmatprep.subr.bf16.mxu0 %v8298
  %9923 = vmatpush1.bf16.msra.mxu0 %v8297
  %9924 = vmatprep.subr.bf16.mxu0 %v8316
  %9925 = vmatpush1.bf16.msra.mxu0 %v8315
  %9926 = vmatprep.subr.bf16.mxu0 %v8334
  %9927 = vmatpush1.bf16.msra.mxu0 %v8333
  %9928 = vmatprep.subr.bf16.mxu0 %v8352
  %9929 = vmatpush1.bf16.msra.mxu0 %v8351
  %9930 = vmatprep.subr.bf16.mxu0 %v8370
  %9931 = vmatpush1.bf16.msra.mxu0 %v8369
  %9932 = vmatprep.subr.bf16.mxu0 %v8388
  %9933 = vmatpush1.bf16.msra.mxu0 %v8387
  %9934 = vmatprep.subr.bf16.mxu0 %v8406
  %9935 = vmatpush1.bf16.msra.mxu0 %v8405
  %9936 = vmatprep.subr.bf16.mxu0 %v8424
  %9937 = vmatpush1.bf16.msra.mxu0 %v8423
  %9938 = vmatprep.subr.bf16.mxu0 %v8442
  %9939 = vmatpush1.bf16.msra.mxu0 %v8441
  %9940 = vmatprep.subr.bf16.mxu0 %v8460
  %9941 = vmatpush1.bf16.msra.mxu0 %v8459
  %9942 = vmatprep.subr.bf16.mxu0 %v8478
  %9943 = vmatpush1.bf16.msra.mxu0 %v8477
  %9944 = vmatprep.subr.bf16.mxu0 %v8496
  %9945 = vmatpush1.bf16.msra.mxu0 %v8495
  %9946 = vmatprep.subr.bf16.mxu0 %v8514
  %9947 = vmatpush1.bf16.msra.mxu0 %v8513
  %9948 = vmatprep.subr.bf16.mxu0 %v8532
  %9949 = vmatpush1.bf16.msra.mxu0 %v8531
  %9950 = vmatprep.mubr.bf16.mxu0 %v5369
  %9951 = vmatmul.mubr.bf16.gmra.mrb[0].mxu0 %v5368
  %v9952 = vpop.f32.mrb[0].mxu0
  %v9953 = vadd.f32 %v9912, %v9952
  %v9954 = vpop.f32.mrb[0].mxu0
  %v9955 = vadd.f32 %v9914, %v9954
  %v9956 = vpop.f32.mrb[0].mxu0
  %v9957 = vpop.f32.mrb[0].mxu0
  %9958 = vdwg.mxu0
  %9959 = vmatprep.subr.bf16.mxu0 %v8550
  %9960 = vmatpush1.bf16.msra.mxu0 %v8549
  %9961 = vmatprep.subr.bf16.mxu0 %v8568
  %9962 = vmatpush1.bf16.msra.mxu0 %v8567
  %9963 = vmatprep.subr.bf16.mxu0 %v8586
  %9964 = vmatpush1.bf16.msra.mxu0 %v8585
  %9965 = vmatprep.subr.bf16.mxu0 %v8604
  %9966 = vmatpush1.bf16.msra.mxu0 %v8603
  %9967 = vmatprep.subr.bf16.mxu0 0
  %9968 = vmatpush1.bf16.msra.mxu0 0
  %9969 = vmatprep.subr.bf16.mxu0 0
  %9970 = vmatpush1.bf16.msra.mxu0 0
  %9971 = vmatprep.subr.bf16.mxu0 0
  %9972 = vmatpush1.bf16.msra.mxu0 0
  %9973 = vmatprep.subr.bf16.mxu0 0
  %9974 = vmatpush1.bf16.msra.mxu0 0
  %9975 = vmatprep.subr.bf16.mxu0 0
  %9976 = vmatpush1.bf16.msra.mxu0 0
  %9977 = vmatprep.subr.bf16.mxu0 0
  %9978 = vmatpush1.bf16.msra.mxu0 0
  %9979 = vmatprep.subr.bf16.mxu0 0
  %9980 = vmatpush1.bf16.msra.mxu0 0
  %9981 = vmatprep.subr.bf16.mxu0 0
  %9982 = vmatpush1.bf16.msra.mxu0 0
  %9983 = vmatprep.subr.bf16.mxu0 0
  %9984 = vmatpush1.bf16.msra.mxu0 0
  %9985 = vmatprep.subr.bf16.mxu0 0
  %9986 = vmatpush1.bf16.msra.mxu0 0
  %9987 = vmatprep.subr.bf16.mxu0 0
  %9988 = vmatpush1.bf16.msra.mxu0 0
  %9989 = vmatprep.subr.bf16.mxu0 0
  %9990 = vmatpush1.bf16.msra.mxu0 0
  %9991 = vmatprep.mubr.bf16.mxu0 0
  %9992 = vmatmul.mubr.bf16.gmra.mrb[0].mxu0 %v9260
  %v9993 = vpop.f32.mrb[0].mxu0
  %v9994 = vadd.f32 %v9953, %v9993
  %v9995 = vpop.f32.mrb[0].mxu0
  %v9996 = vadd.f32 %v9955, %v9995
  %v9997 = vpop.f32.mrb[0].mxu0
  %v9998 = vpop.f32.mrb[0].mxu0
  %9999 = vdwg.mxu0
  %10000 = vmatprep.subr.bf16.mxu0 %v7976
  %10001 = vmatpush1.bf16.msra.mxu0 %v7975
  %10002 = vmatprep.subr.bf16.mxu0 %v7994
  %10003 = vmatpush1.bf16.msra.mxu0 %v7993
  %10004 = vmatprep.subr.bf16.mxu0 %v8012
  %10005 = vmatpush1.bf16.msra.mxu0 %v8011
  %10006 = vmatprep.subr.bf16.mxu0 %v8030
  %10007 = vmatpush1.bf16.msra.mxu0 %v8029
  %10008 = vmatprep.subr.bf16.mxu0 %v8048
  %10009 = vmatpush1.bf16.msra.mxu0 %v8047
  %10010 = vmatprep.subr.bf16.mxu0 %v8066
  %10011 = vmatpush1.bf16.msra.mxu0 %v8065
  %10012 = vmatprep.subr.bf16.mxu0 %v8084
  %10013 = vmatpush1.bf16.msra.mxu0 %v8083
  %10014 = vmatprep.subr.bf16.mxu0 %v8102
  %10015 = vmatpush1.bf16.msra.mxu0 %v8101
  %10016 = vmatprep.subr.bf16.mxu0 %v8120
  %10017 = vmatpush1.bf16.msra.mxu0 %v8119
  %10018 = vmatprep.subr.bf16.mxu0 %v8138
  %10019 = vmatpush1.bf16.msra.mxu0 %v8137
  %10020 = vmatprep.subr.bf16.mxu0 %v8156
  %10021 = vmatpush1.bf16.msra.mxu0 %v8155
  %10022 = vmatprep.subr.bf16.mxu0 %v8174
  %10023 = vmatpush1.bf16.msra.mxu0 %v8173
  %10024 = vmatprep.subr.bf16.mxu0 %v8192
  %10025 = vmatpush1.bf16.msra.mxu0 %v8191
  %10026 = vmatprep.subr.bf16.mxu0 %v8210
  %10027 = vmatpush1.bf16.msra.mxu0 %v8209
  %10028 = vmatprep.subr.bf16.mxu0 %v8228
  %10029 = vmatpush1.bf16.msra.mxu0 %v8227
  %10030 = vmatprep.subr.bf16.mxu0 %v8246
  %10031 = vmatpush1.bf16.msra.mxu0 %v8245
  %10032 = vmatprep.mubr.bf16.mxu0 %v5367
  %10033 = vmatmul.mubr.bf16.gmra.mrb[0].mxu0 %v5366
  %v10034 = vpop.f32.mrb[0].mxu0
  %v10035 = vadd.f32 0.0, %v10034
  %v10036 = vpop.f32.mrb[0].mxu0
  %v10037 = vadd.f32 0.0, %v10036
  %v10038 = vpop.f32.mrb[0].mxu0
  %v10039 = vpop.f32.mrb[0].mxu0
  %10040 = vdwg.mxu0
  %10041 = vmatprep.subr.bf16.mxu0 %v8264
  %10042 = vmatpush1.bf16.msra.mxu0 %v8263
  %10043 = vmatprep.subr.bf16.mxu0 %v8282
  %10044 = vmatpush1.bf16.msra.mxu0 %v8281
  %10045 = vmatprep.subr.bf16.mxu0 %v8300
  %10046 = vmatpush1.bf16.msra.mxu0 %v8299
  %10047 = vmatprep.subr.bf16.mxu0 %v8318
  %10048 = vmatpush1.bf16.msra.mxu0 %v8317
  %10049 = vmatprep.subr.bf16.mxu0 %v8336
  %10050 = vmatpush1.bf16.msra.mxu0 %v8335
  %10051 = vmatprep.subr.bf16.mxu0 %v8354
  %10052 = vmatpush1.bf16.msra.mxu0 %v8353
  %10053 = vmatprep.subr.bf16.mxu0 %v8372
  %10054 = vmatpush1.bf16.msra.mxu0 %v8371
  %10055 = vmatprep.subr.bf16.mxu0 %v8390
  %10056 = vmatpush1.bf16.msra.mxu0 %v8389
  %10057 = vmatprep.subr.bf16.mxu0 %v8408
  %10058 = vmatpush1.bf16.msra.mxu0 %v8407
  %10059 = vmatprep.subr.bf16.mxu0 %v8426
  %10060 = vmatpush1.bf16.msra.mxu0 %v8425
  %10061 = vmatprep.subr.bf16.mxu0 %v8444
  %10062 = vmatpush1.bf16.msra.mxu0 %v8443
  %10063 = vmatprep.subr.bf16.mxu0 %v8462
  %10064 = vmatpush1.bf16.msra.mxu0 %v8461
  %10065 = vmatprep.subr.bf16.mxu0 %v8480
  %10066 = vmatpush1.bf16.msra.mxu0 %v8479
  %10067 = vmatprep.subr.bf16.mxu0 %v8498
  %10068 = vmatpush1.bf16.msra.mxu0 %v8497
  %10069 = vmatprep.subr.bf16.mxu0 %v8516
  %10070 = vmatpush1.bf16.msra.mxu0 %v8515
  %10071 = vmatprep.subr.bf16.mxu0 %v8534
  %10072 = vmatpush1.bf16.msra.mxu0 %v8533
  %10073 = vmatprep.mubr.bf16.mxu0 %v5369
  %10074 = vmatmul.mubr.bf16.gmra.mrb[0].mxu0 %v5368
  %v10075 = vpop.f32.mrb[0].mxu0
  %v10076 = vadd.f32 %v10035, %v10075
  %v10077 = vpop.f32.mrb[0].mxu0
  %v10078 = vadd.f32 %v10037, %v10077
  %v10079 = vpop.f32.mrb[0].mxu0
  %v10080 = vpop.f32.mrb[0].mxu0
  %10081 = vdwg.mxu0
  %10082 = vmatprep.subr.bf16.mxu0 %v8552
  %10083 = vmatpush1.bf16.msra.mxu0 %v8551
  %10084 = vmatprep.subr.bf16.mxu0 %v8570
  %10085 = vmatpush1.bf16.msra.mxu0 %v8569
  %10086 = vmatprep.subr.bf16.mxu0 %v8588
  %10087 = vmatpush1.bf16.msra.mxu0 %v8587
  %10088 = vmatprep.subr.bf16.mxu0 %v8606
  %10089 = vmatpush1.bf16.msra.mxu0 %v8605
  %10090 = vmatprep.subr.bf16.mxu0 0
  %10091 = vmatpush1.bf16.msra.mxu0 0
  %10092 = vmatprep.subr.bf16.mxu0 0
  %10093 = vmatpush1.bf16.msra.mxu0 0
  %10094 = vmatprep.subr.bf16.mxu0 0
  %10095 = vmatpush1.bf16.msra.mxu0 0
  %10096 = vmatprep.subr.bf16.mxu0 0
  %10097 = vmatpush1.bf16.msra.mxu0 0
  %10098 = vmatprep.subr.bf16.mxu0 0
  %10099 = vmatpush1.bf16.msra.mxu0 0
  %10100 = vmatprep.subr.bf16.mxu0 0
  %10101 = vmatpush1.bf16.msra.mxu0 0
  %10102 = vmatprep.subr.bf16.mxu0 0
  %10103 = vmatpush1.bf16.msra.mxu0 0
  %10104 = vmatprep.subr.bf16.mxu0 0
  %10105 = vmatpush1.bf16.msra.mxu0 0
  %10106 = vmatprep.subr.bf16.mxu0 0
  %10107 = vmatpush1.bf16.msra.mxu0 0
  %10108 = vmatprep.subr.bf16.mxu0 0
  %10109 = vmatpush1.bf16.msra.mxu0 0
  %10110 = vmatprep.subr.bf16.mxu0 0
  %10111 = vmatpush1.bf16.msra.mxu0 0
  %10112 = vmatprep.subr.bf16.mxu0 0
  %10113 = vmatpush1.bf16.msra.mxu0 0
  %10114 = vmatprep.mubr.bf16.mxu0 0
  %10115 = vmatmul.mubr.bf16.gmra.mrb[0].mxu0 %v9260
  %v10116 = vpop.f32.mrb[0].mxu0
  %v10117 = vadd.f32 %v10076, %v10116
  %v10118 = vpop.f32.mrb[0].mxu0
  %v10119 = vadd.f32 %v10078, %v10118
  %v10120 = vpop.f32.mrb[0].mxu0
  %v10121 = vpop.f32.mrb[0].mxu0
  %10122 = vdwg.mxu0
  %10123 = vmatprep.subr.bf16.mxu0 %v7978
  %10124 = vmatpush1.bf16.msra.mxu0 %v7977
  %10125 = vmatprep.subr.bf16.mxu0 %v7996
  %10126 = vmatpush1.bf16.msra.mxu0 %v7995
  %10127 = vmatprep.subr.bf16.mxu0 %v8014
  %10128 = vmatpush1.bf16.msra.mxu0 %v8013
  %10129 = vmatprep.subr.bf16.mxu0 %v8032
  %10130 = vmatpush1.bf16.msra.mxu0 %v8031
  %10131 = vmatprep.subr.bf16.mxu0 %v8050
  %10132 = vmatpush1.bf16.msra.mxu0 %v8049
  %10133 = vmatprep.subr.bf16.mxu0 %v8068
  %10134 = vmatpush1.bf16.msra.mxu0 %v8067
  %10135 = vmatprep.subr.bf16.mxu0 %v8086
  %10136 = vmatpush1.bf16.msra.mxu0 %v8085
  %10137 = vmatprep.subr.bf16.mxu0 %v8104
  %10138 = vmatpush1.bf16.msra.mxu0 %v8103
  %10139 = vmatprep.subr.bf16.mxu0 %v8122
  %10140 = vmatpush1.bf16.msra.mxu0 %v8121
  %10141 = vmatprep.subr.bf16.mxu0 %v8140
  %10142 = vmatpush1.bf16.msra.mxu0 %v8139
  %10143 = vmatprep.subr.bf16.mxu0 %v8158
  %10144 = vmatpush1.bf16.msra.mxu0 %v8157
  %10145 = vmatprep.subr.bf16.mxu0 %v8176
  %10146 = vmatpush1.bf16.msra.mxu0 %v8175
  %10147 = vmatprep.subr.bf16.mxu0 %v8194
  %10148 = vmatpush1.bf16.msra.mxu0 %v8193
  %10149 = vmatprep.subr.bf16.mxu0 %v8212
  %10150 = vmatpush1.bf16.msra.mxu0 %v8211
  %10151 = vmatprep.subr.bf16.mxu0 %v8230
  %10152 = vmatpush1.bf16.msra.mxu0 %v8229
  %10153 = vmatprep.subr.bf16.mxu0 %v8248
  %10154 = vmatpush1.bf16.msra.mxu0 %v8247
  %10155 = vmatprep.mubr.bf16.mxu0 %v5367
  %10156 = vmatmul.mubr.bf16.gmra.mrb[0].mxu0 %v5366
  %v10157 = vpop.f32.mrb[0].mxu0
  %v10158 = vadd.f32 0.0, %v10157
  %v10159 = vpop.f32.mrb[0].mxu0
  %v10160 = vadd.f32 0.0, %v10159
  %v10161 = vpop.f32.mrb[0].mxu0
  %v10162 = vpop.f32.mrb[0].mxu0
  %10163 = vdwg.mxu0
  %10164 = vmatprep.subr.bf16.mxu0 %v8266
  %10165 = vmatpush1.bf16.msra.mxu0 %v8265
  %10166 = vmatprep.subr.bf16.mxu0 %v8284
  %10167 = vmatpush1.bf16.msra.mxu0 %v8283
  %10168 = vmatprep.subr.bf16.mxu0 %v8302
  %10169 = vmatpush1.bf16.msra.mxu0 %v8301
  %10170 = vmatprep.subr.bf16.mxu0 %v8320
  %10171 = vmatpush1.bf16.msra.mxu0 %v8319
  %10172 = vmatprep.subr.bf16.mxu0 %v8338
  %10173 = vmatpush1.bf16.msra.mxu0 %v8337
  %10174 = vmatprep.subr.bf16.mxu0 %v8356
  %10175 = vmatpush1.bf16.msra.mxu0 %v8355
  %10176 = vmatprep.subr.bf16.mxu0 %v8374
  %10177 = vmatpush1.bf16.msra.mxu0 %v8373
  %10178 = vmatprep.subr.bf16.mxu0 %v8392
  %10179 = vmatpush1.bf16.msra.mxu0 %v8391
  %10180 = vmatprep.subr.bf16.mxu0 %v8410
  %10181 = vmatpush1.bf16.msra.mxu0 %v8409
  %10182 = vmatprep.subr.bf16.mxu0 %v8428
  %10183 = vmatpush1.bf16.msra.mxu0 %v8427
  %10184 = vmatprep.subr.bf16.mxu0 %v8446
  %10185 = vmatpush1.bf16.msra.mxu0 %v8445
  %10186 = vmatprep.subr.bf16.mxu0 %v8464
  %10187 = vmatpush1.bf16.msra.mxu0 %v8463
  %10188 = vmatprep.subr.bf16.mxu0 %v8482
  %10189 = vmatpush1.bf16.msra.mxu0 %v8481
  %10190 = vmatprep.subr.bf16.mxu0 %v8500
  %10191 = vmatpush1.bf16.msra.mxu0 %v8499
  %10192 = vmatprep.subr.bf16.mxu0 %v8518
  %10193 = vmatpush1.bf16.msra.mxu0 %v8517
  %10194 = vmatprep.subr.bf16.mxu0 %v8536
  %10195 = vmatpush1.bf16.msra.mxu0 %v8535
  %10196 = vmatprep.mubr.bf16.mxu0 %v5369
  %10197 = vmatmul.mubr.bf16.gmra.mrb[0].mxu0 %v5368
  %v10198 = vpop.f32.mrb[0].mxu0
  %v10199 = vadd.f32 %v10158, %v10198
  %v10200 = vpop.f32.mrb[0].mxu0
  %v10201 = vadd.f32 %v10160, %v10200
  %v10202 = vpop.f32.mrb[0].mxu0
  %v10203 = vpop.f32.mrb[0].mxu0
  %10204 = vdwg.mxu0
  %10205 = vmatprep.subr.bf16.mxu0 %v8554
  %10206 = vmatpush1.bf16.msra.mxu0 %v8553
  %10207 = vmatprep.subr.bf16.mxu0 %v8572
  %10208 = vmatpush1.bf16.msra.mxu0 %v8571
  %10209 = vmatprep.subr.bf16.mxu0 %v8590
  %10210 = vmatpush1.bf16.msra.mxu0 %v8589
  %10211 = vmatprep.subr.bf16.mxu0 %v8608
  %10212 = vmatpush1.bf16.msra.mxu0 %v8607
  %10213 = vmatprep.subr.bf16.mxu0 0
  %10214 = vmatpush1.bf16.msra.mxu0 0
  %10215 = vmatprep.subr.bf16.mxu0 0
  %10216 = vmatpush1.bf16.msra.mxu0 0
  %10217 = vmatprep.subr.bf16.mxu0 0
  %10218 = vmatpush1.bf16.msra.mxu0 0
  %10219 = vmatprep.subr.bf16.mxu0 0
  %10220 = vmatpush1.bf16.msra.mxu0 0
  %10221 = vmatprep.subr.bf16.mxu0 0
  %10222 = vmatpush1.bf16.msra.mxu0 0
  %10223 = vmatprep.subr.bf16.mxu0 0
  %10224 = vmatpush1.bf16.msra.mxu0 0
  %10225 = vmatprep.subr.bf16.mxu0 0
  %10226 = vmatpush1.bf16.msra.mxu0 0
  %10227 = vmatprep.subr.bf16.mxu0 0
  %10228 = vmatpush1.bf16.msra.mxu0 0
  %10229 = vmatprep.subr.bf16.mxu0 0
  %10230 = vmatpush1.bf16.msra.mxu0 0
  %10231 = vmatprep.subr.bf16.mxu0 0
  %10232 = vmatpush1.bf16.msra.mxu0 0
  %10233 = vmatprep.subr.bf16.mxu0 0
  %10234 = vmatpush1.bf16.msra.mxu0 0
  %10235 = vmatprep.subr.bf16.mxu0 0
  %10236 = vmatpush1.bf16.msra.mxu0 0
  %10237 = vmatprep.mubr.bf16.mxu0 0
  %10238 = vmatmul.mubr.bf16.gmra.mrb[0].mxu0 %v9260
  %v10239 = vpop.f32.mrb[0].mxu0
  %v10240 = vadd.f32 %v10199, %v10239
  %v10241 = vpop.f32.mrb[0].mxu0
  %v10242 = vadd.f32 %v10201, %v10241
  %v10243 = vpop.f32.mrb[0].mxu0
  %v10244 = vpop.f32.mrb[0].mxu0
  %10245 = vdwg.mxu0
  %10246 = vmatprep.subr.bf16.mxu0 %v7980
  %10247 = vmatpush1.bf16.msra.mxu0 %v7979
  %10248 = vmatprep.subr.bf16.mxu0 %v7998
  %10249 = vmatpush1.bf16.msra.mxu0 %v7997
  %10250 = vmatprep.subr.bf16.mxu0 %v8016
  %10251 = vmatpush1.bf16.msra.mxu0 %v8015
  %10252 = vmatprep.subr.bf16.mxu0 %v8034
  %10253 = vmatpush1.bf16.msra.mxu0 %v8033
  %10254 = vmatprep.subr.bf16.mxu0 %v8052
  %10255 = vmatpush1.bf16.msra.mxu0 %v8051
  %10256 = vmatprep.subr.bf16.mxu0 %v8070
  %10257 = vmatpush1.bf16.msra.mxu0 %v8069
  %10258 = vmatprep.subr.bf16.mxu0 %v8088
  %10259 = vmatpush1.bf16.msra.mxu0 %v8087
  %10260 = vmatprep.subr.bf16.mxu0 %v8106
  %10261 = vmatpush1.bf16.msra.mxu0 %v8105
  %10262 = vmatprep.subr.bf16.mxu0 %v8124
  %10263 = vmatpush1.bf16.msra.mxu0 %v8123
  %10264 = vmatprep.subr.bf16.mxu0 %v8142
  %10265 = vmatpush1.bf16.msra.mxu0 %v8141
  %10266 = vmatprep.subr.bf16.mxu0 %v8160
  %10267 = vmatpush1.bf16.msra.mxu0 %v8159
  %10268 = vmatprep.subr.bf16.mxu0 %v8178
  %10269 = vmatpush1.bf16.msra.mxu0 %v8177
  %10270 = vmatprep.subr.bf16.mxu0 %v8196
  %10271 = vmatpush1.bf16.msra.mxu0 %v8195
  %10272 = vmatprep.subr.bf16.mxu0 %v8214
  %10273 = vmatpush1.bf16.msra.mxu0 %v8213
  %10274 = vmatprep.subr.bf16.mxu0 %v8232
  %10275 = vmatpush1.bf16.msra.mxu0 %v8231
  %10276 = vmatprep.subr.bf16.mxu0 %v8250
  %10277 = vmatpush1.bf16.msra.mxu0 %v8249
  %10278 = vmatprep.mubr.bf16.mxu0 %v5367
  %10279 = vmatmul.mubr.bf16.gmra.mrb[0].mxu0 %v5366
  %v10280 = vpop.f32.mrb[0].mxu0
  %v10281 = vadd.f32 0.0, %v10280
  %v10282 = vpop.f32.mrb[0].mxu0
  %v10283 = vadd.f32 0.0, %v10282
  %v10284 = vpop.f32.mrb[0].mxu0
  %v10285 = vpop.f32.mrb[0].mxu0
  %10286 = vdwg.mxu0
  %10287 = vmatprep.subr.bf16.mxu0 %v8268
  %10288 = vmatpush1.bf16.msra.mxu0 %v8267
  %10289 = vmatprep.subr.bf16.mxu0 %v8286
  %10290 = vmatpush1.bf16.msra.mxu0 %v8285
  %10291 = vmatprep.subr.bf16.mxu0 %v8304
  %10292 = vmatpush1.bf16.msra.mxu0 %v8303
  %10293 = vmatprep.subr.bf16.mxu0 %v8322
  %10294 = vmatpush1.bf16.msra.mxu0 %v8321
  %10295 = vmatprep.subr.bf16.mxu0 %v8340
  %10296 = vmatpush1.bf16.msra.mxu0 %v8339
  %10297 = vmatprep.subr.bf16.mxu0 %v8358
  %10298 = vmatpush1.bf16.msra.mxu0 %v8357
  %10299 = vmatprep.subr.bf16.mxu0 %v8376
  %10300 = vmatpush1.bf16.msra.mxu0 %v8375
  %10301 = vmatprep.subr.bf16.mxu0 %v8394
  %10302 = vmatpush1.bf16.msra.mxu0 %v8393
  %10303 = vmatprep.subr.bf16.mxu0 %v8412
  %10304 = vmatpush1.bf16.msra.mxu0 %v8411
  %10305 = vmatprep.subr.bf16.mxu0 %v8430
  %10306 = vmatpush1.bf16.msra.mxu0 %v8429
  %10307 = vmatprep.subr.bf16.mxu0 %v8448
  %10308 = vmatpush1.bf16.msra.mxu0 %v8447
  %10309 = vmatprep.subr.bf16.mxu0 %v8466
  %10310 = vmatpush1.bf16.msra.mxu0 %v8465
  %10311 = vmatprep.subr.bf16.mxu0 %v8484
  %10312 = vmatpush1.bf16.msra.mxu0 %v8483
  %10313 = vmatprep.subr.bf16.mxu0 %v8502
  %10314 = vmatpush1.bf16.msra.mxu0 %v8501
  %10315 = vmatprep.subr.bf16.mxu0 %v8520
  %10316 = vmatpush1.bf16.msra.mxu0 %v8519
  %10317 = vmatprep.subr.bf16.mxu0 %v8538
  %10318 = vmatpush1.bf16.msra.mxu0 %v8537
  %10319 = vmatprep.mubr.bf16.mxu0 %v5369
  %10320 = vmatmul.mubr.bf16.gmra.mrb[0].mxu0 %v5368
  %v10321 = vpop.f32.mrb[0].mxu0
  %v10322 = vadd.f32 %v10281, %v10321
  %v10323 = vpop.f32.mrb[0].mxu0
  %v10324 = vadd.f32 %v10283, %v10323
  %v10325 = vpop.f32.mrb[0].mxu0
  %v10326 = vpop.f32.mrb[0].mxu0
  %10327 = vdwg.mxu0
  %10328 = vmatprep.subr.bf16.mxu0 %v8556
  %10329 = vmatpush1.bf16.msra.mxu0 %v8555
  %10330 = vmatprep.subr.bf16.mxu0 %v8574
  %10331 = vmatpush1.bf16.msra.mxu0 %v8573
  %10332 = vmatprep.subr.bf16.mxu0 %v8592
  %10333 = vmatpush1.bf16.msra.mxu0 %v8591
  %10334 = vmatprep.subr.bf16.mxu0 %v8610
  %10335 = vmatpush1.bf16.msra.mxu0 %v8609
  %10336 = vmatprep.subr.bf16.mxu0 0
  %10337 = vmatpush1.bf16.msra.mxu0 0
  %10338 = vmatprep.subr.bf16.mxu0 0
  %10339 = vmatpush1.bf16.msra.mxu0 0
  %10340 = vmatprep.subr.bf16.mxu0 0
  %10341 = vmatpush1.bf16.msra.mxu0 0
  %10342 = vmatprep.subr.bf16.mxu0 0
  %10343 = vmatpush1.bf16.msra.mxu0 0
  %10344 = vmatprep.subr.bf16.mxu0 0
  %10345 = vmatpush1.bf16.msra.mxu0 0
  %10346 = vmatprep.subr.bf16.mxu0 0
  %10347 = vmatpush1.bf16.msra.mxu0 0
  %10348 = vmatprep.subr.bf16.mxu0 0
  %10349 = vmatpush1.bf16.msra.mxu0 0
  %10350 = vmatprep.subr.bf16.mxu0 0
  %10351 = vmatpush1.bf16.msra.mxu0 0
  %10352 = vmatprep.subr.bf16.mxu0 0
  %10353 = vmatpush1.bf16.msra.mxu0 0
  %10354 = vmatprep.subr.bf16.mxu0 0
  %10355 = vmatpush1.bf16.msra.mxu0 0
  %10356 = vmatprep.subr.bf16.mxu0 0
  %10357 = vmatpush1.bf16.msra.mxu0 0
  %10358 = vmatprep.subr.bf16.mxu0 0
  %10359 = vmatpush1.bf16.msra.mxu0 0
  %10360 = vmatprep.mubr.bf16.mxu0 0
  %10361 = vmatmul.mubr.bf16.gmra.mrb[0].mxu0 %v9260
  %v10362 = vpop.f32.mrb[0].mxu0
  %v10363 = vadd.f32 %v10322, %v10362
  %v10364 = vpop.f32.mrb[0].mxu0
  %v10365 = vadd.f32 %v10324, %v10364
  %v10366 = vpop.f32.mrb[0].mxu0
  %v10367 = vpop.f32.mrb[0].mxu0
  %10368 = vdwg.mxu0
  %v10369 = vmax.f32 %v9379, %v9502
  %v10370 = vmax.f32 %v9381, %v9504
  %v10371 = vmax.f32 %v10369, %v9625
  %v10372 = vmax.f32 %v10370, %v9627
  %v10373 = vmax.f32 %v10371, %v9748
  %v10374 = vmax.f32 %v10372, %v9750
  %v10375 = vmax.f32 %v10373, %v9871
  %v10376 = vmax.f32 %v10374, %v9873
  %v10377 = vmax.f32 %v10375, %v9994
  %v10378 = vmax.f32 %v10376, %v9996
  %v10379 = vmax.f32 %v10377, %v10117
  %v10380 = vmax.f32 %v10378, %v10119
  %v10381 = vmax.f32 %v10379, %v10240
  %v10382 = vmax.f32 %v10380, %v10242
  %v10383 = vmax.f32 %v10381, %v10363
  %v10384 = vmax.f32 %v10382, %v10365
  %v10385 = vld [vmem:[%s4] sm:$0x3]
  %v10387 = vlaneseq
  %v10388 = vshrl.u32 %v10387, 7
  %v10389 = vsub.s32 0, %v10388
  %v10390 = vrot.slane %v10385, %v10389
  %v10391 = vlaneseq
  %v10392 = vshrl.u32 %v10391, 7
  %v10393 = vsub.s32 1, %v10392
  %v10394 = vrot.slane %v10385, %v10393
  %v10397 = vadd.f32 %v10383, %v10390
  %v10398 = vadd.f32 %v10384, %v10394
  %v10399 = vmax.f32 %v10397, 0.0
  %v10400 = vmax.f32 %v10398, 0.0
  %v10401 = vpack.c.bf16 %v10399, %v10399
  %v10402 = vpack.c.bf16 %v10400, %v10400
  %v10403 = vld [vmem:[%s5] sm:$0xff]
  %v10404 = vld [vmem:[%s5 + $0x8] sm:$0xf]
  %v10405 = vld [vmem:[%s5 + $0xc] sm:$0xff]
  %v10406 = vld [vmem:[%s5 + $0x14] sm:$0xf]
  %v10407 = vld [vmem:[%s5 + $0x18] sm:$0xff]
  %v10408 = vld [vmem:[%s5 + $0x20] sm:$0xf]
  %v10409 = vld [vmem:[%s5 + $0x24] sm:$0xff]
  %v10410 = vld [vmem:[%s5 + $0x2c] sm:$0xf]
  %v10411 = vld [vmem:[%s5 + $0x30] sm:$0xff]
  %v10412 = vld [vmem:[%s5 + $0x38] sm:$0xf]
  %v10413 = vld [vmem:[%s5 + $0x3c] sm:$0xff]
  %v10414 = vld [vmem:[%s5 + $0x44] sm:$0xf]
  %v10415 = vld [vmem:[%s5 + $0x48] sm:$0xff]
  %v10416 = vld [vmem:[%s5 + $0x50] sm:$0xf]
  %v10417 = vld [vmem:[%s5 + $0x54] sm:$0xff]
  %v10418 = vld [vmem:[%s5 + $0x5c] sm:$0xf]
  %v10419 = vld [vmem:[%s5 + $0x60] sm:$0xff]
  %v10420 = vld [vmem:[%s5 + $0x68] sm:$0xf]
  %v10421 = vld [vmem:[%s5 + $0x6c] sm:$0xff]
  %v10422 = vld [vmem:[%s5 + $0x74] sm:$0xf]
  %v10423 = vld [vmem:[%s5 + $0x78] sm:$0xff]
  %v10424 = vld [vmem:[%s5 + $0x80] sm:$0xf]
  %v10425 = vld [vmem:[%s5 + $0x84] sm:$0xff]
  %v10426 = vld [vmem:[%s5 + $0x8c] sm:$0xf]
  %v10427 = vld [vmem:[%s5 + $0x90] sm:$0xff]
  %v10428 = vld [vmem:[%s5 + $0x98] sm:$0xf]
  %v10429 = vld [vmem:[%s5 + $0x9c] sm:$0xff]
  %v10430 = vld [vmem:[%s5 + $0xa4] sm:$0xf]
  %v10431 = vld [vmem:[%s5 + $0xa8] sm:$0xff]
  %v10432 = vld [vmem:[%s5 + $0xb0] sm:$0xf]
  %v10433 = vld [vmem:[%s5 + $0xb4] sm:$0xff]
  %v10434 = vld [vmem:[%s5 + $0xbc] sm:$0xf]
  %v10435 = vld [vmem:[%s5 + $0xc0] sm:$0xff]
  %v10436 = vld [vmem:[%s5 + $0xc8] sm:$0xf]
  %v10437 = vld [vmem:[%s5 + $0xcc] sm:$0xff]
  %v10438 = vld [vmem:[%s5 + $0xd4] sm:$0xf]
  %v10439 = vld [vmem:[%s5 + $0xd8] sm:$0xff]
  %v10440 = vld [vmem:[%s5 + $0xe0] sm:$0xf]
  %v10441 = vld [vmem:[%s5 + $0xe4] sm:$0xff]
  %v10442 = vld [vmem:[%s5 + $0xec] sm:$0xf]
  %v10443 = vld [vmem:[%s5 + $0xf0] sm:$0xff]
  %v10444 = vld [vmem:[%s5 + $0xf8] sm:$0xf]
  %v10445 = vld [vmem:[%s5 + $0xfc] sm:$0xff]
  %v10446 = vld [vmem:[%s5 + $0x104] sm:$0xf]
  %v10447 = vld [vmem:[%s5 + $0x108] sm:$0xff]
  %v10448 = vld [vmem:[%s5 + $0x110] sm:$0xf]
  %v10449 = vld [vmem:[%s5 + $0x114] sm:$0xff]
  %v10450 = vld [vmem:[%s5 + $0x11c] sm:$0xf]
  %v10451 = vld [vmem:[%s5 + $0x120] sm:$0xff]
  %v10452 = vld [vmem:[%s5 + $0x128] sm:$0xf]
  %v10453 = vld [vmem:[%s5 + $0x12c] sm:$0xff]
  %v10454 = vld [vmem:[%s5 + $0x134] sm:$0xf]
  %v10455 = vld [vmem:[%s5 + $0x138] sm:$0xff]
  %v10456 = vld [vmem:[%s5 + $0x140] sm:$0xf]
  %v10457 = vld [vmem:[%s5 + $0x144] sm:$0xff]
  %v10458 = vld [vmem:[%s5 + $0x14c] sm:$0xf]
  %v10459 = vld [vmem:[%s5 + $0x150] sm:$0xff]
  %v10460 = vld [vmem:[%s5 + $0x158] sm:$0xf]
  %v10461 = vld [vmem:[%s5 + $0x15c] sm:$0xff]
  %v10462 = vld [vmem:[%s5 + $0x164] sm:$0xf]
  %v10463 = vld [vmem:[%s5 + $0x168] sm:$0xff]
  %v10464 = vld [vmem:[%s5 + $0x170] sm:$0xf]
  %v10465 = vld [vmem:[%s5 + $0x174] sm:$0xff]
  %v10466 = vld [vmem:[%s5 + $0x17c] sm:$0xf]
  %v10467 = vld [vmem:[%s6] sm:$0x7]
  %v10469 = vlaneseq
  %v10470 = vshrl.u32 %v10469, 7
  %v10471 = vsub.s32 0, %v10470
  %v10472 = vrot.slane %v10467, %v10471
  %v10473 = vlaneseq
  %v10474 = vshrl.u32 %v10473, 7
  %v10475 = vsub.s32 1, %v10474
  %v10476 = vrot.slane %v10467, %v10475
  %v10477 = vlaneseq
  %v10478 = vshrl.u32 %v10477, 7
  %v10479 = vsub.s32 2, %v10478
  %v10480 = vrot.slane %v10467, %v10479
  %v10548 = vunpack.c.l.b16 %v10403
  %v10549 = vunpack.c.h.b16 %v10403
  %v10550 = vunpack.c.l.b16 %v10404
  %v10551 = vunpack.c.l.b16 %v10405
  %v10552 = vunpack.c.h.b16 %v10405
  %v10553 = vunpack.c.l.b16 %v10406
  %v10554 = vunpack.c.l.b16 %v10407
  %v10555 = vunpack.c.h.b16 %v10407
  %v10556 = vunpack.c.l.b16 %v10408
  %v10557 = vunpack.c.l.b16 %v10409
  %v10558 = vunpack.c.h.b16 %v10409
  %v10559 = vunpack.c.l.b16 %v10410
  %v10560 = vunpack.c.l.b16 %v10411
  %v10561 = vunpack.c.h.b16 %v10411
  %v10562 = vunpack.c.l.b16 %v10412
  %v10563 = vunpack.c.l.b16 %v10413
  %v10564 = vunpack.c.h.b16 %v10413
  %v10565 = vunpack.c.l.b16 %v10414
  %v10566 = vunpack.c.l.b16 %v10415
  %v10567 = vunpack.c.h.b16 %v10415
  %v10568 = vunpack.c.l.b16 %v10416
  %v10569 = vunpack.c.l.b16 %v10417
  %v10570 = vunpack.c.h.b16 %v10417
  %v10571 = vunpack.c.l.b16 %v10418
  %v10572 = vunpack.c.l.b16 %v10419
  %v10573 = vunpack.c.h.b16 %v10419
  %v10574 = vunpack.c.l.b16 %v10420
  %v10575 = vunpack.c.l.b16 %v10421
  %v10576 = vunpack.c.h.b16 %v10421
  %v10577 = vunpack.c.l.b16 %v10422
  %v10578 = vunpack.c.l.b16 %v10423
  %v10579 = vunpack.c.h.b16 %v10423
  %v10580 = vunpack.c.l.b16 %v10424
  %v10581 = vunpack.c.l.b16 %v10425
  %v10582 = vunpack.c.h.b16 %v10425
  %v10583 = vunpack.c.l.b16 %v10426
  %v10584 = vunpack.c.l.b16 %v10427
  %v10585 = vunpack.c.h.b16 %v10427
  %v10586 = vunpack.c.l.b16 %v10428
  %v10587 = vunpack.c.l.b16 %v10429
  %v10588 = vunpack.c.h.b16 %v10429
  %v10589 = vunpack.c.l.b16 %v10430
  %v10590 = vunpack.c.l.b16 %v10431
  %v10591 = vunpack.c.h.b16 %v10431
  %v10592 = vunpack.c.l.b16 %v10432
  %v10593 = vunpack.c.l.b16 %v10433
  %v10594 = vunpack.c.h.b16 %v10433
  %v10595 = vunpack.c.l.b16 %v10434
  %v10596 = vunpack.c.l.b16 %v10435
  %v10597 = vunpack.c.h.b16 %v10435
  %v10598 = vunpack.c.l.b16 %v10436
  %v10599 = vunpack.c.l.b16 %v10437
  %v10600 = vunpack.c.h.b16 %v10437
  %v10601 = vunpack.c.l.b16 %v10438
  %v10602 = vunpack.c.l.b16 %v10439
  %v10603 = vunpack.c.h.b16 %v10439
  %v10604 = vunpack.c.l.b16 %v10440
  %v10605 = vunpack.c.l.b16 %v10441
  %v10606 = vunpack.c.h.b16 %v10441
  %v10607 = vunpack.c.l.b16 %v10442
  %v10608 = vunpack.c.l.b16 %v10443
  %v10609 = vunpack.c.h.b16 %v10443
  %v10610 = vunpack.c.l.b16 %v10444
  %v10611 = vunpack.c.l.b16 %v10445
  %v10612 = vunpack.c.h.b16 %v10445
  %v10613 = vunpack.c.l.b16 %v10446
  %v10614 = vunpack.c.l.b16 %v10447
  %v10615 = vunpack.c.h.b16 %v10447
  %v10616 = vunpack.c.l.b16 %v10448
  %v10617 = vunpack.c.l.b16 %v10449
  %v10618 = vunpack.c.h.b16 %v10449
  %v10619 = vunpack.c.l.b16 %v10450
  %v10620 = vunpack.c.l.b16 %v10451
  %v10621 = vunpack.c.h.b16 %v10451
  %v10622 = vunpack.c.l.b16 %v10452
  %v10623 = vunpack.c.l.b16 %v10453
  %v10624 = vunpack.c.h.b16 %v10453
  %v10625 = vunpack.c.l.b16 %v10454
  %v10626 = vunpack.c.l.b16 %v10455
  %v10627 = vunpack.c.h.b16 %v10455
  %v10628 = vunpack.c.l.b16 %v10456
  %v10629 = vunpack.c.l.b16 %v10457
  %v10630 = vunpack.c.h.b16 %v10457
  %v10631 = vunpack.c.l.b16 %v10458
  %v10632 = vunpack.c.l.b16 %v10459
  %v10633 = vunpack.c.h.b16 %v10459
  %v10634 = vunpack.c.l.b16 %v10460
  %v10635 = vunpack.c.l.b16 %v10461
  %v10636 = vunpack.c.h.b16 %v10461
  %v10637 = vunpack.c.l.b16 %v10462
  %v10638 = vunpack.c.l.b16 %v10463
  %v10639 = vunpack.c.h.b16 %v10463
  %v10640 = vunpack.c.l.b16 %v10464
  %v10641 = vunpack.c.l.b16 %v10465
  %v10642 = vunpack.c.h.b16 %v10465
  %v10643 = vunpack.c.l.b16 %v10466
  %v10644 = vpack.c.b16 %v10551, %v10548
  %v10645 = vpack.c.b16 %v10552, %v10549
  %v10646 = vpack.c.b16 %v10553, %v10550
  %v10647 = vpack.c.b16 %v10557, %v10554
  %v10648 = vpack.c.b16 %v10558, %v10555
  %v10649 = vpack.c.b16 %v10559, %v10556
  %v10650 = vpack.c.b16 %v10563, %v10560
  %v10651 = vpack.c.b16 %v10564, %v10561
  %v10652 = vpack.c.b16 %v10565, %v10562
  %v10653 = vpack.c.b16 %v10569, %v10566
  %v10654 = vpack.c.b16 %v10570, %v10567
  %v10655 = vpack.c.b16 %v10571, %v10568
  %v10656 = vpack.c.b16 %v10575, %v10572
  %v10657 = vpack.c.b16 %v10576, %v10573
  %v10658 = vpack.c.b16 %v10577, %v10574
  %v10659 = vpack.c.b16 %v10581, %v10578
  %v10660 = vpack.c.b16 %v10582, %v10579
  %v10661 = vpack.c.b16 %v10583, %v10580
  %v10662 = vpack.c.b16 %v10587, %v10584
  %v10663 = vpack.c.b16 %v10588, %v10585
  %v10664 = vpack.c.b16 %v10589, %v10586
  %v10665 = vpack.c.b16 %v10593, %v10590
  %v10666 = vpack.c.b16 %v10594, %v10591
  %v10667 = vpack.c.b16 %v10595, %v10592
  %v10668 = vpack.c.b16 %v10599, %v10596
  %v10669 = vpack.c.b16 %v10600, %v10597
  %v10670 = vpack.c.b16 %v10601, %v10598
  %v10671 = vpack.c.b16 %v10605, %v10602
  %v10672 = vpack.c.b16 %v10606, %v10603
  %v10673 = vpack.c.b16 %v10607, %v10604
  %v10674 = vpack.c.b16 %v10611, %v10608
  %v10675 = vpack.c.b16 %v10612, %v10609
  %v10676 = vpack.c.b16 %v10613, %v10610
  %v10677 = vpack.c.b16 %v10617, %v10614
  %v10678 = vpack.c.b16 %v10618, %v10615
  %v10679 = vpack.c.b16 %v10619, %v10616
  %v10680 = vpack.c.b16 %v10623, %v10620
  %v10681 = vpack.c.b16 %v10624, %v10621
  %v10682 = vpack.c.b16 %v10625, %v10622
  %v10683 = vpack.c.b16 %v10629, %v10626
  %v10684 = vpack.c.b16 %v10630, %v10627
  %v10685 = vpack.c.b16 %v10631, %v10628
  %v10686 = vpack.c.b16 %v10635, %v10632
  %v10687 = vpack.c.b16 %v10636, %v10633
  %v10688 = vpack.c.b16 %v10637, %v10634
  %v10689 = vpack.c.b16 %v10641, %v10638
  %v10690 = vpack.c.b16 %v10642, %v10639
  %v10691 = vpack.c.b16 %v10643, %v10640
  %10740 = vmatprep.subr.bf16.mxu0 %v10645
  %10741 = vmatpush1.bf16.msra.mxu0 %v10644
  %10742 = vmatprep.subr.bf16.mxu0 %v10648
  %10743 = vmatpush1.bf16.msra.mxu0 %v10647
  %10744 = vmatprep.subr.bf16.mxu0 %v10651
  %10745 = vmatpush1.bf16.msra.mxu0 %v10650
  %10746 = vmatprep.subr.bf16.mxu0 %v10654
  %10747 = vmatpush1.bf16.msra.mxu0 %v10653
  %10748 = vmatprep.subr.bf16.mxu0 %v10657
  %10749 = vmatpush1.bf16.msra.mxu0 %v10656
  %10750 = vmatprep.subr.bf16.mxu0 %v10660
  %10751 = vmatpush1.bf16.msra.mxu0 %v10659
  %10752 = vmatprep.subr.bf16.mxu0 %v10663
  %10753 = vmatpush1.bf16.msra.mxu0 %v10662
  %10754 = vmatprep.subr.bf16.mxu0 %v10666
  %10755 = vmatpush1.bf16.msra.mxu0 %v10665
  %10756 = vmatprep.subr.bf16.mxu0 %v10669
  %10757 = vmatpush1.bf16.msra.mxu0 %v10668
  %10758 = vmatprep.subr.bf16.mxu0 %v10672
  %10759 = vmatpush1.bf16.msra.mxu0 %v10671
  %10760 = vmatprep.subr.bf16.mxu0 %v10675
  %10761 = vmatpush1.bf16.msra.mxu0 %v10674
  %10762 = vmatprep.subr.bf16.mxu0 %v10678
  %10763 = vmatpush1.bf16.msra.mxu0 %v10677
  %10764 = vmatprep.subr.bf16.mxu0 %v10681
  %10765 = vmatpush1.bf16.msra.mxu0 %v10680
  %10766 = vmatprep.subr.bf16.mxu0 %v10684
  %10767 = vmatpush1.bf16.msra.mxu0 %v10683
  %10768 = vmatprep.subr.bf16.mxu0 %v10687
  %10769 = vmatpush1.bf16.msra.mxu0 %v10686
  %10770 = vmatprep.subr.bf16.mxu0 %v10690
  %10771 = vmatpush1.bf16.msra.mxu0 %v10689
  %10772 = vmatprep.mubr.bf16.mxu0 %v10402
  %10773 = vmatmul.mubr.bf16.gmra.mrb[0].mxu0 %v10401
  %v10774 = vpop.f32.mrb[0].mxu0
  %v10775 = vadd.f32 %v10472, %v10774
  %v10776 = vpop.f32.mrb[0].mxu0
  %v10777 = vadd.f32 %v10476, %v10776
  %v10778 = vpop.f32.mrb[0].mxu0
  %v10779 = vpop.f32.mrb[0].mxu0
  %10780 = vdwg.mxu0
  %10781 = vmatprep.subr.bf16.mxu0 0
  %10782 = vmatpush1.bf16.msra.mxu0 %v10646
  %10783 = vmatprep.subr.bf16.mxu0 0
  %10784 = vmatpush1.bf16.msra.mxu0 %v10649
  %10785 = vmatprep.subr.bf16.mxu0 0
  %10786 = vmatpush1.bf16.msra.mxu0 %v10652
  %10787 = vmatprep.subr.bf16.mxu0 0
  %10788 = vmatpush1.bf16.msra.mxu0 %v10655
  %10789 = vmatprep.subr.bf16.mxu0 0
  %10790 = vmatpush1.bf16.msra.mxu0 %v10658
  %10791 = vmatprep.subr.bf16.mxu0 0
  %10792 = vmatpush1.bf16.msra.mxu0 %v10661
  %10793 = vmatprep.subr.bf16.mxu0 0
  %10794 = vmatpush1.bf16.msra.mxu0 %v10664
  %10795 = vmatprep.subr.bf16.mxu0 0
  %10796 = vmatpush1.bf16.msra.mxu0 %v10667
  %10797 = vmatprep.subr.bf16.mxu0 0
  %10798 = vmatpush1.bf16.msra.mxu0 %v10670
  %10799 = vmatprep.subr.bf16.mxu0 0
  %10800 = vmatpush1.bf16.msra.mxu0 %v10673
  %10801 = vmatprep.subr.bf16.mxu0 0
  %10802 = vmatpush1.bf16.msra.mxu0 %v10676
  %10803 = vmatprep.subr.bf16.mxu0 0
  %10804 = vmatpush1.bf16.msra.mxu0 %v10679
  %10805 = vmatprep.subr.bf16.mxu0 0
  %10806 = vmatpush1.bf16.msra.mxu0 %v10682
  %10807 = vmatprep.subr.bf16.mxu0 0
  %10808 = vmatpush1.bf16.msra.mxu0 %v10685
  %10809 = vmatprep.subr.bf16.mxu0 0
  %10810 = vmatpush1.bf16.msra.mxu0 %v10688
  %10811 = vmatprep.subr.bf16.mxu0 0
  %10812 = vmatpush1.bf16.msra.mxu0 %v10691
  %10813 = vmatprep.mubr.bf16.mxu0 %v10402
  %10814 = vmatmul.mubr.bf16.gmra.mrb[0].mxu0 %v10401
  %v10815 = vpop.f32.mrb[0].mxu0
  %v10816 = vadd.f32 %v10480, %v10815
  %v10817 = vpop.f32.mrb[0].mxu0
  %v10818 = vpop.f32.mrb[0].mxu0
  %v10819 = vpop.f32.mrb[0].mxu0
  %10820 = vdwg.mxu0
  %v10821 = vmax.f32 %v10775, 0.0
  %v10822 = vmax.f32 %v10777, 0.0
  %v10823 = vmax.f32 %v10816, 0.0
  %v10824 = vpack.c.bf16 %v10821, %v10821
  %v10825 = vpack.c.bf16 %v10822, %v10822
  %v10826 = vpack.c.bf16 %v10823, %v10823
  %v10827 = vld [vmem:[%s7] sm:$0xff]
  %v10828 = vld [vmem:[%s7 + $0x8] sm:$0xff]
  %v10829 = vld [vmem:[%s7 + $0x10] sm:$0xff]
  %v10830 = vld [vmem:[%s7 + $0x18] sm:$0xff]
  %v10831 = vld [vmem:[%s7 + $0x20] sm:$0xff]
  %v10832 = vld [vmem:[%s7 + $0x28] sm:$0xff]
  %v10833 = vld [vmem:[%s7 + $0x30] sm:$0xff]
  %v10834 = vld [vmem:[%s7 + $0x38] sm:$0xff]
  %v10835 = vld [vmem:[%s7 + $0x40] sm:$0xff]
  %v10836 = vld [vmem:[%s7 + $0x48] sm:$0xff]
  %v10837 = vld [vmem:[%s7 + $0x50] sm:$0xff]
  %v10838 = vld [vmem:[%s7 + $0x58] sm:$0xff]
  %v10839 = vld [vmem:[%s7 + $0x60] sm:$0xff]
  %v10840 = vld [vmem:[%s7 + $0x68] sm:$0xff]
  %v10841 = vld [vmem:[%s7 + $0x70] sm:$0xff]
  %v10842 = vld [vmem:[%s7 + $0x78] sm:$0xff]
  %v10843 = vld [vmem:[%s7 + $0x80] sm:$0xff]
  %v10844 = vld [vmem:[%s7 + $0x88] sm:$0xff]
  %v10845 = vld [vmem:[%s7 + $0x90] sm:$0xff]
  %v10846 = vld [vmem:[%s7 + $0x98] sm:$0xff]
  %v10847 = vld [vmem:[%s7 + $0xa0] sm:$0xff]
  %v10848 = vld [vmem:[%s7 + $0xa8] sm:$0xff]
  %v10849 = vld [vmem:[%s7 + $0xb0] sm:$0xff]
  %v10850 = vld [vmem:[%s7 + $0xb8] sm:$0xff]
  %v10851 = vld [vmem:[%s7 + $0xc0] sm:$0xff]
  %v10852 = vld [vmem:[%s7 + $0xc8] sm:$0xff]
  %v10853 = vld [vmem:[%s7 + $0xd0] sm:$0xff]
  %v10854 = vld [vmem:[%s7 + $0xd8] sm:$0xff]
  %v10855 = vld [vmem:[%s7 + $0xe0] sm:$0xff]
  %v10856 = vld [vmem:[%s7 + $0xe8] sm:$0xff]
  %v10857 = vld [vmem:[%s7 + $0xf0] sm:$0xff]
  %v10858 = vld [vmem:[%s7 + $0xf8] sm:$0xff]
  %v10859 = vld [vmem:[%s7 + $0x100] sm:$0xff]
  %v10860 = vld [vmem:[%s7 + $0x108] sm:$0xff]
  %v10861 = vld [vmem:[%s7 + $0x110] sm:$0xff]
  %v10862 = vld [vmem:[%s7 + $0x118] sm:$0xff]
  %v10863 = vld [vmem:[%s7 + $0x120] sm:$0xff]
  %v10864 = vld [vmem:[%s7 + $0x128] sm:$0xff]
  %v10865 = vld [vmem:[%s7 + $0x130] sm:$0xff]
  %v10866 = vld [vmem:[%s7 + $0x138] sm:$0xff]
  %v10867 = vld [vmem:[%s7 + $0x140] sm:$0xff]
  %v10868 = vld [vmem:[%s7 + $0x148] sm:$0xff]
  %v10869 = vld [vmem:[%s7 + $0x150] sm:$0xff]
  %v10870 = vld [vmem:[%s7 + $0x158] sm:$0xff]
  %v10871 = vld [vmem:[%s7 + $0x160] sm:$0xff]
  %v10872 = vld [vmem:[%s7 + $0x168] sm:$0xff]
  %v10873 = vld [vmem:[%s7 + $0x170] sm:$0xff]
  %v10874 = vld [vmem:[%s7 + $0x178] sm:$0xff]
  %v10875 = vld [vmem:[%s8] sm:$0x3]
  %v10877 = vlaneseq
  %v10878 = vshrl.u32 %v10877, 7
  %v10879 = vsub.s32 0, %v10878
  %v10880 = vrot.slane %v10875, %v10879
  %v10881 = vlaneseq
  %v10882 = vshrl.u32 %v10881, 7
  %v10883 = vsub.s32 1, %v10882
  %v10884 = vrot.slane %v10875, %v10883
  %v10935 = vunpack.c.l.b16 %v10827
  %v10936 = vunpack.c.h.b16 %v10827
  %v10937 = vunpack.c.l.b16 %v10828
  %v10938 = vunpack.c.h.b16 %v10828
  %v10939 = vunpack.c.l.b16 %v10829
  %v10940 = vunpack.c.h.b16 %v10829
  %v10941 = vunpack.c.l.b16 %v10830
  %v10942 = vunpack.c.h.b16 %v10830
  %v10943 = vunpack.c.l.b16 %v10831
  %v10944 = vunpack.c.h.b16 %v10831
  %v10945 = vunpack.c.l.b16 %v10832
  %v10946 = vunpack.c.h.b16 %v10832
  %v10947 = vunpack.c.l.b16 %v10833
  %v10948 = vunpack.c.h.b16 %v10833
  %v10949 = vunpack.c.l.b16 %v10834
  %v10950 = vunpack.c.h.b16 %v10834
  %v10951 = vunpack.c.l.b16 %v10835
  %v10952 = vunpack.c.h.b16 %v10835
  %v10953 = vunpack.c.l.b16 %v10836
  %v10954 = vunpack.c.h.b16 %v10836
  %v10955 = vunpack.c.l.b16 %v10837
  %v10956 = vunpack.c.h.b16 %v10837
  %v10957 = vunpack.c.l.b16 %v10838
  %v10958 = vunpack.c.h.b16 %v10838
  %v10959 = vunpack.c.l.b16 %v10839
  %v10960 = vunpack.c.h.b16 %v10839
  %v10961 = vunpack.c.l.b16 %v10840
  %v10962 = vunpack.c.h.b16 %v10840
  %v10963 = vunpack.c.l.b16 %v10841
  %v10964 = vunpack.c.h.b16 %v10841
  %v10965 = vunpack.c.l.b16 %v10842
  %v10966 = vunpack.c.h.b16 %v10842
  %v10967 = vunpack.c.l.b16 %v10843
  %v10968 = vunpack.c.h.b16 %v10843
  %v10969 = vunpack.c.l.b16 %v10844
  %v10970 = vunpack.c.h.b16 %v10844
  %v10971 = vunpack.c.l.b16 %v10845
  %v10972 = vunpack.c.h.b16 %v10845
  %v10973 = vunpack.c.l.b16 %v10846
  %v10974 = vunpack.c.h.b16 %v10846
  %v10975 = vunpack.c.l.b16 %v10847
  %v10976 = vunpack.c.h.b16 %v10847
  %v10977 = vunpack.c.l.b16 %v10848
  %v10978 = vunpack.c.h.b16 %v10848
  %v10979 = vunpack.c.l.b16 %v10849
  %v10980 = vunpack.c.h.b16 %v10849
  %v10981 = vunpack.c.l.b16 %v10850
  %v10982 = vunpack.c.h.b16 %v10850
  %v10983 = vunpack.c.l.b16 %v10851
  %v10984 = vunpack.c.h.b16 %v10851
  %v10985 = vunpack.c.l.b16 %v10852
  %v10986 = vunpack.c.h.b16 %v10852
  %v10987 = vunpack.c.l.b16 %v10853
  %v10988 = vunpack.c.h.b16 %v10853
  %v10989 = vunpack.c.l.b16 %v10854
  %v10990 = vunpack.c.h.b16 %v10854
  %v10991 = vunpack.c.l.b16 %v10855
  %v10992 = vunpack.c.h.b16 %v10855
  %v10993 = vunpack.c.l.b16 %v10856
  %v10994 = vunpack.c.h.b16 %v10856
  %v10995 = vunpack.c.l.b16 %v10857
  %v10996 = vunpack.c.h.b16 %v10857
  %v10997 = vunpack.c.l.b16 %v10858
  %v10998 = vunpack.c.h.b16 %v10858
  %v10999 = vunpack.c.l.b16 %v10859
  %v11000 = vunpack.c.h.b16 %v10859
  %v11001 = vunpack.c.l.b16 %v10860
  %v11002 = vunpack.c.h.b16 %v10860
  %v11003 = vunpack.c.l.b16 %v10861
  %v11004 = vunpack.c.h.b16 %v10861
  %v11005 = vunpack.c.l.b16 %v10862
  %v11006 = vunpack.c.h.b16 %v10862
  %v11007 = vunpack.c.l.b16 %v10863
  %v11008 = vunpack.c.h.b16 %v10863
  %v11009 = vunpack.c.l.b16 %v10864
  %v11010 = vunpack.c.h.b16 %v10864
  %v11011 = vunpack.c.l.b16 %v10865
  %v11012 = vunpack.c.h.b16 %v10865
  %v11013 = vunpack.c.l.b16 %v10866
  %v11014 = vunpack.c.h.b16 %v10866
  %v11015 = vunpack.c.l.b16 %v10867
  %v11016 = vunpack.c.h.b16 %v10867
  %v11017 = vunpack.c.l.b16 %v10868
  %v11018 = vunpack.c.h.b16 %v10868
  %v11019 = vunpack.c.l.b16 %v10869
  %v11020 = vunpack.c.h.b16 %v10869
  %v11021 = vunpack.c.l.b16 %v10870
  %v11022 = vunpack.c.h.b16 %v10870
  %v11023 = vunpack.c.l.b16 %v10871
  %v11024 = vunpack.c.h.b16 %v10871
  %v11025 = vunpack.c.l.b16 %v10872
  %v11026 = vunpack.c.h.b16 %v10872
  %v11027 = vunpack.c.l.b16 %v10873
  %v11028 = vunpack.c.h.b16 %v10873
  %v11029 = vunpack.c.l.b16 %v10874
  %v11030 = vunpack.c.h.b16 %v10874
  %v11031 = vpack.c.b16 %v10937, %v10935
  %v11032 = vpack.c.b16 %v10938, %v10936
  %v11033 = vpack.c.b16 %v10941, %v10939
  %v11034 = vpack.c.b16 %v10942, %v10940
  %v11035 = vpack.c.b16 %v10945, %v10943
  %v11036 = vpack.c.b16 %v10946, %v10944
  %v11037 = vpack.c.b16 %v10949, %v10947
  %v11038 = vpack.c.b16 %v10950, %v10948
  %v11039 = vpack.c.b16 %v10953, %v10951
  %v11040 = vpack.c.b16 %v10954, %v10952
  %v11041 = vpack.c.b16 %v10957, %v10955
  %v11042 = vpack.c.b16 %v10958, %v10956
  %v11043 = vpack.c.b16 %v10961, %v10959
  %v11044 = vpack.c.b16 %v10962, %v10960
  %v11045 = vpack.c.b16 %v10965, %v10963
  %v11046 = vpack.c.b16 %v10966, %v10964
  %v11047 = vpack.c.b16 %v10969, %v10967
  %v11048 = vpack.c.b16 %v10970, %v10968
  %v11049 = vpack.c.b16 %v10973, %v10971
  %v11050 = vpack.c.b16 %v10974, %v10972
  %v11051 = vpack.c.b16 %v10977, %v10975
  %v11052 = vpack.c.b16 %v10978, %v10976
  %v11053 = vpack.c.b16 %v10981, %v10979
  %v11054 = vpack.c.b16 %v10982, %v10980
  %v11055 = vpack.c.b16 %v10985, %v10983
  %v11056 = vpack.c.b16 %v10986, %v10984
  %v11057 = vpack.c.b16 %v10989, %v10987
  %v11058 = vpack.c.b16 %v10990, %v10988
  %v11059 = vpack.c.b16 %v10993, %v10991
  %v11060 = vpack.c.b16 %v10994, %v10992
  %v11061 = vpack.c.b16 %v10997, %v10995
  %v11062 = vpack.c.b16 %v10998, %v10996
  %v11063 = vpack.c.b16 %v11001, %v10999
  %v11064 = vpack.c.b16 %v11002, %v11000
  %v11065 = vpack.c.b16 %v11005, %v11003
  %v11066 = vpack.c.b16 %v11006, %v11004
  %v11067 = vpack.c.b16 %v11009, %v11007
  %v11068 = vpack.c.b16 %v11010, %v11008
  %v11069 = vpack.c.b16 %v11013, %v11011
  %v11070 = vpack.c.b16 %v11014, %v11012
  %v11071 = vpack.c.b16 %v11017, %v11015
  %v11072 = vpack.c.b16 %v11018, %v11016
  %v11073 = vpack.c.b16 %v11021, %v11019
  %v11074 = vpack.c.b16 %v11022, %v11020
  %v11075 = vpack.c.b16 %v11025, %v11023
  %v11076 = vpack.c.b16 %v11026, %v11024
  %v11077 = vpack.c.b16 %v11029, %v11027
  %v11078 = vpack.c.b16 %v11030, %v11028
  %11127 = vmatprep.subr.bf16.mxu0 %v11032
  %11128 = vmatpush1.bf16.msra.mxu0 %v11031
  %11129 = vmatprep.subr.bf16.mxu0 %v11034
  %11130 = vmatpush1.bf16.msra.mxu0 %v11033
  %11131 = vmatprep.subr.bf16.mxu0 %v11036
  %11132 = vmatpush1.bf16.msra.mxu0 %v11035
  %11133 = vmatprep.subr.bf16.mxu0 %v11038
  %11134 = vmatpush1.bf16.msra.mxu0 %v11037
  %11135 = vmatprep.subr.bf16.mxu0 %v11040
  %11136 = vmatpush1.bf16.msra.mxu0 %v11039
  %11137 = vmatprep.subr.bf16.mxu0 %v11042
  %11138 = vmatpush1.bf16.msra.mxu0 %v11041
  %11139 = vmatprep.subr.bf16.mxu0 %v11044
  %11140 = vmatpush1.bf16.msra.mxu0 %v11043
  %11141 = vmatprep.subr.bf16.mxu0 %v11046
  %11142 = vmatpush1.bf16.msra.mxu0 %v11045
  %11143 = vmatprep.subr.bf16.mxu0 %v11048
  %11144 = vmatpush1.bf16.msra.mxu0 %v11047
  %11145 = vmatprep.subr.bf16.mxu0 %v11050
  %11146 = vmatpush1.bf16.msra.mxu0 %v11049
  %11147 = vmatprep.subr.bf16.mxu0 %v11052
  %11148 = vmatpush1.bf16.msra.mxu0 %v11051
  %11149 = vmatprep.subr.bf16.mxu0 %v11054
  %11150 = vmatpush1.bf16.msra.mxu0 %v11053
  %11151 = vmatprep.subr.bf16.mxu0 %v11056
  %11152 = vmatpush1.bf16.msra.mxu0 %v11055
  %11153 = vmatprep.subr.bf16.mxu0 %v11058
  %11154 = vmatpush1.bf16.msra.mxu0 %v11057
  %11155 = vmatprep.subr.bf16.mxu0 %v11060
  %11156 = vmatpush1.bf16.msra.mxu0 %v11059
  %11157 = vmatprep.subr.bf16.mxu0 %v11062
  %11158 = vmatpush1.bf16.msra.mxu0 %v11061
  %11159 = vmatprep.mubr.bf16.mxu0 %v10825
  %11160 = vmatmul.mubr.bf16.gmra.mrb[0].mxu0 %v10824
  %v11161 = vpop.f32.mrb[0].mxu0
  %v11162 = vadd.f32 %v10880, %v11161
  %v11163 = vpop.f32.mrb[0].mxu0
  %v11164 = vadd.f32 %v10884, %v11163
  %v11165 = vpop.f32.mrb[0].mxu0
  %v11166 = vpop.f32.mrb[0].mxu0
  %11167 = vdwg.mxu0
  %11168 = vmatprep.subr.bf16.mxu0 %v11064
  %11169 = vmatpush1.bf16.msra.mxu0 %v11063
  %11170 = vmatprep.subr.bf16.mxu0 %v11066
  %11171 = vmatpush1.bf16.msra.mxu0 %v11065
  %11172 = vmatprep.subr.bf16.mxu0 %v11068
  %11173 = vmatpush1.bf16.msra.mxu0 %v11067
  %11174 = vmatprep.subr.bf16.mxu0 %v11070
  %11175 = vmatpush1.bf16.msra.mxu0 %v11069
  %11176 = vmatprep.subr.bf16.mxu0 %v11072
  %11177 = vmatpush1.bf16.msra.mxu0 %v11071
  %11178 = vmatprep.subr.bf16.mxu0 %v11074
  %11179 = vmatpush1.bf16.msra.mxu0 %v11073
  %11180 = vmatprep.subr.bf16.mxu0 %v11076
  %11181 = vmatpush1.bf16.msra.mxu0 %v11075
  %11182 = vmatprep.subr.bf16.mxu0 %v11078
  %11183 = vmatpush1.bf16.msra.mxu0 %v11077
  %11184 = vmatprep.subr.bf16.mxu0 0
  %11185 = vmatpush1.bf16.msra.mxu0 0
  %11186 = vmatprep.subr.bf16.mxu0 0
  %11187 = vmatpush1.bf16.msra.mxu0 0
  %11188 = vmatprep.subr.bf16.mxu0 0
  %11189 = vmatpush1.bf16.msra.mxu0 0
  %11190 = vmatprep.subr.bf16.mxu0 0
  %11191 = vmatpush1.bf16.msra.mxu0 0
  %11192 = vmatprep.subr.bf16.mxu0 0
  %11193 = vmatpush1.bf16.msra.mxu0 0
  %11194 = vmatprep.subr.bf16.mxu0 0
  %11195 = vmatpush1.bf16.msra.mxu0 0
  %11196 = vmatprep.subr.bf16.mxu0 0
  %11197 = vmatpush1.bf16.msra.mxu0 0
  %11198 = vmatprep.subr.bf16.mxu0 0
  %11199 = vmatpush1.bf16.msra.mxu0 0
  %11200 = vmatprep.mubr.bf16.mxu0 0
  %11201 = vmatmul.mubr.bf16.gmra.mrb[0].mxu0 %v10826
  %v11202 = vpop.f32.mrb[0].mxu0
  %v11203 = vadd.f32 %v11162, %v11202
  %v11204 = vpop.f32.mrb[0].mxu0
  %v11205 = vadd.f32 %v11164, %v11204
  %v11206 = vpop.f32.mrb[0].mxu0
  %v11207 = vpop.f32.mrb[0].mxu0
  %11208 = vdwg.mxu0
  %v11209 = vmax.f32 %v11203, 0.0
  %v11210 = vmax.f32 %v11205, 0.0
  %v11211 = vpack.c.bf16 %v11209, %v11209
  %v11212 = vpack.c.bf16 %v11210, %v11210
  %v11213 = vld [vmem:[%s9] sm:$0xff]
  %v11214 = vld [vmem:[%s9 + $0x8] sm:$0xff]
  %v11215 = vld [vmem:[%s9 + $0x10] sm:$0xff]
  %v11216 = vld [vmem:[%s9 + $0x18] sm:$0xff]
  %v11217 = vld [vmem:[%s9 + $0x20] sm:$0xff]
  %v11218 = vld [vmem:[%s9 + $0x28] sm:$0xff]
  %v11219 = vld [vmem:[%s9 + $0x30] sm:$0xff]
  %v11220 = vld [vmem:[%s9 + $0x38] sm:$0xff]
  %v11221 = vld [vmem:[%s9 + $0x40] sm:$0xff]
  %v11222 = vld [vmem:[%s9 + $0x48] sm:$0xff]
  %v11223 = vld [vmem:[%s9 + $0x50] sm:$0xff]
  %v11224 = vld [vmem:[%s9 + $0x58] sm:$0xff]
  %v11225 = vld [vmem:[%s9 + $0x60] sm:$0xff]
  %v11226 = vld [vmem:[%s9 + $0x68] sm:$0xff]
  %v11227 = vld [vmem:[%s9 + $0x70] sm:$0xff]
  %v11228 = vld [vmem:[%s9 + $0x78] sm:$0xff]
  %v11229 = vld [vmem:[%s9 + $0x80] sm:$0xff]
  %v11230 = vld [vmem:[%s9 + $0x88] sm:$0xff]
  %v11231 = vld [vmem:[%s9 + $0x90] sm:$0xff]
  %v11232 = vld [vmem:[%s9 + $0x98] sm:$0xff]
  %v11233 = vld [vmem:[%s9 + $0xa0] sm:$0xff]
  %v11234 = vld [vmem:[%s9 + $0xa8] sm:$0xff]
  %v11235 = vld [vmem:[%s9 + $0xb0] sm:$0xff]
  %v11236 = vld [vmem:[%s9 + $0xb8] sm:$0xff]
  %v11237 = vld [vmem:[%s9 + $0xc0] sm:$0xff]
  %v11238 = vld [vmem:[%s9 + $0xc8] sm:$0xff]
  %v11239 = vld [vmem:[%s9 + $0xd0] sm:$0xff]
  %v11240 = vld [vmem:[%s9 + $0xd8] sm:$0xff]
  %v11241 = vld [vmem:[%s9 + $0xe0] sm:$0xff]
  %v11242 = vld [vmem:[%s9 + $0xe8] sm:$0xff]
  %v11243 = vld [vmem:[%s9 + $0xf0] sm:$0xff]
  %v11244 = vld [vmem:[%s9 + $0xf8] sm:$0xff]
  %v11245 = vld [vmem:[%s10] sm:$0x3]
  %v11247 = vlaneseq
  %v11248 = vshrl.u32 %v11247, 7
  %v11249 = vsub.s32 0, %v11248
  %v11250 = vrot.slane %v11245, %v11249
  %v11251 = vlaneseq
  %v11252 = vshrl.u32 %v11251, 7
  %v11253 = vsub.s32 1, %v11252
  %v11254 = vrot.slane %v11245, %v11253
  %v11289 = vunpack.c.l.b16 %v11213
  %v11290 = vunpack.c.h.b16 %v11213
  %v11291 = vunpack.c.l.b16 %v11214
  %v11292 = vunpack.c.h.b16 %v11214
  %v11293 = vunpack.c.l.b16 %v11215
  %v11294 = vunpack.c.h.b16 %v11215
  %v11295 = vunpack.c.l.b16 %v11216
  %v11296 = vunpack.c.h.b16 %v11216
  %v11297 = vunpack.c.l.b16 %v11217
  %v11298 = vunpack.c.h.b16 %v11217
  %v11299 = vunpack.c.l.b16 %v11218
  %v11300 = vunpack.c.h.b16 %v11218
  %v11301 = vunpack.c.l.b16 %v11219
  %v11302 = vunpack.c.h.b16 %v11219
  %v11303 = vunpack.c.l.b16 %v11220
  %v11304 = vunpack.c.h.b16 %v11220
  %v11305 = vunpack.c.l.b16 %v11221
  %v11306 = vunpack.c.h.b16 %v11221
  %v11307 = vunpack.c.l.b16 %v11222
  %v11308 = vunpack.c.h.b16 %v11222
  %v11309 = vunpack.c.l.b16 %v11223
  %v11310 = vunpack.c.h.b16 %v11223
  %v11311 = vunpack.c.l.b16 %v11224
  %v11312 = vunpack.c.h.b16 %v11224
  %v11313 = vunpack.c.l.b16 %v11225
  %v11314 = vunpack.c.h.b16 %v11225
  %v11315 = vunpack.c.l.b16 %v11226
  %v11316 = vunpack.c.h.b16 %v11226
  %v11317 = vunpack.c.l.b16 %v11227
  %v11318 = vunpack.c.h.b16 %v11227
  %v11319 = vunpack.c.l.b16 %v11228
  %v11320 = vunpack.c.h.b16 %v11228
  %v11321 = vunpack.c.l.b16 %v11229
  %v11322 = vunpack.c.h.b16 %v11229
  %v11323 = vunpack.c.l.b16 %v11230
  %v11324 = vunpack.c.h.b16 %v11230
  %v11325 = vunpack.c.l.b16 %v11231
  %v11326 = vunpack.c.h.b16 %v11231
  %v11327 = vunpack.c.l.b16 %v11232
  %v11328 = vunpack.c.h.b16 %v11232
  %v11329 = vunpack.c.l.b16 %v11233
  %v11330 = vunpack.c.h.b16 %v11233
  %v11331 = vunpack.c.l.b16 %v11234
  %v11332 = vunpack.c.h.b16 %v11234
  %v11333 = vunpack.c.l.b16 %v11235
  %v11334 = vunpack.c.h.b16 %v11235
  %v11335 = vunpack.c.l.b16 %v11236
  %v11336 = vunpack.c.h.b16 %v11236
  %v11337 = vunpack.c.l.b16 %v11237
  %v11338 = vunpack.c.h.b16 %v11237
  %v11339 = vunpack.c.l.b16 %v11238
  %v11340 = vunpack.c.h.b16 %v11238
  %v11341 = vunpack.c.l.b16 %v11239
  %v11342 = vunpack.c.h.b16 %v11239
  %v11343 = vunpack.c.l.b16 %v11240
  %v11344 = vunpack.c.h.b16 %v11240
  %v11345 = vunpack.c.l.b16 %v11241
  %v11346 = vunpack.c.h.b16 %v11241
  %v11347 = vunpack.c.l.b16 %v11242
  %v11348 = vunpack.c.h.b16 %v11242
  %v11349 = vunpack.c.l.b16 %v11243
  %v11350 = vunpack.c.h.b16 %v11243
  %v11351 = vunpack.c.l.b16 %v11244
  %v11352 = vunpack.c.h.b16 %v11244
  %v11353 = vpack.c.b16 %v11291, %v11289
  %v11354 = vpack.c.b16 %v11292, %v11290
  %v11355 = vpack.c.b16 %v11295, %v11293
  %v11356 = vpack.c.b16 %v11296, %v11294
  %v11357 = vpack.c.b16 %v11299, %v11297
  %v11358 = vpack.c.b16 %v11300, %v11298
  %v11359 = vpack.c.b16 %v11303, %v11301
  %v11360 = vpack.c.b16 %v11304, %v11302
  %v11361 = vpack.c.b16 %v11307, %v11305
  %v11362 = vpack.c.b16 %v11308, %v11306
  %v11363 = vpack.c.b16 %v11311, %v11309
  %v11364 = vpack.c.b16 %v11312, %v11310
  %v11365 = vpack.c.b16 %v11315, %v11313
  %v11366 = vpack.c.b16 %v11316, %v11314
  %v11367 = vpack.c.b16 %v11319, %v11317
  %v11368 = vpack.c.b16 %v11320, %v11318
  %v11369 = vpack.c.b16 %v11323, %v11321
  %v11370 = vpack.c.b16 %v11324, %v11322
  %v11371 = vpack.c.b16 %v11327, %v11325
  %v11372 = vpack.c.b16 %v11328, %v11326
  %v11373 = vpack.c.b16 %v11331, %v11329
  %v11374 = vpack.c.b16 %v11332, %v11330
  %v11375 = vpack.c.b16 %v11335, %v11333
  %v11376 = vpack.c.b16 %v11336, %v11334
  %v11377 = vpack.c.b16 %v11339, %v11337
  %v11378 = vpack.c.b16 %v11340, %v11338
  %v11379 = vpack.c.b16 %v11343, %v11341
  %v11380 = vpack.c.b16 %v11344, %v11342
  %v11381 = vpack.c.b16 %v11347, %v11345
  %v11382 = vpack.c.b16 %v11348, %v11346
  %v11383 = vpack.c.b16 %v11351, %v11349
  %v11384 = vpack.c.b16 %v11352, %v11350
  %11417 = vmatprep.subr.bf16.mxu0 %v11354
  %11418 = vmatpush1.bf16.msra.mxu0 %v11353
  %11419 = vmatprep.subr.bf16.mxu0 %v11356
  %11420 = vmatpush1.bf16.msra.mxu0 %v11355
  %11421 = vmatprep.subr.bf16.mxu0 %v11358
  %11422 = vmatpush1.bf16.msra.mxu0 %v11357
  %11423 = vmatprep.subr.bf16.mxu0 %v11360
  %11424 = vmatpush1.bf16.msra.mxu0 %v11359
  %11425 = vmatprep.subr.bf16.mxu0 %v11362
  %11426 = vmatpush1.bf16.msra.mxu0 %v11361
  %11427 = vmatprep.subr.bf16.mxu0 %v11364
  %11428 = vmatpush1.bf16.msra.mxu0 %v11363
  %11429 = vmatprep.subr.bf16.mxu0 %v11366
  %11430 = vmatpush1.bf16.msra.mxu0 %v11365
  %11431 = vmatprep.subr.bf16.mxu0 %v11368
  %11432 = vmatpush1.bf16.msra.mxu0 %v11367
  %11433 = vmatprep.subr.bf16.mxu0 %v11370
  %11434 = vmatpush1.bf16.msra.mxu0 %v11369
  %11435 = vmatprep.subr.bf16.mxu0 %v11372
  %11436 = vmatpush1.bf16.msra.mxu0 %v11371
  %11437 = vmatprep.subr.bf16.mxu0 %v11374
  %11438 = vmatpush1.bf16.msra.mxu0 %v11373
  %11439 = vmatprep.subr.bf16.mxu0 %v11376
  %11440 = vmatpush1.bf16.msra.mxu0 %v11375
  %11441 = vmatprep.subr.bf16.mxu0 %v11378
  %11442 = vmatpush1.bf16.msra.mxu0 %v11377
  %11443 = vmatprep.subr.bf16.mxu0 %v11380
  %11444 = vmatpush1.bf16.msra.mxu0 %v11379
  %11445 = vmatprep.subr.bf16.mxu0 %v11382
  %11446 = vmatpush1.bf16.msra.mxu0 %v11381
  %11447 = vmatprep.subr.bf16.mxu0 %v11384
  %11448 = vmatpush1.bf16.msra.mxu0 %v11383
  %11449 = vmatprep.mubr.bf16.mxu0 %v11212
  %11450 = vmatmul.mubr.bf16.gmra.mrb[0].mxu0 %v11211
  %v11451 = vpop.f32.mrb[0].mxu0
  %v11452 = vadd.f32 %v11250, %v11451
  %v11453 = vpop.f32.mrb[0].mxu0
  %v11454 = vadd.f32 %v11254, %v11453
  %v11455 = vpop.f32.mrb[0].mxu0
  %v11456 = vpop.f32.mrb[0].mxu0
  %11457 = vdwg.mxu0
  %v11458 = vmax.f32 %v11452, 0.0
  %v11459 = vmax.f32 %v11454, 0.0
  %v11460 = vpack.c.bf16 %v11458, %v11458
  %v11461 = vpack.c.bf16 %v11459, %v11459
  %v11462 = vld [vmem:[%s11] sm:$0xff]
  %v11463 = vld [vmem:[%s11 + $0x8] sm:$0xff]
  %v11464 = vld [vmem:[%s11 + $0x10] sm:$0xff]
  %v11465 = vld [vmem:[%s11 + $0x18] sm:$0xff]
  %v11466 = vld [vmem:[%s11 + $0x20] sm:$0xff]
  %v11467 = vld [vmem:[%s11 + $0x28] sm:$0xff]
  %v11468 = vld [vmem:[%s11 + $0x30] sm:$0xff]
  %v11469 = vld [vmem:[%s11 + $0x38] sm:$0xff]
  %v11470 = vld [vmem:[%s11 + $0x40] sm:$0xff]
  %v11471 = vld [vmem:[%s11 + $0x48] sm:$0xff]
  %v11472 = vld [vmem:[%s11 + $0x50] sm:$0xff]
  %v11473 = vld [vmem:[%s11 + $0x58] sm:$0xff]
  %v11474 = vld [vmem:[%s11 + $0x60] sm:$0xff]
  %v11475 = vld [vmem:[%s11 + $0x68] sm:$0xff]
  %v11476 = vld [vmem:[%s11 + $0x70] sm:$0xff]
  %v11477 = vld [vmem:[%s11 + $0x78] sm:$0xff]
  %v11478 = vld [vmem:[%s11 + $0x80] sm:$0xff]
  %v11479 = vld [vmem:[%s11 + $0x88] sm:$0xff]
  %v11480 = vld [vmem:[%s11 + $0x90] sm:$0xff]
  %v11481 = vld [vmem:[%s11 + $0x98] sm:$0xff]
  %v11482 = vld [vmem:[%s11 + $0xa0] sm:$0xff]
  %v11483 = vld [vmem:[%s11 + $0xa8] sm:$0xff]
  %v11484 = vld [vmem:[%s11 + $0xb0] sm:$0xff]
  %v11485 = vld [vmem:[%s11 + $0xb8] sm:$0xff]
  %v11486 = vld [vmem:[%s11 + $0xc0] sm:$0xff]
  %v11487 = vld [vmem:[%s11 + $0xc8] sm:$0xff]
  %v11488 = vld [vmem:[%s11 + $0xd0] sm:$0xff]
  %v11489 = vld [vmem:[%s11 + $0xd8] sm:$0xff]
  %v11490 = vld [vmem:[%s11 + $0xe0] sm:$0xff]
  %v11491 = vld [vmem:[%s11 + $0xe8] sm:$0xff]
  %v11492 = vld [vmem:[%s11 + $0xf0] sm:$0xff]
  %v11493 = vld [vmem:[%s11 + $0xf8] sm:$0xff]
  %v11494 = vld [vmem:[%s12] sm:$0x3]
  %v11496 = vlaneseq
  %v11497 = vshrl.u32 %v11496, 7
  %v11498 = vsub.s32 0, %v11497
  %v11499 = vrot.slane %v11494, %v11498
  %v11500 = vlaneseq
  %v11501 = vshrl.u32 %v11500, 7
  %v11502 = vsub.s32 1, %v11501
  %v11503 = vrot.slane %v11494, %v11502
  %v11538 = vunpack.c.l.b16 %v11462
  %v11539 = vunpack.c.h.b16 %v11462
  %v11540 = vunpack.c.l.b16 %v11463
  %v11541 = vunpack.c.h.b16 %v11463
  %v11542 = vunpack.c.l.b16 %v11464
  %v11543 = vunpack.c.h.b16 %v11464
  %v11544 = vunpack.c.l.b16 %v11465
  %v11545 = vunpack.c.h.b16 %v11465
  %v11546 = vunpack.c.l.b16 %v11466
  %v11547 = vunpack.c.h.b16 %v11466
  %v11548 = vunpack.c.l.b16 %v11467
  %v11549 = vunpack.c.h.b16 %v11467
  %v11550 = vunpack.c.l.b16 %v11468
  %v11551 = vunpack.c.h.b16 %v11468
  %v11552 = vunpack.c.l.b16 %v11469
  %v11553 = vunpack.c.h.b16 %v11469
  %v11554 = vunpack.c.l.b16 %v11470
  %v11555 = vunpack.c.h.b16 %v11470
  %v11556 = vunpack.c.l.b16 %v11471
  %v11557 = vunpack.c.h.b16 %v11471
  %v11558 = vunpack.c.l.b16 %v11472
  %v11559 = vunpack.c.h.b16 %v11472
  %v11560 = vunpack.c.l.b16 %v11473
  %v11561 = vunpack.c.h.b16 %v11473
  %v11562 = vunpack.c.l.b16 %v11474
  %v11563 = vunpack.c.h.b16 %v11474
  %v11564 = vunpack.c.l.b16 %v11475
  %v11565 = vunpack.c.h.b16 %v11475
  %v11566 = vunpack.c.l.b16 %v11476
  %v11567 = vunpack.c.h.b16 %v11476
  %v11568 = vunpack.c.l.b16 %v11477
  %v11569 = vunpack.c.h.b16 %v11477
  %v11570 = vunpack.c.l.b16 %v11478
  %v11571 = vunpack.c.h.b16 %v11478
  %v11572 = vunpack.c.l.b16 %v11479
  %v11573 = vunpack.c.h.b16 %v11479
  %v11574 = vunpack.c.l.b16 %v11480
  %v11575 = vunpack.c.h.b16 %v11480
  %v11576 = vunpack.c.l.b16 %v11481
  %v11577 = vunpack.c.h.b16 %v11481
  %v11578 = vunpack.c.l.b16 %v11482
  %v11579 = vunpack.c.h.b16 %v11482
  %v11580 = vunpack.c.l.b16 %v11483
  %v11581 = vunpack.c.h.b16 %v11483
  %v11582 = vunpack.c.l.b16 %v11484
  %v11583 = vunpack.c.h.b16 %v11484
  %v11584 = vunpack.c.l.b16 %v11485
  %v11585 = vunpack.c.h.b16 %v11485
  %v11586 = vunpack.c.l.b16 %v11486
  %v11587 = vunpack.c.h.b16 %v11486
  %v11588 = vunpack.c.l.b16 %v11487
  %v11589 = vunpack.c.h.b16 %v11487
  %v11590 = vunpack.c.l.b16 %v11488
  %v11591 = vunpack.c.h.b16 %v11488
  %v11592 = vunpack.c.l.b16 %v11489
  %v11593 = vunpack.c.h.b16 %v11489
  %v11594 = vunpack.c.l.b16 %v11490
  %v11595 = vunpack.c.h.b16 %v11490
  %v11596 = vunpack.c.l.b16 %v11491
  %v11597 = vunpack.c.h.b16 %v11491
  %v11598 = vunpack.c.l.b16 %v11492
  %v11599 = vunpack.c.h.b16 %v11492
  %v11600 = vunpack.c.l.b16 %v11493
  %v11601 = vunpack.c.h.b16 %v11493
  %v11602 = vpack.c.b16 %v11540, %v11538
  %v11603 = vpack.c.b16 %v11541, %v11539
  %v11604 = vpack.c.b16 %v11544, %v11542
  %v11605 = vpack.c.b16 %v11545, %v11543
  %v11606 = vpack.c.b16 %v11548, %v11546
  %v11607 = vpack.c.b16 %v11549, %v11547
  %v11608 = vpack.c.b16 %v11552, %v11550
  %v11609 = vpack.c.b16 %v11553, %v11551
  %v11610 = vpack.c.b16 %v11556, %v11554
  %v11611 = vpack.c.b16 %v11557, %v11555
  %v11612 = vpack.c.b16 %v11560, %v11558
  %v11613 = vpack.c.b16 %v11561, %v11559
  %v11614 = vpack.c.b16 %v11564, %v11562
  %v11615 = vpack.c.b16 %v11565, %v11563
  %v11616 = vpack.c.b16 %v11568, %v11566
  %v11617 = vpack.c.b16 %v11569, %v11567
  %v11618 = vpack.c.b16 %v11572, %v11570
  %v11619 = vpack.c.b16 %v11573, %v11571
  %v11620 = vpack.c.b16 %v11576, %v11574
  %v11621 = vpack.c.b16 %v11577, %v11575
  %v11622 = vpack.c.b16 %v11580, %v11578
  %v11623 = vpack.c.b16 %v11581, %v11579
  %v11624 = vpack.c.b16 %v11584, %v11582
  %v11625 = vpack.c.b16 %v11585, %v11583
  %v11626 = vpack.c.b16 %v11588, %v11586
  %v11627 = vpack.c.b16 %v11589, %v11587
  %v11628 = vpack.c.b16 %v11592, %v11590
  %v11629 = vpack.c.b16 %v11593, %v11591
  %v11630 = vpack.c.b16 %v11596, %v11594
  %v11631 = vpack.c.b16 %v11597, %v11595
  %v11632 = vpack.c.b16 %v11600, %v11598
  %v11633 = vpack.c.b16 %v11601, %v11599
  %11666 = vmatprep.subr.bf16.mxu0 %v11603
  %11667 = vmatpush1.bf16.msra.mxu0 %v11602
  %11668 = vmatprep.subr.bf16.mxu0 %v11605
  %11669 = vmatpush1.bf16.msra.mxu0 %v11604
  %11670 = vmatprep.subr.bf16.mxu0 %v11607
  %11671 = vmatpush1.bf16.msra.mxu0 %v11606
  %11672 = vmatprep.subr.bf16.mxu0 %v11609
  %11673 = vmatpush1.bf16.msra.mxu0 %v11608
  %11674 = vmatprep.subr.bf16.mxu0 %v11611
  %11675 = vmatpush1.bf16.msra.mxu0 %v11610
  %11676 = vmatprep.subr.bf16.mxu0 %v11613
  %11677 = vmatpush1.bf16.msra.mxu0 %v11612
  %11678 = vmatprep.subr.bf16.mxu0 %v11615
  %11679 = vmatpush1.bf16.msra.mxu0 %v11614
  %11680 = vmatprep.subr.bf16.mxu0 %v11617
  %11681 = vmatpush1.bf16.msra.mxu0 %v11616
  %11682 = vmatprep.subr.bf16.mxu0 %v11619
  %11683 = vmatpush1.bf16.msra.mxu0 %v11618
  %11684 = vmatprep.subr.bf16.mxu0 %v11621
  %11685 = vmatpush1.bf16.msra.mxu0 %v11620
  %11686 = vmatprep.subr.bf16.mxu0 %v11623
  %11687 = vmatpush1.bf16.msra.mxu0 %v11622
  %11688 = vmatprep.subr.bf16.mxu0 %v11625
  %11689 = vmatpush1.bf16.msra.mxu0 %v11624
  %11690 = vmatprep.subr.bf16.mxu0 %v11627
  %11691 = vmatpush1.bf16.msra.mxu0 %v11626
  %11692 = vmatprep.subr.bf16.mxu0 %v11629
  %11693 = vmatpush1.bf16.msra.mxu0 %v11628
  %11694 = vmatprep.subr.bf16.mxu0 %v11631
  %11695 = vmatpush1.bf16.msra.mxu0 %v11630
  %11696 = vmatprep.subr.bf16.mxu0 %v11633
  %11697 = vmatpush1.bf16.msra.mxu0 %v11632
  %11698 = vmatprep.mubr.bf16.mxu0 %v11461
  %11699 = vmatmul.mubr.bf16.gmra.mrb[0].mxu0 %v11460
  %v11700 = vpop.f32.mrb[0].mxu0
  %v11701 = vadd.f32 %v11499, %v11700
  %v11702 = vpop.f32.mrb[0].mxu0
  %v11703 = vadd.f32 %v11503, %v11702
  %v11704 = vpop.f32.mrb[0].mxu0
  %v11705 = vpop.f32.mrb[0].mxu0
  %11706 = vdwg.mxu0
  %v11707 = vmax.f32 %v11701, 0.0
  %v11708 = vmax.f32 %v11703, 0.0
  %v11709 = vpack.c.bf16 %v11707, %v11707
  %v11710 = vpack.c.bf16 %v11708, %v11708
  %v11711 = vld [vmem:[%s13] sm:$0xff]
  %v11712 = vld [vmem:[%s13 + $0x8] sm:$0xff]
  %v11713 = vld [vmem:[%s13 + $0x10] sm:$0xff]
  %v11714 = vld [vmem:[%s13 + $0x18] sm:$0xff]
  %v11715 = vld [vmem:[%s13 + $0x20] sm:$0xff]
  %v11716 = vld [vmem:[%s13 + $0x28] sm:$0xff]
  %v11717 = vld [vmem:[%s13 + $0x30] sm:$0xff]
  %v11718 = vld [vmem:[%s13 + $0x38] sm:$0xff]
  %v11719 = vld [vmem:[%s13 + $0x40] sm:$0xff]
  %v11720 = vld [vmem:[%s13 + $0x48] sm:$0xff]
  %v11721 = vld [vmem:[%s13 + $0x50] sm:$0xff]
  %v11722 = vld [vmem:[%s13 + $0x58] sm:$0xff]
  %v11723 = vld [vmem:[%s13 + $0x60] sm:$0xff]
  %v11724 = vld [vmem:[%s13 + $0x68] sm:$0xff]
  %v11725 = vld [vmem:[%s13 + $0x70] sm:$0xff]
  %v11726 = vld [vmem:[%s13 + $0x78] sm:$0xff]
  %v11727 = vld [vmem:[%s13 + $0x80] sm:$0xff]
  %v11728 = vld [vmem:[%s13 + $0x88] sm:$0xff]
  %v11729 = vld [vmem:[%s13 + $0x90] sm:$0xff]
  %v11730 = vld [vmem:[%s13 + $0x98] sm:$0xff]
  %v11731 = vld [vmem:[%s13 + $0xa0] sm:$0xff]
  %v11732 = vld [vmem:[%s13 + $0xa8] sm:$0xff]
  %v11733 = vld [vmem:[%s13 + $0xb0] sm:$0xff]
  %v11734 = vld [vmem:[%s13 + $0xb8] sm:$0xff]
  %v11735 = vld [vmem:[%s13 + $0xc0] sm:$0xff]
  %v11736 = vld [vmem:[%s13 + $0xc8] sm:$0xff]
  %v11737 = vld [vmem:[%s13 + $0xd0] sm:$0xff]
  %v11738 = vld [vmem:[%s13 + $0xd8] sm:$0xff]
  %v11739 = vld [vmem:[%s13 + $0xe0] sm:$0xff]
  %v11740 = vld [vmem:[%s13 + $0xe8] sm:$0xff]
  %v11741 = vld [vmem:[%s13 + $0xf0] sm:$0xff]
  %v11742 = vld [vmem:[%s13 + $0xf8] sm:$0xff]
  %v11743 = vld [vmem:[%s14] sm:$0x3]
  %v11745 = vlaneseq
  %v11746 = vshrl.u32 %v11745, 7
  %v11747 = vsub.s32 0, %v11746
  %v11748 = vrot.slane %v11743, %v11747
  %v11749 = vlaneseq
  %v11750 = vshrl.u32 %v11749, 7
  %v11751 = vsub.s32 1, %v11750
  %v11752 = vrot.slane %v11743, %v11751
  %v11787 = vunpack.c.l.b16 %v11711
  %v11788 = vunpack.c.h.b16 %v11711
  %v11789 = vunpack.c.l.b16 %v11712
  %v11790 = vunpack.c.h.b16 %v11712
  %v11791 = vunpack.c.l.b16 %v11713
  %v11792 = vunpack.c.h.b16 %v11713
  %v11793 = vunpack.c.l.b16 %v11714
  %v11794 = vunpack.c.h.b16 %v11714
  %v11795 = vunpack.c.l.b16 %v11715
  %v11796 = vunpack.c.h.b16 %v11715
  %v11797 = vunpack.c.l.b16 %v11716
  %v11798 = vunpack.c.h.b16 %v11716
  %v11799 = vunpack.c.l.b16 %v11717
  %v11800 = vunpack.c.h.b16 %v11717
  %v11801 = vunpack.c.l.b16 %v11718
  %v11802 = vunpack.c.h.b16 %v11718
  %v11803 = vunpack.c.l.b16 %v11719
  %v11804 = vunpack.c.h.b16 %v11719
  %v11805 = vunpack.c.l.b16 %v11720
  %v11806 = vunpack.c.h.b16 %v11720
  %v11807 = vunpack.c.l.b16 %v11721
  %v11808 = vunpack.c.h.b16 %v11721
  %v11809 = vunpack.c.l.b16 %v11722
  %v11810 = vunpack.c.h.b16 %v11722
  %v11811 = vunpack.c.l.b16 %v11723
  %v11812 = vunpack.c.h.b16 %v11723
  %v11813 = vunpack.c.l.b16 %v11724
  %v11814 = vunpack.c.h.b16 %v11724
  %v11815 = vunpack.c.l.b16 %v11725
  %v11816 = vunpack.c.h.b16 %v11725
  %v11817 = vunpack.c.l.b16 %v11726
  %v11818 = vunpack.c.h.b16 %v11726
  %v11819 = vunpack.c.l.b16 %v11727
  %v11820 = vunpack.c.h.b16 %v11727
  %v11821 = vunpack.c.l.b16 %v11728
  %v11822 = vunpack.c.h.b16 %v11728
  %v11823 = vunpack.c.l.b16 %v11729
  %v11824 = vunpack.c.h.b16 %v11729
  %v11825 = vunpack.c.l.b16 %v11730
  %v11826 = vunpack.c.h.b16 %v11730
  %v11827 = vunpack.c.l.b16 %v11731
  %v11828 = vunpack.c.h.b16 %v11731
  %v11829 = vunpack.c.l.b16 %v11732
  %v11830 = vunpack.c.h.b16 %v11732
  %v11831 = vunpack.c.l.b16 %v11733
  %v11832 = vunpack.c.h.b16 %v11733
  %v11833 = vunpack.c.l.b16 %v11734
  %v11834 = vunpack.c.h.b16 %v11734
  %v11835 = vunpack.c.l.b16 %v11735
  %v11836 = vunpack.c.h.b16 %v11735
  %v11837 = vunpack.c.l.b16 %v11736
  %v11838 = vunpack.c.h.b16 %v11736
  %v11839 = vunpack.c.l.b16 %v11737
  %v11840 = vunpack.c.h.b16 %v11737
  %v11841 = vunpack.c.l.b16 %v11738
  %v11842 = vunpack.c.h.b16 %v11738
  %v11843 = vunpack.c.l.b16 %v11739
  %v11844 = vunpack.c.h.b16 %v11739
  %v11845 = vunpack.c.l.b16 %v11740
  %v11846 = vunpack.c.h.b16 %v11740
  %v11847 = vunpack.c.l.b16 %v11741
  %v11848 = vunpack.c.h.b16 %v11741
  %v11849 = vunpack.c.l.b16 %v11742
  %v11850 = vunpack.c.h.b16 %v11742
  %v11851 = vpack.c.b16 %v11789, %v11787
  %v11852 = vpack.c.b16 %v11790, %v11788
  %v11853 = vpack.c.b16 %v11793, %v11791
  %v11854 = vpack.c.b16 %v11794, %v11792
  %v11855 = vpack.c.b16 %v11797, %v11795
  %v11856 = vpack.c.b16 %v11798, %v11796
  %v11857 = vpack.c.b16 %v11801, %v11799
  %v11858 = vpack.c.b16 %v11802, %v11800
  %v11859 = vpack.c.b16 %v11805, %v11803
  %v11860 = vpack.c.b16 %v11806, %v11804
  %v11861 = vpack.c.b16 %v11809, %v11807
  %v11862 = vpack.c.b16 %v11810, %v11808
  %v11863 = vpack.c.b16 %v11813, %v11811
  %v11864 = vpack.c.b16 %v11814, %v11812
  %v11865 = vpack.c.b16 %v11817, %v11815
  %v11866 = vpack.c.b16 %v11818, %v11816
  %v11867 = vpack.c.b16 %v11821, %v11819
  %v11868 = vpack.c.b16 %v11822, %v11820
  %v11869 = vpack.c.b16 %v11825, %v11823
  %v11870 = vpack.c.b16 %v11826, %v11824
  %v11871 = vpack.c.b16 %v11829, %v11827
  %v11872 = vpack.c.b16 %v11830, %v11828
  %v11873 = vpack.c.b16 %v11833, %v11831
  %v11874 = vpack.c.b16 %v11834, %v11832
  %v11875 = vpack.c.b16 %v11837, %v11835
  %v11876 = vpack.c.b16 %v11838, %v11836
  %v11877 = vpack.c.b16 %v11841, %v11839
  %v11878 = vpack.c.b16 %v11842, %v11840
  %v11879 = vpack.c.b16 %v11845, %v11843
  %v11880 = vpack.c.b16 %v11846, %v11844
  %v11881 = vpack.c.b16 %v11849, %v11847
  %v11882 = vpack.c.b16 %v11850, %v11848
  %11915 = vmatprep.subr.bf16.mxu0 %v11852
  %11916 = vmatpush1.bf16.msra.mxu0 %v11851
  %11917 = vmatprep.subr.bf16.mxu0 %v11854
  %11918 = vmatpush1.bf16.msra.mxu0 %v11853
  %11919 = vmatprep.subr.bf16.mxu0 %v11856
  %11920 = vmatpush1.bf16.msra.mxu0 %v11855
  %11921 = vmatprep.subr.bf16.mxu0 %v11858
  %11922 = vmatpush1.bf16.msra.mxu0 %v11857
  %11923 = vmatprep.subr.bf16.mxu0 %v11860
  %11924 = vmatpush1.bf16.msra.mxu0 %v11859
  %11925 = vmatprep.subr.bf16.mxu0 %v11862
  %11926 = vmatpush1.bf16.msra.mxu0 %v11861
  %11927 = vmatprep.subr.bf16.mxu0 %v11864
  %11928 = vmatpush1.bf16.msra.mxu0 %v11863
  %11929 = vmatprep.subr.bf16.mxu0 %v11866
  %11930 = vmatpush1.bf16.msra.mxu0 %v11865
  %11931 = vmatprep.subr.bf16.mxu0 %v11868
  %11932 = vmatpush1.bf16.msra.mxu0 %v11867
  %11933 = vmatprep.subr.bf16.mxu0 %v11870
  %11934 = vmatpush1.bf16.msra.mxu0 %v11869
  %11935 = vmatprep.subr.bf16.mxu0 %v11872
  %11936 = vmatpush1.bf16.msra.mxu0 %v11871
  %11937 = vmatprep.subr.bf16.mxu0 %v11874
  %11938 = vmatpush1.bf16.msra.mxu0 %v11873
  %11939 = vmatprep.subr.bf16.mxu0 %v11876
  %11940 = vmatpush1.bf16.msra.mxu0 %v11875
  %11941 = vmatprep.subr.bf16.mxu0 %v11878
  %11942 = vmatpush1.bf16.msra.mxu0 %v11877
  %11943 = vmatprep.subr.bf16.mxu0 %v11880
  %11944 = vmatpush1.bf16.msra.mxu0 %v11879
  %11945 = vmatprep.subr.bf16.mxu0 %v11882
  %11946 = vmatpush1.bf16.msra.mxu0 %v11881
  %11947 = vmatprep.mubr.bf16.mxu0 %v11710
  %11948 = vmatmul.mubr.bf16.gmra.mrb[0].mxu0 %v11709
  %v11949 = vpop.f32.mrb[0].mxu0
  %v11950 = vadd.f32 %v11748, %v11949
  %v11951 = vpop.f32.mrb[0].mxu0
  %v11952 = vadd.f32 %v11752, %v11951
  %v11953 = vpop.f32.mrb[0].mxu0
  %v11954 = vpop.f32.mrb[0].mxu0
  %11955 = vdwg.mxu0
  %v11956 = vmax.f32 %v11950, 0.0
  %v11957 = vmax.f32 %v11952, 0.0
  %v11958 = vpack.c.bf16 %v11956, %v11956
  %v11959 = vpack.c.bf16 %v11957, %v11957
  %v11960 = vld [vmem:[%s15] sm:$0xf]
  %v11961 = vld [vmem:[%s15 + $0x4] sm:$0xf]
  %v11962 = vld [vmem:[%s15 + $0x8] sm:$0xf]
  %v11963 = vld [vmem:[%s15 + $0xc] sm:$0xf]
  %v11964 = vld [vmem:[%s15 + $0x10] sm:$0xf]
  %v11965 = vld [vmem:[%s15 + $0x14] sm:$0xf]
  %v11966 = vld [vmem:[%s15 + $0x18] sm:$0xf]
  %v11967 = vld [vmem:[%s15 + $0x1c] sm:$0xf]
  %v11968 = vld [vmem:[%s15 + $0x20] sm:$0xf]
  %v11969 = vld [vmem:[%s15 + $0x24] sm:$0xf]
  %v11970 = vld [vmem:[%s15 + $0x28] sm:$0xf]
  %v11971 = vld [vmem:[%s15 + $0x2c] sm:$0xf]
  %v11972 = vld [vmem:[%s15 + $0x30] sm:$0xf]
  %v11973 = vld [vmem:[%s15 + $0x34] sm:$0xf]
  %v11974 = vld [vmem:[%s15 + $0x38] sm:$0xf]
  %v11975 = vld [vmem:[%s15 + $0x3c] sm:$0xf]
  %v11976 = vld [vmem:[%s15 + $0x40] sm:$0xf]
  %v11977 = vld [vmem:[%s15 + $0x44] sm:$0xf]
  %v11978 = vld [vmem:[%s15 + $0x48] sm:$0xf]
  %v11979 = vld [vmem:[%s15 + $0x4c] sm:$0xf]
  %v11980 = vld [vmem:[%s15 + $0x50] sm:$0xf]
  %v11981 = vld [vmem:[%s15 + $0x54] sm:$0xf]
  %v11982 = vld [vmem:[%s15 + $0x58] sm:$0xf]
  %v11983 = vld [vmem:[%s15 + $0x5c] sm:$0xf]
  %v11984 = vld [vmem:[%s15 + $0x60] sm:$0xf]
  %v11985 = vld [vmem:[%s15 + $0x64] sm:$0xf]
  %v11986 = vld [vmem:[%s15 + $0x68] sm:$0xf]
  %v11987 = vld [vmem:[%s15 + $0x6c] sm:$0xf]
  %v11988 = vld [vmem:[%s15 + $0x70] sm:$0xf]
  %v11989 = vld [vmem:[%s15 + $0x74] sm:$0xf]
  %v11990 = vld [vmem:[%s15 + $0x78] sm:$0xf]
  %v11991 = vld [vmem:[%s15 + $0x7c] sm:$0xf]
  %v11992 = vld [vmem:[%s16] sm:$0x1]
  %v11994 = vlaneseq
  %v11995 = vshrl.u32 %v11994, 7
  %v11996 = vsub.s32 0, %v11995
  %v11997 = vrot.slane %v11992, %v11996
  %v12031 = vunpack.c.l.b16 %v11960
  %v12032 = vunpack.c.l.b16 %v11961
  %v12033 = vunpack.c.l.b16 %v11962
  %v12034 = vunpack.c.l.b16 %v11963
  %v12035 = vunpack.c.l.b16 %v11964
  %v12036 = vunpack.c.l.b16 %v11965
  %v12037 = vunpack.c.l.b16 %v11966
  %v12038 = vunpack.c.l.b16 %v11967
  %v12039 = vunpack.c.l.b16 %v11968
  %v12040 = vunpack.c.l.b16 %v11969
  %v12041 = vunpack.c.l.b16 %v11970
  %v12042 = vunpack.c.l.b16 %v11971
  %v12043 = vunpack.c.l.b16 %v11972
  %v12044 = vunpack.c.l.b16 %v11973
  %v12045 = vunpack.c.l.b16 %v11974
  %v12046 = vunpack.c.l.b16 %v11975
  %v12047 = vunpack.c.l.b16 %v11976
  %v12048 = vunpack.c.l.b16 %v11977
  %v12049 = vunpack.c.l.b16 %v11978
  %v12050 = vunpack.c.l.b16 %v11979
  %v12051 = vunpack.c.l.b16 %v11980
  %v12052 = vunpack.c.l.b16 %v11981
  %v12053 = vunpack.c.l.b16 %v11982
  %v12054 = vunpack.c.l.b16 %v11983
  %v12055 = vunpack.c.l.b16 %v11984
  %v12056 = vunpack.c.l.b16 %v11985
  %v12057 = vunpack.c.l.b16 %v11986
  %v12058 = vunpack.c.l.b16 %v11987
  %v12059 = vunpack.c.l.b16 %v11988
  %v12060 = vunpack.c.l.b16 %v11989
  %v12061 = vunpack.c.l.b16 %v11990
  %v12062 = vunpack.c.l.b16 %v11991
  %v12063 = vpack.c.b16 %v12032, %v12031
  %v12064 = vpack.c.b16 %v12034, %v12033
  %v12065 = vpack.c.b16 %v12036, %v12035
  %v12066 = vpack.c.b16 %v12038, %v12037
  %v12067 = vpack.c.b16 %v12040, %v12039
  %v12068 = vpack.c.b16 %v12042, %v12041
  %v12069 = vpack.c.b16 %v12044, %v12043
  %v12070 = vpack.c.b16 %v12046, %v12045
  %v12071 = vpack.c.b16 %v12048, %v12047
  %v12072 = vpack.c.b16 %v12050, %v12049
  %v12073 = vpack.c.b16 %v12052, %v12051
  %v12074 = vpack.c.b16 %v12054, %v12053
  %v12075 = vpack.c.b16 %v12056, %v12055
  %v12076 = vpack.c.b16 %v12058, %v12057
  %v12077 = vpack.c.b16 %v12060, %v12059
  %v12078 = vpack.c.b16 %v12062, %v12061
  %12095 = vmatprep.subr.bf16.mxu0 0
  %12096 = vmatpush1.bf16.msra.mxu0 %v12063
  %12097 = vmatprep.subr.bf16.mxu0 0
  %12098 = vmatpush1.bf16.msra.mxu0 %v12064
  %12099 = vmatprep.subr.bf16.mxu0 0
  %12100 = vmatpush1.bf16.msra.mxu0 %v12065
  %12101 = vmatprep.subr.bf16.mxu0 0
  %12102 = vmatpush1.bf16.msra.mxu0 %v12066
  %12103 = vmatprep.subr.bf16.mxu0 0
  %12104 = vmatpush1.bf16.msra.mxu0 %v12067
  %12105 = vmatprep.subr.bf16.mxu0 0
  %12106 = vmatpush1.bf16.msra.mxu0 %v12068
  %12107 = vmatprep.subr.bf16.mxu0 0
  %12108 = vmatpush1.bf16.msra.mxu0 %v12069
  %12109 = vmatprep.subr.bf16.mxu0 0
  %12110 = vmatpush1.bf16.msra.mxu0 %v12070
  %12111 = vmatprep.subr.bf16.mxu0 0
  %12112 = vmatpush1.bf16.msra.mxu0 %v12071
  %12113 = vmatprep.subr.bf16.mxu0 0
  %12114 = vmatpush1.bf16.msra.mxu0 %v12072
  %12115 = vmatprep.subr.bf16.mxu0 0
  %12116 = vmatpush1.bf16.msra.mxu0 %v12073
  %12117 = vmatprep.subr.bf16.mxu0 0
  %12118 = vmatpush1.bf16.msra.mxu0 %v12074
  %12119 = vmatprep.subr.bf16.mxu0 0
  %12120 = vmatpush1.bf16.msra.mxu0 %v12075
  %12121 = vmatprep.subr.bf16.mxu0 0
  %12122 = vmatpush1.bf16.msra.mxu0 %v12076
  %12123 = vmatprep.subr.bf16.mxu0 0
  %12124 = vmatpush1.bf16.msra.mxu0 %v12077
  %12125 = vmatprep.subr.bf16.mxu0 0
  %12126 = vmatpush1.bf16.msra.mxu0 %v12078
  %12127 = vmatprep.mubr.bf16.mxu0 %v11959
  %12128 = vmatmul.mubr.bf16.gmra.mrb[0].mxu0 %v11958
  %v12129 = vpop.f32.mrb[0].mxu0
  %v12130 = vadd.f32 %v11997, %v12129
  %v12131 = vpop.f32.mrb[0].mxu0
  %v12132 = vpop.f32.mrb[0].mxu0
  %v12133 = vpop.f32.mrb[0].mxu0
  %12134 = vdwg.mxu0
  %12135 = vst [vmem:[%s17] sm:$0xff] %v12130
  // Predicated region
  $region70: #{net_forward.1} parent=0 // pred_check
    _
  $region71: #{net_forward.1} parent=0 // pred_check_branch
    %12137 = sbr.rel (0) target = $region73
  $region72: #{net_forward.1} parent=0 // pred_region
    _
  $region73: #{net_forward.1} parent=0 // pred_fallthru
    _
  // Predicated region
  $region74: #{net_forward.1} parent=0 // pred_check
    _
  $region75: #{net_forward.1} parent=0 // pred_check_branch
    %12139 = sbr.rel (0) target = $region77
  $region76: #{net_forward.1} parent=0 // pred_region
    _
  $region77: #{net_forward.1} parent=0 // pred_fallthru
    _

</llo_original>
